<compile_context>
chip_gen: v5e
topology: v5e:2x2
jax: 0.10.0
libtpu: 0.0.40
codegen_flags: <defaults>
</compile_context>

<pallas_src>
import functools

import jax
import jax.numpy as jnp
from jax import lax
from jax.experimental import pallas as pl
from jax.experimental.pallas import tpu as pltpu

_PADL = 128  # zero guard band (lanes) in front of / behind each image group


# ---------------- encoder: fused conv3x3 + relu + GAP (one kernel) ------------

def _encoder_kernel(x_ref, w_ref, b_ref, f_ref, *, group, H, W, Dp):
    # x_ref: [1, C_pad, 2*_PADL + group*H*W]  channels on sublanes, pixels on lanes
    # w_ref: [Dp, 9*C_pad]                    conv weights, (di,dj)-major / chan-minor
    # b_ref: [Dp, 1]                          bias (zero for padded output channels)
    # f_ref: [group, Dp]                      pooled features (padded channels zero)
    HW = H * W
    GHW = group * HW
    inv_hw = 1.0 / float(HW)

    x = x_ref[0]                 # [C_pad, L]
    w2 = w_ref[...]
    bias = b_ref[...]

    # Boundary masks: images are packed back-to-back along lanes, so taps that
    # read outside an image's rows/cols must be zeroed (VPU, computed once).
    lane = lax.broadcasted_iota(jnp.int32, (1, GHW), 1)
    p_img = lane % HW            # pixel index within its image
    col = lane % W               # column within the row
    m_top = (p_img >= W).astype(jnp.float32)       # tap reads row-1
    m_bot = (p_img < HW - W).astype(jnp.float32)   # tap reads row+1
    m_lft = (col > 0).astype(jnp.float32)          # tap reads col-1
    m_rgt = (col < W - 1).astype(jnp.float32)      # tap reads col+1

    parts = []
    for di in range(3):
        for dj in range(3):
            r = (di - 1) * W + (dj - 1)
            s = x[:, _PADL + r:_PADL + r + GHW]    # [C_pad, GHW] lane-shifted tap
            m = None
            if di == 0:
                m = m_top
            elif di == 2:
                m = m_bot
            if dj == 0:
                m = m_lft if m is None else m * m_lft
            elif dj == 2:
                m = m_rgt if m is None else m * m_rgt
            if m is not None:
                s = s * m
            parts.append(s)
    # Full 8-sublane slabs -> concat lands exactly on (8,128) tile boundaries.
    rhs = jnp.concatenate(parts, axis=0)           # [9*C_pad, GHW]

    # ONE group-batched GEMM for the whole grid step (was 16 tiny matmuls).
    h = jnp.dot(w2, rhs, preferred_element_type=jnp.float32)   # [Dp, GHW]
    h = jnp.maximum(h + bias, 0.0)

    # Global average pool: VPU halving fold, then per-image XLU lane reduce;
    # rows assembled and stored as ONE dense [group, Dp] tile.
    rows = []
    for g in range(group):
        blk = h[:, g * HW:(g + 1) * HW]            # lane-tile aligned slice
        if HW % 2 == 0:
            blk = blk[:, :HW // 2] + blk[:, HW // 2:]
        rows.append(jnp.sum(blk, axis=1)[None, :])  # [1, Dp]
    f_ref[...] = jnp.concatenate(rows, axis=0) * inv_hw


def _pick_group(n):
    """Images per grid step: >=4 steps on dual-TC chips, fewer on single-TC."""
    try:
        kind = jax.devices()[0].device_kind.lower()
    except Exception:
        kind = ""
    prefs = (8, 16, 32) if "v7" in kind else (16, 32, 8)
    for g in prefs:
        if n % g == 0:
            return g
    return n                      # fall back to a single full-batch step


def encode(x, conv_w, conv_b, *, d_pad=128):
    # x: [N, C, H, W] -> pooled features [N, Dp] (channels >= Cout are zero).
    N, C, H, W = x.shape
    Cout = conv_w.shape[0]
    HW = H * W
    Dp = max(d_pad, ((Cout + 127) // 128) * 128)   # lane-dense feature width
    C_pad = ((C + 7) // 8) * 8                     # full-sublane channel slabs
    group = _pick_group(N)
    n_grp = N // group
    GHW = group * HW
    L = GHW + 2 * _PADL

    # [n_grp, C_pad, L]: each group's images concatenated along lanes with a
    # zero guard band of _PADL lanes on each side for the 3x3 tap shifts.
    xf = x.reshape(N, C, HW).astype(jnp.float32)
    xf = jnp.pad(xf, ((0, 0), (0, C_pad - C), (0, 0)))
    xf = xf.reshape(n_grp, group, C_pad, HW).transpose(0, 2, 1, 3)
    xf = xf.reshape(n_grp, C_pad, GHW)
    xf = jnp.pad(xf, ((0, 0), (0, 0), (_PADL, _PADL)))

    # Weights as [Dp, (di,dj,c)] with channels padded to C_pad, out chans to Dp.
    w2 = conv_w.transpose(0, 2, 3, 1).astype(jnp.float32)      # [Cout, 3, 3, C]
    w2 = jnp.pad(w2, ((0, Dp - Cout), (0, 0), (0, 0), (0, C_pad - C)))
    w2 = w2.reshape(Dp, 9 * C_pad)
    b2 = jnp.pad(conv_b.astype(jnp.float32).reshape(Cout, 1),
                 ((0, Dp - Cout), (0, 0)))

    kernel = functools.partial(_encoder_kernel, group=group, H=H, W=W, Dp=Dp)
    return pl.pallas_call(
        kernel,
        out_shape=jax.ShapeDtypeStruct((N, Dp), jnp.float32),
        grid_spec=pltpu.PrefetchScalarGridSpec(
            num_scalar_prefetch=0,
            grid=(n_grp,),
            in_specs=[
                pl.BlockSpec((1, C_pad, L), lambda n: (n, 0, 0)),
                pl.BlockSpec((Dp, 9 * C_pad), lambda n: (0, 0)),
                pl.BlockSpec((Dp, 1), lambda n: (0, 0)),
            ],
            out_specs=pl.BlockSpec((group, Dp), lambda n: (n, 0)),
        ),
        compiler_params=pltpu.CompilerParams(
            dimension_semantics=("parallel",)),   # image groups are independent
    )(xf, w2, b2)


# ------------- metric / logits / softmax: one batched invocation --------------

def _metric_kernel(xs_ref, xq_ref, xd_ref, out_ref, *, temp, lanes):
    xs = xs_ref[...]                     # [B, way, shot, Dp]
    xq = xq_ref[...]                     # [B, Q, Dp]
    xd = xd_ref[...]                     # [B, Nd, Dp]
    B, way, _, _ = xs.shape
    Q = xq.shape[1]
    Nd = xd.shape[1]

    proto = jnp.mean(xs, axis=2)         # mean over shots -> [B, way, Dp]

    def l2n(v):                          # F.normalize(dim=-1), eps=1e-12
        ss = jnp.sum(v * v, axis=-1, keepdims=True)
        return v * lax.rsqrt(jnp.maximum(ss, 1e-24))   # rsqrt -> EUP slot

    proto = l2n(proto)
    xq = l2n(xq)
    xd = l2n(xd)

    # ONE fused MXU pass for the three dot-product metrics:
    #   gram = [xq; proto] @ [xd; proto]^T per episode.
    lhs = jnp.concatenate([xq, proto], axis=1)     # [B, Q+way, Dp]
    rhs = jnp.concatenate([xd, proto], axis=1)     # [B, Nd+way, Dp]
    gram = jnp.einsum('bmd,bnd->bmn', lhs, rhs,
                      preferred_element_type=jnp.float32)  # [B, Q+way, Nd+way]
    lq = gram[:, :Q, :Nd]                # xq . xd     [B, Q, Nd]
    ls = gram[:, Q:, :Nd]                # proto . xd  [B, way, Nd]
    logits = gram[:, :Q, Nd:] * temp     # xq . proto  [B, Q, way]

    # TODO(synk): exact semantics of the custom 'delete' / 'add' metrics in
    # utils.compute_logits are not public; modeled as difference / sum reduced
    # over the trailing axis, scaled by temp.
    demo = (jnp.sum(lq, axis=-1, keepdims=True)
            - jnp.sum(ls, axis=-1)[:, None, :]) * temp      # [B, Q, way]
    add = (jnp.sum(xq, axis=-1, keepdims=True)
           + jnp.sum(proto, axis=-1)[:, None, :]) * temp    # [B, Q, way]

    def softmax_q(a):                    # F.softmax(dim=1) over the query axis
        m = jnp.max(a, axis=1, keepdims=True)
        e = jnp.exp(a - m)
        return (e / jnp.sum(e, axis=1, keepdims=True)) * temp

    # Pack the three tiny results into one lane-dense output slab.
    pad = jnp.zeros((B, Q, lanes - 3 * way), jnp.float32)
    out_ref[...] = jnp.concatenate(
        [softmax_q(logits), softmax_q(demo), softmax_q(add), pad], axis=-1)


def metric_logits(f_shot, f_query, x_data, *, temp):
    B, n_way, _, _ = f_shot.shape
    Q = f_query.shape[1]
    lanes = 128
    assert 3 * n_way <= lanes
    kernel = functools.partial(_metric_kernel, temp=float(temp), lanes=lanes)
    # Single invocation (no grid): the entire episode batch is a few vregs.
    packed = pl.pallas_call(
        kernel,
        out_shape=jax.ShapeDtypeStruct((B, Q, lanes), jnp.float32),
    )(f_shot.astype(jnp.float32), f_query.astype(jnp.float32),
      x_data.astype(jnp.float32))
    return (packed[..., :n_way],
            packed[..., n_way:2 * n_way],
            packed[..., 2 * n_way:3 * n_way])


# ------------------------------- full forward --------------------------------

def meta_baseline_forward(x_shot, x_query, x_data, conv_w, conv_b, *, temp=10.0):
    shot_shape = x_shot.shape[:-3]
    query_shape = x_query.shape[:-3]
    img_shape = x_shot.shape[-3:]
    xs_flat = x_shot.reshape((-1,) + img_shape)
    xq_flat = x_query.reshape((-1,) + img_shape)
    x_tot = jnp.concatenate([xs_flat, xq_flat], axis=0)
    feats = encode(x_tot, conv_w, conv_b)                 # [N_tot, Dp] (padded)
    Dp = feats.shape[-1]
    n_s = xs_flat.shape[0]
    f_shot = feats[:n_s].reshape(shot_shape + (Dp,))      # [B, way, shot, Dp]
    f_query = feats[n_s:].reshape(query_shape + (Dp,))    # [B, Q, Dp]
    d = x_data.shape[-1]
    x_data_p = jnp.pad(x_data.astype(jnp.float32),
                       ((0, 0), (0, 0), (0, Dp - d)))     # zero-pad feature dim
    logits, logits_demo, logits_add = metric_logits(
        f_shot, f_query, x_data_p, temp=temp)
    # forward() returns (logits, x, logits_add) with x = logits_demo
    return logits, logits_demo, logits_add


# ---------------------------- pure-JAX reference -----------------------------

def reference_forward(x_shot, x_query, x_data, conv_w, conv_b, temp):
    shot_shape = x_shot.shape[:-3]
    query_shape = x_query.shape[:-3]
    img_shape = x_shot.shape[-3:]
    xs = x_shot.reshape((-1,) + img_shape)
    xq = x_query.reshape((-1,) + img_shape)
    x_tot = jnp.concatenate([xs, xq], axis=0)
    h = lax.conv_general_dilated(x_tot, conv_w, (1, 1), 'SAME',
                                 dimension_numbers=('NCHW', 'OIHW', 'NCHW'))
    h = jnp.maximum(h + conv_b[None, :, None, None], 0.0)
    feats = jnp.mean(h, axis=(2, 3))
    f_shot = feats[:xs.shape[0]].reshape(shot_shape + (-1,))
    f_query = feats[xs.shape[0]:].reshape(query_shape + (-1,))
    proto = jnp.mean(f_shot, axis=-2)

    def l2n(v):
        return v / jnp.maximum(jnp.linalg.norm(v, axis=-1, keepdims=True), 1e-12)

    proto, f_query, xd = l2n(proto), l2n(f_query), l2n(x_data)
    lq = jnp.einsum('bqd,bnd->bqn', f_query, xd)
    ls = jnp.einsum('bwd,bnd->bwn', proto, xd)
    logits = jnp.einsum('bqd,bwd->bqw', f_query, proto) * temp
    demo = (lq.sum(-1)[:, :, None] - ls.sum(-1)[:, None, :]) * temp
    add = (f_query.sum(-1)[:, :, None] + proto.sum(-1)[:, None, :]) * temp
    sm = lambda a: jax.nn.softmax(a, axis=1) * temp
    return sm(logits), sm(demo), sm(add)


# ------------------------------------ main ------------------------------------

if __name__ == "__main__":
    key = jax.random.PRNGKey(0)
    kcw, kcb, kfw, kfb, ks, kq, kd = jax.random.split(key, 7)

    B, n_way, n_shot, n_query = 2, 4, 2, 8
    C, H, W = 4, 16, 16
    D = 32            # encoder feature dim (conv out channels)
    n_data = 8
    temp = 10.0       # nn.Parameter init value

    conv_w = 0.1 * jax.random.normal(kcw, (D, C, 3, 3), dtype=jnp.float32)
    conv_b = 0.1 * jax.random.normal(kcb, (D,), dtype=jnp.float32)
    # fc / dropout exist in the module but are never used in forward()
    fc_w = 0.1 * jax.random.normal(kfw, (5, 10), dtype=jnp.float32)
    fc_b = jnp.zeros((5,), dtype=jnp.float32)

    x_shot = jax.random.normal(ks, (B, n_way, n_shot, C, H, W), dtype=jnp.float32)
    x_query = jax.random.normal(kq, (B, n_query, C, H, W), dtype=jnp.float32)
    x_data = jax.random.normal(kd, (B, n_data, D), dtype=jnp.float32)

    fwd = jax.jit(functools.partial(meta_baseline_forward, temp=temp))
    logits, x, logits_add = fwd(x_shot, x_query, x_data, conv_w, conv_b)
    jax.block_until_ready((logits, x, logits_add))

    ref = reference_forward(x_shot, x_query, x_data, conv_w, conv_b, temp)
    for got, want in zip((logits, x, logits_add), ref):
        assert got.shape == want.shape, (got.shape, want.shape)
        assert jnp.allclose(got, want, rtol=2e-2, atol=2e-2), \
            float(jnp.max(jnp.abs(got - want)))

    print("KERNEL_OK")
</pallas_src>

<mosaic_0001>
module attributes {stable_mosaic.version = 11 : i64} {
  func.func @_encoder_kernel(%arg0: i32, %arg1: memref<1x8x4352xf32, #tpu.memory_space<vmem>>, %arg2: memref<128x72xf32, #tpu.memory_space<vmem>>, %arg3: memref<128x1xf32, #tpu.memory_space<vmem>>, %arg4: memref<16x128xf32, #tpu.memory_space<vmem>>) attributes {dimension_semantics = [#tpu.dimension_semantics<parallel>], iteration_bounds = array<i64: 2>, scalar_prefetch = 0 : i64, scratch_operands = 0 : i64, tpu.core_type = #tpu.core_type<tc>, window_params = [{transform_indices = @transform_0, window_bounds = array<i64: 1, 8, 4352>}, {pipeline_mode = #tpu.pipeline_mode<synchronous>, transform_indices = @transform_1, window_bounds = array<i64: 128, 72>}, {pipeline_mode = #tpu.pipeline_mode<synchronous>, transform_indices = @transform_2, window_bounds = array<i64: 128, 1>}, {transform_indices = @transform_3, window_bounds = array<i64: 16, 128>}]} {
    %c0 = arith.constant 0 : index
    %c0_0 = arith.constant 0 : index
    %c0_1 = arith.constant 0 : index
    %0 = vector.load %arg1[%c0, %c0_0, %c0_1] : memref<1x8x4352xf32, #tpu.memory_space<vmem>>, vector<1x8x4352xf32>
    %1 = vector.shape_cast %0 : vector<1x8x4352xf32> to vector<8x4352xf32>
    %c0_2 = arith.constant 0 : index
    %c0_3 = arith.constant 0 : index
    %2 = vector.load %arg2[%c0_2, %c0_3] : memref<128x72xf32, #tpu.memory_space<vmem>>, vector<128x72xf32>
    %c0_4 = arith.constant 0 : index
    %c0_5 = arith.constant 0 : index
    %3 = vector.load %arg3[%c0_4, %c0_5] : memref<128x1xf32, #tpu.memory_space<vmem>>, vector<128x1xf32>
    %4 = tpu.iota {dimensions = array<i32: 1>} : vector<1x4096xi32>
    %c256_i32 = arith.constant 256 : i32
    %c0_i32 = arith.constant 0 : i32
    %5 = arith.cmpi eq, %c256_i32, %c0_i32 : i32
    %c1_i32 = arith.constant 1 : i32
    %6 = arith.select %5, %c1_i32, %c256_i32 : i32
    %7 = vector.broadcast %6 : i32 to vector<1x4096xi32>
    %8 = arith.remsi %4, %7 : vector<1x4096xi32>
    %c0_i32_6 = arith.constant 0 : i32
    %9 = vector.broadcast %c0_i32_6 : i32 to vector<1x4096xi32>
    %10 = arith.cmpi ne, %8, %9 : vector<1x4096xi32>
    %c0_i32_7 = arith.constant 0 : i32
    %11 = vector.broadcast %c0_i32_7 : i32 to vector<1x4096xi32>
    %12 = arith.cmpi slt, %8, %11 : vector<1x4096xi32>
    %c0_i32_8 = arith.constant 0 : i32
    %13 = arith.cmpi slt, %6, %c0_i32_8 : i32
    %14 = vector.broadcast %13 : i1 to vector<1x4096xi1>
    %15 = vector.broadcast %14 : vector<1x4096xi1> to vector<1x4096xi1>
    %16 = arith.xori %12, %15 : vector<1x4096xi1>
    %17 = arith.andi %16, %10 : vector<1x4096xi1>
    %18 = vector.broadcast %6 : i32 to vector<1x4096xi32>
    %19 = arith.addi %8, %18 : vector<1x4096xi32>
    %20 = arith.select %17, %19, %8 : vector<1x4096xi1>, vector<1x4096xi32>
    %c16_i32 = arith.constant 16 : i32
    %c0_i32_9 = arith.constant 0 : i32
    %21 = arith.cmpi eq, %c16_i32, %c0_i32_9 : i32
    %c1_i32_10 = arith.constant 1 : i32
    %22 = arith.select %21, %c1_i32_10, %c16_i32 : i32
    %23 = vector.broadcast %22 : i32 to vector<1x4096xi32>
    %24 = arith.remsi %4, %23 : vector<1x4096xi32>
    %c0_i32_11 = arith.constant 0 : i32
    %25 = vector.broadcast %c0_i32_11 : i32 to vector<1x4096xi32>
    %26 = arith.cmpi ne, %24, %25 : vector<1x4096xi32>
    %c0_i32_12 = arith.constant 0 : i32
    %27 = vector.broadcast %c0_i32_12 : i32 to vector<1x4096xi32>
    %28 = arith.cmpi slt, %24, %27 : vector<1x4096xi32>
    %c0_i32_13 = arith.constant 0 : i32
    %29 = arith.cmpi slt, %22, %c0_i32_13 : i32
    %30 = vector.broadcast %29 : i1 to vector<1x4096xi1>
    %31 = vector.broadcast %30 : vector<1x4096xi1> to vector<1x4096xi1>
    %32 = arith.xori %28, %31 : vector<1x4096xi1>
    %33 = arith.andi %32, %26 : vector<1x4096xi1>
    %34 = vector.broadcast %22 : i32 to vector<1x4096xi32>
    %35 = arith.addi %24, %34 : vector<1x4096xi32>
    %36 = arith.select %33, %35, %24 : vector<1x4096xi1>, vector<1x4096xi32>
    %c16_i32_14 = arith.constant 16 : i32
    %37 = vector.broadcast %c16_i32_14 : i32 to vector<1x4096xi32>
    %38 = arith.cmpi sge, %20, %37 : vector<1x4096xi32>
    %39 = arith.extui %38 : vector<1x4096xi1> to vector<1x4096xi32>
    %40 = arith.sitofp %39 : vector<1x4096xi32> to vector<1x4096xf32>
    %c240_i32 = arith.constant 240 : i32
    %41 = vector.broadcast %c240_i32 : i32 to vector<1x4096xi32>
    %42 = arith.cmpi slt, %20, %41 : vector<1x4096xi32>
    %43 = arith.extui %42 : vector<1x4096xi1> to vector<1x4096xi32>
    %44 = arith.sitofp %43 : vector<1x4096xi32> to vector<1x4096xf32>
    %c0_i32_15 = arith.constant 0 : i32
    %45 = vector.broadcast %c0_i32_15 : i32 to vector<1x4096xi32>
    %46 = arith.cmpi sgt, %36, %45 : vector<1x4096xi32>
    %47 = arith.extui %46 : vector<1x4096xi1> to vector<1x4096xi32>
    %48 = arith.sitofp %47 : vector<1x4096xi32> to vector<1x4096xf32>
    %c15_i32 = arith.constant 15 : i32
    %49 = vector.broadcast %c15_i32 : i32 to vector<1x4096xi32>
    %50 = arith.cmpi slt, %36, %49 : vector<1x4096xi32>
    %51 = arith.extui %50 : vector<1x4096xi1> to vector<1x4096xi32>
    %52 = arith.sitofp %51 : vector<1x4096xi32> to vector<1x4096xf32>
    %53 = vector.extract_strided_slice %1 {offsets = [0, 111], sizes = [8, 4096], strides = [1, 1]} : vector<8x4352xf32> to vector<8x4096xf32>
    %54 = arith.mulf %40, %48 : vector<1x4096xf32>
    %55 = vector.broadcast %54 : vector<1x4096xf32> to vector<8x4096xf32>
    %56 = arith.mulf %53, %55 : vector<8x4096xf32>
    %57 = vector.extract_strided_slice %1 {offsets = [0, 112], sizes = [8, 4096], strides = [1, 1]} : vector<8x4352xf32> to vector<8x4096xf32>
    %58 = vector.broadcast %40 : vector<1x4096xf32> to vector<8x4096xf32>
    %59 = arith.mulf %57, %58 : vector<8x4096xf32>
    %60 = vector.extract_strided_slice %1 {offsets = [0, 113], sizes = [8, 4096], strides = [1, 1]} : vector<8x4352xf32> to vector<8x4096xf32>
    %61 = arith.mulf %40, %52 : vector<1x4096xf32>
    %62 = vector.broadcast %61 : vector<1x4096xf32> to vector<8x4096xf32>
    %63 = arith.mulf %60, %62 : vector<8x4096xf32>
    %64 = vector.extract_strided_slice %1 {offsets = [0, 127], sizes = [8, 4096], strides = [1, 1]} : vector<8x4352xf32> to vector<8x4096xf32>
    %65 = vector.broadcast %48 : vector<1x4096xf32> to vector<8x4096xf32>
    %66 = arith.mulf %64, %65 : vector<8x4096xf32>
    %67 = vector.extract_strided_slice %1 {offsets = [0, 128], sizes = [8, 4096], strides = [1, 1]} : vector<8x4352xf32> to vector<8x4096xf32>
    %68 = vector.extract_strided_slice %1 {offsets = [0, 129], sizes = [8, 4096], strides = [1, 1]} : vector<8x4352xf32> to vector<8x4096xf32>
    %69 = vector.broadcast %52 : vector<1x4096xf32> to vector<8x4096xf32>
    %70 = arith.mulf %68, %69 : vector<8x4096xf32>
    %71 = vector.extract_strided_slice %1 {offsets = [0, 143], sizes = [8, 4096], strides = [1, 1]} : vector<8x4352xf32> to vector<8x4096xf32>
    %72 = arith.mulf %44, %48 : vector<1x4096xf32>
    %73 = vector.broadcast %72 : vector<1x4096xf32> to vector<8x4096xf32>
    %74 = arith.mulf %71, %73 : vector<8x4096xf32>
    %75 = vector.extract_strided_slice %1 {offsets = [0, 144], sizes = [8, 4096], strides = [1, 1]} : vector<8x4352xf32> to vector<8x4096xf32>
    %76 = vector.broadcast %44 : vector<1x4096xf32> to vector<8x4096xf32>
    %77 = arith.mulf %75, %76 : vector<8x4096xf32>
    %78 = vector.extract_strided_slice %1 {offsets = [0, 145], sizes = [8, 4096], strides = [1, 1]} : vector<8x4352xf32> to vector<8x4096xf32>
    %79 = arith.mulf %44, %52 : vector<1x4096xf32>
    %80 = vector.broadcast %79 : vector<1x4096xf32> to vector<8x4096xf32>
    %81 = arith.mulf %78, %80 : vector<8x4096xf32>
    %82 = tpu.concatenate %56, %59, %63, %66, %67, %70, %74, %77, %81 in 0 : vector<8x4096xf32>, vector<8x4096xf32>, vector<8x4096xf32>, vector<8x4096xf32>, vector<8x4096xf32>, vector<8x4096xf32>, vector<8x4096xf32>, vector<8x4096xf32>, vector<8x4096xf32> -> vector<72x4096xf32>
    %cst = arith.constant dense<0.000000e+00> : vector<128x4096xf32>
    %83 = tpu.matmul %2, %82, %cst {dimension_numbers = #tpu.dot_dimension_numbers<[1], [0], [0], [1], [0, 0, 1, 1], [], []>} : vector<128x72xf32>, vector<72x4096xf32>, vector<128x4096xf32> -> vector<128x4096xf32>
    %84 = vector.broadcast %3 : vector<128x1xf32> to vector<128x4096xf32>
    %85 = arith.addf %83, %84 : vector<128x4096xf32>
    %cst_16 = arith.constant 0.000000e+00 : f32
    %86 = vector.broadcast %cst_16 : f32 to vector<128x4096xf32>
    %87 = arith.maximumf %85, %86 : vector<128x4096xf32>
    %88 = vector.extract_strided_slice %87 {offsets = [0, 0], sizes = [128, 256], strides = [1, 1]} : vector<128x4096xf32> to vector<128x256xf32>
    %89 = vector.extract_strided_slice %88 {offsets = [0, 0], sizes = [128, 128], strides = [1, 1]} : vector<128x256xf32> to vector<128x128xf32>
    %90 = vector.extract_strided_slice %88 {offsets = [0, 128], sizes = [128, 128], strides = [1, 1]} : vector<128x256xf32> to vector<128x128xf32>
    %91 = arith.addf %89, %90 : vector<128x128xf32>
    %cst_17 = arith.constant dense<0.000000e+00> : vector<128xf32>
    %92 = vector.multi_reduction <add>, %91, %cst_17 [1] : vector<128x128xf32> to vector<128xf32>
    %93 = vector.shape_cast %92 : vector<128xf32> to vector<1x128xf32>
    %94 = vector.extract_strided_slice %87 {offsets = [0, 256], sizes = [128, 256], strides = [1, 1]} : vector<128x4096xf32> to vector<128x256xf32>
    %95 = vector.extract_strided_slice %94 {offsets = [0, 0], sizes = [128, 128], strides = [1, 1]} : vector<128x256xf32> to vector<128x128xf32>
    %96 = vector.extract_strided_slice %94 {offsets = [0, 128], sizes = [128, 128], strides = [1, 1]} : vector<128x256xf32> to vector<128x128xf32>
    %97 = arith.addf %95, %96 : vector<128x128xf32>
    %cst_18 = arith.constant dense<0.000000e+00> : vector<128xf32>
    %98 = vector.multi_reduction <add>, %97, %cst_18 [1] : vector<128x128xf32> to vector<128xf32>
    %99 = vector.shape_cast %98 : vector<128xf32> to vector<1x128xf32>
    %100 = vector.extract_strided_slice %87 {offsets = [0, 512], sizes = [128, 256], strides = [1, 1]} : vector<128x4096xf32> to vector<128x256xf32>
    %101 = vector.extract_strided_slice %100 {offsets = [0, 0], sizes = [128, 128], strides = [1, 1]} : vector<128x256xf32> to vector<128x128xf32>
    %102 = vector.extract_strided_slice %100 {offsets = [0, 128], sizes = [128, 128], strides = [1, 1]} : vector<128x256xf32> to vector<128x128xf32>
    %103 = arith.addf %101, %102 : vector<128x128xf32>
    %cst_19 = arith.constant dense<0.000000e+00> : vector<128xf32>
    %104 = vector.multi_reduction <add>, %103, %cst_19 [1] : vector<128x128xf32> to vector<128xf32>
    %105 = vector.shape_cast %104 : vector<128xf32> to vector<1x128xf32>
    %106 = vector.extract_strided_slice %87 {offsets = [0, 768], sizes = [128, 256], strides = [1, 1]} : vector<128x4096xf32> to vector<128x256xf32>
    %107 = vector.extract_strided_slice %106 {offsets = [0, 0], sizes = [128, 128], strides = [1, 1]} : vector<128x256xf32> to vector<128x128xf32>
    %108 = vector.extract_strided_slice %106 {offsets = [0, 128], sizes = [128, 128], strides = [1, 1]} : vector<128x256xf32> to vector<128x128xf32>
    %109 = arith.addf %107, %108 : vector<128x128xf32>
    %cst_20 = arith.constant dense<0.000000e+00> : vector<128xf32>
    %110 = vector.multi_reduction <add>, %109, %cst_20 [1] : vector<128x128xf32> to vector<128xf32>
    %111 = vector.shape_cast %110 : vector<128xf32> to vector<1x128xf32>
    %112 = vector.extract_strided_slice %87 {offsets = [0, 1024], sizes = [128, 256], strides = [1, 1]} : vector<128x4096xf32> to vector<128x256xf32>
    %113 = vector.extract_strided_slice %112 {offsets = [0, 0], sizes = [128, 128], strides = [1, 1]} : vector<128x256xf32> to vector<128x128xf32>
    %114 = vector.extract_strided_slice %112 {offsets = [0, 128], sizes = [128, 128], strides = [1, 1]} : vector<128x256xf32> to vector<128x128xf32>
    %115 = arith.addf %113, %114 : vector<128x128xf32>
    %cst_21 = arith.constant dense<0.000000e+00> : vector<128xf32>
    %116 = vector.multi_reduction <add>, %115, %cst_21 [1] : vector<128x128xf32> to vector<128xf32>
    %117 = vector.shape_cast %116 : vector<128xf32> to vector<1x128xf32>
    %118 = vector.extract_strided_slice %87 {offsets = [0, 1280], sizes = [128, 256], strides = [1, 1]} : vector<128x4096xf32> to vector<128x256xf32>
    %119 = vector.extract_strided_slice %118 {offsets = [0, 0], sizes = [128, 128], strides = [1, 1]} : vector<128x256xf32> to vector<128x128xf32>
    %120 = vector.extract_strided_slice %118 {offsets = [0, 128], sizes = [128, 128], strides = [1, 1]} : vector<128x256xf32> to vector<128x128xf32>
    %121 = arith.addf %119, %120 : vector<128x128xf32>
    %cst_22 = arith.constant dense<0.000000e+00> : vector<128xf32>
    %122 = vector.multi_reduction <add>, %121, %cst_22 [1] : vector<128x128xf32> to vector<128xf32>
    %123 = vector.shape_cast %122 : vector<128xf32> to vector<1x128xf32>
    %124 = vector.extract_strided_slice %87 {offsets = [0, 1536], sizes = [128, 256], strides = [1, 1]} : vector<128x4096xf32> to vector<128x256xf32>
    %125 = vector.extract_strided_slice %124 {offsets = [0, 0], sizes = [128, 128], strides = [1, 1]} : vector<128x256xf32> to vector<128x128xf32>
    %126 = vector.extract_strided_slice %124 {offsets = [0, 128], sizes = [128, 128], strides = [1, 1]} : vector<128x256xf32> to vector<128x128xf32>
    %127 = arith.addf %125, %126 : vector<128x128xf32>
    %cst_23 = arith.constant dense<0.000000e+00> : vector<128xf32>
    %128 = vector.multi_reduction <add>, %127, %cst_23 [1] : vector<128x128xf32> to vector<128xf32>
    %129 = vector.shape_cast %128 : vector<128xf32> to vector<1x128xf32>
    %130 = vector.extract_strided_slice %87 {offsets = [0, 1792], sizes = [128, 256], strides = [1, 1]} : vector<128x4096xf32> to vector<128x256xf32>
    %131 = vector.extract_strided_slice %130 {offsets = [0, 0], sizes = [128, 128], strides = [1, 1]} : vector<128x256xf32> to vector<128x128xf32>
    %132 = vector.extract_strided_slice %130 {offsets = [0, 128], sizes = [128, 128], strides = [1, 1]} : vector<128x256xf32> to vector<128x128xf32>
    %133 = arith.addf %131, %132 : vector<128x128xf32>
    %cst_24 = arith.constant dense<0.000000e+00> : vector<128xf32>
    %134 = vector.multi_reduction <add>, %133, %cst_24 [1] : vector<128x128xf32> to vector<128xf32>
    %135 = vector.shape_cast %134 : vector<128xf32> to vector<1x128xf32>
    %136 = vector.extract_strided_slice %87 {offsets = [0, 2048], sizes = [128, 256], strides = [1, 1]} : vector<128x4096xf32> to vector<128x256xf32>
    %137 = vector.extract_strided_slice %136 {offsets = [0, 0], sizes = [128, 128], strides = [1, 1]} : vector<128x256xf32> to vector<128x128xf32>
    %138 = vector.extract_strided_slice %136 {offsets = [0, 128], sizes = [128, 128], strides = [1, 1]} : vector<128x256xf32> to vector<128x128xf32>
    %139 = arith.addf %137, %138 : vector<128x128xf32>
    %cst_25 = arith.constant dense<0.000000e+00> : vector<128xf32>
    %140 = vector.multi_reduction <add>, %139, %cst_25 [1] : vector<128x128xf32> to vector<128xf32>
    %141 = vector.shape_cast %140 : vector<128xf32> to vector<1x128xf32>
    %142 = vector.extract_strided_slice %87 {offsets = [0, 2304], sizes = [128, 256], strides = [1, 1]} : vector<128x4096xf32> to vector<128x256xf32>
    %143 = vector.extract_strided_slice %142 {offsets = [0, 0], sizes = [128, 128], strides = [1, 1]} : vector<128x256xf32> to vector<128x128xf32>
    %144 = vector.extract_strided_slice %142 {offsets = [0, 128], sizes = [128, 128], strides = [1, 1]} : vector<128x256xf32> to vector<128x128xf32>
    %145 = arith.addf %143, %144 : vector<128x128xf32>
    %cst_26 = arith.constant dense<0.000000e+00> : vector<128xf32>
    %146 = vector.multi_reduction <add>, %145, %cst_26 [1] : vector<128x128xf32> to vector<128xf32>
    %147 = vector.shape_cast %146 : vector<128xf32> to vector<1x128xf32>
    %148 = vector.extract_strided_slice %87 {offsets = [0, 2560], sizes = [128, 256], strides = [1, 1]} : vector<128x4096xf32> to vector<128x256xf32>
    %149 = vector.extract_strided_slice %148 {offsets = [0, 0], sizes = [128, 128], strides = [1, 1]} : vector<128x256xf32> to vector<128x128xf32>
    %150 = vector.extract_strided_slice %148 {offsets = [0, 128], sizes = [128, 128], strides = [1, 1]} : vector<128x256xf32> to vector<128x128xf32>
    %151 = arith.addf %149, %150 : vector<128x128xf32>
    %cst_27 = arith.constant dense<0.000000e+00> : vector<128xf32>
    %152 = vector.multi_reduction <add>, %151, %cst_27 [1] : vector<128x128xf32> to vector<128xf32>
    %153 = vector.shape_cast %152 : vector<128xf32> to vector<1x128xf32>
    %154 = vector.extract_strided_slice %87 {offsets = [0, 2816], sizes = [128, 256], strides = [1, 1]} : vector<128x4096xf32> to vector<128x256xf32>
    %155 = vector.extract_strided_slice %154 {offsets = [0, 0], sizes = [128, 128], strides = [1, 1]} : vector<128x256xf32> to vector<128x128xf32>
    %156 = vector.extract_strided_slice %154 {offsets = [0, 128], sizes = [128, 128], strides = [1, 1]} : vector<128x256xf32> to vector<128x128xf32>
    %157 = arith.addf %155, %156 : vector<128x128xf32>
    %cst_28 = arith.constant dense<0.000000e+00> : vector<128xf32>
    %158 = vector.multi_reduction <add>, %157, %cst_28 [1] : vector<128x128xf32> to vector<128xf32>
    %159 = vector.shape_cast %158 : vector<128xf32> to vector<1x128xf32>
    %160 = vector.extract_strided_slice %87 {offsets = [0, 3072], sizes = [128, 256], strides = [1, 1]} : vector<128x4096xf32> to vector<128x256xf32>
    %161 = vector.extract_strided_slice %160 {offsets = [0, 0], sizes = [128, 128], strides = [1, 1]} : vector<128x256xf32> to vector<128x128xf32>
    %162 = vector.extract_strided_slice %160 {offsets = [0, 128], sizes = [128, 128], strides = [1, 1]} : vector<128x256xf32> to vector<128x128xf32>
    %163 = arith.addf %161, %162 : vector<128x128xf32>
    %cst_29 = arith.constant dense<0.000000e+00> : vector<128xf32>
    %164 = vector.multi_reduction <add>, %163, %cst_29 [1] : vector<128x128xf32> to vector<128xf32>
    %165 = vector.shape_cast %164 : vector<128xf32> to vector<1x128xf32>
    %166 = vector.extract_strided_slice %87 {offsets = [0, 3328], sizes = [128, 256], strides = [1, 1]} : vector<128x4096xf32> to vector<128x256xf32>
    %167 = vector.extract_strided_slice %166 {offsets = [0, 0], sizes = [128, 128], strides = [1, 1]} : vector<128x256xf32> to vector<128x128xf32>
    %168 = vector.extract_strided_slice %166 {offsets = [0, 128], sizes = [128, 128], strides = [1, 1]} : vector<128x256xf32> to vector<128x128xf32>
    %169 = arith.addf %167, %168 : vector<128x128xf32>
    %cst_30 = arith.constant dense<0.000000e+00> : vector<128xf32>
    %170 = vector.multi_reduction <add>, %169, %cst_30 [1] : vector<128x128xf32> to vector<128xf32>
    %171 = vector.shape_cast %170 : vector<128xf32> to vector<1x128xf32>
    %172 = vector.extract_strided_slice %87 {offsets = [0, 3584], sizes = [128, 256], strides = [1, 1]} : vector<128x4096xf32> to vector<128x256xf32>
    %173 = vector.extract_strided_slice %172 {offsets = [0, 0], sizes = [128, 128], strides = [1, 1]} : vector<128x256xf32> to vector<128x128xf32>
    %174 = vector.extract_strided_slice %172 {offsets = [0, 128], sizes = [128, 128], strides = [1, 1]} : vector<128x256xf32> to vector<128x128xf32>
    %175 = arith.addf %173, %174 : vector<128x128xf32>
    %cst_31 = arith.constant dense<0.000000e+00> : vector<128xf32>
    %176 = vector.multi_reduction <add>, %175, %cst_31 [1] : vector<128x128xf32> to vector<128xf32>
    %177 = vector.shape_cast %176 : vector<128xf32> to vector<1x128xf32>
    %178 = vector.extract_strided_slice %87 {offsets = [0, 3840], sizes = [128, 256], strides = [1, 1]} : vector<128x4096xf32> to vector<128x256xf32>
    %179 = vector.extract_strided_slice %178 {offsets = [0, 0], sizes = [128, 128], strides = [1, 1]} : vector<128x256xf32> to vector<128x128xf32>
    %180 = vector.extract_strided_slice %178 {offsets = [0, 128], sizes = [128, 128], strides = [1, 1]} : vector<128x256xf32> to vector<128x128xf32>
    %181 = arith.addf %179, %180 : vector<128x128xf32>
    %cst_32 = arith.constant dense<0.000000e+00> : vector<128xf32>
    %182 = vector.multi_reduction <add>, %181, %cst_32 [1] : vector<128x128xf32> to vector<128xf32>
    %183 = vector.shape_cast %182 : vector<128xf32> to vector<1x128xf32>
    %184 = tpu.concatenate %93, %99, %105, %111, %117, %123, %129, %135, %141, %147, %153, %159, %165, %171, %177, %183 in 0 : vector<1x128xf32>, vector<1x128xf32>, vector<1x128xf32>, vector<1x128xf32>, vector<1x128xf32>, vector<1x128xf32>, vector<1x128xf32>, vector<1x128xf32>, vector<1x128xf32>, vector<1x128xf32>, vector<1x128xf32>, vector<1x128xf32>, vector<1x128xf32>, vector<1x128xf32>, vector<1x128xf32>, vector<1x128xf32> -> vector<16x128xf32>
    %cst_33 = arith.constant 3.906250e-03 : f32
    %185 = vector.broadcast %cst_33 : f32 to vector<16x128xf32>
    %186 = arith.mulf %184, %185 : vector<16x128xf32>
    %c0_34 = arith.constant 0 : index
    %c0_35 = arith.constant 0 : index
    %187 = vector.load %arg4[%c0_34, %c0_35] : memref<16x128xf32, #tpu.memory_space<vmem>>, vector<16x128xf32>
    tpu.vector_store %arg4[%c0_34, %c0_35], %186 {strides = array<i32>} : memref<16x128xf32, #tpu.memory_space<vmem>>, vector<16x128xf32>,
    return
  }
  func.func @transform_0(%arg0: i32) -> (i32, i32, i32) {
    %c0_i32 = arith.constant 0 : i32
    %c0_i32_0 = arith.constant 0 : i32
    %c0_i32_1 = arith.constant 0 : i32
    return %arg0, %c0_i32, %c0_i32_0 : i32, i32, i32
  }
  func.func @transform_1(%arg0: i32) -> (i32, i32) {
    %c0_i32 = arith.constant 0 : i32
    %c0_i32_0 = arith.constant 0 : i32
    %c0_i32_1 = arith.constant 0 : i32
    return %c0_i32, %c0_i32_0 : i32, i32
  }
  func.func @transform_2(%arg0: i32) -> (i32, i32) {
    %c0_i32 = arith.constant 0 : i32
    %c0_i32_0 = arith.constant 0 : i32
    %c0_i32_1 = arith.constant 0 : i32
    return %c0_i32, %c0_i32_0 : i32, i32
  }
  func.func @transform_3(%arg0: i32) -> (i32, i32) {
    %c0_i32 = arith.constant 0 : i32
    %c0_i32_0 = arith.constant 0 : i32
    return %arg0, %c0_i32 : i32, i32
  }
}

module attributes {stable_mosaic.version = 11 : i64} {
  func.func @_metric_kernel(%arg0: memref<2x4x2x128xf32, #tpu.memory_space<vmem>>, %arg1: memref<2x8x128xf32, #tpu.memory_space<vmem>>, %arg2: memref<2x8x128xf32, #tpu.memory_space<vmem>>, %arg3: memref<2x8x128xf32, #tpu.memory_space<vmem>>) attributes {dimension_semantics = [], scalar_prefetch = 0 : i64, scratch_operands = 0 : i64, tpu.core_type = #tpu.core_type<tc>} {
    %c0 = arith.constant 0 : index
    %c0_0 = arith.constant 0 : index
    %c0_1 = arith.constant 0 : index
    %c0_2 = arith.constant 0 : index
    %0 = vector.load %arg0[%c0, %c0_0, %c0_1, %c0_2] : memref<2x4x2x128xf32, #tpu.memory_space<vmem>>, vector<2x4x2x128xf32>
    %c0_3 = arith.constant 0 : index
    %c0_4 = arith.constant 0 : index
    %c0_5 = arith.constant 0 : index
    %1 = vector.load %arg1[%c0_3, %c0_4, %c0_5] : memref<2x8x128xf32, #tpu.memory_space<vmem>>, vector<2x8x128xf32>
    %c0_6 = arith.constant 0 : index
    %c0_7 = arith.constant 0 : index
    %c0_8 = arith.constant 0 : index
    %2 = vector.load %arg2[%c0_6, %c0_7, %c0_8] : memref<2x8x128xf32, #tpu.memory_space<vmem>>, vector<2x8x128xf32>
    %cst = arith.constant dense<0.000000e+00> : vector<2x4x128xf32>
    %3 = vector.multi_reduction <add>, %0, %cst [2] : vector<2x4x2x128xf32> to vector<2x4x128xf32>
    %cst_9 = arith.constant 2.000000e+00 : f32
    %4 = vector.broadcast %cst_9 : f32 to vector<2x4x128xf32>
    %5 = arith.divf %3, %4 : vector<2x4x128xf32>
    %6 = arith.mulf %5, %5 : vector<2x4x128xf32>
    %cst_10 = arith.constant dense<0.000000e+00> : vector<2x4xf32>
    %7 = vector.multi_reduction <add>, %6, %cst_10 [2] : vector<2x4x128xf32> to vector<2x4xf32>
    %8 = vector.shape_cast %7 : vector<2x4xf32> to vector<2x4x1xf32>
    %cst_11 = arith.constant 1.000000e-24 : f32
    %9 = vector.broadcast %cst_11 : f32 to vector<2x4x1xf32>
    %10 = arith.maximumf %8, %9 : vector<2x4x1xf32>
    %11 = math.rsqrt %10 : vector<2x4x1xf32>
    %12 = vector.broadcast %11 : vector<2x4x1xf32> to vector<2x4x128xf32>
    %13 = arith.mulf %5, %12 : vector<2x4x128xf32>
    %14 = arith.mulf %1, %1 : vector<2x8x128xf32>
    %cst_12 = arith.constant dense<0.000000e+00> : vector<2x8xf32>
    %15 = vector.multi_reduction <add>, %14, %cst_12 [2] : vector<2x8x128xf32> to vector<2x8xf32>
    %16 = vector.shape_cast %15 : vector<2x8xf32> to vector<2x8x1xf32>
    %cst_13 = arith.constant 1.000000e-24 : f32
    %17 = vector.broadcast %cst_13 : f32 to vector<2x8x1xf32>
    %18 = arith.maximumf %16, %17 : vector<2x8x1xf32>
    %19 = math.rsqrt %18 : vector<2x8x1xf32>
    %20 = vector.broadcast %19 : vector<2x8x1xf32> to vector<2x8x128xf32>
    %21 = arith.mulf %1, %20 : vector<2x8x128xf32>
    %22 = arith.mulf %2, %2 : vector<2x8x128xf32>
    %cst_14 = arith.constant dense<0.000000e+00> : vector<2x8xf32>
    %23 = vector.multi_reduction <add>, %22, %cst_14 [2] : vector<2x8x128xf32> to vector<2x8xf32>
    %24 = vector.shape_cast %23 : vector<2x8xf32> to vector<2x8x1xf32>
    %cst_15 = arith.constant 1.000000e-24 : f32
    %25 = vector.broadcast %cst_15 : f32 to vector<2x8x1xf32>
    %26 = arith.maximumf %24, %25 : vector<2x8x1xf32>
    %27 = math.rsqrt %26 : vector<2x8x1xf32>
    %28 = vector.broadcast %27 : vector<2x8x1xf32> to vector<2x8x128xf32>
    %29 = arith.mulf %2, %28 : vector<2x8x128xf32>
    %30 = tpu.concatenate %21, %13 in 1 : vector<2x8x128xf32>, vector<2x4x128xf32> -> vector<2x12x128xf32>
    %31 = tpu.concatenate %29, %13 in 1 : vector<2x8x128xf32>, vector<2x4x128xf32> -> vector<2x12x128xf32>
    "tpu.trace_start"() <{level = 10 : i32, message = "bmd,bnd->bmn"}> : () -> ()
    %cst_16 = arith.constant dense<0.000000e+00> : vector<2x12x12xf32>
    %32 = tpu.matmul %30, %31, %cst_16 {dimension_numbers = #tpu.dot_dimension_numbers<[2], [2], [1], [1], [0, 0, 0, 1, 1, 1], [0], [0]>} : vector<2x12x128xf32>, vector<2x12x128xf32>, vector<2x12x12xf32> -> vector<2x12x12xf32>
    "tpu.trace_stop"() : () -> ()
    %33 = vector.extract_strided_slice %32 {offsets = [0, 0, 0], sizes = [2, 8, 8], strides = [1, 1, 1]} : vector<2x12x12xf32> to vector<2x8x8xf32>
    %34 = vector.extract_strided_slice %32 {offsets = [0, 8, 0], sizes = [2, 4, 8], strides = [1, 1, 1]} : vector<2x12x12xf32> to vector<2x4x8xf32>
    %35 = vector.extract_strided_slice %32 {offsets = [0, 0, 8], sizes = [2, 8, 4], strides = [1, 1, 1]} : vector<2x12x12xf32> to vector<2x8x4xf32>
    %cst_17 = arith.constant 1.000000e+01 : f32
    %36 = vector.broadcast %cst_17 : f32 to vector<2x8x4xf32>
    %37 = arith.mulf %35, %36 : vector<2x8x4xf32>
    %cst_18 = arith.constant dense<0.000000e+00> : vector<2x8xf32>
    %38 = vector.multi_reduction <add>, %33, %cst_18 [2] : vector<2x8x8xf32> to vector<2x8xf32>
    %39 = vector.shape_cast %38 : vector<2x8xf32> to vector<2x8x1xf32>
    %cst_19 = arith.constant dense<0.000000e+00> : vector<2x4xf32>
    %40 = vector.multi_reduction <add>, %34, %cst_19 [2] : vector<2x4x8xf32> to vector<2x4xf32>
    %41 = vector.shape_cast %40 : vector<2x4xf32> to vector<2x1x4xf32>
    %42 = vector.broadcast %39 : vector<2x8x1xf32> to vector<2x8x4xf32>
    %43 = vector.broadcast %41 : vector<2x1x4xf32> to vector<2x8x4xf32>
    %44 = arith.subf %42, %43 : vector<2x8x4xf32>
    %cst_20 = arith.constant 1.000000e+01 : f32
    %45 = vector.broadcast %cst_20 : f32 to vector<2x8x4xf32>
    %46 = arith.mulf %44, %45 : vector<2x8x4xf32>
    %cst_21 = arith.constant dense<0.000000e+00> : vector<2x8xf32>
    %47 = vector.multi_reduction <add>, %21, %cst_21 [2] : vector<2x8x128xf32> to vector<2x8xf32>
    %48 = vector.shape_cast %47 : vector<2x8xf32> to vector<2x8x1xf32>
    %cst_22 = arith.constant dense<0.000000e+00> : vector<2x4xf32>
    %49 = vector.multi_reduction <add>, %13, %cst_22 [2] : vector<2x4x128xf32> to vector<2x4xf32>
    %50 = vector.shape_cast %49 : vector<2x4xf32> to vector<2x1x4xf32>
    %51 = vector.broadcast %48 : vector<2x8x1xf32> to vector<2x8x4xf32>
    %52 = vector.broadcast %50 : vector<2x1x4xf32> to vector<2x8x4xf32>
    %53 = arith.addf %51, %52 : vector<2x8x4xf32>
    %cst_23 = arith.constant 1.000000e+01 : f32
    %54 = vector.broadcast %cst_23 : f32 to vector<2x8x4xf32>
    %55 = arith.mulf %53, %54 : vector<2x8x4xf32>
    %cst_24 = arith.constant 0.000000e+00 : f32
    %56 = vector.broadcast %cst_24 : f32 to vector<2x8x116xf32>
    %cst_25 = arith.constant dense<0xFF800000> : vector<2x4xf32>
    %57 = vector.multi_reduction <maximumf>, %37, %cst_25 [1] : vector<2x8x4xf32> to vector<2x4xf32>
    %58 = vector.shape_cast %57 : vector<2x4xf32> to vector<2x1x4xf32>
    %59 = vector.broadcast %58 : vector<2x1x4xf32> to vector<2x8x4xf32>
    %60 = arith.subf %37, %59 : vector<2x8x4xf32>
    %61 = math.exp %60 : vector<2x8x4xf32>
    %cst_26 = arith.constant dense<0.000000e+00> : vector<2x4xf32>
    %62 = vector.multi_reduction <add>, %61, %cst_26 [1] : vector<2x8x4xf32> to vector<2x4xf32>
    %63 = vector.shape_cast %62 : vector<2x4xf32> to vector<2x1x4xf32>
    %64 = vector.broadcast %63 : vector<2x1x4xf32> to vector<2x8x4xf32>
    %65 = arith.divf %61, %64 : vector<2x8x4xf32>
    %cst_27 = arith.constant 1.000000e+01 : f32
    %66 = vector.broadcast %cst_27 : f32 to vector<2x8x4xf32>
    %67 = arith.mulf %65, %66 : vector<2x8x4xf32>
    %cst_28 = arith.constant dense<0xFF800000> : vector<2x4xf32>
    %68 = vector.multi_reduction <maximumf>, %46, %cst_28 [1] : vector<2x8x4xf32> to vector<2x4xf32>
    %69 = vector.shape_cast %68 : vector<2x4xf32> to vector<2x1x4xf32>
    %70 = vector.broadcast %69 : vector<2x1x4xf32> to vector<2x8x4xf32>
    %71 = arith.subf %46, %70 : vector<2x8x4xf32>
    %72 = math.exp %71 : vector<2x8x4xf32>
    %cst_29 = arith.constant dense<0.000000e+00> : vector<2x4xf32>
    %73 = vector.multi_reduction <add>, %72, %cst_29 [1] : vector<2x8x4xf32> to vector<2x4xf32>
    %74 = vector.shape_cast %73 : vector<2x4xf32> to vector<2x1x4xf32>
    %75 = vector.broadcast %74 : vector<2x1x4xf32> to vector<2x8x4xf32>
    %76 = arith.divf %72, %75 : vector<2x8x4xf32>
    %cst_30 = arith.constant 1.000000e+01 : f32
    %77 = vector.broadcast %cst_30 : f32 to vector<2x8x4xf32>
    %78 = arith.mulf %76, %77 : vector<2x8x4xf32>
    %cst_31 = arith.constant dense<0xFF800000> : vector<2x4xf32>
    %79 = vector.multi_reduction <maximumf>, %55, %cst_31 [1] : vector<2x8x4xf32> to vector<2x4xf32>
    %80 = vector.shape_cast %79 : vector<2x4xf32> to vector<2x1x4xf32>
    %81 = vector.broadcast %80 : vector<2x1x4xf32> to vector<2x8x4xf32>
    %82 = arith.subf %55, %81 : vector<2x8x4xf32>
    %83 = math.exp %82 : vector<2x8x4xf32>
    %cst_32 = arith.constant dense<0.000000e+00> : vector<2x4xf32>
    %84 = vector.multi_reduction <add>, %83, %cst_32 [1] : vector<2x8x4xf32> to vector<2x4xf32>
    %85 = vector.shape_cast %84 : vector<2x4xf32> to vector<2x1x4xf32>
    %86 = vector.broadcast %85 : vector<2x1x4xf32> to vector<2x8x4xf32>
    %87 = arith.divf %83, %86 : vector<2x8x4xf32>
    %cst_33 = arith.constant 1.000000e+01 : f32
    %88 = vector.broadcast %cst_33 : f32 to vector<2x8x4xf32>
    %89 = arith.mulf %87, %88 : vector<2x8x4xf32>
    %90 = tpu.concatenate %67, %78, %89, %56 in 2 : vector<2x8x4xf32>, vector<2x8x4xf32>, vector<2x8x4xf32>, vector<2x8x116xf32> -> vector<2x8x128xf32>
    %c0_34 = arith.constant 0 : index
    %c0_35 = arith.constant 0 : index
    %c0_36 = arith.constant 0 : index
    %91 = vector.load %arg3[%c0_34, %c0_35, %c0_36] : memref<2x8x128xf32, #tpu.memory_space<vmem>>, vector<2x8x128xf32>
    tpu.vector_store %arg3[%c0_34, %c0_35, %c0_36], %90 {strides = array<i32>} : memref<2x8x128xf32, #tpu.memory_space<vmem>>, vector<2x8x128xf32>,
    return
  }
}

</mosaic_0001>

<llo_original>
// kernel: meta_baseline_forward.3
$region0: #{meta_baseline_forward.3}
  #allocation0 [shape = 'u32[]', space=smem, size = 0x4, offset = 0x4, fixed_abs, tag = 'smem constant byte address 0x4 - core index']
  #allocation1 [shape = 'u32[72,128]{1,0:T(1,128)}', space=vmem, size = 0x9000, scoped, tag = 'internal scratch']
  %s0 = inlined_call_operand.vmem [shape: f32[2,4,2,128], index: 0, kind: input, shape index: {}]
  %s1 = inlined_call_operand.vmem [shape: f32[2,8,128], index: 1, kind: input, shape index: {}]
  %s2 = inlined_call_operand.vmem [shape: f32[2,8,128], index: 2, kind: input, shape index: {}]
  %s3 = inlined_call_operand.vmem [shape: f32[2,8,128], index: 3, kind: output, shape index: {}]
  %s4 = sld [smem:[#allocation0]]
  $region22: #{meta_baseline_forward.3} parent=0
    _
  %s6 = ssub.s32 1, %s4
  %s7 = scalar_select 0, %s6, %s4
  // Predicated region
  $region2: #{meta_baseline_forward.3} parent=0 // pred_check
    _
  $region3: #{meta_baseline_forward.3} parent=0 // pred_check_branch
    %9 = sbr.rel (0) target = $region5
  $region4: #{meta_baseline_forward.3} parent=0 // pred_region
    _
  $region5: #{meta_baseline_forward.3} parent=0 // pred_fallthru
    _
  // Predicated region
  $region6: #{meta_baseline_forward.3} parent=0 // pred_check
    _
  $region7: #{meta_baseline_forward.3} parent=0 // pred_check_branch
    %11 = sbr.rel (0) target = $region9
  $region8: #{meta_baseline_forward.3} parent=0 // pred_region
    _
  $region9: #{meta_baseline_forward.3} parent=0 // pred_fallthru
    _
  // Predicated region
  $region10: #{meta_baseline_forward.3} parent=0 // pred_check
    _
  $region11: #{meta_baseline_forward.3} parent=0 // pred_check_branch
    %13 = sbr.rel (0) target = $region13
  $region12: #{meta_baseline_forward.3} parent=0 // pred_region
    _
  $region13: #{meta_baseline_forward.3} parent=0 // pred_fallthru
    _
  %v14 = vld [vmem:[%s0] sm:$0x3]
  %v15 = vld [vmem:[%s0 + $0x2] sm:$0x3]
  %v16 = vld [vmem:[%s0 + $0x4] sm:$0x3]
  %v17 = vld [vmem:[%s0 + $0x6] sm:$0x3]
  %v18 = vld [vmem:[%s0 + $0x8] sm:$0x3]
  %v19 = vld [vmem:[%s0 + $0xa] sm:$0x3]
  %v20 = vld [vmem:[%s0 + $0xc] sm:$0x3]
  %v21 = vld [vmem:[%s0 + $0xe] sm:$0x3]
  %v22 = vld [vmem:[%s1] sm:$0xff]
  %v23 = vld [vmem:[%s1 + $0x8] sm:$0xff]
  %v24 = vld [vmem:[%s2] sm:$0xff]
  %v25 = vld [vmem:[%s2 + $0x8] sm:$0xff]
  %vm26 = vcmask 1041408
  %v27 = vsel %vm26, %v14, 0.0
  %v28 = vrot.slane %v27, 4
  %v29 = vadd.f32 %v27, %v28
  %v30 = vrot.slane %v29, 2
  %v31 = vadd.f32 %v29, %v30
  %v32 = vrot.slane %v31, 1
  %v33 = vadd.f32 %v31, %v32
  %v34 = vsel %vm26, %v15, 0.0
  %v35 = vrot.slane %v34, 4
  %v36 = vadd.f32 %v34, %v35
  %v37 = vrot.slane %v36, 2
  %v38 = vadd.f32 %v36, %v37
  %v39 = vrot.slane %v38, 1
  %v40 = vadd.f32 %v38, %v39
  %v41 = vsel %vm26, %v16, 0.0
  %v42 = vrot.slane %v41, 4
  %v43 = vadd.f32 %v41, %v42
  %v44 = vrot.slane %v43, 2
  %v45 = vadd.f32 %v43, %v44
  %v46 = vrot.slane %v45, 1
  %v47 = vadd.f32 %v45, %v46
  %v48 = vsel %vm26, %v17, 0.0
  %v49 = vrot.slane %v48, 4
  %v50 = vadd.f32 %v48, %v49
  %v51 = vrot.slane %v50, 2
  %v52 = vadd.f32 %v50, %v51
  %v53 = vrot.slane %v52, 1
  %v54 = vadd.f32 %v52, %v53
  %v55 = vsel %vm26, %v18, 0.0
  %v56 = vrot.slane %v55, 4
  %v57 = vadd.f32 %v55, %v56
  %v58 = vrot.slane %v57, 2
  %v59 = vadd.f32 %v57, %v58
  %v60 = vrot.slane %v59, 1
  %v61 = vadd.f32 %v59, %v60
  %v62 = vsel %vm26, %v19, 0.0
  %v63 = vrot.slane %v62, 4
  %v64 = vadd.f32 %v62, %v63
  %v65 = vrot.slane %v64, 2
  %v66 = vadd.f32 %v64, %v65
  %v67 = vrot.slane %v66, 1
  %v68 = vadd.f32 %v66, %v67
  %v69 = vsel %vm26, %v20, 0.0
  %v70 = vrot.slane %v69, 4
  %v71 = vadd.f32 %v69, %v70
  %v72 = vrot.slane %v71, 2
  %v73 = vadd.f32 %v71, %v72
  %v74 = vrot.slane %v73, 1
  %v75 = vadd.f32 %v73, %v74
  %v76 = vsel %vm26, %v21, 0.0
  %v77 = vrot.slane %v76, 4
  %v78 = vadd.f32 %v76, %v77
  %v79 = vrot.slane %v78, 2
  %v80 = vadd.f32 %v78, %v79
  %v81 = vrot.slane %v80, 1
  %v82 = vadd.f32 %v80, %v81
  %v83 = vrcp.pop 2.0
  %v84 = vmul.f32 2.0, %v83
  %v85 = vsub.f32 1.0, %v84
  %v86 = vmul.f32 %v83, %v85
  %v87 = vadd.f32 %v83, %v86
  %vm88 = vweird.f32 %v83
  %v89 = vsel %vm88, %v83, %v87
  %v90 = vmul.f32 %v33, %v89
  %v91 = vmul.f32 %v40, %v89
  %v92 = vmul.f32 %v47, %v89
  %v93 = vmul.f32 %v54, %v89
  %v94 = vmul.f32 %v61, %v89
  %v95 = vmul.f32 %v68, %v89
  %v96 = vmul.f32 %v75, %v89
  %v97 = vmul.f32 %v82, %v89
  %v98 = vmul.f32 %v90, %v90
  %v99 = vmul.f32 %v91, %v91
  %v100 = vmul.f32 %v92, %v92
  %v101 = vmul.f32 %v93, %v93
  %v102 = vmul.f32 %v94, %v94
  %v103 = vmul.f32 %v95, %v95
  %v104 = vmul.f32 %v96, %v96
  %v105 = vmul.f32 %v97, %v97
  %vm114 = vcmask 1041409
  %v115 = vsel %vm114, %v99, %v98
  %vm116 = vcmask 1042434
  %v117 = vsel %vm116, %v100, %v115
  %vm118 = vcmask 1043459
  %v119 = vsel %vm118, %v101, %v117
  %v120 = vsel %vm114, %v103, %v102
  %v121 = vsel %vm116, %v104, %v120
  %v122 = vsel %vm118, %v105, %v121
  %vm125 = vcmask 1043456
  %v126 = vsel %vm125, %v119, 0.0
  %127 = vadd.xlane.f32.xlu0 %v126
  %v128 = vpop.xlane.xlu0 %127
  %v129 = vsel %vm125, %v122, 0.0
  %130 = vadd.xlane.f32.xlu0 %v129
  %v131 = vpop.xlane.xlu0 %130
  %v132 = vmax.f32 %v128, 1e-24
  %v133 = vmax.f32 %v131, 1e-24
  %v134 = vrsqrt.pop %v132
  %v135 = vmul.f32 %v134, %v132
  %v136 = vmul.f32 %v135, %v134
  %v137 = vmul.f32 0.5, %v136
  %v138 = vsub.f32 1.5, %v137
  %v139 = vmul.f32 %v134, %v138
  %vm140 = vweird.f32 %v132
  %vm141 = vweird.f32 %v134
  %vm142 = vmor %vm140, %vm141
  %v143 = vsel %vm142, %v134, %v139
  %v144 = vrsqrt.pop %v133
  %v145 = vmul.f32 %v144, %v133
  %v146 = vmul.f32 %v145, %v144
  %v147 = vmul.f32 0.5, %v146
  %v148 = vsub.f32 1.5, %v147
  %v149 = vmul.f32 %v144, %v148
  %vm150 = vweird.f32 %v133
  %vm151 = vweird.f32 %v144
  %vm152 = vmor %vm150, %vm151
  %v153 = vsel %vm152, %v144, %v149
  %v156 = vrot.slane %v143, 1
  %v157 = vrot.slane %v143, 2
  %v158 = vrot.slane %v143, 3
  %v159 = vrot.slane %v153, 1
  %v160 = vrot.slane %v153, 2
  %v161 = vrot.slane %v153, 3
  %v170 = vmul.f32 %v90, %v143
  %v171 = vmul.f32 %v91, %v156
  %v172 = vmul.f32 %v92, %v157
  %v173 = vmul.f32 %v93, %v158
  %v174 = vmul.f32 %v94, %v153
  %v175 = vmul.f32 %v95, %v159
  %v176 = vmul.f32 %v96, %v160
  %v177 = vmul.f32 %v97, %v161
  %v178 = vmul.f32 %v22, %v22
  %v179 = vmul.f32 %v23, %v23
  %180 = vadd.xlane.f32.xlu0 %v178
  %v181 = vpop.xlane.xlu0 %180
  %182 = vadd.xlane.f32.xlu0 %v179
  %v183 = vpop.xlane.xlu0 %182
  %v184 = vmax.f32 %v181, 1e-24
  %v185 = vmax.f32 %v183, 1e-24
  %v186 = vrsqrt.pop %v184
  %v187 = vmul.f32 %v186, %v184
  %v188 = vmul.f32 %v187, %v186
  %v189 = vmul.f32 0.5, %v188
  %v190 = vsub.f32 1.5, %v189
  %v191 = vmul.f32 %v186, %v190
  %vm192 = vweird.f32 %v184
  %vm193 = vweird.f32 %v186
  %vm194 = vmor %vm192, %vm193
  %v195 = vsel %vm194, %v186, %v191
  %v196 = vrsqrt.pop %v185
  %v197 = vmul.f32 %v196, %v185
  %v198 = vmul.f32 %v197, %v196
  %v199 = vmul.f32 0.5, %v198
  %v200 = vsub.f32 1.5, %v199
  %v201 = vmul.f32 %v196, %v200
  %vm202 = vweird.f32 %v185
  %vm203 = vweird.f32 %v196
  %vm204 = vmor %vm202, %vm203
  %v205 = vsel %vm204, %v196, %v201
  %v206 = vmul.f32 %v22, %v195
  %v207 = vmul.f32 %v23, %v205
  %v208 = vmul.f32 %v24, %v24
  %v209 = vmul.f32 %v25, %v25
  %210 = vadd.xlane.f32.xlu0 %v208
  %v211 = vpop.xlane.xlu0 %210
  %212 = vadd.xlane.f32.xlu0 %v209
  %v213 = vpop.xlane.xlu0 %212
  %v214 = vmax.f32 %v211, 1e-24
  %v215 = vmax.f32 %v213, 1e-24
  %v216 = vrsqrt.pop %v214
  %v217 = vmul.f32 %v216, %v214
  %v218 = vmul.f32 %v217, %v216
  %v219 = vmul.f32 0.5, %v218
  %v220 = vsub.f32 1.5, %v219
  %v221 = vmul.f32 %v216, %v220
  %vm222 = vweird.f32 %v214
  %vm223 = vweird.f32 %v216
  %vm224 = vmor %vm222, %vm223
  %v225 = vsel %vm224, %v216, %v221
  %v226 = vrsqrt.pop %v215
  %v227 = vmul.f32 %v226, %v215
  %v228 = vmul.f32 %v227, %v226
  %v229 = vmul.f32 0.5, %v228
  %v230 = vsub.f32 1.5, %v229
  %v231 = vmul.f32 %v226, %v230
  %vm232 = vweird.f32 %v215
  %vm233 = vweird.f32 %v226
  %vm234 = vmor %vm232, %vm233
  %v235 = vsel %vm234, %v226, %v231
  %v236 = vmul.f32 %v24, %v225
  %v237 = vmul.f32 %v25, %v235
  %v246 = vrot.slane %v171, 7
  %v247 = vsel %vm114, %v246, %v170
  %v248 = vrot.slane %v172, 6
  %v249 = vsel %vm116, %v248, %v247
  %v250 = vrot.slane %v173, 5
  %v251 = vsel %vm118, %v250, %v249
  %v252 = vrot.slane %v175, 7
  %v253 = vsel %vm114, %v252, %v174
  %v254 = vrot.slane %v176, 6
  %v255 = vsel %vm116, %v254, %v253
  %v256 = vrot.slane %v177, 5
  %v257 = vsel %vm118, %v256, %v255
  %260 = vmatpush.xpose.msra.mxu0 0.0
  %261 = vmatpush.xpose.msra.mxu0 0.0
  %262 = vmatpush.xpose.msra.mxu0 0.0
  %263 = vmatpush.xpose.msra.mxu0 0.0
  %264 = vmatpush.xpose.msra.mxu0 0.0
  %265 = vmatpush.xpose.msra.mxu0 0.0
  %266 = vmatpush.xpose.msra.mxu0 0.0
  %267 = vmatpush.xpose.msra.mxu0 0.0
  %268 = vmatpush.xpose.msra.mxu0 0.0
  %269 = vmatpush.xpose.msra.mxu0 0.0
  %270 = vmatpush.xpose.msra.mxu0 0.0
  %271 = vmatpush.xpose.msra.mxu0 0.0
  %272 = vmatpush.xpose.msra.mxu0 0.0
  %273 = vmatpush.xpose.msra.mxu0 0.0
  %274 = vmatpush.xpose.msra.mxu0 %v251
  %275 = vmatpush.xpose.msra.mxu0 %v236
  %276 = vmatmul.f32.gmra.mxu0 %v206
  %v277 = vpop.f32.mrf.mxu0
  %v278 = vadd.f32 0.0, %v277
  %279 = vmatmul.f32.gmra.mxu0 %v251
  %v280 = vpop.f32.mrf.mxu0
  %v281 = vadd.f32 0.0, %v280
  %282 = vdwg.mxu0
  %283 = vmatpush.xpose.msra.mxu0 0.0
  %284 = vmatpush.xpose.msra.mxu0 0.0
  %285 = vmatpush.xpose.msra.mxu0 0.0
  %286 = vmatpush.xpose.msra.mxu0 0.0
  %287 = vmatpush.xpose.msra.mxu0 0.0
  %288 = vmatpush.xpose.msra.mxu0 0.0
  %289 = vmatpush.xpose.msra.mxu0 0.0
  %290 = vmatpush.xpose.msra.mxu0 0.0
  %291 = vmatpush.xpose.msra.mxu0 0.0
  %292 = vmatpush.xpose.msra.mxu0 0.0
  %293 = vmatpush.xpose.msra.mxu0 0.0
  %294 = vmatpush.xpose.msra.mxu0 0.0
  %295 = vmatpush.xpose.msra.mxu0 0.0
  %296 = vmatpush.xpose.msra.mxu0 0.0
  %297 = vmatpush.xpose.msra.mxu0 %v257
  %298 = vmatpush.xpose.msra.mxu0 %v237
  %299 = vmatmul.f32.gmra.mxu0 %v207
  %v300 = vpop.f32.mrf.mxu0
  %v301 = vadd.f32 0.0, %v300
  %302 = vmatmul.f32.gmra.mxu0 %v257
  %v303 = vpop.f32.mrf.mxu0
  %v304 = vadd.f32 0.0, %v303
  %305 = vdwg.mxu0
  %v306 = vmul.f32 %v278, 10.0
  %v307 = vmul.f32 %v301, 10.0
  %vm308 = vcmask 64512
  %v309 = vsel %vm308, %v278, 0.0
  %310 = vadd.xlane.f32.xlu0 %v309
  %v311 = vpop.xlane.xlu0 %310
  %v312 = vsel %vm308, %v301, 0.0
  %313 = vadd.xlane.f32.xlu0 %v312
  %v314 = vpop.xlane.xlu0 %313
  %vm315 = vcmask 60416
  %v316 = vsel %vm315, %v281, 0.0
  %317 = vadd.xlane.f32.xlu0 %v316
  %v318 = vpop.xlane.xlu0 %317
  %v319 = vsel %vm315, %v304, 0.0
  %320 = vadd.xlane.f32.xlu0 %v319
  %v321 = vpop.xlane.xlu0 %320
  %v324 = vlaneseq
  %v325 = vand.u32 %v324, 127
  %v326 = vperm.slane %v318, %v325
  %v327 = vperm.slane %v321, %v325
  %v328 = vsel %vm116, %v326, %v326
  %v329 = vsel %vm118, %v326, %v328
  %vm330 = vcmask 1044484
  %v331 = vsel %vm330, %v326, %v329
  %vm332 = vcmask 1045509
  %v333 = vsel %vm332, %v326, %v331
  %vm334 = vcmask 1046534
  %v335 = vsel %vm334, %v326, %v333
  %vm336 = vcmask 1047559
  %v337 = vsel %vm336, %v326, %v335
  %v338 = vsel %vm116, %v327, %v327
  %v339 = vsel %vm118, %v327, %v338
  %v340 = vsel %vm330, %v327, %v339
  %v341 = vsel %vm332, %v327, %v340
  %v342 = vsel %vm334, %v327, %v341
  %v343 = vsel %vm336, %v327, %v342
  %v346 = vsub.f32 %v311, %v337
  %v347 = vsub.f32 %v314, %v343
  %v348 = vmul.f32 %v346, 10.0
  %v349 = vmul.f32 %v347, 10.0
  %350 = vadd.xlane.f32.xlu0 %v206
  %v351 = vpop.xlane.xlu0 %350
  %352 = vadd.xlane.f32.xlu0 %v207
  %v353 = vpop.xlane.xlu0 %352
  %v354 = vsel %vm125, %v251, 0.0
  %355 = vadd.xlane.f32.xlu0 %v354
  %v356 = vpop.xlane.xlu0 %355
  %v357 = vsel %vm125, %v257, 0.0
  %358 = vadd.xlane.f32.xlu0 %v357
  %v359 = vpop.xlane.xlu0 %358
  %v362 = vperm.slane %v356, %v325
  %v363 = vperm.slane %v359, %v325
  %v364 = vsel %vm116, %v362, %v362
  %v365 = vsel %vm118, %v362, %v364
  %v366 = vsel %vm330, %v362, %v365
  %v367 = vsel %vm332, %v362, %v366
  %v368 = vsel %vm334, %v362, %v367
  %v369 = vsel %vm336, %v362, %v368
  %v370 = vsel %vm116, %v363, %v363
  %v371 = vsel %vm118, %v363, %v370
  %v372 = vsel %vm330, %v363, %v371
  %v373 = vsel %vm332, %v363, %v372
  %v374 = vsel %vm334, %v363, %v373
  %v375 = vsel %vm336, %v363, %v374
  %v378 = vadd.f32 %v351, %v369
  %v379 = vadd.f32 %v353, %v375
  %v380 = vmul.f32 %v378, 10.0
  %v381 = vmul.f32 %v379, 10.0
  %vm382 = vcmask 97344
  %v383 = vsel %vm382, %v306, -inf
  %v384 = vrot.slane %v383, 4
  %v385 = vmax.f32 %v383, %v384
  %v386 = vrot.slane %v385, 2
  %v387 = vmax.f32 %v385, %v386
  %v388 = vrot.slane %v387, 1
  %v389 = vmax.f32 %v387, %v388
  %v390 = vsel %vm382, %v307, -inf
  %v391 = vrot.slane %v390, 4
  %v392 = vmax.f32 %v390, %v391
  %v393 = vrot.slane %v392, 2
  %v394 = vmax.f32 %v392, %v393
  %v395 = vrot.slane %v394, 1
  %v396 = vmax.f32 %v394, %v395
  %v397 = vsub.f32 %v306, %v389
  %v398 = vsub.f32 %v307, %v396
  %v399 = vmul.f32 %v397, 1.442695
  %v400 = vpow.pop %v399
  %v401 = vmul.f32 %v398, 1.442695
  %v402 = vpow.pop %v401
  %v403 = vsel %vm382, %v400, 0.0
  %v404 = vrot.slane %v403, 4
  %v405 = vadd.f32 %v403, %v404
  %v406 = vrot.slane %v405, 2
  %v407 = vadd.f32 %v405, %v406
  %v408 = vrot.slane %v407, 1
  %v409 = vadd.f32 %v407, %v408
  %v410 = vsel %vm382, %v402, 0.0
  %v411 = vrot.slane %v410, 4
  %v412 = vadd.f32 %v410, %v411
  %v413 = vrot.slane %v412, 2
  %v414 = vadd.f32 %v412, %v413
  %v415 = vrot.slane %v414, 1
  %v416 = vadd.f32 %v414, %v415
  %v417 = vrcp.pop %v409
  %v418 = vmul.f32 %v409, %v417
  %v419 = vsub.f32 1.0, %v418
  %v420 = vmul.f32 %v417, %v419
  %v421 = vadd.f32 %v417, %v420
  %vm422 = vweird.f32 %v409
  %vm423 = vweird.f32 %v417
  %vm424 = vmor %vm422, %vm423
  %v425 = vsel %vm424, %v417, %v421
  %v426 = vand.u32 2147483647, %v409
  %vm427 = vcmp.eq.f32.partialorder %v426, 8.507059e+37
  %v428 = vand.u32 %v409, 2147483648
  %v429 = vor.u32 1.1754944e-38, %v428
  %v430 = vsel %vm427, %v429, %v425
  %v431 = vmul.f32 %v400, %v430
  %v432 = vrcp.pop %v416
  %v433 = vmul.f32 %v416, %v432
  %v434 = vsub.f32 1.0, %v433
  %v435 = vmul.f32 %v432, %v434
  %v436 = vadd.f32 %v432, %v435
  %vm437 = vweird.f32 %v416
  %vm438 = vweird.f32 %v432
  %vm439 = vmor %vm437, %vm438
  %v440 = vsel %vm439, %v432, %v436
  %v441 = vand.u32 2147483647, %v416
  %vm442 = vcmp.eq.f32.partialorder %v441, 8.507059e+37
  %v443 = vand.u32 %v416, 2147483648
  %v444 = vor.u32 1.1754944e-38, %v443
  %v445 = vsel %vm442, %v444, %v440
  %v446 = vmul.f32 %v402, %v445
  %v447 = vmul.f32 %v431, 10.0
  %v448 = vmul.f32 %v446, 10.0
  %vm449 = vcmask 31744
  %v450 = vsel %vm449, %v348, -inf
  %v451 = vrot.slane %v450, 4
  %v452 = vmax.f32 %v450, %v451
  %v453 = vrot.slane %v452, 2
  %v454 = vmax.f32 %v452, %v453
  %v455 = vrot.slane %v454, 1
  %v456 = vmax.f32 %v454, %v455
  %v457 = vsel %vm449, %v349, -inf
  %v458 = vrot.slane %v457, 4
  %v459 = vmax.f32 %v457, %v458
  %v460 = vrot.slane %v459, 2
  %v461 = vmax.f32 %v459, %v460
  %v462 = vrot.slane %v461, 1
  %v463 = vmax.f32 %v461, %v462
  %v464 = vsub.f32 %v348, %v456
  %v465 = vsub.f32 %v349, %v463
  %v466 = vmul.f32 %v464, 1.442695
  %v467 = vpow.pop %v466
  %v468 = vmul.f32 %v465, 1.442695
  %v469 = vpow.pop %v468
  %v470 = vsel %vm449, %v467, 0.0
  %v471 = vrot.slane %v470, 4
  %v472 = vadd.f32 %v470, %v471
  %v473 = vrot.slane %v472, 2
  %v474 = vadd.f32 %v472, %v473
  %v475 = vrot.slane %v474, 1
  %v476 = vadd.f32 %v474, %v475
  %v477 = vsel %vm449, %v469, 0.0
  %v478 = vrot.slane %v477, 4
  %v479 = vadd.f32 %v477, %v478
  %v480 = vrot.slane %v479, 2
  %v481 = vadd.f32 %v479, %v480
  %v482 = vrot.slane %v481, 1
  %v483 = vadd.f32 %v481, %v482
  %v484 = vrcp.pop %v476
  %v485 = vmul.f32 %v476, %v484
  %v486 = vsub.f32 1.0, %v485
  %v487 = vmul.f32 %v484, %v486
  %v488 = vadd.f32 %v484, %v487
  %vm489 = vweird.f32 %v476
  %vm490 = vweird.f32 %v484
  %vm491 = vmor %vm489, %vm490
  %v492 = vsel %vm491, %v484, %v488
  %v493 = vand.u32 2147483647, %v476
  %vm494 = vcmp.eq.f32.partialorder %v493, 8.507059e+37
  %v495 = vand.u32 %v476, 2147483648
  %v496 = vor.u32 1.1754944e-38, %v495
  %v497 = vsel %vm494, %v496, %v492
  %v498 = vmul.f32 %v467, %v497
  %v499 = vrcp.pop %v483
  %v500 = vmul.f32 %v483, %v499
  %v501 = vsub.f32 1.0, %v500
  %v502 = vmul.f32 %v499, %v501
  %v503 = vadd.f32 %v499, %v502
  %vm504 = vweird.f32 %v483
  %vm505 = vweird.f32 %v499
  %vm506 = vmor %vm504, %vm505
  %v507 = vsel %vm506, %v499, %v503
  %v508 = vand.u32 2147483647, %v483
  %vm509 = vcmp.eq.f32.partialorder %v508, 8.507059e+37
  %v510 = vand.u32 %v483, 2147483648
  %v511 = vor.u32 1.1754944e-38, %v510
  %v512 = vsel %vm509, %v511, %v507
  %v513 = vmul.f32 %v469, %v512
  %v514 = vmul.f32 %v498, 10.0
  %v515 = vmul.f32 %v513, 10.0
  %v516 = vsel %vm449, %v380, -inf
  %v517 = vrot.slane %v516, 4
  %v518 = vmax.f32 %v516, %v517
  %v519 = vrot.slane %v518, 2
  %v520 = vmax.f32 %v518, %v519
  %v521 = vrot.slane %v520, 1
  %v522 = vmax.f32 %v520, %v521
  %v523 = vsel %vm449, %v381, -inf
  %v524 = vrot.slane %v523, 4
  %v525 = vmax.f32 %v523, %v524
  %v526 = vrot.slane %v525, 2
  %v527 = vmax.f32 %v525, %v526
  %v528 = vrot.slane %v527, 1
  %v529 = vmax.f32 %v527, %v528
  %v530 = vsub.f32 %v380, %v522
  %v531 = vsub.f32 %v381, %v529
  %v532 = vmul.f32 %v530, 1.442695
  %v533 = vpow.pop %v532
  %v534 = vmul.f32 %v531, 1.442695
  %v535 = vpow.pop %v534
  %v536 = vsel %vm449, %v533, 0.0
  %v537 = vrot.slane %v536, 4
  %v538 = vadd.f32 %v536, %v537
  %v539 = vrot.slane %v538, 2
  %v540 = vadd.f32 %v538, %v539
  %v541 = vrot.slane %v540, 1
  %v542 = vadd.f32 %v540, %v541
  %v543 = vsel %vm449, %v535, 0.0
  %v544 = vrot.slane %v543, 4
  %v545 = vadd.f32 %v543, %v544
  %v546 = vrot.slane %v545, 2
  %v547 = vadd.f32 %v545, %v546
  %v548 = vrot.slane %v547, 1
  %v549 = vadd.f32 %v547, %v548
  %v550 = vrcp.pop %v542
  %v551 = vmul.f32 %v542, %v550
  %v552 = vsub.f32 1.0, %v551
  %v553 = vmul.f32 %v550, %v552
  %v554 = vadd.f32 %v550, %v553
  %vm555 = vweird.f32 %v542
  %vm556 = vweird.f32 %v550
  %vm557 = vmor %vm555, %vm556
  %v558 = vsel %vm557, %v550, %v554
  %v559 = vand.u32 2147483647, %v542
  %vm560 = vcmp.eq.f32.partialorder %v559, 8.507059e+37
  %v561 = vand.u32 %v542, 2147483648
  %v562 = vor.u32 1.1754944e-38, %v561
  %v563 = vsel %vm560, %v562, %v558
  %v564 = vmul.f32 %v533, %v563
  %v565 = vrcp.pop %v549
  %v566 = vmul.f32 %v549, %v565
  %v567 = vsub.f32 1.0, %v566
  %v568 = vmul.f32 %v565, %v567
  %v569 = vadd.f32 %v565, %v568
  %vm570 = vweird.f32 %v549
  %vm571 = vweird.f32 %v565
  %vm572 = vmor %vm570, %vm571
  %v573 = vsel %vm572, %v565, %v569
  %v574 = vand.u32 2147483647, %v549
  %vm575 = vcmp.eq.f32.partialorder %v574, 8.507059e+37
  %v576 = vand.u32 %v549, 2147483648
  %v577 = vor.u32 1.1754944e-38, %v576
  %v578 = vsel %vm575, %v577, %v573
  %v579 = vmul.f32 %v535, %v578
  %v580 = vmul.f32 %v564, 10.0
  %v581 = vmul.f32 %v579, 10.0
  %584 = vrot.lane.b32.xlu0 %v447, 120
  %v585 = vpop.permute.xlu0 %584
  %586 = vrot.lane.b32.xlu0 %v448, 120
  %v587 = vpop.permute.xlu0 %586
  %592 = vrot.lane.b32.xlu0 %v514, 4
  %v593 = vpop.permute.xlu0 %592
  %594 = vrot.lane.b32.xlu0 %v515, 4
  %v595 = vpop.permute.xlu0 %594
  %600 = vrot.lane.b32.xlu0 %v580, 8
  %v601 = vpop.permute.xlu0 %600
  %602 = vrot.lane.b32.xlu0 %v581, 8
  %v603 = vpop.permute.xlu0 %602
  %v606 = vsel %vm449, %v585, %v593
  %v607 = vsel %vm449, %v587, %v595
  %v608 = vsel %vm308, %v606, %v601
  %v609 = vsel %vm308, %v607, %v603
  %vm610 = vcmask 97280
  %v611 = vsel %vm610, %v608, 0.0
  %v612 = vsel %vm610, %v609, 0.0
  %613 = vst [vmem:[%s3] sm:$0xff] %v611
  %614 = vst [vmem:[%s3 + $0x8] sm:$0xff] %v612
  // Predicated region
  $region14: #{meta_baseline_forward.3} parent=0 // pred_check
    _
  $region15: #{meta_baseline_forward.3} parent=0 // pred_check_branch
    %616 = sbr.rel (0) target = $region17
  $region16: #{meta_baseline_forward.3} parent=0 // pred_region
    _
  $region17: #{meta_baseline_forward.3} parent=0 // pred_fallthru
    _
  // Predicated region
  $region18: #{meta_baseline_forward.3} parent=0 // pred_check
    _
  $region19: #{meta_baseline_forward.3} parent=0 // pred_check_branch
    %618 = sbr.rel (0) target = $region21
  $region20: #{meta_baseline_forward.3} parent=0 // pred_region
    _
  $region21: #{meta_baseline_forward.3} parent=0 // pred_fallthru
    _

// kernel: meta_baseline_forward.2
$region0: #{meta_baseline_forward.2}
  #allocation0 [shape = 'u32[]', space=smem, size = 0x4, offset = 0x4, fixed_abs, tag = 'smem constant byte address 0x4 - core index']
  #allocation1 [shape = 'u32[72,128]{1,0:T(1,128)}', space=vmem, size = 0x9000, scoped, tag = 'internal scratch']
  %s0 = inlined_call_operand.vmem [shape: f32[2,8,4352], index: 0, kind: input, shape index: {}]
  %s1 = inlined_call_operand.vmem [shape: f32[128,72], index: 1, kind: input, shape index: {}]
  %s2 = inlined_call_operand.vmem [shape: f32[128,1], index: 2, kind: input, shape index: {}]
  %s3 = inlined_call_operand.vmem [shape: f32[32,128], index: 3, kind: output, shape index: {}]
  %s4 = sld [smem:[#allocation0]]
  $region45: #{meta_baseline_forward.2} parent=0
    _
  %s6 = ssub.s32 1, %s4
  %s7 = scalar_select 0, %s6, %s4
  loop: start=0, step=1, limit=4
  $region2: #{meta_baseline_forward.2} parent=0 // loop_pre_header
    _
  $region3: #{meta_baseline_forward.2} parent=0 // loop_header
    %s9 = sphi 0, %s13
    %p10 = scmp.ge.s32.totalorder %s9, 4
    %s19 = sphi 0, %s21
    %s22 = sphi 0, %s19
    %s23 = sphi 0, %s22
    %s39 = sphi 0, %s23
    %s43 = sphi 0, %s43
    %s45 = sphi 0, %s43
    %s46 = sphi 0, %s45
    %s60 = sphi 0, %s46
    %s64 = sphi 0, %s64
    %s66 = sphi 0, %s64
    %s67 = sphi 0, %s66
    %s81 = sphi 0, %s67
    %s87 = sphi 0, %s89
    %s90 = sphi 0, %s87
    %s91 = sphi 0, %s90
    %s107 = sphi 0, %s91
  $region4: #{meta_baseline_forward.2} parent=0 // loop_header_branch
    %12 = sbr.rel (%p10) target = $region8
  $region5: #{meta_baseline_forward.2} parent=0 // loop_body
    %s14 = ssub.s32 %s9, 1
    %s15 = ssub.s32 %s9, 2
    %s16 = sadd.s32 %s9, 1
    %s17 = ssub.s32 %s9, %s16
    %p18 = scmp.eq.s32.totalorder %s17, 0
    %s20 = sadd.s32 %s19, 1
    %s21 = scalar_select %p18, %s19, %s20
    %p24 = pneg %p18
    %p25 = scmp.eq.s32.totalorder %s9, 1
    %p26 = por %p24, %p25
    %p27 = scmp.ne.s32.totalorder %s19, %s22
    %p28 = scmp.eq.s32.totalorder %s9, 0
    %p29 = por %p27, %p28
    %p30 = scmp.ne.s32.totalorder %s19, %s22
    %p31 = scmp.eq.s32.totalorder %s14, 1
    %p32 = por %p30, %p31
    %p33 = scmp.ne.s32.totalorder %s22, %s23
    %p34 = scmp.eq.s32.totalorder %s14, 0
    %p35 = por %p33, %p34
    %p36 = scmp.ne.s32.totalorder %s22, %s23
    %p37 = scmp.eq.s32.totalorder %s15, 1
    %p38 = por %p36, %p37
    %p40 = scmp.ne.s32.totalorder %s23, %s39
    %p41 = scmp.eq.s32.totalorder %s15, 0
    %p42 = por %p40, %p41
    %s44 = sadd.s32 %s43, 1
    %p47 = scmp.eq.s32.totalorder %s9, 1
    %p48 = scmp.ne.s32.totalorder %s43, %s45
    %p49 = scmp.eq.s32.totalorder %s9, 0
    %p50 = por %p48, %p49
    %p51 = scmp.ne.s32.totalorder %s43, %s45
    %p52 = scmp.eq.s32.totalorder %s14, 1
    %p53 = por %p51, %p52
    %p54 = scmp.ne.s32.totalorder %s45, %s46
    %p55 = scmp.eq.s32.totalorder %s14, 0
    %p56 = por %p54, %p55
    %p57 = scmp.ne.s32.totalorder %s45, %s46
    %p58 = scmp.eq.s32.totalorder %s15, 1
    %p59 = por %p57, %p58
    %p61 = scmp.ne.s32.totalorder %s46, %s60
    %p62 = scmp.eq.s32.totalorder %s15, 0
    %p63 = por %p61, %p62
    %s65 = sadd.s32 %s64, 1
    %p68 = scmp.eq.s32.totalorder %s9, 1
    %p69 = scmp.ne.s32.totalorder %s64, %s66
    %p70 = scmp.eq.s32.totalorder %s9, 0
    %p71 = por %p69, %p70
    %p72 = scmp.ne.s32.totalorder %s64, %s66
    %p73 = scmp.eq.s32.totalorder %s14, 1
    %p74 = por %p72, %p73
    %p75 = scmp.ne.s32.totalorder %s66, %s67
    %p76 = scmp.eq.s32.totalorder %s14, 0
    %p77 = por %p75, %p76
    %p78 = scmp.ne.s32.totalorder %s66, %s67
    %p79 = scmp.eq.s32.totalorder %s15, 1
    %p80 = por %p78, %p79
    %p82 = scmp.ne.s32.totalorder %s67, %s81
    %p83 = scmp.eq.s32.totalorder %s15, 0
    %p84 = por %p82, %p83
    %s85 = ssub.s32 %s9, %s16
    %p86 = scmp.eq.s32.totalorder %s85, 0
    %s88 = sadd.s32 %s87, 1
    %s89 = scalar_select %p86, %s87, %s88
    %p92 = pneg %p86
    %p93 = scmp.eq.s32.totalorder %s9, 1
    %p94 = por %p92, %p93
    %p95 = scmp.ne.s32.totalorder %s87, %s90
    %p96 = scmp.eq.s32.totalorder %s9, 0
    %p97 = por %p95, %p96
    %p98 = scmp.ne.s32.totalorder %s87, %s90
    %p99 = scmp.eq.s32.totalorder %s14, 1
    %p100 = por %p98, %p99
    %p101 = scmp.ne.s32.totalorder %s90, %s91
    %p102 = scmp.eq.s32.totalorder %s14, 0
    %p103 = por %p101, %p102
    %p104 = scmp.ne.s32.totalorder %s90, %s91
    %p105 = scmp.eq.s32.totalorder %s15, 1
    %p106 = por %p104, %p105
    %p108 = scmp.ne.s32.totalorder %s91, %s107
    %p109 = scmp.eq.s32.totalorder %s15, 0
    %p110 = por %p108, %p109
    %p111 = scmp.le.s32.totalorder 1, %s9
    %p112 = scmp.lt.s32.totalorder %s9, 3
    %p113 = pnand %p111, %p112
    %p114 = pneg %p113
    // Predicated region
    $region9: #{meta_baseline_forward.2} parent=5 // pred_check
      _
    $region10: #{meta_baseline_forward.2} parent=5 // pred_check_branch
      %116 = sbr.rel (%p113) target = $region12
    $region11: #{meta_baseline_forward.2} parent=5 // pred_region
      %s117 = ssub.s32 %s9, 1
      // Predicated region
      $region13: #{meta_baseline_forward.2} parent=11 // pred_check
        %p118 = pneg %p56
      $region14: #{meta_baseline_forward.2} parent=11 // pred_check_branch
        %120 = sbr.rel (%p118) target = $region16
      $region15: #{meta_baseline_forward.2} parent=11 // pred_region
        _
      $region16: #{meta_baseline_forward.2} parent=11 // pred_fallthru
        _
      // Predicated region
      $region17: #{meta_baseline_forward.2} parent=11 // pred_check
        %p121 = pneg %p77
      $region18: #{meta_baseline_forward.2} parent=11 // pred_check_branch
        %123 = sbr.rel (%p121) target = $region20
      $region19: #{meta_baseline_forward.2} parent=11 // pred_region
        _
      $region20: #{meta_baseline_forward.2} parent=11 // pred_fallthru
        _
    $region12: #{meta_baseline_forward.2} parent=5 // pred_fallthru
      _
    %p124 = scmp.lt.s32.totalorder %s9, 2
    // Predicated region
    $region21: #{meta_baseline_forward.2} parent=5 // pred_check
      %p125 = pneg %p124
    $region22: #{meta_baseline_forward.2} parent=5 // pred_check_branch
      %127 = sbr.rel (%p125) target = $region24
    $region23: #{meta_baseline_forward.2} parent=5 // pred_region
      // Predicated region
      $region25: #{meta_baseline_forward.2} parent=23 // pred_check
        %p128 = pneg %p29
      $region26: #{meta_baseline_forward.2} parent=23 // pred_check_branch
        %130 = sbr.rel (%p128) target = $region28
      $region27: #{meta_baseline_forward.2} parent=23 // pred_region
        %p131 = scmp.lt.s32.totalorder %s9, 1
        %s132 = scalar_select %p131, %s9, 1
        %s133 = smul.addr %s132, 34
        %s134 = smul.addr %s133, 8
        %s135 = scalar_lea.vmem %s0, %s134
      $region28: #{meta_baseline_forward.2} parent=23 // pred_fallthru
        _
    $region24: #{meta_baseline_forward.2} parent=5 // pred_fallthru
      _
    %p136 = scmp.le.s32.totalorder 1, %s9
    %p137 = scmp.lt.s32.totalorder %s9, 3
    %p138 = pnand %p136, %p137
    %p139 = pneg %p138
    // Predicated region
    $region29: #{meta_baseline_forward.2} parent=5 // pred_check
      _
    $region30: #{meta_baseline_forward.2} parent=5 // pred_check_branch
      %141 = sbr.rel (%p138) target = $region32
    $region31: #{meta_baseline_forward.2} parent=5 // pred_region
      %s142 = ssub.s32 %s9, 1
      %p143 = scmp.lt.s32.totalorder %s14, 1
      %s144 = scalar_select %p143, %s14, 1
      %s145 = smul.addr %s144, 34
      %s146 = smul.addr %s145, 8
      %s147 = scalar_lea.vmem %s0, %s146
      %p148 = pneg %p35
      %p149 = pneg %p32
      %p150 = pneg %p56
      %p151 = pneg %p53
      %p152 = pneg %p77
      %p153 = pneg %p74
      %p154 = pneg %p103
      %p155 = pneg %p100
      %s156 = smul.u32 2, %s14
      %p157 = scmp.lt.s32.totalorder %s156, 3
      %s158 = scalar_select %p157, %s156, 3
      %s159 = smul.addr %s158, 8
      %s160 = scalar_lea.vmem %s3, %s159
      %p161 = scmp.lt.s32.totalorder %s14, 1
      %s162 = scalar_select %p161, %s14, 1
      %s163 = smul.addr %s162, 34
      %s164 = smul.addr %s163, 8
      %s165 = scalar_lea.vmem %s0, %s164
      %s166 = smul.u32 2, %s14
      %p167 = scmp.lt.s32.totalorder %s166, 3
      %s168 = scalar_select %p167, %s166, 3
      %s169 = smul.addr %s168, 8
      %s170 = scalar_lea.vmem %s3, %s169
      %s171 = smul.u32 2, %s14
      %v172 = vld [vmem:[%s165] sm:$0xff]
      %v173 = vld [vmem:[%s165 + $0x8] sm:$0xff]
      %v174 = vld [vmem:[%s165 + $0x10] sm:$0xff]
      %v175 = vld [vmem:[%s165 + $0x18] sm:$0xff]
      %v176 = vld [vmem:[%s165 + $0x20] sm:$0xff]
      %v177 = vld [vmem:[%s165 + $0x28] sm:$0xff]
      %v178 = vld [vmem:[%s165 + $0x30] sm:$0xff]
      %v179 = vld [vmem:[%s165 + $0x38] sm:$0xff]
      %v180 = vld [vmem:[%s165 + $0x40] sm:$0xff]
      %v181 = vld [vmem:[%s165 + $0x48] sm:$0xff]
      %v182 = vld [vmem:[%s165 + $0x50] sm:$0xff]
      %v183 = vld [vmem:[%s165 + $0x58] sm:$0xff]
      %v184 = vld [vmem:[%s165 + $0x60] sm:$0xff]
      %v185 = vld [vmem:[%s165 + $0x68] sm:$0xff]
      %v186 = vld [vmem:[%s165 + $0x70] sm:$0xff]
      %v187 = vld [vmem:[%s165 + $0x78] sm:$0xff]
      %v188 = vld [vmem:[%s165 + $0x80] sm:$0xff]
      %v189 = vld [vmem:[%s165 + $0x88] sm:$0xff]
      %v190 = vld [vmem:[%s165 + $0x90] sm:$0xff]
      %v191 = vld [vmem:[%s165 + $0x98] sm:$0xff]
      %v192 = vld [vmem:[%s165 + $0xa0] sm:$0xff]
      %v193 = vld [vmem:[%s165 + $0xa8] sm:$0xff]
      %v194 = vld [vmem:[%s165 + $0xb0] sm:$0xff]
      %v195 = vld [vmem:[%s165 + $0xb8] sm:$0xff]
      %v196 = vld [vmem:[%s165 + $0xc0] sm:$0xff]
      %v197 = vld [vmem:[%s165 + $0xc8] sm:$0xff]
      %v198 = vld [vmem:[%s165 + $0xd0] sm:$0xff]
      %v199 = vld [vmem:[%s165 + $0xd8] sm:$0xff]
      %v200 = vld [vmem:[%s165 + $0xe0] sm:$0xff]
      %v201 = vld [vmem:[%s165 + $0xe8] sm:$0xff]
      %v202 = vld [vmem:[%s165 + $0xf0] sm:$0xff]
      %v203 = vld [vmem:[%s165 + $0xf8] sm:$0xff]
      %v204 = vld [vmem:[%s165 + $0x100] sm:$0xff]
      %v205 = vld [vmem:[%s165 + $0x108] sm:$0xff]
      %v206 = vld [vmem:[%s1] sm:$0xff]
      %v207 = vld [vmem:[%s1 + $0x8] sm:$0xff]
      %v208 = vld [vmem:[%s1 + $0x10] sm:$0xff]
      %v209 = vld [vmem:[%s1 + $0x18] sm:$0xff]
      %v210 = vld [vmem:[%s1 + $0x20] sm:$0xff]
      %v211 = vld [vmem:[%s1 + $0x28] sm:$0xff]
      %v212 = vld [vmem:[%s1 + $0x30] sm:$0xff]
      %v213 = vld [vmem:[%s1 + $0x38] sm:$0xff]
      %v214 = vld [vmem:[%s1 + $0x40] sm:$0xff]
      %v215 = vld [vmem:[%s1 + $0x48] sm:$0xff]
      %v216 = vld [vmem:[%s1 + $0x50] sm:$0xff]
      %v217 = vld [vmem:[%s1 + $0x58] sm:$0xff]
      %v218 = vld [vmem:[%s1 + $0x60] sm:$0xff]
      %v219 = vld [vmem:[%s1 + $0x68] sm:$0xff]
      %v220 = vld [vmem:[%s1 + $0x70] sm:$0xff]
      %v221 = vld [vmem:[%s1 + $0x78] sm:$0xff]
      %v222 = vld [vmem:[%s2] sm:$0xff]
      %v223 = vld [vmem:[%s2 + $0x8] sm:$0xff]
      %v224 = vld [vmem:[%s2 + $0x10] sm:$0xff]
      %v225 = vld [vmem:[%s2 + $0x18] sm:$0xff]
      %v226 = vld [vmem:[%s2 + $0x20] sm:$0xff]
      %v227 = vld [vmem:[%s2 + $0x28] sm:$0xff]
      %v228 = vld [vmem:[%s2 + $0x30] sm:$0xff]
      %v229 = vld [vmem:[%s2 + $0x38] sm:$0xff]
      %v230 = vld [vmem:[%s2 + $0x40] sm:$0xff]
      %v231 = vld [vmem:[%s2 + $0x48] sm:$0xff]
      %v232 = vld [vmem:[%s2 + $0x50] sm:$0xff]
      %v233 = vld [vmem:[%s2 + $0x58] sm:$0xff]
      %v234 = vld [vmem:[%s2 + $0x60] sm:$0xff]
      %v235 = vld [vmem:[%s2 + $0x68] sm:$0xff]
      %v236 = vld [vmem:[%s2 + $0x70] sm:$0xff]
      %v237 = vld [vmem:[%s2 + $0x78] sm:$0xff]
      %v238 = vlaneseq
      %v239 = vand.u32 %v238, 127
      %v240 = vadd.s32 %v239, 128
      %v241 = vadd.s32 %v239, 256
      %v242 = vadd.s32 %v239, 384
      %v243 = vadd.s32 %v239, 512
      %v244 = vadd.s32 %v239, 640
      %v245 = vadd.s32 %v239, 768
      %v246 = vadd.s32 %v239, 896
      %v247 = vadd.s32 %v239, 1024
      %v248 = vadd.s32 %v239, 1152
      %v249 = vadd.s32 %v239, 1280
      %v250 = vadd.s32 %v239, 1408
      %v251 = vadd.s32 %v239, 1536
      %v252 = vadd.s32 %v239, 1664
      %v253 = vadd.s32 %v239, 1792
      %v254 = vadd.s32 %v239, 1920
      %v255 = vadd.s32 %v239, 2048
      %v256 = vadd.s32 %v239, 2176
      %v257 = vadd.s32 %v239, 2304
      %v258 = vadd.s32 %v239, 2432
      %v259 = vadd.s32 %v239, 2560
      %v260 = vadd.s32 %v239, 2688
      %v261 = vadd.s32 %v239, 2816
      %v262 = vadd.s32 %v239, 2944
      %v263 = vadd.s32 %v239, 3072
      %v264 = vadd.s32 %v239, 3200
      %v265 = vadd.s32 %v239, 3328
      %v266 = vadd.s32 %v239, 3456
      %v267 = vadd.s32 %v239, 3584
      %v268 = vadd.s32 %v239, 3712
      %v269 = vadd.s32 %v239, 3840
      %v270 = vadd.s32 %v239, 3968
      %vm271 = vcmp.lt.s32.totalorder %v239, 0
      %v272 = vsub.s32 0, %v239
      %v273 = vsel %vm271, %v272, %v239
      %v274 = vshrl.u32 %v273, 8
      %v275 = vand.u32 %v273, 255
      %v276 = vsub.s32 0, %v275
      %v277 = vsel %vm271, %v276, %v275
      %vm278 = vcmp.lt.s32.totalorder %v240, 0
      %v279 = vsub.s32 0, %v240
      %v280 = vsel %vm278, %v279, %v240
      %v281 = vshrl.u32 %v280, 8
      %v282 = vand.u32 %v280, 255
      %v283 = vsub.s32 0, %v282
      %v284 = vsel %vm278, %v283, %v282
      %vm285 = vcmp.lt.s32.totalorder %v241, 0
      %v286 = vsub.s32 0, %v241
      %v287 = vsel %vm285, %v286, %v241
      %v288 = vshrl.u32 %v287, 8
      %v289 = vand.u32 %v287, 255
      %v290 = vsub.s32 0, %v289
      %v291 = vsel %vm285, %v290, %v289
      %vm292 = vcmp.lt.s32.totalorder %v242, 0
      %v293 = vsub.s32 0, %v242
      %v294 = vsel %vm292, %v293, %v242
      %v295 = vshrl.u32 %v294, 8
      %v296 = vand.u32 %v294, 255
      %v297 = vsub.s32 0, %v296
      %v298 = vsel %vm292, %v297, %v296
      %vm299 = vcmp.lt.s32.totalorder %v243, 0
      %v300 = vsub.s32 0, %v243
      %v301 = vsel %vm299, %v300, %v243
      %v302 = vshrl.u32 %v301, 8
      %v303 = vand.u32 %v301, 255
      %v304 = vsub.s32 0, %v303
      %v305 = vsel %vm299, %v304, %v303
      %vm306 = vcmp.lt.s32.totalorder %v244, 0
      %v307 = vsub.s32 0, %v244
      %v308 = vsel %vm306, %v307, %v244
      %v309 = vshrl.u32 %v308, 8
      %v310 = vand.u32 %v308, 255
      %v311 = vsub.s32 0, %v310
      %v312 = vsel %vm306, %v311, %v310
      %vm313 = vcmp.lt.s32.totalorder %v245, 0
      %v314 = vsub.s32 0, %v245
      %v315 = vsel %vm313, %v314, %v245
      %v316 = vshrl.u32 %v315, 8
      %v317 = vand.u32 %v315, 255
      %v318 = vsub.s32 0, %v317
      %v319 = vsel %vm313, %v318, %v317
      %vm320 = vcmp.lt.s32.totalorder %v246, 0
      %v321 = vsub.s32 0, %v246
      %v322 = vsel %vm320, %v321, %v246
      %v323 = vshrl.u32 %v322, 8
      %v324 = vand.u32 %v322, 255
      %v325 = vsub.s32 0, %v324
      %v326 = vsel %vm320, %v325, %v324
      %vm327 = vcmp.lt.s32.totalorder %v247, 0
      %v328 = vsub.s32 0, %v247
      %v329 = vsel %vm327, %v328, %v247
      %v330 = vshrl.u32 %v329, 8
      %v331 = vand.u32 %v329, 255
      %v332 = vsub.s32 0, %v331
      %v333 = vsel %vm327, %v332, %v331
      %vm334 = vcmp.lt.s32.totalorder %v248, 0
      %v335 = vsub.s32 0, %v248
      %v336 = vsel %vm334, %v335, %v248
      %v337 = vshrl.u32 %v336, 8
      %v338 = vand.u32 %v336, 255
      %v339 = vsub.s32 0, %v338
      %v340 = vsel %vm334, %v339, %v338
      %vm341 = vcmp.lt.s32.totalorder %v249, 0
      %v342 = vsub.s32 0, %v249
      %v343 = vsel %vm341, %v342, %v249
      %v344 = vshrl.u32 %v343, 8
      %v345 = vand.u32 %v343, 255
      %v346 = vsub.s32 0, %v345
      %v347 = vsel %vm341, %v346, %v345
      %vm348 = vcmp.lt.s32.totalorder %v250, 0
      %v349 = vsub.s32 0, %v250
      %v350 = vsel %vm348, %v349, %v250
      %v351 = vshrl.u32 %v350, 8
      %v352 = vand.u32 %v350, 255
      %v353 = vsub.s32 0, %v352
      %v354 = vsel %vm348, %v353, %v352
      %vm355 = vcmp.lt.s32.totalorder %v251, 0
      %v356 = vsub.s32 0, %v251
      %v357 = vsel %vm355, %v356, %v251
      %v358 = vshrl.u32 %v357, 8
      %v359 = vand.u32 %v357, 255
      %v360 = vsub.s32 0, %v359
      %v361 = vsel %vm355, %v360, %v359
      %vm362 = vcmp.lt.s32.totalorder %v252, 0
      %v363 = vsub.s32 0, %v252
      %v364 = vsel %vm362, %v363, %v252
      %v365 = vshrl.u32 %v364, 8
      %v366 = vand.u32 %v364, 255
      %v367 = vsub.s32 0, %v366
      %v368 = vsel %vm362, %v367, %v366
      %vm369 = vcmp.lt.s32.totalorder %v253, 0
      %v370 = vsub.s32 0, %v253
      %v371 = vsel %vm369, %v370, %v253
      %v372 = vshrl.u32 %v371, 8
      %v373 = vand.u32 %v371, 255
      %v374 = vsub.s32 0, %v373
      %v375 = vsel %vm369, %v374, %v373
      %vm376 = vcmp.lt.s32.totalorder %v254, 0
      %v377 = vsub.s32 0, %v254
      %v378 = vsel %vm376, %v377, %v254
      %v379 = vshrl.u32 %v378, 8
      %v380 = vand.u32 %v378, 255
      %v381 = vsub.s32 0, %v380
      %v382 = vsel %vm376, %v381, %v380
      %vm383 = vcmp.lt.s32.totalorder %v255, 0
      %v384 = vsub.s32 0, %v255
      %v385 = vsel %vm383, %v384, %v255
      %v386 = vshrl.u32 %v385, 8
      %v387 = vand.u32 %v385, 255
      %v388 = vsub.s32 0, %v387
      %v389 = vsel %vm383, %v388, %v387
      %vm390 = vcmp.lt.s32.totalorder %v256, 0
      %v391 = vsub.s32 0, %v256
      %v392 = vsel %vm390, %v391, %v256
      %v393 = vshrl.u32 %v392, 8
      %v394 = vand.u32 %v392, 255
      %v395 = vsub.s32 0, %v394
      %v396 = vsel %vm390, %v395, %v394
      %vm397 = vcmp.lt.s32.totalorder %v257, 0
      %v398 = vsub.s32 0, %v257
      %v399 = vsel %vm397, %v398, %v257
      %v400 = vshrl.u32 %v399, 8
      %v401 = vand.u32 %v399, 255
      %v402 = vsub.s32 0, %v401
      %v403 = vsel %vm397, %v402, %v401
      %vm404 = vcmp.lt.s32.totalorder %v258, 0
      %v405 = vsub.s32 0, %v258
      %v406 = vsel %vm404, %v405, %v258
      %v407 = vshrl.u32 %v406, 8
      %v408 = vand.u32 %v406, 255
      %v409 = vsub.s32 0, %v408
      %v410 = vsel %vm404, %v409, %v408
      %vm411 = vcmp.lt.s32.totalorder %v259, 0
      %v412 = vsub.s32 0, %v259
      %v413 = vsel %vm411, %v412, %v259
      %v414 = vshrl.u32 %v413, 8
      %v415 = vand.u32 %v413, 255
      %v416 = vsub.s32 0, %v415
      %v417 = vsel %vm411, %v416, %v415
      %vm418 = vcmp.lt.s32.totalorder %v260, 0
      %v419 = vsub.s32 0, %v260
      %v420 = vsel %vm418, %v419, %v260
      %v421 = vshrl.u32 %v420, 8
      %v422 = vand.u32 %v420, 255
      %v423 = vsub.s32 0, %v422
      %v424 = vsel %vm418, %v423, %v422
      %vm425 = vcmp.lt.s32.totalorder %v261, 0
      %v426 = vsub.s32 0, %v261
      %v427 = vsel %vm425, %v426, %v261
      %v428 = vshrl.u32 %v427, 8
      %v429 = vand.u32 %v427, 255
      %v430 = vsub.s32 0, %v429
      %v431 = vsel %vm425, %v430, %v429
      %vm432 = vcmp.lt.s32.totalorder %v262, 0
      %v433 = vsub.s32 0, %v262
      %v434 = vsel %vm432, %v433, %v262
      %v435 = vshrl.u32 %v434, 8
      %v436 = vand.u32 %v434, 255
      %v437 = vsub.s32 0, %v436
      %v438 = vsel %vm432, %v437, %v436
      %vm439 = vcmp.lt.s32.totalorder %v263, 0
      %v440 = vsub.s32 0, %v263
      %v441 = vsel %vm439, %v440, %v263
      %v442 = vshrl.u32 %v441, 8
      %v443 = vand.u32 %v441, 255
      %v444 = vsub.s32 0, %v443
      %v445 = vsel %vm439, %v444, %v443
      %vm446 = vcmp.lt.s32.totalorder %v264, 0
      %v447 = vsub.s32 0, %v264
      %v448 = vsel %vm446, %v447, %v264
      %v449 = vshrl.u32 %v448, 8
      %v450 = vand.u32 %v448, 255
      %v451 = vsub.s32 0, %v450
      %v452 = vsel %vm446, %v451, %v450
      %vm453 = vcmp.lt.s32.totalorder %v265, 0
      %v454 = vsub.s32 0, %v265
      %v455 = vsel %vm453, %v454, %v265
      %v456 = vshrl.u32 %v455, 8
      %v457 = vand.u32 %v455, 255
      %v458 = vsub.s32 0, %v457
      %v459 = vsel %vm453, %v458, %v457
      %vm460 = vcmp.lt.s32.totalorder %v266, 0
      %v461 = vsub.s32 0, %v266
      %v462 = vsel %vm460, %v461, %v266
      %v463 = vshrl.u32 %v462, 8
      %v464 = vand.u32 %v462, 255
      %v465 = vsub.s32 0, %v464
      %v466 = vsel %vm460, %v465, %v464
      %vm467 = vcmp.lt.s32.totalorder %v267, 0
      %v468 = vsub.s32 0, %v267
      %v469 = vsel %vm467, %v468, %v267
      %v470 = vshrl.u32 %v469, 8
      %v471 = vand.u32 %v469, 255
      %v472 = vsub.s32 0, %v471
      %v473 = vsel %vm467, %v472, %v471
      %vm474 = vcmp.lt.s32.totalorder %v268, 0
      %v475 = vsub.s32 0, %v268
      %v476 = vsel %vm474, %v475, %v268
      %v477 = vshrl.u32 %v476, 8
      %v478 = vand.u32 %v476, 255
      %v479 = vsub.s32 0, %v478
      %v480 = vsel %vm474, %v479, %v478
      %vm481 = vcmp.lt.s32.totalorder %v269, 0
      %v482 = vsub.s32 0, %v269
      %v483 = vsel %vm481, %v482, %v269
      %v484 = vshrl.u32 %v483, 8
      %v485 = vand.u32 %v483, 255
      %v486 = vsub.s32 0, %v485
      %v487 = vsel %vm481, %v486, %v485
      %vm488 = vcmp.lt.s32.totalorder %v270, 0
      %v489 = vsub.s32 0, %v270
      %v490 = vsel %vm488, %v489, %v270
      %v491 = vshrl.u32 %v490, 8
      %v492 = vand.u32 %v490, 255
      %v493 = vsub.s32 0, %v492
      %v494 = vsel %vm488, %v493, %v492
      %vm495 = vcmp.ne.s32.totalorder %v277, 0
      %vm496 = vcmp.ne.s32.totalorder %v284, 0
      %vm497 = vcmp.ne.s32.totalorder %v291, 0
      %vm498 = vcmp.ne.s32.totalorder %v298, 0
      %vm499 = vcmp.ne.s32.totalorder %v305, 0
      %vm500 = vcmp.ne.s32.totalorder %v312, 0
      %vm501 = vcmp.ne.s32.totalorder %v319, 0
      %vm502 = vcmp.ne.s32.totalorder %v326, 0
      %vm503 = vcmp.ne.s32.totalorder %v333, 0
      %vm504 = vcmp.ne.s32.totalorder %v340, 0
      %vm505 = vcmp.ne.s32.totalorder %v347, 0
      %vm506 = vcmp.ne.s32.totalorder %v354, 0
      %vm507 = vcmp.ne.s32.totalorder %v361, 0
      %vm508 = vcmp.ne.s32.totalorder %v368, 0
      %vm509 = vcmp.ne.s32.totalorder %v375, 0
      %vm510 = vcmp.ne.s32.totalorder %v382, 0
      %vm511 = vcmp.ne.s32.totalorder %v389, 0
      %vm512 = vcmp.ne.s32.totalorder %v396, 0
      %vm513 = vcmp.ne.s32.totalorder %v403, 0
      %vm514 = vcmp.ne.s32.totalorder %v410, 0
      %vm515 = vcmp.ne.s32.totalorder %v417, 0
      %vm516 = vcmp.ne.s32.totalorder %v424, 0
      %vm517 = vcmp.ne.s32.totalorder %v431, 0
      %vm518 = vcmp.ne.s32.totalorder %v438, 0
      %vm519 = vcmp.ne.s32.totalorder %v445, 0
      %vm520 = vcmp.ne.s32.totalorder %v452, 0
      %vm521 = vcmp.ne.s32.totalorder %v459, 0
      %vm522 = vcmp.ne.s32.totalorder %v466, 0
      %vm523 = vcmp.ne.s32.totalorder %v473, 0
      %vm524 = vcmp.ne.s32.totalorder %v480, 0
      %vm525 = vcmp.ne.s32.totalorder %v487, 0
      %vm526 = vcmp.ne.s32.totalorder %v494, 0
      %vm527 = vcmp.lt.s32.totalorder %v277, 0
      %vm528 = vcmp.lt.s32.totalorder %v284, 0
      %vm529 = vcmp.lt.s32.totalorder %v291, 0
      %vm530 = vcmp.lt.s32.totalorder %v298, 0
      %vm531 = vcmp.lt.s32.totalorder %v305, 0
      %vm532 = vcmp.lt.s32.totalorder %v312, 0
      %vm533 = vcmp.lt.s32.totalorder %v319, 0
      %vm534 = vcmp.lt.s32.totalorder %v326, 0
      %vm535 = vcmp.lt.s32.totalorder %v333, 0
      %vm536 = vcmp.lt.s32.totalorder %v340, 0
      %vm537 = vcmp.lt.s32.totalorder %v347, 0
      %vm538 = vcmp.lt.s32.totalorder %v354, 0
      %vm539 = vcmp.lt.s32.totalorder %v361, 0
      %vm540 = vcmp.lt.s32.totalorder %v368, 0
      %vm541 = vcmp.lt.s32.totalorder %v375, 0
      %vm542 = vcmp.lt.s32.totalorder %v382, 0
      %vm543 = vcmp.lt.s32.totalorder %v389, 0
      %vm544 = vcmp.lt.s32.totalorder %v396, 0
      %vm545 = vcmp.lt.s32.totalorder %v403, 0
      %vm546 = vcmp.lt.s32.totalorder %v410, 0
      %vm547 = vcmp.lt.s32.totalorder %v417, 0
      %vm548 = vcmp.lt.s32.totalorder %v424, 0
      %vm549 = vcmp.lt.s32.totalorder %v431, 0
      %vm550 = vcmp.lt.s32.totalorder %v438, 0
      %vm551 = vcmp.lt.s32.totalorder %v445, 0
      %vm552 = vcmp.lt.s32.totalorder %v452, 0
      %vm553 = vcmp.lt.s32.totalorder %v459, 0
      %vm554 = vcmp.lt.s32.totalorder %v466, 0
      %vm555 = vcmp.lt.s32.totalorder %v473, 0
      %vm556 = vcmp.lt.s32.totalorder %v480, 0
      %vm557 = vcmp.lt.s32.totalorder %v487, 0
      %vm558 = vcmp.lt.s32.totalorder %v494, 0
      %vm559 = vmand %vm527, %vm495
      %vm560 = vmand %vm528, %vm496
      %vm561 = vmand %vm529, %vm497
      %vm562 = vmand %vm530, %vm498
      %vm563 = vmand %vm531, %vm499
      %vm564 = vmand %vm532, %vm500
      %vm565 = vmand %vm533, %vm501
      %vm566 = vmand %vm534, %vm502
      %vm567 = vmand %vm535, %vm503
      %vm568 = vmand %vm536, %vm504
      %vm569 = vmand %vm537, %vm505
      %vm570 = vmand %vm538, %vm506
      %vm571 = vmand %vm539, %vm507
      %vm572 = vmand %vm540, %vm508
      %vm573 = vmand %vm541, %vm509
      %vm574 = vmand %vm542, %vm510
      %vm575 = vmand %vm543, %vm511
      %vm576 = vmand %vm544, %vm512
      %vm577 = vmand %vm545, %vm513
      %vm578 = vmand %vm546, %vm514
      %vm579 = vmand %vm547, %vm515
      %vm580 = vmand %vm548, %vm516
      %vm581 = vmand %vm549, %vm517
      %vm582 = vmand %vm550, %vm518
      %vm583 = vmand %vm551, %vm519
      %vm584 = vmand %vm552, %vm520
      %vm585 = vmand %vm553, %vm521
      %vm586 = vmand %vm554, %vm522
      %vm587 = vmand %vm555, %vm523
      %vm588 = vmand %vm556, %vm524
      %vm589 = vmand %vm557, %vm525
      %vm590 = vmand %vm558, %vm526
      %v591 = vadd.s32 %v277, 256
      %v592 = vadd.s32 %v284, 256
      %v593 = vadd.s32 %v291, 256
      %v594 = vadd.s32 %v298, 256
      %v595 = vadd.s32 %v305, 256
      %v596 = vadd.s32 %v312, 256
      %v597 = vadd.s32 %v319, 256
      %v598 = vadd.s32 %v326, 256
      %v599 = vadd.s32 %v333, 256
      %v600 = vadd.s32 %v340, 256
      %v601 = vadd.s32 %v347, 256
      %v602 = vadd.s32 %v354, 256
      %v603 = vadd.s32 %v361, 256
      %v604 = vadd.s32 %v368, 256
      %v605 = vadd.s32 %v375, 256
      %v606 = vadd.s32 %v382, 256
      %v607 = vadd.s32 %v389, 256
      %v608 = vadd.s32 %v396, 256
      %v609 = vadd.s32 %v403, 256
      %v610 = vadd.s32 %v410, 256
      %v611 = vadd.s32 %v417, 256
      %v612 = vadd.s32 %v424, 256
      %v613 = vadd.s32 %v431, 256
      %v614 = vadd.s32 %v438, 256
      %v615 = vadd.s32 %v445, 256
      %v616 = vadd.s32 %v452, 256
      %v617 = vadd.s32 %v459, 256
      %v618 = vadd.s32 %v466, 256
      %v619 = vadd.s32 %v473, 256
      %v620 = vadd.s32 %v480, 256
      %v621 = vadd.s32 %v487, 256
      %v622 = vadd.s32 %v494, 256
      %v623 = vsel %vm559, %v591, %v277
      %v624 = vsel %vm560, %v592, %v284
      %v625 = vsel %vm561, %v593, %v291
      %v626 = vsel %vm562, %v594, %v298
      %v627 = vsel %vm563, %v595, %v305
      %v628 = vsel %vm564, %v596, %v312
      %v629 = vsel %vm565, %v597, %v319
      %v630 = vsel %vm566, %v598, %v326
      %v631 = vsel %vm567, %v599, %v333
      %v632 = vsel %vm568, %v600, %v340
      %v633 = vsel %vm569, %v601, %v347
      %v634 = vsel %vm570, %v602, %v354
      %v635 = vsel %vm571, %v603, %v361
      %v636 = vsel %vm572, %v604, %v368
      %v637 = vsel %vm573, %v605, %v375
      %v638 = vsel %vm574, %v606, %v382
      %v639 = vsel %vm575, %v607, %v389
      %v640 = vsel %vm576, %v608, %v396
      %v641 = vsel %vm577, %v609, %v403
      %v642 = vsel %vm578, %v610, %v410
      %v643 = vsel %vm579, %v611, %v417
      %v644 = vsel %vm580, %v612, %v424
      %v645 = vsel %vm581, %v613, %v431
      %v646 = vsel %vm582, %v614, %v438
      %v647 = vsel %vm583, %v615, %v445
      %v648 = vsel %vm584, %v616, %v452
      %v649 = vsel %vm585, %v617, %v459
      %v650 = vsel %vm586, %v618, %v466
      %v651 = vsel %vm587, %v619, %v473
      %v652 = vsel %vm588, %v620, %v480
      %v653 = vsel %vm589, %v621, %v487
      %v654 = vsel %vm590, %v622, %v494
      %vm655 = vcmp.lt.s32.totalorder %v239, 0
      %v656 = vsub.s32 0, %v239
      %v657 = vsel %vm655, %v656, %v239
      %v658 = vshrl.u32 %v657, 4
      %v659 = vand.u32 %v657, 15
      %v660 = vsub.s32 0, %v659
      %v661 = vsel %vm655, %v660, %v659
      %vm662 = vcmp.lt.s32.totalorder %v240, 0
      %v663 = vsub.s32 0, %v240
      %v664 = vsel %vm662, %v663, %v240
      %v665 = vshrl.u32 %v664, 4
      %v666 = vand.u32 %v664, 15
      %v667 = vsub.s32 0, %v666
      %v668 = vsel %vm662, %v667, %v666
      %vm669 = vcmp.lt.s32.totalorder %v241, 0
      %v670 = vsub.s32 0, %v241
      %v671 = vsel %vm669, %v670, %v241
      %v672 = vshrl.u32 %v671, 4
      %v673 = vand.u32 %v671, 15
      %v674 = vsub.s32 0, %v673
      %v675 = vsel %vm669, %v674, %v673
      %vm676 = vcmp.lt.s32.totalorder %v242, 0
      %v677 = vsub.s32 0, %v242
      %v678 = vsel %vm676, %v677, %v242
      %v679 = vshrl.u32 %v678, 4
      %v680 = vand.u32 %v678, 15
      %v681 = vsub.s32 0, %v680
      %v682 = vsel %vm676, %v681, %v680
      %vm683 = vcmp.lt.s32.totalorder %v243, 0
      %v684 = vsub.s32 0, %v243
      %v685 = vsel %vm683, %v684, %v243
      %v686 = vshrl.u32 %v685, 4
      %v687 = vand.u32 %v685, 15
      %v688 = vsub.s32 0, %v687
      %v689 = vsel %vm683, %v688, %v687
      %vm690 = vcmp.lt.s32.totalorder %v244, 0
      %v691 = vsub.s32 0, %v244
      %v692 = vsel %vm690, %v691, %v244
      %v693 = vshrl.u32 %v692, 4
      %v694 = vand.u32 %v692, 15
      %v695 = vsub.s32 0, %v694
      %v696 = vsel %vm690, %v695, %v694
      %vm697 = vcmp.lt.s32.totalorder %v245, 0
      %v698 = vsub.s32 0, %v245
      %v699 = vsel %vm697, %v698, %v245
      %v700 = vshrl.u32 %v699, 4
      %v701 = vand.u32 %v699, 15
      %v702 = vsub.s32 0, %v701
      %v703 = vsel %vm697, %v702, %v701
      %vm704 = vcmp.lt.s32.totalorder %v246, 0
      %v705 = vsub.s32 0, %v246
      %v706 = vsel %vm704, %v705, %v246
      %v707 = vshrl.u32 %v706, 4
      %v708 = vand.u32 %v706, 15
      %v709 = vsub.s32 0, %v708
      %v710 = vsel %vm704, %v709, %v708
      %vm711 = vcmp.lt.s32.totalorder %v247, 0
      %v712 = vsub.s32 0, %v247
      %v713 = vsel %vm711, %v712, %v247
      %v714 = vshrl.u32 %v713, 4
      %v715 = vand.u32 %v713, 15
      %v716 = vsub.s32 0, %v715
      %v717 = vsel %vm711, %v716, %v715
      %vm718 = vcmp.lt.s32.totalorder %v248, 0
      %v719 = vsub.s32 0, %v248
      %v720 = vsel %vm718, %v719, %v248
      %v721 = vshrl.u32 %v720, 4
      %v722 = vand.u32 %v720, 15
      %v723 = vsub.s32 0, %v722
      %v724 = vsel %vm718, %v723, %v722
      %vm725 = vcmp.lt.s32.totalorder %v249, 0
      %v726 = vsub.s32 0, %v249
      %v727 = vsel %vm725, %v726, %v249
      %v728 = vshrl.u32 %v727, 4
      %v729 = vand.u32 %v727, 15
      %v730 = vsub.s32 0, %v729
      %v731 = vsel %vm725, %v730, %v729
      %vm732 = vcmp.lt.s32.totalorder %v250, 0
      %v733 = vsub.s32 0, %v250
      %v734 = vsel %vm732, %v733, %v250
      %v735 = vshrl.u32 %v734, 4
      %v736 = vand.u32 %v734, 15
      %v737 = vsub.s32 0, %v736
      %v738 = vsel %vm732, %v737, %v736
      %vm739 = vcmp.lt.s32.totalorder %v251, 0
      %v740 = vsub.s32 0, %v251
      %v741 = vsel %vm739, %v740, %v251
      %v742 = vshrl.u32 %v741, 4
      %v743 = vand.u32 %v741, 15
      %v744 = vsub.s32 0, %v743
      %v745 = vsel %vm739, %v744, %v743
      %vm746 = vcmp.lt.s32.totalorder %v252, 0
      %v747 = vsub.s32 0, %v252
      %v748 = vsel %vm746, %v747, %v252
      %v749 = vshrl.u32 %v748, 4
      %v750 = vand.u32 %v748, 15
      %v751 = vsub.s32 0, %v750
      %v752 = vsel %vm746, %v751, %v750
      %vm753 = vcmp.lt.s32.totalorder %v253, 0
      %v754 = vsub.s32 0, %v253
      %v755 = vsel %vm753, %v754, %v253
      %v756 = vshrl.u32 %v755, 4
      %v757 = vand.u32 %v755, 15
      %v758 = vsub.s32 0, %v757
      %v759 = vsel %vm753, %v758, %v757
      %vm760 = vcmp.lt.s32.totalorder %v254, 0
      %v761 = vsub.s32 0, %v254
      %v762 = vsel %vm760, %v761, %v254
      %v763 = vshrl.u32 %v762, 4
      %v764 = vand.u32 %v762, 15
      %v765 = vsub.s32 0, %v764
      %v766 = vsel %vm760, %v765, %v764
      %vm767 = vcmp.lt.s32.totalorder %v255, 0
      %v768 = vsub.s32 0, %v255
      %v769 = vsel %vm767, %v768, %v255
      %v770 = vshrl.u32 %v769, 4
      %v771 = vand.u32 %v769, 15
      %v772 = vsub.s32 0, %v771
      %v773 = vsel %vm767, %v772, %v771
      %vm774 = vcmp.lt.s32.totalorder %v256, 0
      %v775 = vsub.s32 0, %v256
      %v776 = vsel %vm774, %v775, %v256
      %v777 = vshrl.u32 %v776, 4
      %v778 = vand.u32 %v776, 15
      %v779 = vsub.s32 0, %v778
      %v780 = vsel %vm774, %v779, %v778
      %vm781 = vcmp.lt.s32.totalorder %v257, 0
      %v782 = vsub.s32 0, %v257
      %v783 = vsel %vm781, %v782, %v257
      %v784 = vshrl.u32 %v783, 4
      %v785 = vand.u32 %v783, 15
      %v786 = vsub.s32 0, %v785
      %v787 = vsel %vm781, %v786, %v785
      %vm788 = vcmp.lt.s32.totalorder %v258, 0
      %v789 = vsub.s32 0, %v258
      %v790 = vsel %vm788, %v789, %v258
      %v791 = vshrl.u32 %v790, 4
      %v792 = vand.u32 %v790, 15
      %v793 = vsub.s32 0, %v792
      %v794 = vsel %vm788, %v793, %v792
      %vm795 = vcmp.lt.s32.totalorder %v259, 0
      %v796 = vsub.s32 0, %v259
      %v797 = vsel %vm795, %v796, %v259
      %v798 = vshrl.u32 %v797, 4
      %v799 = vand.u32 %v797, 15
      %v800 = vsub.s32 0, %v799
      %v801 = vsel %vm795, %v800, %v799
      %vm802 = vcmp.lt.s32.totalorder %v260, 0
      %v803 = vsub.s32 0, %v260
      %v804 = vsel %vm802, %v803, %v260
      %v805 = vshrl.u32 %v804, 4
      %v806 = vand.u32 %v804, 15
      %v807 = vsub.s32 0, %v806
      %v808 = vsel %vm802, %v807, %v806
      %vm809 = vcmp.lt.s32.totalorder %v261, 0
      %v810 = vsub.s32 0, %v261
      %v811 = vsel %vm809, %v810, %v261
      %v812 = vshrl.u32 %v811, 4
      %v813 = vand.u32 %v811, 15
      %v814 = vsub.s32 0, %v813
      %v815 = vsel %vm809, %v814, %v813
      %vm816 = vcmp.lt.s32.totalorder %v262, 0
      %v817 = vsub.s32 0, %v262
      %v818 = vsel %vm816, %v817, %v262
      %v819 = vshrl.u32 %v818, 4
      %v820 = vand.u32 %v818, 15
      %v821 = vsub.s32 0, %v820
      %v822 = vsel %vm816, %v821, %v820
      %vm823 = vcmp.lt.s32.totalorder %v263, 0
      %v824 = vsub.s32 0, %v263
      %v825 = vsel %vm823, %v824, %v263
      %v826 = vshrl.u32 %v825, 4
      %v827 = vand.u32 %v825, 15
      %v828 = vsub.s32 0, %v827
      %v829 = vsel %vm823, %v828, %v827
      %vm830 = vcmp.lt.s32.totalorder %v264, 0
      %v831 = vsub.s32 0, %v264
      %v832 = vsel %vm830, %v831, %v264
      %v833 = vshrl.u32 %v832, 4
      %v834 = vand.u32 %v832, 15
      %v835 = vsub.s32 0, %v834
      %v836 = vsel %vm830, %v835, %v834
      %vm837 = vcmp.lt.s32.totalorder %v265, 0
      %v838 = vsub.s32 0, %v265
      %v839 = vsel %vm837, %v838, %v265
      %v840 = vshrl.u32 %v839, 4
      %v841 = vand.u32 %v839, 15
      %v842 = vsub.s32 0, %v841
      %v843 = vsel %vm837, %v842, %v841
      %vm844 = vcmp.lt.s32.totalorder %v266, 0
      %v845 = vsub.s32 0, %v266
      %v846 = vsel %vm844, %v845, %v266
      %v847 = vshrl.u32 %v846, 4
      %v848 = vand.u32 %v846, 15
      %v849 = vsub.s32 0, %v848
      %v850 = vsel %vm844, %v849, %v848
      %vm851 = vcmp.lt.s32.totalorder %v267, 0
      %v852 = vsub.s32 0, %v267
      %v853 = vsel %vm851, %v852, %v267
      %v854 = vshrl.u32 %v853, 4
      %v855 = vand.u32 %v853, 15
      %v856 = vsub.s32 0, %v855
      %v857 = vsel %vm851, %v856, %v855
      %vm858 = vcmp.lt.s32.totalorder %v268, 0
      %v859 = vsub.s32 0, %v268
      %v860 = vsel %vm858, %v859, %v268
      %v861 = vshrl.u32 %v860, 4
      %v862 = vand.u32 %v860, 15
      %v863 = vsub.s32 0, %v862
      %v864 = vsel %vm858, %v863, %v862
      %vm865 = vcmp.lt.s32.totalorder %v269, 0
      %v866 = vsub.s32 0, %v269
      %v867 = vsel %vm865, %v866, %v269
      %v868 = vshrl.u32 %v867, 4
      %v869 = vand.u32 %v867, 15
      %v870 = vsub.s32 0, %v869
      %v871 = vsel %vm865, %v870, %v869
      %vm872 = vcmp.lt.s32.totalorder %v270, 0
      %v873 = vsub.s32 0, %v270
      %v874 = vsel %vm872, %v873, %v270
      %v875 = vshrl.u32 %v874, 4
      %v876 = vand.u32 %v874, 15
      %v877 = vsub.s32 0, %v876
      %v878 = vsel %vm872, %v877, %v876
      %vm879 = vcmp.ne.s32.totalorder %v661, 0
      %vm880 = vcmp.ne.s32.totalorder %v668, 0
      %vm881 = vcmp.ne.s32.totalorder %v675, 0
      %vm882 = vcmp.ne.s32.totalorder %v682, 0
      %vm883 = vcmp.ne.s32.totalorder %v689, 0
      %vm884 = vcmp.ne.s32.totalorder %v696, 0
      %vm885 = vcmp.ne.s32.totalorder %v703, 0
      %vm886 = vcmp.ne.s32.totalorder %v710, 0
      %vm887 = vcmp.ne.s32.totalorder %v717, 0
      %vm888 = vcmp.ne.s32.totalorder %v724, 0
      %vm889 = vcmp.ne.s32.totalorder %v731, 0
      %vm890 = vcmp.ne.s32.totalorder %v738, 0
      %vm891 = vcmp.ne.s32.totalorder %v745, 0
      %vm892 = vcmp.ne.s32.totalorder %v752, 0
      %vm893 = vcmp.ne.s32.totalorder %v759, 0
      %vm894 = vcmp.ne.s32.totalorder %v766, 0
      %vm895 = vcmp.ne.s32.totalorder %v773, 0
      %vm896 = vcmp.ne.s32.totalorder %v780, 0
      %vm897 = vcmp.ne.s32.totalorder %v787, 0
      %vm898 = vcmp.ne.s32.totalorder %v794, 0
      %vm899 = vcmp.ne.s32.totalorder %v801, 0
      %vm900 = vcmp.ne.s32.totalorder %v808, 0
      %vm901 = vcmp.ne.s32.totalorder %v815, 0
      %vm902 = vcmp.ne.s32.totalorder %v822, 0
      %vm903 = vcmp.ne.s32.totalorder %v829, 0
      %vm904 = vcmp.ne.s32.totalorder %v836, 0
      %vm905 = vcmp.ne.s32.totalorder %v843, 0
      %vm906 = vcmp.ne.s32.totalorder %v850, 0
      %vm907 = vcmp.ne.s32.totalorder %v857, 0
      %vm908 = vcmp.ne.s32.totalorder %v864, 0
      %vm909 = vcmp.ne.s32.totalorder %v871, 0
      %vm910 = vcmp.ne.s32.totalorder %v878, 0
      %vm911 = vcmp.lt.s32.totalorder %v661, 0
      %vm912 = vcmp.lt.s32.totalorder %v668, 0
      %vm913 = vcmp.lt.s32.totalorder %v675, 0
      %vm914 = vcmp.lt.s32.totalorder %v682, 0
      %vm915 = vcmp.lt.s32.totalorder %v689, 0
      %vm916 = vcmp.lt.s32.totalorder %v696, 0
      %vm917 = vcmp.lt.s32.totalorder %v703, 0
      %vm918 = vcmp.lt.s32.totalorder %v710, 0
      %vm919 = vcmp.lt.s32.totalorder %v717, 0
      %vm920 = vcmp.lt.s32.totalorder %v724, 0
      %vm921 = vcmp.lt.s32.totalorder %v731, 0
      %vm922 = vcmp.lt.s32.totalorder %v738, 0
      %vm923 = vcmp.lt.s32.totalorder %v745, 0
      %vm924 = vcmp.lt.s32.totalorder %v752, 0
      %vm925 = vcmp.lt.s32.totalorder %v759, 0
      %vm926 = vcmp.lt.s32.totalorder %v766, 0
      %vm927 = vcmp.lt.s32.totalorder %v773, 0
      %vm928 = vcmp.lt.s32.totalorder %v780, 0
      %vm929 = vcmp.lt.s32.totalorder %v787, 0
      %vm930 = vcmp.lt.s32.totalorder %v794, 0
      %vm931 = vcmp.lt.s32.totalorder %v801, 0
      %vm932 = vcmp.lt.s32.totalorder %v808, 0
      %vm933 = vcmp.lt.s32.totalorder %v815, 0
      %vm934 = vcmp.lt.s32.totalorder %v822, 0
      %vm935 = vcmp.lt.s32.totalorder %v829, 0
      %vm936 = vcmp.lt.s32.totalorder %v836, 0
      %vm937 = vcmp.lt.s32.totalorder %v843, 0
      %vm938 = vcmp.lt.s32.totalorder %v850, 0
      %vm939 = vcmp.lt.s32.totalorder %v857, 0
      %vm940 = vcmp.lt.s32.totalorder %v864, 0
      %vm941 = vcmp.lt.s32.totalorder %v871, 0
      %vm942 = vcmp.lt.s32.totalorder %v878, 0
      %vm943 = vmand %vm911, %vm879
      %vm944 = vmand %vm912, %vm880
      %vm945 = vmand %vm913, %vm881
      %vm946 = vmand %vm914, %vm882
      %vm947 = vmand %vm915, %vm883
      %vm948 = vmand %vm916, %vm884
      %vm949 = vmand %vm917, %vm885
      %vm950 = vmand %vm918, %vm886
      %vm951 = vmand %vm919, %vm887
      %vm952 = vmand %vm920, %vm888
      %vm953 = vmand %vm921, %vm889
      %vm954 = vmand %vm922, %vm890
      %vm955 = vmand %vm923, %vm891
      %vm956 = vmand %vm924, %vm892
      %vm957 = vmand %vm925, %vm893
      %vm958 = vmand %vm926, %vm894
      %vm959 = vmand %vm927, %vm895
      %vm960 = vmand %vm928, %vm896
      %vm961 = vmand %vm929, %vm897
      %vm962 = vmand %vm930, %vm898
      %vm963 = vmand %vm931, %vm899
      %vm964 = vmand %vm932, %vm900
      %vm965 = vmand %vm933, %vm901
      %vm966 = vmand %vm934, %vm902
      %vm967 = vmand %vm935, %vm903
      %vm968 = vmand %vm936, %vm904
      %vm969 = vmand %vm937, %vm905
      %vm970 = vmand %vm938, %vm906
      %vm971 = vmand %vm939, %vm907
      %vm972 = vmand %vm940, %vm908
      %vm973 = vmand %vm941, %vm909
      %vm974 = vmand %vm942, %vm910
      %v975 = vadd.s32 %v661, 16
      %v976 = vadd.s32 %v668, 16
      %v977 = vadd.s32 %v675, 16
      %v978 = vadd.s32 %v682, 16
      %v979 = vadd.s32 %v689, 16
      %v980 = vadd.s32 %v696, 16
      %v981 = vadd.s32 %v703, 16
      %v982 = vadd.s32 %v710, 16
      %v983 = vadd.s32 %v717, 16
      %v984 = vadd.s32 %v724, 16
      %v985 = vadd.s32 %v731, 16
      %v986 = vadd.s32 %v738, 16
      %v987 = vadd.s32 %v745, 16
      %v988 = vadd.s32 %v752, 16
      %v989 = vadd.s32 %v759, 16
      %v990 = vadd.s32 %v766, 16
      %v991 = vadd.s32 %v773, 16
      %v992 = vadd.s32 %v780, 16
      %v993 = vadd.s32 %v787, 16
      %v994 = vadd.s32 %v794, 16
      %v995 = vadd.s32 %v801, 16
      %v996 = vadd.s32 %v808, 16
      %v997 = vadd.s32 %v815, 16
      %v998 = vadd.s32 %v822, 16
      %v999 = vadd.s32 %v829, 16
      %v1000 = vadd.s32 %v836, 16
      %v1001 = vadd.s32 %v843, 16
      %v1002 = vadd.s32 %v850, 16
      %v1003 = vadd.s32 %v857, 16
      %v1004 = vadd.s32 %v864, 16
      %v1005 = vadd.s32 %v871, 16
      %v1006 = vadd.s32 %v878, 16
      %v1007 = vsel %vm943, %v975, %v661
      %v1008 = vsel %vm944, %v976, %v668
      %v1009 = vsel %vm945, %v977, %v675
      %v1010 = vsel %vm946, %v978, %v682
      %v1011 = vsel %vm947, %v979, %v689
      %v1012 = vsel %vm948, %v980, %v696
      %v1013 = vsel %vm949, %v981, %v703
      %v1014 = vsel %vm950, %v982, %v710
      %v1015 = vsel %vm951, %v983, %v717
      %v1016 = vsel %vm952, %v984, %v724
      %v1017 = vsel %vm953, %v985, %v731
      %v1018 = vsel %vm954, %v986, %v738
      %v1019 = vsel %vm955, %v987, %v745
      %v1020 = vsel %vm956, %v988, %v752
      %v1021 = vsel %vm957, %v989, %v759
      %v1022 = vsel %vm958, %v990, %v766
      %v1023 = vsel %vm959, %v991, %v773
      %v1024 = vsel %vm960, %v992, %v780
      %v1025 = vsel %vm961, %v993, %v787
      %v1026 = vsel %vm962, %v994, %v794
      %v1027 = vsel %vm963, %v995, %v801
      %v1028 = vsel %vm964, %v996, %v808
      %v1029 = vsel %vm965, %v997, %v815
      %v1030 = vsel %vm966, %v998, %v822
      %v1031 = vsel %vm967, %v999, %v829
      %v1032 = vsel %vm968, %v1000, %v836
      %v1033 = vsel %vm969, %v1001, %v843
      %v1034 = vsel %vm970, %v1002, %v850
      %v1035 = vsel %vm971, %v1003, %v857
      %v1036 = vsel %vm972, %v1004, %v864
      %v1037 = vsel %vm973, %v1005, %v871
      %v1038 = vsel %vm974, %v1006, %v878
      %vm1039 = vcmp.ge.s32.totalorder %v623, 16
      %vm1040 = vcmp.ge.s32.totalorder %v624, 16
      %vm1041 = vcmp.ge.s32.totalorder %v625, 16
      %vm1042 = vcmp.ge.s32.totalorder %v626, 16
      %vm1043 = vcmp.ge.s32.totalorder %v627, 16
      %vm1044 = vcmp.ge.s32.totalorder %v628, 16
      %vm1045 = vcmp.ge.s32.totalorder %v629, 16
      %vm1046 = vcmp.ge.s32.totalorder %v630, 16
      %vm1047 = vcmp.ge.s32.totalorder %v631, 16
      %vm1048 = vcmp.ge.s32.totalorder %v632, 16
      %vm1049 = vcmp.ge.s32.totalorder %v633, 16
      %vm1050 = vcmp.ge.s32.totalorder %v634, 16
      %vm1051 = vcmp.ge.s32.totalorder %v635, 16
      %vm1052 = vcmp.ge.s32.totalorder %v636, 16
      %vm1053 = vcmp.ge.s32.totalorder %v637, 16
      %vm1054 = vcmp.ge.s32.totalorder %v638, 16
      %vm1055 = vcmp.ge.s32.totalorder %v639, 16
      %vm1056 = vcmp.ge.s32.totalorder %v640, 16
      %vm1057 = vcmp.ge.s32.totalorder %v641, 16
      %vm1058 = vcmp.ge.s32.totalorder %v642, 16
      %vm1059 = vcmp.ge.s32.totalorder %v643, 16
      %vm1060 = vcmp.ge.s32.totalorder %v644, 16
      %vm1061 = vcmp.ge.s32.totalorder %v645, 16
      %vm1062 = vcmp.ge.s32.totalorder %v646, 16
      %vm1063 = vcmp.ge.s32.totalorder %v647, 16
      %vm1064 = vcmp.ge.s32.totalorder %v648, 16
      %vm1065 = vcmp.ge.s32.totalorder %v649, 16
      %vm1066 = vcmp.ge.s32.totalorder %v650, 16
      %vm1067 = vcmp.ge.s32.totalorder %v651, 16
      %vm1068 = vcmp.ge.s32.totalorder %v652, 16
      %vm1069 = vcmp.ge.s32.totalorder %v653, 16
      %vm1070 = vcmp.ge.s32.totalorder %v654, 16
      %v1071 = vsel %vm1039, 1, 0
      %v1072 = vsel %vm1040, 1, 0
      %v1073 = vsel %vm1041, 1, 0
      %v1074 = vsel %vm1042, 1, 0
      %v1075 = vsel %vm1043, 1, 0
      %v1076 = vsel %vm1044, 1, 0
      %v1077 = vsel %vm1045, 1, 0
      %v1078 = vsel %vm1046, 1, 0
      %v1079 = vsel %vm1047, 1, 0
      %v1080 = vsel %vm1048, 1, 0
      %v1081 = vsel %vm1049, 1, 0
      %v1082 = vsel %vm1050, 1, 0
      %v1083 = vsel %vm1051, 1, 0
      %v1084 = vsel %vm1052, 1, 0
      %v1085 = vsel %vm1053, 1, 0
      %v1086 = vsel %vm1054, 1, 0
      %v1087 = vsel %vm1055, 1, 0
      %v1088 = vsel %vm1056, 1, 0
      %v1089 = vsel %vm1057, 1, 0
      %v1090 = vsel %vm1058, 1, 0
      %v1091 = vsel %vm1059, 1, 0
      %v1092 = vsel %vm1060, 1, 0
      %v1093 = vsel %vm1061, 1, 0
      %v1094 = vsel %vm1062, 1, 0
      %v1095 = vsel %vm1063, 1, 0
      %v1096 = vsel %vm1064, 1, 0
      %v1097 = vsel %vm1065, 1, 0
      %v1098 = vsel %vm1066, 1, 0
      %v1099 = vsel %vm1067, 1, 0
      %v1100 = vsel %vm1068, 1, 0
      %v1101 = vsel %vm1069, 1, 0
      %v1102 = vsel %vm1070, 1, 0
      %v1103 = vcvt.s32.f32 %v1071
      %v1104 = vcvt.s32.f32 %v1072
      %v1105 = vcvt.s32.f32 %v1073
      %v1106 = vcvt.s32.f32 %v1074
      %v1107 = vcvt.s32.f32 %v1075
      %v1108 = vcvt.s32.f32 %v1076
      %v1109 = vcvt.s32.f32 %v1077
      %v1110 = vcvt.s32.f32 %v1078
      %v1111 = vcvt.s32.f32 %v1079
      %v1112 = vcvt.s32.f32 %v1080
      %v1113 = vcvt.s32.f32 %v1081
      %v1114 = vcvt.s32.f32 %v1082
      %v1115 = vcvt.s32.f32 %v1083
      %v1116 = vcvt.s32.f32 %v1084
      %v1117 = vcvt.s32.f32 %v1085
      %v1118 = vcvt.s32.f32 %v1086
      %v1119 = vcvt.s32.f32 %v1087
      %v1120 = vcvt.s32.f32 %v1088
      %v1121 = vcvt.s32.f32 %v1089
      %v1122 = vcvt.s32.f32 %v1090
      %v1123 = vcvt.s32.f32 %v1091
      %v1124 = vcvt.s32.f32 %v1092
      %v1125 = vcvt.s32.f32 %v1093
      %v1126 = vcvt.s32.f32 %v1094
      %v1127 = vcvt.s32.f32 %v1095
      %v1128 = vcvt.s32.f32 %v1096
      %v1129 = vcvt.s32.f32 %v1097
      %v1130 = vcvt.s32.f32 %v1098
      %v1131 = vcvt.s32.f32 %v1099
      %v1132 = vcvt.s32.f32 %v1100
      %v1133 = vcvt.s32.f32 %v1101
      %v1134 = vcvt.s32.f32 %v1102
      %vm1135 = vcmp.lt.s32.totalorder %v623, 240
      %vm1136 = vcmp.lt.s32.totalorder %v624, 240
      %vm1137 = vcmp.lt.s32.totalorder %v625, 240
      %vm1138 = vcmp.lt.s32.totalorder %v626, 240
      %vm1139 = vcmp.lt.s32.totalorder %v627, 240
      %vm1140 = vcmp.lt.s32.totalorder %v628, 240
      %vm1141 = vcmp.lt.s32.totalorder %v629, 240
      %vm1142 = vcmp.lt.s32.totalorder %v630, 240
      %vm1143 = vcmp.lt.s32.totalorder %v631, 240
      %vm1144 = vcmp.lt.s32.totalorder %v632, 240
      %vm1145 = vcmp.lt.s32.totalorder %v633, 240
      %vm1146 = vcmp.lt.s32.totalorder %v634, 240
      %vm1147 = vcmp.lt.s32.totalorder %v635, 240
      %vm1148 = vcmp.lt.s32.totalorder %v636, 240
      %vm1149 = vcmp.lt.s32.totalorder %v637, 240
      %vm1150 = vcmp.lt.s32.totalorder %v638, 240
      %vm1151 = vcmp.lt.s32.totalorder %v639, 240
      %vm1152 = vcmp.lt.s32.totalorder %v640, 240
      %vm1153 = vcmp.lt.s32.totalorder %v641, 240
      %vm1154 = vcmp.lt.s32.totalorder %v642, 240
      %vm1155 = vcmp.lt.s32.totalorder %v643, 240
      %vm1156 = vcmp.lt.s32.totalorder %v644, 240
      %vm1157 = vcmp.lt.s32.totalorder %v645, 240
      %vm1158 = vcmp.lt.s32.totalorder %v646, 240
      %vm1159 = vcmp.lt.s32.totalorder %v647, 240
      %vm1160 = vcmp.lt.s32.totalorder %v648, 240
      %vm1161 = vcmp.lt.s32.totalorder %v649, 240
      %vm1162 = vcmp.lt.s32.totalorder %v650, 240
      %vm1163 = vcmp.lt.s32.totalorder %v651, 240
      %vm1164 = vcmp.lt.s32.totalorder %v652, 240
      %vm1165 = vcmp.lt.s32.totalorder %v653, 240
      %vm1166 = vcmp.lt.s32.totalorder %v654, 240
      %v1167 = vsel %vm1135, 1, 0
      %v1168 = vsel %vm1136, 1, 0
      %v1169 = vsel %vm1137, 1, 0
      %v1170 = vsel %vm1138, 1, 0
      %v1171 = vsel %vm1139, 1, 0
      %v1172 = vsel %vm1140, 1, 0
      %v1173 = vsel %vm1141, 1, 0
      %v1174 = vsel %vm1142, 1, 0
      %v1175 = vsel %vm1143, 1, 0
      %v1176 = vsel %vm1144, 1, 0
      %v1177 = vsel %vm1145, 1, 0
      %v1178 = vsel %vm1146, 1, 0
      %v1179 = vsel %vm1147, 1, 0
      %v1180 = vsel %vm1148, 1, 0
      %v1181 = vsel %vm1149, 1, 0
      %v1182 = vsel %vm1150, 1, 0
      %v1183 = vsel %vm1151, 1, 0
      %v1184 = vsel %vm1152, 1, 0
      %v1185 = vsel %vm1153, 1, 0
      %v1186 = vsel %vm1154, 1, 0
      %v1187 = vsel %vm1155, 1, 0
      %v1188 = vsel %vm1156, 1, 0
      %v1189 = vsel %vm1157, 1, 0
      %v1190 = vsel %vm1158, 1, 0
      %v1191 = vsel %vm1159, 1, 0
      %v1192 = vsel %vm1160, 1, 0
      %v1193 = vsel %vm1161, 1, 0
      %v1194 = vsel %vm1162, 1, 0
      %v1195 = vsel %vm1163, 1, 0
      %v1196 = vsel %vm1164, 1, 0
      %v1197 = vsel %vm1165, 1, 0
      %v1198 = vsel %vm1166, 1, 0
      %v1199 = vcvt.s32.f32 %v1167
      %v1200 = vcvt.s32.f32 %v1168
      %v1201 = vcvt.s32.f32 %v1169
      %v1202 = vcvt.s32.f32 %v1170
      %v1203 = vcvt.s32.f32 %v1171
      %v1204 = vcvt.s32.f32 %v1172
      %v1205 = vcvt.s32.f32 %v1173
      %v1206 = vcvt.s32.f32 %v1174
      %v1207 = vcvt.s32.f32 %v1175
      %v1208 = vcvt.s32.f32 %v1176
      %v1209 = vcvt.s32.f32 %v1177
      %v1210 = vcvt.s32.f32 %v1178
      %v1211 = vcvt.s32.f32 %v1179
      %v1212 = vcvt.s32.f32 %v1180
      %v1213 = vcvt.s32.f32 %v1181
      %v1214 = vcvt.s32.f32 %v1182
      %v1215 = vcvt.s32.f32 %v1183
      %v1216 = vcvt.s32.f32 %v1184
      %v1217 = vcvt.s32.f32 %v1185
      %v1218 = vcvt.s32.f32 %v1186
      %v1219 = vcvt.s32.f32 %v1187
      %v1220 = vcvt.s32.f32 %v1188
      %v1221 = vcvt.s32.f32 %v1189
      %v1222 = vcvt.s32.f32 %v1190
      %v1223 = vcvt.s32.f32 %v1191
      %v1224 = vcvt.s32.f32 %v1192
      %v1225 = vcvt.s32.f32 %v1193
      %v1226 = vcvt.s32.f32 %v1194
      %v1227 = vcvt.s32.f32 %v1195
      %v1228 = vcvt.s32.f32 %v1196
      %v1229 = vcvt.s32.f32 %v1197
      %v1230 = vcvt.s32.f32 %v1198
      %vm1231 = vcmp.gt.s32.totalorder %v1007, 0
      %vm1232 = vcmp.gt.s32.totalorder %v1008, 0
      %vm1233 = vcmp.gt.s32.totalorder %v1009, 0
      %vm1234 = vcmp.gt.s32.totalorder %v1010, 0
      %vm1235 = vcmp.gt.s32.totalorder %v1011, 0
      %vm1236 = vcmp.gt.s32.totalorder %v1012, 0
      %vm1237 = vcmp.gt.s32.totalorder %v1013, 0
      %vm1238 = vcmp.gt.s32.totalorder %v1014, 0
      %vm1239 = vcmp.gt.s32.totalorder %v1015, 0
      %vm1240 = vcmp.gt.s32.totalorder %v1016, 0
      %vm1241 = vcmp.gt.s32.totalorder %v1017, 0
      %vm1242 = vcmp.gt.s32.totalorder %v1018, 0
      %vm1243 = vcmp.gt.s32.totalorder %v1019, 0
      %vm1244 = vcmp.gt.s32.totalorder %v1020, 0
      %vm1245 = vcmp.gt.s32.totalorder %v1021, 0
      %vm1246 = vcmp.gt.s32.totalorder %v1022, 0
      %vm1247 = vcmp.gt.s32.totalorder %v1023, 0
      %vm1248 = vcmp.gt.s32.totalorder %v1024, 0
      %vm1249 = vcmp.gt.s32.totalorder %v1025, 0
      %vm1250 = vcmp.gt.s32.totalorder %v1026, 0
      %vm1251 = vcmp.gt.s32.totalorder %v1027, 0
      %vm1252 = vcmp.gt.s32.totalorder %v1028, 0
      %vm1253 = vcmp.gt.s32.totalorder %v1029, 0
      %vm1254 = vcmp.gt.s32.totalorder %v1030, 0
      %vm1255 = vcmp.gt.s32.totalorder %v1031, 0
      %vm1256 = vcmp.gt.s32.totalorder %v1032, 0
      %vm1257 = vcmp.gt.s32.totalorder %v1033, 0
      %vm1258 = vcmp.gt.s32.totalorder %v1034, 0
      %vm1259 = vcmp.gt.s32.totalorder %v1035, 0
      %vm1260 = vcmp.gt.s32.totalorder %v1036, 0
      %vm1261 = vcmp.gt.s32.totalorder %v1037, 0
      %vm1262 = vcmp.gt.s32.totalorder %v1038, 0
      %v1263 = vsel %vm1231, 1, 0
      %v1264 = vsel %vm1232, 1, 0
      %v1265 = vsel %vm1233, 1, 0
      %v1266 = vsel %vm1234, 1, 0
      %v1267 = vsel %vm1235, 1, 0
      %v1268 = vsel %vm1236, 1, 0
      %v1269 = vsel %vm1237, 1, 0
      %v1270 = vsel %vm1238, 1, 0
      %v1271 = vsel %vm1239, 1, 0
      %v1272 = vsel %vm1240, 1, 0
      %v1273 = vsel %vm1241, 1, 0
      %v1274 = vsel %vm1242, 1, 0
      %v1275 = vsel %vm1243, 1, 0
      %v1276 = vsel %vm1244, 1, 0
      %v1277 = vsel %vm1245, 1, 0
      %v1278 = vsel %vm1246, 1, 0
      %v1279 = vsel %vm1247, 1, 0
      %v1280 = vsel %vm1248, 1, 0
      %v1281 = vsel %vm1249, 1, 0
      %v1282 = vsel %vm1250, 1, 0
      %v1283 = vsel %vm1251, 1, 0
      %v1284 = vsel %vm1252, 1, 0
      %v1285 = vsel %vm1253, 1, 0
      %v1286 = vsel %vm1254, 1, 0
      %v1287 = vsel %vm1255, 1, 0
      %v1288 = vsel %vm1256, 1, 0
      %v1289 = vsel %vm1257, 1, 0
      %v1290 = vsel %vm1258, 1, 0
      %v1291 = vsel %vm1259, 1, 0
      %v1292 = vsel %vm1260, 1, 0
      %v1293 = vsel %vm1261, 1, 0
      %v1294 = vsel %vm1262, 1, 0
      %v1295 = vcvt.s32.f32 %v1263
      %v1296 = vcvt.s32.f32 %v1264
      %v1297 = vcvt.s32.f32 %v1265
      %v1298 = vcvt.s32.f32 %v1266
      %v1299 = vcvt.s32.f32 %v1267
      %v1300 = vcvt.s32.f32 %v1268
      %v1301 = vcvt.s32.f32 %v1269
      %v1302 = vcvt.s32.f32 %v1270
      %v1303 = vcvt.s32.f32 %v1271
      %v1304 = vcvt.s32.f32 %v1272
      %v1305 = vcvt.s32.f32 %v1273
      %v1306 = vcvt.s32.f32 %v1274
      %v1307 = vcvt.s32.f32 %v1275
      %v1308 = vcvt.s32.f32 %v1276
      %v1309 = vcvt.s32.f32 %v1277
      %v1310 = vcvt.s32.f32 %v1278
      %v1311 = vcvt.s32.f32 %v1279
      %v1312 = vcvt.s32.f32 %v1280
      %v1313 = vcvt.s32.f32 %v1281
      %v1314 = vcvt.s32.f32 %v1282
      %v1315 = vcvt.s32.f32 %v1283
      %v1316 = vcvt.s32.f32 %v1284
      %v1317 = vcvt.s32.f32 %v1285
      %v1318 = vcvt.s32.f32 %v1286
      %v1319 = vcvt.s32.f32 %v1287
      %v1320 = vcvt.s32.f32 %v1288
      %v1321 = vcvt.s32.f32 %v1289
      %v1322 = vcvt.s32.f32 %v1290
      %v1323 = vcvt.s32.f32 %v1291
      %v1324 = vcvt.s32.f32 %v1292
      %v1325 = vcvt.s32.f32 %v1293
      %v1326 = vcvt.s32.f32 %v1294
      %vm1327 = vcmp.lt.s32.totalorder %v1007, 15
      %vm1328 = vcmp.lt.s32.totalorder %v1008, 15
      %vm1329 = vcmp.lt.s32.totalorder %v1009, 15
      %vm1330 = vcmp.lt.s32.totalorder %v1010, 15
      %vm1331 = vcmp.lt.s32.totalorder %v1011, 15
      %vm1332 = vcmp.lt.s32.totalorder %v1012, 15
      %vm1333 = vcmp.lt.s32.totalorder %v1013, 15
      %vm1334 = vcmp.lt.s32.totalorder %v1014, 15
      %vm1335 = vcmp.lt.s32.totalorder %v1015, 15
      %vm1336 = vcmp.lt.s32.totalorder %v1016, 15
      %vm1337 = vcmp.lt.s32.totalorder %v1017, 15
      %vm1338 = vcmp.lt.s32.totalorder %v1018, 15
      %vm1339 = vcmp.lt.s32.totalorder %v1019, 15
      %vm1340 = vcmp.lt.s32.totalorder %v1020, 15
      %vm1341 = vcmp.lt.s32.totalorder %v1021, 15
      %vm1342 = vcmp.lt.s32.totalorder %v1022, 15
      %vm1343 = vcmp.lt.s32.totalorder %v1023, 15
      %vm1344 = vcmp.lt.s32.totalorder %v1024, 15
      %vm1345 = vcmp.lt.s32.totalorder %v1025, 15
      %vm1346 = vcmp.lt.s32.totalorder %v1026, 15
      %vm1347 = vcmp.lt.s32.totalorder %v1027, 15
      %vm1348 = vcmp.lt.s32.totalorder %v1028, 15
      %vm1349 = vcmp.lt.s32.totalorder %v1029, 15
      %vm1350 = vcmp.lt.s32.totalorder %v1030, 15
      %vm1351 = vcmp.lt.s32.totalorder %v1031, 15
      %vm1352 = vcmp.lt.s32.totalorder %v1032, 15
      %vm1353 = vcmp.lt.s32.totalorder %v1033, 15
      %vm1354 = vcmp.lt.s32.totalorder %v1034, 15
      %vm1355 = vcmp.lt.s32.totalorder %v1035, 15
      %vm1356 = vcmp.lt.s32.totalorder %v1036, 15
      %vm1357 = vcmp.lt.s32.totalorder %v1037, 15
      %vm1358 = vcmp.lt.s32.totalorder %v1038, 15
      %v1359 = vsel %vm1327, 1, 0
      %v1360 = vsel %vm1328, 1, 0
      %v1361 = vsel %vm1329, 1, 0
      %v1362 = vsel %vm1330, 1, 0
      %v1363 = vsel %vm1331, 1, 0
      %v1364 = vsel %vm1332, 1, 0
      %v1365 = vsel %vm1333, 1, 0
      %v1366 = vsel %vm1334, 1, 0
      %v1367 = vsel %vm1335, 1, 0
      %v1368 = vsel %vm1336, 1, 0
      %v1369 = vsel %vm1337, 1, 0
      %v1370 = vsel %vm1338, 1, 0
      %v1371 = vsel %vm1339, 1, 0
      %v1372 = vsel %vm1340, 1, 0
      %v1373 = vsel %vm1341, 1, 0
      %v1374 = vsel %vm1342, 1, 0
      %v1375 = vsel %vm1343, 1, 0
      %v1376 = vsel %vm1344, 1, 0
      %v1377 = vsel %vm1345, 1, 0
      %v1378 = vsel %vm1346, 1, 0
      %v1379 = vsel %vm1347, 1, 0
      %v1380 = vsel %vm1348, 1, 0
      %v1381 = vsel %vm1349, 1, 0
      %v1382 = vsel %vm1350, 1, 0
      %v1383 = vsel %vm1351, 1, 0
      %v1384 = vsel %vm1352, 1, 0
      %v1385 = vsel %vm1353, 1, 0
      %v1386 = vsel %vm1354, 1, 0
      %v1387 = vsel %vm1355, 1, 0
      %v1388 = vsel %vm1356, 1, 0
      %v1389 = vsel %vm1357, 1, 0
      %v1390 = vsel %vm1358, 1, 0
      %v1391 = vcvt.s32.f32 %v1359
      %v1392 = vcvt.s32.f32 %v1360
      %v1393 = vcvt.s32.f32 %v1361
      %v1394 = vcvt.s32.f32 %v1362
      %v1395 = vcvt.s32.f32 %v1363
      %v1396 = vcvt.s32.f32 %v1364
      %v1397 = vcvt.s32.f32 %v1365
      %v1398 = vcvt.s32.f32 %v1366
      %v1399 = vcvt.s32.f32 %v1367
      %v1400 = vcvt.s32.f32 %v1368
      %v1401 = vcvt.s32.f32 %v1369
      %v1402 = vcvt.s32.f32 %v1370
      %v1403 = vcvt.s32.f32 %v1371
      %v1404 = vcvt.s32.f32 %v1372
      %v1405 = vcvt.s32.f32 %v1373
      %v1406 = vcvt.s32.f32 %v1374
      %v1407 = vcvt.s32.f32 %v1375
      %v1408 = vcvt.s32.f32 %v1376
      %v1409 = vcvt.s32.f32 %v1377
      %v1410 = vcvt.s32.f32 %v1378
      %v1411 = vcvt.s32.f32 %v1379
      %v1412 = vcvt.s32.f32 %v1380
      %v1413 = vcvt.s32.f32 %v1381
      %v1414 = vcvt.s32.f32 %v1382
      %v1415 = vcvt.s32.f32 %v1383
      %v1416 = vcvt.s32.f32 %v1384
      %v1417 = vcvt.s32.f32 %v1385
      %v1418 = vcvt.s32.f32 %v1386
      %v1419 = vcvt.s32.f32 %v1387
      %v1420 = vcvt.s32.f32 %v1388
      %v1421 = vcvt.s32.f32 %v1389
      %v1422 = vcvt.s32.f32 %v1390
      %v1423 = vmul.f32 %v1103, %v1295
      %v1424 = vmul.f32 %v1104, %v1296
      %v1425 = vmul.f32 %v1105, %v1297
      %v1426 = vmul.f32 %v1106, %v1298
      %v1427 = vmul.f32 %v1107, %v1299
      %v1428 = vmul.f32 %v1108, %v1300
      %v1429 = vmul.f32 %v1109, %v1301
      %v1430 = vmul.f32 %v1110, %v1302
      %v1431 = vmul.f32 %v1111, %v1303
      %v1432 = vmul.f32 %v1112, %v1304
      %v1433 = vmul.f32 %v1113, %v1305
      %v1434 = vmul.f32 %v1114, %v1306
      %v1435 = vmul.f32 %v1115, %v1307
      %v1436 = vmul.f32 %v1116, %v1308
      %v1437 = vmul.f32 %v1117, %v1309
      %v1438 = vmul.f32 %v1118, %v1310
      %v1439 = vmul.f32 %v1119, %v1311
      %v1440 = vmul.f32 %v1120, %v1312
      %v1441 = vmul.f32 %v1121, %v1313
      %v1442 = vmul.f32 %v1122, %v1314
      %v1443 = vmul.f32 %v1123, %v1315
      %v1444 = vmul.f32 %v1124, %v1316
      %v1445 = vmul.f32 %v1125, %v1317
      %v1446 = vmul.f32 %v1126, %v1318
      %v1447 = vmul.f32 %v1127, %v1319
      %v1448 = vmul.f32 %v1128, %v1320
      %v1449 = vmul.f32 %v1129, %v1321
      %v1450 = vmul.f32 %v1130, %v1322
      %v1451 = vmul.f32 %v1131, %v1323
      %v1452 = vmul.f32 %v1132, %v1324
      %v1453 = vmul.f32 %v1133, %v1325
      %v1454 = vmul.f32 %v1134, %v1326
      %1487 = vrot.lane.b32.xlu0 %v1423, 111
      %v1488 = vpop.permute.xlu0 %1487
      %1489 = vrot.lane.b32.xlu0 %v1424, 111
      %v1490 = vpop.permute.xlu0 %1489
      %1491 = vrot.lane.b32.xlu0 %v1425, 111
      %v1492 = vpop.permute.xlu0 %1491
      %1493 = vrot.lane.b32.xlu0 %v1426, 111
      %v1494 = vpop.permute.xlu0 %1493
      %1495 = vrot.lane.b32.xlu0 %v1427, 111
      %v1496 = vpop.permute.xlu0 %1495
      %1497 = vrot.lane.b32.xlu0 %v1428, 111
      %v1498 = vpop.permute.xlu0 %1497
      %1499 = vrot.lane.b32.xlu0 %v1429, 111
      %v1500 = vpop.permute.xlu0 %1499
      %1501 = vrot.lane.b32.xlu0 %v1430, 111
      %v1502 = vpop.permute.xlu0 %1501
      %1503 = vrot.lane.b32.xlu0 %v1431, 111
      %v1504 = vpop.permute.xlu0 %1503
      %1505 = vrot.lane.b32.xlu0 %v1432, 111
      %v1506 = vpop.permute.xlu0 %1505
      %1507 = vrot.lane.b32.xlu0 %v1433, 111
      %v1508 = vpop.permute.xlu0 %1507
      %1509 = vrot.lane.b32.xlu0 %v1434, 111
      %v1510 = vpop.permute.xlu0 %1509
      %1511 = vrot.lane.b32.xlu0 %v1435, 111
      %v1512 = vpop.permute.xlu0 %1511
      %1513 = vrot.lane.b32.xlu0 %v1436, 111
      %v1514 = vpop.permute.xlu0 %1513
      %1515 = vrot.lane.b32.xlu0 %v1437, 111
      %v1516 = vpop.permute.xlu0 %1515
      %1517 = vrot.lane.b32.xlu0 %v1438, 111
      %v1518 = vpop.permute.xlu0 %1517
      %1519 = vrot.lane.b32.xlu0 %v1439, 111
      %v1520 = vpop.permute.xlu0 %1519
      %1521 = vrot.lane.b32.xlu0 %v1440, 111
      %v1522 = vpop.permute.xlu0 %1521
      %1523 = vrot.lane.b32.xlu0 %v1441, 111
      %v1524 = vpop.permute.xlu0 %1523
      %1525 = vrot.lane.b32.xlu0 %v1442, 111
      %v1526 = vpop.permute.xlu0 %1525
      %1527 = vrot.lane.b32.xlu0 %v1443, 111
      %v1528 = vpop.permute.xlu0 %1527
      %1529 = vrot.lane.b32.xlu0 %v1444, 111
      %v1530 = vpop.permute.xlu0 %1529
      %1531 = vrot.lane.b32.xlu0 %v1445, 111
      %v1532 = vpop.permute.xlu0 %1531
      %1533 = vrot.lane.b32.xlu0 %v1446, 111
      %v1534 = vpop.permute.xlu0 %1533
      %1535 = vrot.lane.b32.xlu0 %v1447, 111
      %v1536 = vpop.permute.xlu0 %1535
      %1537 = vrot.lane.b32.xlu0 %v1448, 111
      %v1538 = vpop.permute.xlu0 %1537
      %1539 = vrot.lane.b32.xlu0 %v1449, 111
      %v1540 = vpop.permute.xlu0 %1539
      %1541 = vrot.lane.b32.xlu0 %v1450, 111
      %v1542 = vpop.permute.xlu0 %1541
      %1543 = vrot.lane.b32.xlu0 %v1451, 111
      %v1544 = vpop.permute.xlu0 %1543
      %1545 = vrot.lane.b32.xlu0 %v1452, 111
      %v1546 = vpop.permute.xlu0 %1545
      %1547 = vrot.lane.b32.xlu0 %v1453, 111
      %v1548 = vpop.permute.xlu0 %1547
      %1549 = vrot.lane.b32.xlu0 %v1454, 111
      %v1550 = vpop.permute.xlu0 %1549
      %vm1551 = vcmask 908288
      %v1552 = vsel %vm1551, %v1488, %v1490
      %v1553 = vsel %vm1551, %v1490, %v1492
      %v1554 = vsel %vm1551, %v1492, %v1494
      %v1555 = vsel %vm1551, %v1494, %v1496
      %v1556 = vsel %vm1551, %v1496, %v1498
      %v1557 = vsel %vm1551, %v1498, %v1500
      %v1558 = vsel %vm1551, %v1500, %v1502
      %v1559 = vsel %vm1551, %v1502, %v1504
      %v1560 = vsel %vm1551, %v1504, %v1506
      %v1561 = vsel %vm1551, %v1506, %v1508
      %v1562 = vsel %vm1551, %v1508, %v1510
      %v1563 = vsel %vm1551, %v1510, %v1512
      %v1564 = vsel %vm1551, %v1512, %v1514
      %v1565 = vsel %vm1551, %v1514, %v1516
      %v1566 = vsel %vm1551, %v1516, %v1518
      %v1567 = vsel %vm1551, %v1518, %v1520
      %v1568 = vsel %vm1551, %v1520, %v1522
      %v1569 = vsel %vm1551, %v1522, %v1524
      %v1570 = vsel %vm1551, %v1524, %v1526
      %v1571 = vsel %vm1551, %v1526, %v1528
      %v1572 = vsel %vm1551, %v1528, %v1530
      %v1573 = vsel %vm1551, %v1530, %v1532
      %v1574 = vsel %vm1551, %v1532, %v1534
      %v1575 = vsel %vm1551, %v1534, %v1536
      %v1576 = vsel %vm1551, %v1536, %v1538
      %v1577 = vsel %vm1551, %v1538, %v1540
      %v1578 = vsel %vm1551, %v1540, %v1542
      %v1579 = vsel %vm1551, %v1542, %v1544
      %v1580 = vsel %vm1551, %v1544, %v1546
      %v1581 = vsel %vm1551, %v1546, %v1548
      %v1582 = vsel %vm1551, %v1548, %v1550
      %v1616 = vmul.f32 %v172, %v1488
      %v1617 = vmul.f32 %v173, %v1552
      %v1618 = vmul.f32 %v174, %v1553
      %v1619 = vmul.f32 %v175, %v1554
      %v1620 = vmul.f32 %v176, %v1555
      %v1621 = vmul.f32 %v177, %v1556
      %v1622 = vmul.f32 %v178, %v1557
      %v1623 = vmul.f32 %v179, %v1558
      %v1624 = vmul.f32 %v180, %v1559
      %v1625 = vmul.f32 %v181, %v1560
      %v1626 = vmul.f32 %v182, %v1561
      %v1627 = vmul.f32 %v183, %v1562
      %v1628 = vmul.f32 %v184, %v1563
      %v1629 = vmul.f32 %v185, %v1564
      %v1630 = vmul.f32 %v186, %v1565
      %v1631 = vmul.f32 %v187, %v1566
      %v1632 = vmul.f32 %v188, %v1567
      %v1633 = vmul.f32 %v189, %v1568
      %v1634 = vmul.f32 %v190, %v1569
      %v1635 = vmul.f32 %v191, %v1570
      %v1636 = vmul.f32 %v192, %v1571
      %v1637 = vmul.f32 %v193, %v1572
      %v1638 = vmul.f32 %v194, %v1573
      %v1639 = vmul.f32 %v195, %v1574
      %v1640 = vmul.f32 %v196, %v1575
      %v1641 = vmul.f32 %v197, %v1576
      %v1642 = vmul.f32 %v198, %v1577
      %v1643 = vmul.f32 %v199, %v1578
      %v1644 = vmul.f32 %v200, %v1579
      %v1645 = vmul.f32 %v201, %v1580
      %v1646 = vmul.f32 %v202, %v1581
      %v1647 = vmul.f32 %v203, %v1582
      %v1648 = vmul.f32 %v204, %v1550
      %1681 = vrot.lane.b32.xlu0 %v1103, 112
      %v1682 = vpop.permute.xlu0 %1681
      %1683 = vrot.lane.b32.xlu0 %v1104, 112
      %v1684 = vpop.permute.xlu0 %1683
      %1685 = vrot.lane.b32.xlu0 %v1105, 112
      %v1686 = vpop.permute.xlu0 %1685
      %1687 = vrot.lane.b32.xlu0 %v1106, 112
      %v1688 = vpop.permute.xlu0 %1687
      %1689 = vrot.lane.b32.xlu0 %v1107, 112
      %v1690 = vpop.permute.xlu0 %1689
      %1691 = vrot.lane.b32.xlu0 %v1108, 112
      %v1692 = vpop.permute.xlu0 %1691
      %1693 = vrot.lane.b32.xlu0 %v1109, 112
      %v1694 = vpop.permute.xlu0 %1693
      %1695 = vrot.lane.b32.xlu0 %v1110, 112
      %v1696 = vpop.permute.xlu0 %1695
      %1697 = vrot.lane.b32.xlu0 %v1111, 112
      %v1698 = vpop.permute.xlu0 %1697
      %1699 = vrot.lane.b32.xlu0 %v1112, 112
      %v1700 = vpop.permute.xlu0 %1699
      %1701 = vrot.lane.b32.xlu0 %v1113, 112
      %v1702 = vpop.permute.xlu0 %1701
      %1703 = vrot.lane.b32.xlu0 %v1114, 112
      %v1704 = vpop.permute.xlu0 %1703
      %1705 = vrot.lane.b32.xlu0 %v1115, 112
      %v1706 = vpop.permute.xlu0 %1705
      %1707 = vrot.lane.b32.xlu0 %v1116, 112
      %v1708 = vpop.permute.xlu0 %1707
      %1709 = vrot.lane.b32.xlu0 %v1117, 112
      %v1710 = vpop.permute.xlu0 %1709
      %1711 = vrot.lane.b32.xlu0 %v1118, 112
      %v1712 = vpop.permute.xlu0 %1711
      %1713 = vrot.lane.b32.xlu0 %v1119, 112
      %v1714 = vpop.permute.xlu0 %1713
      %1715 = vrot.lane.b32.xlu0 %v1120, 112
      %v1716 = vpop.permute.xlu0 %1715
      %1717 = vrot.lane.b32.xlu0 %v1121, 112
      %v1718 = vpop.permute.xlu0 %1717
      %1719 = vrot.lane.b32.xlu0 %v1122, 112
      %v1720 = vpop.permute.xlu0 %1719
      %1721 = vrot.lane.b32.xlu0 %v1123, 112
      %v1722 = vpop.permute.xlu0 %1721
      %1723 = vrot.lane.b32.xlu0 %v1124, 112
      %v1724 = vpop.permute.xlu0 %1723
      %1725 = vrot.lane.b32.xlu0 %v1125, 112
      %v1726 = vpop.permute.xlu0 %1725
      %1727 = vrot.lane.b32.xlu0 %v1126, 112
      %v1728 = vpop.permute.xlu0 %1727
      %1729 = vrot.lane.b32.xlu0 %v1127, 112
      %v1730 = vpop.permute.xlu0 %1729
      %1731 = vrot.lane.b32.xlu0 %v1128, 112
      %v1732 = vpop.permute.xlu0 %1731
      %1733 = vrot.lane.b32.xlu0 %v1129, 112
      %v1734 = vpop.permute.xlu0 %1733
      %1735 = vrot.lane.b32.xlu0 %v1130, 112
      %v1736 = vpop.permute.xlu0 %1735
      %1737 = vrot.lane.b32.xlu0 %v1131, 112
      %v1738 = vpop.permute.xlu0 %1737
      %1739 = vrot.lane.b32.xlu0 %v1132, 112
      %v1740 = vpop.permute.xlu0 %1739
      %1741 = vrot.lane.b32.xlu0 %v1133, 112
      %v1742 = vpop.permute.xlu0 %1741
      %1743 = vrot.lane.b32.xlu0 %v1134, 112
      %v1744 = vpop.permute.xlu0 %1743
      %vm1745 = vcmask 916480
      %v1746 = vsel %vm1745, %v1682, %v1684
      %v1747 = vsel %vm1745, %v1684, %v1686
      %v1748 = vsel %vm1745, %v1686, %v1688
      %v1749 = vsel %vm1745, %v1688, %v1690
      %v1750 = vsel %vm1745, %v1690, %v1692
      %v1751 = vsel %vm1745, %v1692, %v1694
      %v1752 = vsel %vm1745, %v1694, %v1696
      %v1753 = vsel %vm1745, %v1696, %v1698
      %v1754 = vsel %vm1745, %v1698, %v1700
      %v1755 = vsel %vm1745, %v1700, %v1702
      %v1756 = vsel %vm1745, %v1702, %v1704
      %v1757 = vsel %vm1745, %v1704, %v1706
      %v1758 = vsel %vm1745, %v1706, %v1708
      %v1759 = vsel %vm1745, %v1708, %v1710
      %v1760 = vsel %vm1745, %v1710, %v1712
      %v1761 = vsel %vm1745, %v1712, %v1714
      %v1762 = vsel %vm1745, %v1714, %v1716
      %v1763 = vsel %vm1745, %v1716, %v1718
      %v1764 = vsel %vm1745, %v1718, %v1720
      %v1765 = vsel %vm1745, %v1720, %v1722
      %v1766 = vsel %vm1745, %v1722, %v1724
      %v1767 = vsel %vm1745, %v1724, %v1726
      %v1768 = vsel %vm1745, %v1726, %v1728
      %v1769 = vsel %vm1745, %v1728, %v1730
      %v1770 = vsel %vm1745, %v1730, %v1732
      %v1771 = vsel %vm1745, %v1732, %v1734
      %v1772 = vsel %vm1745, %v1734, %v1736
      %v1773 = vsel %vm1745, %v1736, %v1738
      %v1774 = vsel %vm1745, %v1738, %v1740
      %v1775 = vsel %vm1745, %v1740, %v1742
      %v1776 = vsel %vm1745, %v1742, %v1744
      %v1810 = vmul.f32 %v172, %v1682
      %v1811 = vmul.f32 %v173, %v1746
      %v1812 = vmul.f32 %v174, %v1747
      %v1813 = vmul.f32 %v175, %v1748
      %v1814 = vmul.f32 %v176, %v1749
      %v1815 = vmul.f32 %v177, %v1750
      %v1816 = vmul.f32 %v178, %v1751
      %v1817 = vmul.f32 %v179, %v1752
      %v1818 = vmul.f32 %v180, %v1753
      %v1819 = vmul.f32 %v181, %v1754
      %v1820 = vmul.f32 %v182, %v1755
      %v1821 = vmul.f32 %v183, %v1756
      %v1822 = vmul.f32 %v184, %v1757
      %v1823 = vmul.f32 %v185, %v1758
      %v1824 = vmul.f32 %v186, %v1759
      %v1825 = vmul.f32 %v187, %v1760
      %v1826 = vmul.f32 %v188, %v1761
      %v1827 = vmul.f32 %v189, %v1762
      %v1828 = vmul.f32 %v190, %v1763
      %v1829 = vmul.f32 %v191, %v1764
      %v1830 = vmul.f32 %v192, %v1765
      %v1831 = vmul.f32 %v193, %v1766
      %v1832 = vmul.f32 %v194, %v1767
      %v1833 = vmul.f32 %v195, %v1768
      %v1834 = vmul.f32 %v196, %v1769
      %v1835 = vmul.f32 %v197, %v1770
      %v1836 = vmul.f32 %v198, %v1771
      %v1837 = vmul.f32 %v199, %v1772
      %v1838 = vmul.f32 %v200, %v1773
      %v1839 = vmul.f32 %v201, %v1774
      %v1840 = vmul.f32 %v202, %v1775
      %v1841 = vmul.f32 %v203, %v1776
      %v1842 = vmul.f32 %v204, %v1744
      %v1843 = vmul.f32 %v1103, %v1391
      %v1844 = vmul.f32 %v1104, %v1392
      %v1845 = vmul.f32 %v1105, %v1393
      %v1846 = vmul.f32 %v1106, %v1394
      %v1847 = vmul.f32 %v1107, %v1395
      %v1848 = vmul.f32 %v1108, %v1396
      %v1849 = vmul.f32 %v1109, %v1397
      %v1850 = vmul.f32 %v1110, %v1398
      %v1851 = vmul.f32 %v1111, %v1399
      %v1852 = vmul.f32 %v1112, %v1400
      %v1853 = vmul.f32 %v1113, %v1401
      %v1854 = vmul.f32 %v1114, %v1402
      %v1855 = vmul.f32 %v1115, %v1403
      %v1856 = vmul.f32 %v1116, %v1404
      %v1857 = vmul.f32 %v1117, %v1405
      %v1858 = vmul.f32 %v1118, %v1406
      %v1859 = vmul.f32 %v1119, %v1407
      %v1860 = vmul.f32 %v1120, %v1408
      %v1861 = vmul.f32 %v1121, %v1409
      %v1862 = vmul.f32 %v1122, %v1410
      %v1863 = vmul.f32 %v1123, %v1411
      %v1864 = vmul.f32 %v1124, %v1412
      %v1865 = vmul.f32 %v1125, %v1413
      %v1866 = vmul.f32 %v1126, %v1414
      %v1867 = vmul.f32 %v1127, %v1415
      %v1868 = vmul.f32 %v1128, %v1416
      %v1869 = vmul.f32 %v1129, %v1417
      %v1870 = vmul.f32 %v1130, %v1418
      %v1871 = vmul.f32 %v1131, %v1419
      %v1872 = vmul.f32 %v1132, %v1420
      %v1873 = vmul.f32 %v1133, %v1421
      %v1874 = vmul.f32 %v1134, %v1422
      %1907 = vrot.lane.b32.xlu0 %v1843, 113
      %v1908 = vpop.permute.xlu0 %1907
      %1909 = vrot.lane.b32.xlu0 %v1844, 113
      %v1910 = vpop.permute.xlu0 %1909
      %1911 = vrot.lane.b32.xlu0 %v1845, 113
      %v1912 = vpop.permute.xlu0 %1911
      %1913 = vrot.lane.b32.xlu0 %v1846, 113
      %v1914 = vpop.permute.xlu0 %1913
      %1915 = vrot.lane.b32.xlu0 %v1847, 113
      %v1916 = vpop.permute.xlu0 %1915
      %1917 = vrot.lane.b32.xlu0 %v1848, 113
      %v1918 = vpop.permute.xlu0 %1917
      %1919 = vrot.lane.b32.xlu0 %v1849, 113
      %v1920 = vpop.permute.xlu0 %1919
      %1921 = vrot.lane.b32.xlu0 %v1850, 113
      %v1922 = vpop.permute.xlu0 %1921
      %1923 = vrot.lane.b32.xlu0 %v1851, 113
      %v1924 = vpop.permute.xlu0 %1923
      %1925 = vrot.lane.b32.xlu0 %v1852, 113
      %v1926 = vpop.permute.xlu0 %1925
      %1927 = vrot.lane.b32.xlu0 %v1853, 113
      %v1928 = vpop.permute.xlu0 %1927
      %1929 = vrot.lane.b32.xlu0 %v1854, 113
      %v1930 = vpop.permute.xlu0 %1929
      %1931 = vrot.lane.b32.xlu0 %v1855, 113
      %v1932 = vpop.permute.xlu0 %1931
      %1933 = vrot.lane.b32.xlu0 %v1856, 113
      %v1934 = vpop.permute.xlu0 %1933
      %1935 = vrot.lane.b32.xlu0 %v1857, 113
      %v1936 = vpop.permute.xlu0 %1935
      %1937 = vrot.lane.b32.xlu0 %v1858, 113
      %v1938 = vpop.permute.xlu0 %1937
      %1939 = vrot.lane.b32.xlu0 %v1859, 113
      %v1940 = vpop.permute.xlu0 %1939
      %1941 = vrot.lane.b32.xlu0 %v1860, 113
      %v1942 = vpop.permute.xlu0 %1941
      %1943 = vrot.lane.b32.xlu0 %v1861, 113
      %v1944 = vpop.permute.xlu0 %1943
      %1945 = vrot.lane.b32.xlu0 %v1862, 113
      %v1946 = vpop.permute.xlu0 %1945
      %1947 = vrot.lane.b32.xlu0 %v1863, 113
      %v1948 = vpop.permute.xlu0 %1947
      %1949 = vrot.lane.b32.xlu0 %v1864, 113
      %v1950 = vpop.permute.xlu0 %1949
      %1951 = vrot.lane.b32.xlu0 %v1865, 113
      %v1952 = vpop.permute.xlu0 %1951
      %1953 = vrot.lane.b32.xlu0 %v1866, 113
      %v1954 = vpop.permute.xlu0 %1953
      %1955 = vrot.lane.b32.xlu0 %v1867, 113
      %v1956 = vpop.permute.xlu0 %1955
      %1957 = vrot.lane.b32.xlu0 %v1868, 113
      %v1958 = vpop.permute.xlu0 %1957
      %1959 = vrot.lane.b32.xlu0 %v1869, 113
      %v1960 = vpop.permute.xlu0 %1959
      %1961 = vrot.lane.b32.xlu0 %v1870, 113
      %v1962 = vpop.permute.xlu0 %1961
      %1963 = vrot.lane.b32.xlu0 %v1871, 113
      %v1964 = vpop.permute.xlu0 %1963
      %1965 = vrot.lane.b32.xlu0 %v1872, 113
      %v1966 = vpop.permute.xlu0 %1965
      %1967 = vrot.lane.b32.xlu0 %v1873, 113
      %v1968 = vpop.permute.xlu0 %1967
      %1969 = vrot.lane.b32.xlu0 %v1874, 113
      %v1970 = vpop.permute.xlu0 %1969
      %vm1971 = vcmask 924672
      %v1972 = vsel %vm1971, %v1908, %v1910
      %v1973 = vsel %vm1971, %v1910, %v1912
      %v1974 = vsel %vm1971, %v1912, %v1914
      %v1975 = vsel %vm1971, %v1914, %v1916
      %v1976 = vsel %vm1971, %v1916, %v1918
      %v1977 = vsel %vm1971, %v1918, %v1920
      %v1978 = vsel %vm1971, %v1920, %v1922
      %v1979 = vsel %vm1971, %v1922, %v1924
      %v1980 = vsel %vm1971, %v1924, %v1926
      %v1981 = vsel %vm1971, %v1926, %v1928
      %v1982 = vsel %vm1971, %v1928, %v1930
      %v1983 = vsel %vm1971, %v1930, %v1932
      %v1984 = vsel %vm1971, %v1932, %v1934
      %v1985 = vsel %vm1971, %v1934, %v1936
      %v1986 = vsel %vm1971, %v1936, %v1938
      %v1987 = vsel %vm1971, %v1938, %v1940
      %v1988 = vsel %vm1971, %v1940, %v1942
      %v1989 = vsel %vm1971, %v1942, %v1944
      %v1990 = vsel %vm1971, %v1944, %v1946
      %v1991 = vsel %vm1971, %v1946, %v1948
      %v1992 = vsel %vm1971, %v1948, %v1950
      %v1993 = vsel %vm1971, %v1950, %v1952
      %v1994 = vsel %vm1971, %v1952, %v1954
      %v1995 = vsel %vm1971, %v1954, %v1956
      %v1996 = vsel %vm1971, %v1956, %v1958
      %v1997 = vsel %vm1971, %v1958, %v1960
      %v1998 = vsel %vm1971, %v1960, %v1962
      %v1999 = vsel %vm1971, %v1962, %v1964
      %v2000 = vsel %vm1971, %v1964, %v1966
      %v2001 = vsel %vm1971, %v1966, %v1968
      %v2002 = vsel %vm1971, %v1968, %v1970
      %v2036 = vmul.f32 %v172, %v1908
      %v2037 = vmul.f32 %v173, %v1972
      %v2038 = vmul.f32 %v174, %v1973
      %v2039 = vmul.f32 %v175, %v1974
      %v2040 = vmul.f32 %v176, %v1975
      %v2041 = vmul.f32 %v177, %v1976
      %v2042 = vmul.f32 %v178, %v1977
      %v2043 = vmul.f32 %v179, %v1978
      %v2044 = vmul.f32 %v180, %v1979
      %v2045 = vmul.f32 %v181, %v1980
      %v2046 = vmul.f32 %v182, %v1981
      %v2047 = vmul.f32 %v183, %v1982
      %v2048 = vmul.f32 %v184, %v1983
      %v2049 = vmul.f32 %v185, %v1984
      %v2050 = vmul.f32 %v186, %v1985
      %v2051 = vmul.f32 %v187, %v1986
      %v2052 = vmul.f32 %v188, %v1987
      %v2053 = vmul.f32 %v189, %v1988
      %v2054 = vmul.f32 %v190, %v1989
      %v2055 = vmul.f32 %v191, %v1990
      %v2056 = vmul.f32 %v192, %v1991
      %v2057 = vmul.f32 %v193, %v1992
      %v2058 = vmul.f32 %v194, %v1993
      %v2059 = vmul.f32 %v195, %v1994
      %v2060 = vmul.f32 %v196, %v1995
      %v2061 = vmul.f32 %v197, %v1996
      %v2062 = vmul.f32 %v198, %v1997
      %v2063 = vmul.f32 %v199, %v1998
      %v2064 = vmul.f32 %v200, %v1999
      %v2065 = vmul.f32 %v201, %v2000
      %v2066 = vmul.f32 %v202, %v2001
      %v2067 = vmul.f32 %v203, %v2002
      %v2068 = vmul.f32 %v204, %v1970
      %2101 = vrot.lane.b32.xlu0 %v1295, 127
      %v2102 = vpop.permute.xlu0 %2101
      %2103 = vrot.lane.b32.xlu0 %v1296, 127
      %v2104 = vpop.permute.xlu0 %2103
      %2105 = vrot.lane.b32.xlu0 %v1297, 127
      %v2106 = vpop.permute.xlu0 %2105
      %2107 = vrot.lane.b32.xlu0 %v1298, 127
      %v2108 = vpop.permute.xlu0 %2107
      %2109 = vrot.lane.b32.xlu0 %v1299, 127
      %v2110 = vpop.permute.xlu0 %2109
      %2111 = vrot.lane.b32.xlu0 %v1300, 127
      %v2112 = vpop.permute.xlu0 %2111
      %2113 = vrot.lane.b32.xlu0 %v1301, 127
      %v2114 = vpop.permute.xlu0 %2113
      %2115 = vrot.lane.b32.xlu0 %v1302, 127
      %v2116 = vpop.permute.xlu0 %2115
      %2117 = vrot.lane.b32.xlu0 %v1303, 127
      %v2118 = vpop.permute.xlu0 %2117
      %2119 = vrot.lane.b32.xlu0 %v1304, 127
      %v2120 = vpop.permute.xlu0 %2119
      %2121 = vrot.lane.b32.xlu0 %v1305, 127
      %v2122 = vpop.permute.xlu0 %2121
      %2123 = vrot.lane.b32.xlu0 %v1306, 127
      %v2124 = vpop.permute.xlu0 %2123
      %2125 = vrot.lane.b32.xlu0 %v1307, 127
      %v2126 = vpop.permute.xlu0 %2125
      %2127 = vrot.lane.b32.xlu0 %v1308, 127
      %v2128 = vpop.permute.xlu0 %2127
      %2129 = vrot.lane.b32.xlu0 %v1309, 127
      %v2130 = vpop.permute.xlu0 %2129
      %2131 = vrot.lane.b32.xlu0 %v1310, 127
      %v2132 = vpop.permute.xlu0 %2131
      %2133 = vrot.lane.b32.xlu0 %v1311, 127
      %v2134 = vpop.permute.xlu0 %2133
      %2135 = vrot.lane.b32.xlu0 %v1312, 127
      %v2136 = vpop.permute.xlu0 %2135
      %2137 = vrot.lane.b32.xlu0 %v1313, 127
      %v2138 = vpop.permute.xlu0 %2137
      %2139 = vrot.lane.b32.xlu0 %v1314, 127
      %v2140 = vpop.permute.xlu0 %2139
      %2141 = vrot.lane.b32.xlu0 %v1315, 127
      %v2142 = vpop.permute.xlu0 %2141
      %2143 = vrot.lane.b32.xlu0 %v1316, 127
      %v2144 = vpop.permute.xlu0 %2143
      %2145 = vrot.lane.b32.xlu0 %v1317, 127
      %v2146 = vpop.permute.xlu0 %2145
      %2147 = vrot.lane.b32.xlu0 %v1318, 127
      %v2148 = vpop.permute.xlu0 %2147
      %2149 = vrot.lane.b32.xlu0 %v1319, 127
      %v2150 = vpop.permute.xlu0 %2149
      %2151 = vrot.lane.b32.xlu0 %v1320, 127
      %v2152 = vpop.permute.xlu0 %2151
      %2153 = vrot.lane.b32.xlu0 %v1321, 127
      %v2154 = vpop.permute.xlu0 %2153
      %2155 = vrot.lane.b32.xlu0 %v1322, 127
      %v2156 = vpop.permute.xlu0 %2155
      %2157 = vrot.lane.b32.xlu0 %v1323, 127
      %v2158 = vpop.permute.xlu0 %2157
      %2159 = vrot.lane.b32.xlu0 %v1324, 127
      %v2160 = vpop.permute.xlu0 %2159
      %2161 = vrot.lane.b32.xlu0 %v1325, 127
      %v2162 = vpop.permute.xlu0 %2161
      %2163 = vrot.lane.b32.xlu0 %v1326, 127
      %v2164 = vpop.permute.xlu0 %2163
      %vm2165 = vcmask 1039360
      %v2166 = vsel %vm2165, %v2102, %v2104
      %v2167 = vsel %vm2165, %v2104, %v2106
      %v2168 = vsel %vm2165, %v2106, %v2108
      %v2169 = vsel %vm2165, %v2108, %v2110
      %v2170 = vsel %vm2165, %v2110, %v2112
      %v2171 = vsel %vm2165, %v2112, %v2114
      %v2172 = vsel %vm2165, %v2114, %v2116
      %v2173 = vsel %vm2165, %v2116, %v2118
      %v2174 = vsel %vm2165, %v2118, %v2120
      %v2175 = vsel %vm2165, %v2120, %v2122
      %v2176 = vsel %vm2165, %v2122, %v2124
      %v2177 = vsel %vm2165, %v2124, %v2126
      %v2178 = vsel %vm2165, %v2126, %v2128
      %v2179 = vsel %vm2165, %v2128, %v2130
      %v2180 = vsel %vm2165, %v2130, %v2132
      %v2181 = vsel %vm2165, %v2132, %v2134
      %v2182 = vsel %vm2165, %v2134, %v2136
      %v2183 = vsel %vm2165, %v2136, %v2138
      %v2184 = vsel %vm2165, %v2138, %v2140
      %v2185 = vsel %vm2165, %v2140, %v2142
      %v2186 = vsel %vm2165, %v2142, %v2144
      %v2187 = vsel %vm2165, %v2144, %v2146
      %v2188 = vsel %vm2165, %v2146, %v2148
      %v2189 = vsel %vm2165, %v2148, %v2150
      %v2190 = vsel %vm2165, %v2150, %v2152
      %v2191 = vsel %vm2165, %v2152, %v2154
      %v2192 = vsel %vm2165, %v2154, %v2156
      %v2193 = vsel %vm2165, %v2156, %v2158
      %v2194 = vsel %vm2165, %v2158, %v2160
      %v2195 = vsel %vm2165, %v2160, %v2162
      %v2196 = vsel %vm2165, %v2162, %v2164
      %v2230 = vmul.f32 %v172, %v2102
      %v2231 = vmul.f32 %v173, %v2166
      %v2232 = vmul.f32 %v174, %v2167
      %v2233 = vmul.f32 %v175, %v2168
      %v2234 = vmul.f32 %v176, %v2169
      %v2235 = vmul.f32 %v177, %v2170
      %v2236 = vmul.f32 %v178, %v2171
      %v2237 = vmul.f32 %v179, %v2172
      %v2238 = vmul.f32 %v180, %v2173
      %v2239 = vmul.f32 %v181, %v2174
      %v2240 = vmul.f32 %v182, %v2175
      %v2241 = vmul.f32 %v183, %v2176
      %v2242 = vmul.f32 %v184, %v2177
      %v2243 = vmul.f32 %v185, %v2178
      %v2244 = vmul.f32 %v186, %v2179
      %v2245 = vmul.f32 %v187, %v2180
      %v2246 = vmul.f32 %v188, %v2181
      %v2247 = vmul.f32 %v189, %v2182
      %v2248 = vmul.f32 %v190, %v2183
      %v2249 = vmul.f32 %v191, %v2184
      %v2250 = vmul.f32 %v192, %v2185
      %v2251 = vmul.f32 %v193, %v2186
      %v2252 = vmul.f32 %v194, %v2187
      %v2253 = vmul.f32 %v195, %v2188
      %v2254 = vmul.f32 %v196, %v2189
      %v2255 = vmul.f32 %v197, %v2190
      %v2256 = vmul.f32 %v198, %v2191
      %v2257 = vmul.f32 %v199, %v2192
      %v2258 = vmul.f32 %v200, %v2193
      %v2259 = vmul.f32 %v201, %v2194
      %v2260 = vmul.f32 %v202, %v2195
      %v2261 = vmul.f32 %v203, %v2196
      %v2262 = vmul.f32 %v204, %v2164
      %2295 = vrot.lane.b32.xlu0 %v1391, 1
      %v2296 = vpop.permute.xlu0 %2295
      %2297 = vrot.lane.b32.xlu0 %v1392, 1
      %v2298 = vpop.permute.xlu0 %2297
      %2299 = vrot.lane.b32.xlu0 %v1393, 1
      %v2300 = vpop.permute.xlu0 %2299
      %2301 = vrot.lane.b32.xlu0 %v1394, 1
      %v2302 = vpop.permute.xlu0 %2301
      %2303 = vrot.lane.b32.xlu0 %v1395, 1
      %v2304 = vpop.permute.xlu0 %2303
      %2305 = vrot.lane.b32.xlu0 %v1396, 1
      %v2306 = vpop.permute.xlu0 %2305
      %2307 = vrot.lane.b32.xlu0 %v1397, 1
      %v2308 = vpop.permute.xlu0 %2307
      %2309 = vrot.lane.b32.xlu0 %v1398, 1
      %v2310 = vpop.permute.xlu0 %2309
      %2311 = vrot.lane.b32.xlu0 %v1399, 1
      %v2312 = vpop.permute.xlu0 %2311
      %2313 = vrot.lane.b32.xlu0 %v1400, 1
      %v2314 = vpop.permute.xlu0 %2313
      %2315 = vrot.lane.b32.xlu0 %v1401, 1
      %v2316 = vpop.permute.xlu0 %2315
      %2317 = vrot.lane.b32.xlu0 %v1402, 1
      %v2318 = vpop.permute.xlu0 %2317
      %2319 = vrot.lane.b32.xlu0 %v1403, 1
      %v2320 = vpop.permute.xlu0 %2319
      %2321 = vrot.lane.b32.xlu0 %v1404, 1
      %v2322 = vpop.permute.xlu0 %2321
      %2323 = vrot.lane.b32.xlu0 %v1405, 1
      %v2324 = vpop.permute.xlu0 %2323
      %2325 = vrot.lane.b32.xlu0 %v1406, 1
      %v2326 = vpop.permute.xlu0 %2325
      %2327 = vrot.lane.b32.xlu0 %v1407, 1
      %v2328 = vpop.permute.xlu0 %2327
      %2329 = vrot.lane.b32.xlu0 %v1408, 1
      %v2330 = vpop.permute.xlu0 %2329
      %2331 = vrot.lane.b32.xlu0 %v1409, 1
      %v2332 = vpop.permute.xlu0 %2331
      %2333 = vrot.lane.b32.xlu0 %v1410, 1
      %v2334 = vpop.permute.xlu0 %2333
      %2335 = vrot.lane.b32.xlu0 %v1411, 1
      %v2336 = vpop.permute.xlu0 %2335
      %2337 = vrot.lane.b32.xlu0 %v1412, 1
      %v2338 = vpop.permute.xlu0 %2337
      %2339 = vrot.lane.b32.xlu0 %v1413, 1
      %v2340 = vpop.permute.xlu0 %2339
      %2341 = vrot.lane.b32.xlu0 %v1414, 1
      %v2342 = vpop.permute.xlu0 %2341
      %2343 = vrot.lane.b32.xlu0 %v1415, 1
      %v2344 = vpop.permute.xlu0 %2343
      %2345 = vrot.lane.b32.xlu0 %v1416, 1
      %v2346 = vpop.permute.xlu0 %2345
      %2347 = vrot.lane.b32.xlu0 %v1417, 1
      %v2348 = vpop.permute.xlu0 %2347
      %2349 = vrot.lane.b32.xlu0 %v1418, 1
      %v2350 = vpop.permute.xlu0 %2349
      %2351 = vrot.lane.b32.xlu0 %v1419, 1
      %v2352 = vpop.permute.xlu0 %2351
      %2353 = vrot.lane.b32.xlu0 %v1420, 1
      %v2354 = vpop.permute.xlu0 %2353
      %2355 = vrot.lane.b32.xlu0 %v1421, 1
      %v2356 = vpop.permute.xlu0 %2355
      %2357 = vrot.lane.b32.xlu0 %v1422, 1
      %v2358 = vpop.permute.xlu0 %2357
      %vm2359 = vcmask 7168
      %v2360 = vsel %vm2359, %v2296, %v2298
      %v2361 = vsel %vm2359, %v2298, %v2300
      %v2362 = vsel %vm2359, %v2300, %v2302
      %v2363 = vsel %vm2359, %v2302, %v2304
      %v2364 = vsel %vm2359, %v2304, %v2306
      %v2365 = vsel %vm2359, %v2306, %v2308
      %v2366 = vsel %vm2359, %v2308, %v2310
      %v2367 = vsel %vm2359, %v2310, %v2312
      %v2368 = vsel %vm2359, %v2312, %v2314
      %v2369 = vsel %vm2359, %v2314, %v2316
      %v2370 = vsel %vm2359, %v2316, %v2318
      %v2371 = vsel %vm2359, %v2318, %v2320
      %v2372 = vsel %vm2359, %v2320, %v2322
      %v2373 = vsel %vm2359, %v2322, %v2324
      %v2374 = vsel %vm2359, %v2324, %v2326
      %v2375 = vsel %vm2359, %v2326, %v2328
      %v2376 = vsel %vm2359, %v2328, %v2330
      %v2377 = vsel %vm2359, %v2330, %v2332
      %v2378 = vsel %vm2359, %v2332, %v2334
      %v2379 = vsel %vm2359, %v2334, %v2336
      %v2380 = vsel %vm2359, %v2336, %v2338
      %v2381 = vsel %vm2359, %v2338, %v2340
      %v2382 = vsel %vm2359, %v2340, %v2342
      %v2383 = vsel %vm2359, %v2342, %v2344
      %v2384 = vsel %vm2359, %v2344, %v2346
      %v2385 = vsel %vm2359, %v2346, %v2348
      %v2386 = vsel %vm2359, %v2348, %v2350
      %v2387 = vsel %vm2359, %v2350, %v2352
      %v2388 = vsel %vm2359, %v2352, %v2354
      %v2389 = vsel %vm2359, %v2354, %v2356
      %v2390 = vsel %vm2359, %v2356, %v2358
      %v2424 = vmul.f32 %v173, %v2296
      %v2425 = vmul.f32 %v174, %v2360
      %v2426 = vmul.f32 %v175, %v2361
      %v2427 = vmul.f32 %v176, %v2362
      %v2428 = vmul.f32 %v177, %v2363
      %v2429 = vmul.f32 %v178, %v2364
      %v2430 = vmul.f32 %v179, %v2365
      %v2431 = vmul.f32 %v180, %v2366
      %v2432 = vmul.f32 %v181, %v2367
      %v2433 = vmul.f32 %v182, %v2368
      %v2434 = vmul.f32 %v183, %v2369
      %v2435 = vmul.f32 %v184, %v2370
      %v2436 = vmul.f32 %v185, %v2371
      %v2437 = vmul.f32 %v186, %v2372
      %v2438 = vmul.f32 %v187, %v2373
      %v2439 = vmul.f32 %v188, %v2374
      %v2440 = vmul.f32 %v189, %v2375
      %v2441 = vmul.f32 %v190, %v2376
      %v2442 = vmul.f32 %v191, %v2377
      %v2443 = vmul.f32 %v192, %v2378
      %v2444 = vmul.f32 %v193, %v2379
      %v2445 = vmul.f32 %v194, %v2380
      %v2446 = vmul.f32 %v195, %v2381
      %v2447 = vmul.f32 %v196, %v2382
      %v2448 = vmul.f32 %v197, %v2383
      %v2449 = vmul.f32 %v198, %v2384
      %v2450 = vmul.f32 %v199, %v2385
      %v2451 = vmul.f32 %v200, %v2386
      %v2452 = vmul.f32 %v201, %v2387
      %v2453 = vmul.f32 %v202, %v2388
      %v2454 = vmul.f32 %v203, %v2389
      %v2455 = vmul.f32 %v204, %v2390
      %v2456 = vmul.f32 %v205, %v2358
      %v2457 = vmul.f32 %v1199, %v1295
      %v2458 = vmul.f32 %v1200, %v1296
      %v2459 = vmul.f32 %v1201, %v1297
      %v2460 = vmul.f32 %v1202, %v1298
      %v2461 = vmul.f32 %v1203, %v1299
      %v2462 = vmul.f32 %v1204, %v1300
      %v2463 = vmul.f32 %v1205, %v1301
      %v2464 = vmul.f32 %v1206, %v1302
      %v2465 = vmul.f32 %v1207, %v1303
      %v2466 = vmul.f32 %v1208, %v1304
      %v2467 = vmul.f32 %v1209, %v1305
      %v2468 = vmul.f32 %v1210, %v1306
      %v2469 = vmul.f32 %v1211, %v1307
      %v2470 = vmul.f32 %v1212, %v1308
      %v2471 = vmul.f32 %v1213, %v1309
      %v2472 = vmul.f32 %v1214, %v1310
      %v2473 = vmul.f32 %v1215, %v1311
      %v2474 = vmul.f32 %v1216, %v1312
      %v2475 = vmul.f32 %v1217, %v1313
      %v2476 = vmul.f32 %v1218, %v1314
      %v2477 = vmul.f32 %v1219, %v1315
      %v2478 = vmul.f32 %v1220, %v1316
      %v2479 = vmul.f32 %v1221, %v1317
      %v2480 = vmul.f32 %v1222, %v1318
      %v2481 = vmul.f32 %v1223, %v1319
      %v2482 = vmul.f32 %v1224, %v1320
      %v2483 = vmul.f32 %v1225, %v1321
      %v2484 = vmul.f32 %v1226, %v1322
      %v2485 = vmul.f32 %v1227, %v1323
      %v2486 = vmul.f32 %v1228, %v1324
      %v2487 = vmul.f32 %v1229, %v1325
      %v2488 = vmul.f32 %v1230, %v1326
      %2521 = vrot.lane.b32.xlu0 %v2457, 15
      %v2522 = vpop.permute.xlu0 %2521
      %2523 = vrot.lane.b32.xlu0 %v2458, 15
      %v2524 = vpop.permute.xlu0 %2523
      %2525 = vrot.lane.b32.xlu0 %v2459, 15
      %v2526 = vpop.permute.xlu0 %2525
      %2527 = vrot.lane.b32.xlu0 %v2460, 15
      %v2528 = vpop.permute.xlu0 %2527
      %2529 = vrot.lane.b32.xlu0 %v2461, 15
      %v2530 = vpop.permute.xlu0 %2529
      %2531 = vrot.lane.b32.xlu0 %v2462, 15
      %v2532 = vpop.permute.xlu0 %2531
      %2533 = vrot.lane.b32.xlu0 %v2463, 15
      %v2534 = vpop.permute.xlu0 %2533
      %2535 = vrot.lane.b32.xlu0 %v2464, 15
      %v2536 = vpop.permute.xlu0 %2535
      %2537 = vrot.lane.b32.xlu0 %v2465, 15
      %v2538 = vpop.permute.xlu0 %2537
      %2539 = vrot.lane.b32.xlu0 %v2466, 15
      %v2540 = vpop.permute.xlu0 %2539
      %2541 = vrot.lane.b32.xlu0 %v2467, 15
      %v2542 = vpop.permute.xlu0 %2541
      %2543 = vrot.lane.b32.xlu0 %v2468, 15
      %v2544 = vpop.permute.xlu0 %2543
      %2545 = vrot.lane.b32.xlu0 %v2469, 15
      %v2546 = vpop.permute.xlu0 %2545
      %2547 = vrot.lane.b32.xlu0 %v2470, 15
      %v2548 = vpop.permute.xlu0 %2547
      %2549 = vrot.lane.b32.xlu0 %v2471, 15
      %v2550 = vpop.permute.xlu0 %2549
      %2551 = vrot.lane.b32.xlu0 %v2472, 15
      %v2552 = vpop.permute.xlu0 %2551
      %2553 = vrot.lane.b32.xlu0 %v2473, 15
      %v2554 = vpop.permute.xlu0 %2553
      %2555 = vrot.lane.b32.xlu0 %v2474, 15
      %v2556 = vpop.permute.xlu0 %2555
      %2557 = vrot.lane.b32.xlu0 %v2475, 15
      %v2558 = vpop.permute.xlu0 %2557
      %2559 = vrot.lane.b32.xlu0 %v2476, 15
      %v2560 = vpop.permute.xlu0 %2559
      %2561 = vrot.lane.b32.xlu0 %v2477, 15
      %v2562 = vpop.permute.xlu0 %2561
      %2563 = vrot.lane.b32.xlu0 %v2478, 15
      %v2564 = vpop.permute.xlu0 %2563
      %2565 = vrot.lane.b32.xlu0 %v2479, 15
      %v2566 = vpop.permute.xlu0 %2565
      %2567 = vrot.lane.b32.xlu0 %v2480, 15
      %v2568 = vpop.permute.xlu0 %2567
      %2569 = vrot.lane.b32.xlu0 %v2481, 15
      %v2570 = vpop.permute.xlu0 %2569
      %2571 = vrot.lane.b32.xlu0 %v2482, 15
      %v2572 = vpop.permute.xlu0 %2571
      %2573 = vrot.lane.b32.xlu0 %v2483, 15
      %v2574 = vpop.permute.xlu0 %2573
      %2575 = vrot.lane.b32.xlu0 %v2484, 15
      %v2576 = vpop.permute.xlu0 %2575
      %2577 = vrot.lane.b32.xlu0 %v2485, 15
      %v2578 = vpop.permute.xlu0 %2577
      %2579 = vrot.lane.b32.xlu0 %v2486, 15
      %v2580 = vpop.permute.xlu0 %2579
      %2581 = vrot.lane.b32.xlu0 %v2487, 15
      %v2582 = vpop.permute.xlu0 %2581
      %2583 = vrot.lane.b32.xlu0 %v2488, 15
      %v2584 = vpop.permute.xlu0 %2583
      %vm2585 = vcmask 121856
      %v2586 = vsel %vm2585, %v2522, %v2524
      %v2587 = vsel %vm2585, %v2524, %v2526
      %v2588 = vsel %vm2585, %v2526, %v2528
      %v2589 = vsel %vm2585, %v2528, %v2530
      %v2590 = vsel %vm2585, %v2530, %v2532
      %v2591 = vsel %vm2585, %v2532, %v2534
      %v2592 = vsel %vm2585, %v2534, %v2536
      %v2593 = vsel %vm2585, %v2536, %v2538
      %v2594 = vsel %vm2585, %v2538, %v2540
      %v2595 = vsel %vm2585, %v2540, %v2542
      %v2596 = vsel %vm2585, %v2542, %v2544
      %v2597 = vsel %vm2585, %v2544, %v2546
      %v2598 = vsel %vm2585, %v2546, %v2548
      %v2599 = vsel %vm2585, %v2548, %v2550
      %v2600 = vsel %vm2585, %v2550, %v2552
      %v2601 = vsel %vm2585, %v2552, %v2554
      %v2602 = vsel %vm2585, %v2554, %v2556
      %v2603 = vsel %vm2585, %v2556, %v2558
      %v2604 = vsel %vm2585, %v2558, %v2560
      %v2605 = vsel %vm2585, %v2560, %v2562
      %v2606 = vsel %vm2585, %v2562, %v2564
      %v2607 = vsel %vm2585, %v2564, %v2566
      %v2608 = vsel %vm2585, %v2566, %v2568
      %v2609 = vsel %vm2585, %v2568, %v2570
      %v2610 = vsel %vm2585, %v2570, %v2572
      %v2611 = vsel %vm2585, %v2572, %v2574
      %v2612 = vsel %vm2585, %v2574, %v2576
      %v2613 = vsel %vm2585, %v2576, %v2578
      %v2614 = vsel %vm2585, %v2578, %v2580
      %v2615 = vsel %vm2585, %v2580, %v2582
      %v2616 = vsel %vm2585, %v2582, %v2584
      %v2650 = vmul.f32 %v173, %v2522
      %v2651 = vmul.f32 %v174, %v2586
      %v2652 = vmul.f32 %v175, %v2587
      %v2653 = vmul.f32 %v176, %v2588
      %v2654 = vmul.f32 %v177, %v2589
      %v2655 = vmul.f32 %v178, %v2590
      %v2656 = vmul.f32 %v179, %v2591
      %v2657 = vmul.f32 %v180, %v2592
      %v2658 = vmul.f32 %v181, %v2593
      %v2659 = vmul.f32 %v182, %v2594
      %v2660 = vmul.f32 %v183, %v2595
      %v2661 = vmul.f32 %v184, %v2596
      %v2662 = vmul.f32 %v185, %v2597
      %v2663 = vmul.f32 %v186, %v2598
      %v2664 = vmul.f32 %v187, %v2599
      %v2665 = vmul.f32 %v188, %v2600
      %v2666 = vmul.f32 %v189, %v2601
      %v2667 = vmul.f32 %v190, %v2602
      %v2668 = vmul.f32 %v191, %v2603
      %v2669 = vmul.f32 %v192, %v2604
      %v2670 = vmul.f32 %v193, %v2605
      %v2671 = vmul.f32 %v194, %v2606
      %v2672 = vmul.f32 %v195, %v2607
      %v2673 = vmul.f32 %v196, %v2608
      %v2674 = vmul.f32 %v197, %v2609
      %v2675 = vmul.f32 %v198, %v2610
      %v2676 = vmul.f32 %v199, %v2611
      %v2677 = vmul.f32 %v200, %v2612
      %v2678 = vmul.f32 %v201, %v2613
      %v2679 = vmul.f32 %v202, %v2614
      %v2680 = vmul.f32 %v203, %v2615
      %v2681 = vmul.f32 %v204, %v2616
      %v2682 = vmul.f32 %v205, %v2584
      %2715 = vrot.lane.b32.xlu0 %v1199, 16
      %v2716 = vpop.permute.xlu0 %2715
      %2717 = vrot.lane.b32.xlu0 %v1200, 16
      %v2718 = vpop.permute.xlu0 %2717
      %2719 = vrot.lane.b32.xlu0 %v1201, 16
      %v2720 = vpop.permute.xlu0 %2719
      %2721 = vrot.lane.b32.xlu0 %v1202, 16
      %v2722 = vpop.permute.xlu0 %2721
      %2723 = vrot.lane.b32.xlu0 %v1203, 16
      %v2724 = vpop.permute.xlu0 %2723
      %2725 = vrot.lane.b32.xlu0 %v1204, 16
      %v2726 = vpop.permute.xlu0 %2725
      %2727 = vrot.lane.b32.xlu0 %v1205, 16
      %v2728 = vpop.permute.xlu0 %2727
      %2729 = vrot.lane.b32.xlu0 %v1206, 16
      %v2730 = vpop.permute.xlu0 %2729
      %2731 = vrot.lane.b32.xlu0 %v1207, 16
      %v2732 = vpop.permute.xlu0 %2731
      %2733 = vrot.lane.b32.xlu0 %v1208, 16
      %v2734 = vpop.permute.xlu0 %2733
      %2735 = vrot.lane.b32.xlu0 %v1209, 16
      %v2736 = vpop.permute.xlu0 %2735
      %2737 = vrot.lane.b32.xlu0 %v1210, 16
      %v2738 = vpop.permute.xlu0 %2737
      %2739 = vrot.lane.b32.xlu0 %v1211, 16
      %v2740 = vpop.permute.xlu0 %2739
      %2741 = vrot.lane.b32.xlu0 %v1212, 16
      %v2742 = vpop.permute.xlu0 %2741
      %2743 = vrot.lane.b32.xlu0 %v1213, 16
      %v2744 = vpop.permute.xlu0 %2743
      %2745 = vrot.lane.b32.xlu0 %v1214, 16
      %v2746 = vpop.permute.xlu0 %2745
      %2747 = vrot.lane.b32.xlu0 %v1215, 16
      %v2748 = vpop.permute.xlu0 %2747
      %2749 = vrot.lane.b32.xlu0 %v1216, 16
      %v2750 = vpop.permute.xlu0 %2749
      %2751 = vrot.lane.b32.xlu0 %v1217, 16
      %v2752 = vpop.permute.xlu0 %2751
      %2753 = vrot.lane.b32.xlu0 %v1218, 16
      %v2754 = vpop.permute.xlu0 %2753
      %2755 = vrot.lane.b32.xlu0 %v1219, 16
      %v2756 = vpop.permute.xlu0 %2755
      %2757 = vrot.lane.b32.xlu0 %v1220, 16
      %v2758 = vpop.permute.xlu0 %2757
      %2759 = vrot.lane.b32.xlu0 %v1221, 16
      %v2760 = vpop.permute.xlu0 %2759
      %2761 = vrot.lane.b32.xlu0 %v1222, 16
      %v2762 = vpop.permute.xlu0 %2761
      %2763 = vrot.lane.b32.xlu0 %v1223, 16
      %v2764 = vpop.permute.xlu0 %2763
      %2765 = vrot.lane.b32.xlu0 %v1224, 16
      %v2766 = vpop.permute.xlu0 %2765
      %2767 = vrot.lane.b32.xlu0 %v1225, 16
      %v2768 = vpop.permute.xlu0 %2767
      %2769 = vrot.lane.b32.xlu0 %v1226, 16
      %v2770 = vpop.permute.xlu0 %2769
      %2771 = vrot.lane.b32.xlu0 %v1227, 16
      %v2772 = vpop.permute.xlu0 %2771
      %2773 = vrot.lane.b32.xlu0 %v1228, 16
      %v2774 = vpop.permute.xlu0 %2773
      %2775 = vrot.lane.b32.xlu0 %v1229, 16
      %v2776 = vpop.permute.xlu0 %2775
      %2777 = vrot.lane.b32.xlu0 %v1230, 16
      %v2778 = vpop.permute.xlu0 %2777
      %vm2779 = vcmask 130048
      %v2780 = vsel %vm2779, %v2716, %v2718
      %v2781 = vsel %vm2779, %v2718, %v2720
      %v2782 = vsel %vm2779, %v2720, %v2722
      %v2783 = vsel %vm2779, %v2722, %v2724
      %v2784 = vsel %vm2779, %v2724, %v2726
      %v2785 = vsel %vm2779, %v2726, %v2728
      %v2786 = vsel %vm2779, %v2728, %v2730
      %v2787 = vsel %vm2779, %v2730, %v2732
      %v2788 = vsel %vm2779, %v2732, %v2734
      %v2789 = vsel %vm2779, %v2734, %v2736
      %v2790 = vsel %vm2779, %v2736, %v2738
      %v2791 = vsel %vm2779, %v2738, %v2740
      %v2792 = vsel %vm2779, %v2740, %v2742
      %v2793 = vsel %vm2779, %v2742, %v2744
      %v2794 = vsel %vm2779, %v2744, %v2746
      %v2795 = vsel %vm2779, %v2746, %v2748
      %v2796 = vsel %vm2779, %v2748, %v2750
      %v2797 = vsel %vm2779, %v2750, %v2752
      %v2798 = vsel %vm2779, %v2752, %v2754
      %v2799 = vsel %vm2779, %v2754, %v2756
      %v2800 = vsel %vm2779, %v2756, %v2758
      %v2801 = vsel %vm2779, %v2758, %v2760
      %v2802 = vsel %vm2779, %v2760, %v2762
      %v2803 = vsel %vm2779, %v2762, %v2764
      %v2804 = vsel %vm2779, %v2764, %v2766
      %v2805 = vsel %vm2779, %v2766, %v2768
      %v2806 = vsel %vm2779, %v2768, %v2770
      %v2807 = vsel %vm2779, %v2770, %v2772
      %v2808 = vsel %vm2779, %v2772, %v2774
      %v2809 = vsel %vm2779, %v2774, %v2776
      %v2810 = vsel %vm2779, %v2776, %v2778
      %v2844 = vmul.f32 %v173, %v2716
      %v2845 = vmul.f32 %v174, %v2780
      %v2846 = vmul.f32 %v175, %v2781
      %v2847 = vmul.f32 %v176, %v2782
      %v2848 = vmul.f32 %v177, %v2783
      %v2849 = vmul.f32 %v178, %v2784
      %v2850 = vmul.f32 %v179, %v2785
      %v2851 = vmul.f32 %v180, %v2786
      %v2852 = vmul.f32 %v181, %v2787
      %v2853 = vmul.f32 %v182, %v2788
      %v2854 = vmul.f32 %v183, %v2789
      %v2855 = vmul.f32 %v184, %v2790
      %v2856 = vmul.f32 %v185, %v2791
      %v2857 = vmul.f32 %v186, %v2792
      %v2858 = vmul.f32 %v187, %v2793
      %v2859 = vmul.f32 %v188, %v2794
      %v2860 = vmul.f32 %v189, %v2795
      %v2861 = vmul.f32 %v190, %v2796
      %v2862 = vmul.f32 %v191, %v2797
      %v2863 = vmul.f32 %v192, %v2798
      %v2864 = vmul.f32 %v193, %v2799
      %v2865 = vmul.f32 %v194, %v2800
      %v2866 = vmul.f32 %v195, %v2801
      %v2867 = vmul.f32 %v196, %v2802
      %v2868 = vmul.f32 %v197, %v2803
      %v2869 = vmul.f32 %v198, %v2804
      %v2870 = vmul.f32 %v199, %v2805
      %v2871 = vmul.f32 %v200, %v2806
      %v2872 = vmul.f32 %v201, %v2807
      %v2873 = vmul.f32 %v202, %v2808
      %v2874 = vmul.f32 %v203, %v2809
      %v2875 = vmul.f32 %v204, %v2810
      %v2876 = vmul.f32 %v205, %v2778
      %v2877 = vmul.f32 %v1199, %v1391
      %v2878 = vmul.f32 %v1200, %v1392
      %v2879 = vmul.f32 %v1201, %v1393
      %v2880 = vmul.f32 %v1202, %v1394
      %v2881 = vmul.f32 %v1203, %v1395
      %v2882 = vmul.f32 %v1204, %v1396
      %v2883 = vmul.f32 %v1205, %v1397
      %v2884 = vmul.f32 %v1206, %v1398
      %v2885 = vmul.f32 %v1207, %v1399
      %v2886 = vmul.f32 %v1208, %v1400
      %v2887 = vmul.f32 %v1209, %v1401
      %v2888 = vmul.f32 %v1210, %v1402
      %v2889 = vmul.f32 %v1211, %v1403
      %v2890 = vmul.f32 %v1212, %v1404
      %v2891 = vmul.f32 %v1213, %v1405
      %v2892 = vmul.f32 %v1214, %v1406
      %v2893 = vmul.f32 %v1215, %v1407
      %v2894 = vmul.f32 %v1216, %v1408
      %v2895 = vmul.f32 %v1217, %v1409
      %v2896 = vmul.f32 %v1218, %v1410
      %v2897 = vmul.f32 %v1219, %v1411
      %v2898 = vmul.f32 %v1220, %v1412
      %v2899 = vmul.f32 %v1221, %v1413
      %v2900 = vmul.f32 %v1222, %v1414
      %v2901 = vmul.f32 %v1223, %v1415
      %v2902 = vmul.f32 %v1224, %v1416
      %v2903 = vmul.f32 %v1225, %v1417
      %v2904 = vmul.f32 %v1226, %v1418
      %v2905 = vmul.f32 %v1227, %v1419
      %v2906 = vmul.f32 %v1228, %v1420
      %v2907 = vmul.f32 %v1229, %v1421
      %v2908 = vmul.f32 %v1230, %v1422
      %2941 = vrot.lane.b32.xlu0 %v2877, 17
      %v2942 = vpop.permute.xlu0 %2941
      %2943 = vrot.lane.b32.xlu0 %v2878, 17
      %v2944 = vpop.permute.xlu0 %2943
      %2945 = vrot.lane.b32.xlu0 %v2879, 17
      %v2946 = vpop.permute.xlu0 %2945
      %2947 = vrot.lane.b32.xlu0 %v2880, 17
      %v2948 = vpop.permute.xlu0 %2947
      %2949 = vrot.lane.b32.xlu0 %v2881, 17
      %v2950 = vpop.permute.xlu0 %2949
      %2951 = vrot.lane.b32.xlu0 %v2882, 17
      %v2952 = vpop.permute.xlu0 %2951
      %2953 = vrot.lane.b32.xlu0 %v2883, 17
      %v2954 = vpop.permute.xlu0 %2953
      %2955 = vrot.lane.b32.xlu0 %v2884, 17
      %v2956 = vpop.permute.xlu0 %2955
      %2957 = vrot.lane.b32.xlu0 %v2885, 17
      %v2958 = vpop.permute.xlu0 %2957
      %2959 = vrot.lane.b32.xlu0 %v2886, 17
      %v2960 = vpop.permute.xlu0 %2959
      %2961 = vrot.lane.b32.xlu0 %v2887, 17
      %v2962 = vpop.permute.xlu0 %2961
      %2963 = vrot.lane.b32.xlu0 %v2888, 17
      %v2964 = vpop.permute.xlu0 %2963
      %2965 = vrot.lane.b32.xlu0 %v2889, 17
      %v2966 = vpop.permute.xlu0 %2965
      %2967 = vrot.lane.b32.xlu0 %v2890, 17
      %v2968 = vpop.permute.xlu0 %2967
      %2969 = vrot.lane.b32.xlu0 %v2891, 17
      %v2970 = vpop.permute.xlu0 %2969
      %2971 = vrot.lane.b32.xlu0 %v2892, 17
      %v2972 = vpop.permute.xlu0 %2971
      %2973 = vrot.lane.b32.xlu0 %v2893, 17
      %v2974 = vpop.permute.xlu0 %2973
      %2975 = vrot.lane.b32.xlu0 %v2894, 17
      %v2976 = vpop.permute.xlu0 %2975
      %2977 = vrot.lane.b32.xlu0 %v2895, 17
      %v2978 = vpop.permute.xlu0 %2977
      %2979 = vrot.lane.b32.xlu0 %v2896, 17
      %v2980 = vpop.permute.xlu0 %2979
      %2981 = vrot.lane.b32.xlu0 %v2897, 17
      %v2982 = vpop.permute.xlu0 %2981
      %2983 = vrot.lane.b32.xlu0 %v2898, 17
      %v2984 = vpop.permute.xlu0 %2983
      %2985 = vrot.lane.b32.xlu0 %v2899, 17
      %v2986 = vpop.permute.xlu0 %2985
      %2987 = vrot.lane.b32.xlu0 %v2900, 17
      %v2988 = vpop.permute.xlu0 %2987
      %2989 = vrot.lane.b32.xlu0 %v2901, 17
      %v2990 = vpop.permute.xlu0 %2989
      %2991 = vrot.lane.b32.xlu0 %v2902, 17
      %v2992 = vpop.permute.xlu0 %2991
      %2993 = vrot.lane.b32.xlu0 %v2903, 17
      %v2994 = vpop.permute.xlu0 %2993
      %2995 = vrot.lane.b32.xlu0 %v2904, 17
      %v2996 = vpop.permute.xlu0 %2995
      %2997 = vrot.lane.b32.xlu0 %v2905, 17
      %v2998 = vpop.permute.xlu0 %2997
      %2999 = vrot.lane.b32.xlu0 %v2906, 17
      %v3000 = vpop.permute.xlu0 %2999
      %3001 = vrot.lane.b32.xlu0 %v2907, 17
      %v3002 = vpop.permute.xlu0 %3001
      %3003 = vrot.lane.b32.xlu0 %v2908, 17
      %v3004 = vpop.permute.xlu0 %3003
      %vm3005 = vcmask 138240
      %v3006 = vsel %vm3005, %v2942, %v2944
      %v3007 = vsel %vm3005, %v2944, %v2946
      %v3008 = vsel %vm3005, %v2946, %v2948
      %v3009 = vsel %vm3005, %v2948, %v2950
      %v3010 = vsel %vm3005, %v2950, %v2952
      %v3011 = vsel %vm3005, %v2952, %v2954
      %v3012 = vsel %vm3005, %v2954, %v2956
      %v3013 = vsel %vm3005, %v2956, %v2958
      %v3014 = vsel %vm3005, %v2958, %v2960
      %v3015 = vsel %vm3005, %v2960, %v2962
      %v3016 = vsel %vm3005, %v2962, %v2964
      %v3017 = vsel %vm3005, %v2964, %v2966
      %v3018 = vsel %vm3005, %v2966, %v2968
      %v3019 = vsel %vm3005, %v2968, %v2970
      %v3020 = vsel %vm3005, %v2970, %v2972
      %v3021 = vsel %vm3005, %v2972, %v2974
      %v3022 = vsel %vm3005, %v2974, %v2976
      %v3023 = vsel %vm3005, %v2976, %v2978
      %v3024 = vsel %vm3005, %v2978, %v2980
      %v3025 = vsel %vm3005, %v2980, %v2982
      %v3026 = vsel %vm3005, %v2982, %v2984
      %v3027 = vsel %vm3005, %v2984, %v2986
      %v3028 = vsel %vm3005, %v2986, %v2988
      %v3029 = vsel %vm3005, %v2988, %v2990
      %v3030 = vsel %vm3005, %v2990, %v2992
      %v3031 = vsel %vm3005, %v2992, %v2994
      %v3032 = vsel %vm3005, %v2994, %v2996
      %v3033 = vsel %vm3005, %v2996, %v2998
      %v3034 = vsel %vm3005, %v2998, %v3000
      %v3035 = vsel %vm3005, %v3000, %v3002
      %v3036 = vsel %vm3005, %v3002, %v3004
      %v3070 = vmul.f32 %v173, %v2942
      %v3071 = vmul.f32 %v174, %v3006
      %v3072 = vmul.f32 %v175, %v3007
      %v3073 = vmul.f32 %v176, %v3008
      %v3074 = vmul.f32 %v177, %v3009
      %v3075 = vmul.f32 %v178, %v3010
      %v3076 = vmul.f32 %v179, %v3011
      %v3077 = vmul.f32 %v180, %v3012
      %v3078 = vmul.f32 %v181, %v3013
      %v3079 = vmul.f32 %v182, %v3014
      %v3080 = vmul.f32 %v183, %v3015
      %v3081 = vmul.f32 %v184, %v3016
      %v3082 = vmul.f32 %v185, %v3017
      %v3083 = vmul.f32 %v186, %v3018
      %v3084 = vmul.f32 %v187, %v3019
      %v3085 = vmul.f32 %v188, %v3020
      %v3086 = vmul.f32 %v189, %v3021
      %v3087 = vmul.f32 %v190, %v3022
      %v3088 = vmul.f32 %v191, %v3023
      %v3089 = vmul.f32 %v192, %v3024
      %v3090 = vmul.f32 %v193, %v3025
      %v3091 = vmul.f32 %v194, %v3026
      %v3092 = vmul.f32 %v195, %v3027
      %v3093 = vmul.f32 %v196, %v3028
      %v3094 = vmul.f32 %v197, %v3029
      %v3095 = vmul.f32 %v198, %v3030
      %v3096 = vmul.f32 %v199, %v3031
      %v3097 = vmul.f32 %v200, %v3032
      %v3098 = vmul.f32 %v201, %v3033
      %v3099 = vmul.f32 %v202, %v3034
      %v3100 = vmul.f32 %v203, %v3035
      %v3101 = vmul.f32 %v204, %v3036
      %v3102 = vmul.f32 %v205, %v3004
      %3136 = vrot.lane.b32.xlu0 %v1810, 127
      %v3137 = vpop.permute.xlu0 %3136
      %3138 = vrot.lane.b32.xlu0 %v1811, 127
      %v3139 = vpop.permute.xlu0 %3138
      %3140 = vrot.lane.b32.xlu0 %v1812, 127
      %v3141 = vpop.permute.xlu0 %3140
      %3142 = vrot.lane.b32.xlu0 %v1813, 127
      %v3143 = vpop.permute.xlu0 %3142
      %3144 = vrot.lane.b32.xlu0 %v1814, 127
      %v3145 = vpop.permute.xlu0 %3144
      %3146 = vrot.lane.b32.xlu0 %v1815, 127
      %v3147 = vpop.permute.xlu0 %3146
      %3148 = vrot.lane.b32.xlu0 %v1816, 127
      %v3149 = vpop.permute.xlu0 %3148
      %3150 = vrot.lane.b32.xlu0 %v1817, 127
      %v3151 = vpop.permute.xlu0 %3150
      %3152 = vrot.lane.b32.xlu0 %v1818, 127
      %v3153 = vpop.permute.xlu0 %3152
      %3154 = vrot.lane.b32.xlu0 %v1819, 127
      %v3155 = vpop.permute.xlu0 %3154
      %3156 = vrot.lane.b32.xlu0 %v1820, 127
      %v3157 = vpop.permute.xlu0 %3156
      %3158 = vrot.lane.b32.xlu0 %v1821, 127
      %v3159 = vpop.permute.xlu0 %3158
      %3160 = vrot.lane.b32.xlu0 %v1822, 127
      %v3161 = vpop.permute.xlu0 %3160
      %3162 = vrot.lane.b32.xlu0 %v1823, 127
      %v3163 = vpop.permute.xlu0 %3162
      %3164 = vrot.lane.b32.xlu0 %v1824, 127
      %v3165 = vpop.permute.xlu0 %3164
      %3166 = vrot.lane.b32.xlu0 %v1825, 127
      %v3167 = vpop.permute.xlu0 %3166
      %3168 = vrot.lane.b32.xlu0 %v1826, 127
      %v3169 = vpop.permute.xlu0 %3168
      %3170 = vrot.lane.b32.xlu0 %v1827, 127
      %v3171 = vpop.permute.xlu0 %3170
      %3172 = vrot.lane.b32.xlu0 %v1828, 127
      %v3173 = vpop.permute.xlu0 %3172
      %3174 = vrot.lane.b32.xlu0 %v1829, 127
      %v3175 = vpop.permute.xlu0 %3174
      %3176 = vrot.lane.b32.xlu0 %v1830, 127
      %v3177 = vpop.permute.xlu0 %3176
      %3178 = vrot.lane.b32.xlu0 %v1831, 127
      %v3179 = vpop.permute.xlu0 %3178
      %3180 = vrot.lane.b32.xlu0 %v1832, 127
      %v3181 = vpop.permute.xlu0 %3180
      %3182 = vrot.lane.b32.xlu0 %v1833, 127
      %v3183 = vpop.permute.xlu0 %3182
      %3184 = vrot.lane.b32.xlu0 %v1834, 127
      %v3185 = vpop.permute.xlu0 %3184
      %3186 = vrot.lane.b32.xlu0 %v1835, 127
      %v3187 = vpop.permute.xlu0 %3186
      %3188 = vrot.lane.b32.xlu0 %v1836, 127
      %v3189 = vpop.permute.xlu0 %3188
      %3190 = vrot.lane.b32.xlu0 %v1837, 127
      %v3191 = vpop.permute.xlu0 %3190
      %3192 = vrot.lane.b32.xlu0 %v1838, 127
      %v3193 = vpop.permute.xlu0 %3192
      %3194 = vrot.lane.b32.xlu0 %v1839, 127
      %v3195 = vpop.permute.xlu0 %3194
      %3196 = vrot.lane.b32.xlu0 %v1840, 127
      %v3197 = vpop.permute.xlu0 %3196
      %3198 = vrot.lane.b32.xlu0 %v1841, 127
      %v3199 = vpop.permute.xlu0 %3198
      %3200 = vrot.lane.b32.xlu0 %v1842, 127
      %v3201 = vpop.permute.xlu0 %3200
      %v3202 = vsel %vm2165, %v3137, %v3139
      %v3203 = vsel %vm2165, %v3139, %v3141
      %v3204 = vsel %vm2165, %v3141, %v3143
      %v3205 = vsel %vm2165, %v3143, %v3145
      %v3206 = vsel %vm2165, %v3145, %v3147
      %v3207 = vsel %vm2165, %v3147, %v3149
      %v3208 = vsel %vm2165, %v3149, %v3151
      %v3209 = vsel %vm2165, %v3151, %v3153
      %v3210 = vsel %vm2165, %v3153, %v3155
      %v3211 = vsel %vm2165, %v3155, %v3157
      %v3212 = vsel %vm2165, %v3157, %v3159
      %v3213 = vsel %vm2165, %v3159, %v3161
      %v3214 = vsel %vm2165, %v3161, %v3163
      %v3215 = vsel %vm2165, %v3163, %v3165
      %v3216 = vsel %vm2165, %v3165, %v3167
      %v3217 = vsel %vm2165, %v3167, %v3169
      %v3218 = vsel %vm2165, %v3169, %v3171
      %v3219 = vsel %vm2165, %v3171, %v3173
      %v3220 = vsel %vm2165, %v3173, %v3175
      %v3221 = vsel %vm2165, %v3175, %v3177
      %v3222 = vsel %vm2165, %v3177, %v3179
      %v3223 = vsel %vm2165, %v3179, %v3181
      %v3224 = vsel %vm2165, %v3181, %v3183
      %v3225 = vsel %vm2165, %v3183, %v3185
      %v3226 = vsel %vm2165, %v3185, %v3187
      %v3227 = vsel %vm2165, %v3187, %v3189
      %v3228 = vsel %vm2165, %v3189, %v3191
      %v3229 = vsel %vm2165, %v3191, %v3193
      %v3230 = vsel %vm2165, %v3193, %v3195
      %v3231 = vsel %vm2165, %v3195, %v3197
      %v3232 = vsel %vm2165, %v3197, %v3199
      %v3233 = vsel %vm2165, %v3199, %v3201
      %3267 = vrot.lane.b32.xlu0 %v2036, 126
      %v3268 = vpop.permute.xlu0 %3267
      %3269 = vrot.lane.b32.xlu0 %v2037, 126
      %v3270 = vpop.permute.xlu0 %3269
      %3271 = vrot.lane.b32.xlu0 %v2038, 126
      %v3272 = vpop.permute.xlu0 %3271
      %3273 = vrot.lane.b32.xlu0 %v2039, 126
      %v3274 = vpop.permute.xlu0 %3273
      %3275 = vrot.lane.b32.xlu0 %v2040, 126
      %v3276 = vpop.permute.xlu0 %3275
      %3277 = vrot.lane.b32.xlu0 %v2041, 126
      %v3278 = vpop.permute.xlu0 %3277
      %3279 = vrot.lane.b32.xlu0 %v2042, 126
      %v3280 = vpop.permute.xlu0 %3279
      %3281 = vrot.lane.b32.xlu0 %v2043, 126
      %v3282 = vpop.permute.xlu0 %3281
      %3283 = vrot.lane.b32.xlu0 %v2044, 126
      %v3284 = vpop.permute.xlu0 %3283
      %3285 = vrot.lane.b32.xlu0 %v2045, 126
      %v3286 = vpop.permute.xlu0 %3285
      %3287 = vrot.lane.b32.xlu0 %v2046, 126
      %v3288 = vpop.permute.xlu0 %3287
      %3289 = vrot.lane.b32.xlu0 %v2047, 126
      %v3290 = vpop.permute.xlu0 %3289
      %3291 = vrot.lane.b32.xlu0 %v2048, 126
      %v3292 = vpop.permute.xlu0 %3291
      %3293 = vrot.lane.b32.xlu0 %v2049, 126
      %v3294 = vpop.permute.xlu0 %3293
      %3295 = vrot.lane.b32.xlu0 %v2050, 126
      %v3296 = vpop.permute.xlu0 %3295
      %3297 = vrot.lane.b32.xlu0 %v2051, 126
      %v3298 = vpop.permute.xlu0 %3297
      %3299 = vrot.lane.b32.xlu0 %v2052, 126
      %v3300 = vpop.permute.xlu0 %3299
      %3301 = vrot.lane.b32.xlu0 %v2053, 126
      %v3302 = vpop.permute.xlu0 %3301
      %3303 = vrot.lane.b32.xlu0 %v2054, 126
      %v3304 = vpop.permute.xlu0 %3303
      %3305 = vrot.lane.b32.xlu0 %v2055, 126
      %v3306 = vpop.permute.xlu0 %3305
      %3307 = vrot.lane.b32.xlu0 %v2056, 126
      %v3308 = vpop.permute.xlu0 %3307
      %3309 = vrot.lane.b32.xlu0 %v2057, 126
      %v3310 = vpop.permute.xlu0 %3309
      %3311 = vrot.lane.b32.xlu0 %v2058, 126
      %v3312 = vpop.permute.xlu0 %3311
      %3313 = vrot.lane.b32.xlu0 %v2059, 126
      %v3314 = vpop.permute.xlu0 %3313
      %3315 = vrot.lane.b32.xlu0 %v2060, 126
      %v3316 = vpop.permute.xlu0 %3315
      %3317 = vrot.lane.b32.xlu0 %v2061, 126
      %v3318 = vpop.permute.xlu0 %3317
      %3319 = vrot.lane.b32.xlu0 %v2062, 126
      %v3320 = vpop.permute.xlu0 %3319
      %3321 = vrot.lane.b32.xlu0 %v2063, 126
      %v3322 = vpop.permute.xlu0 %3321
      %3323 = vrot.lane.b32.xlu0 %v2064, 126
      %v3324 = vpop.permute.xlu0 %3323
      %3325 = vrot.lane.b32.xlu0 %v2065, 126
      %v3326 = vpop.permute.xlu0 %3325
      %3327 = vrot.lane.b32.xlu0 %v2066, 126
      %v3328 = vpop.permute.xlu0 %3327
      %3329 = vrot.lane.b32.xlu0 %v2067, 126
      %v3330 = vpop.permute.xlu0 %3329
      %3331 = vrot.lane.b32.xlu0 %v2068, 126
      %v3332 = vpop.permute.xlu0 %3331
      %vm3333 = vcmask 1031168
      %v3334 = vsel %vm3333, %v3268, %v3270
      %v3335 = vsel %vm3333, %v3270, %v3272
      %v3336 = vsel %vm3333, %v3272, %v3274
      %v3337 = vsel %vm3333, %v3274, %v3276
      %v3338 = vsel %vm3333, %v3276, %v3278
      %v3339 = vsel %vm3333, %v3278, %v3280
      %v3340 = vsel %vm3333, %v3280, %v3282
      %v3341 = vsel %vm3333, %v3282, %v3284
      %v3342 = vsel %vm3333, %v3284, %v3286
      %v3343 = vsel %vm3333, %v3286, %v3288
      %v3344 = vsel %vm3333, %v3288, %v3290
      %v3345 = vsel %vm3333, %v3290, %v3292
      %v3346 = vsel %vm3333, %v3292, %v3294
      %v3347 = vsel %vm3333, %v3294, %v3296
      %v3348 = vsel %vm3333, %v3296, %v3298
      %v3349 = vsel %vm3333, %v3298, %v3300
      %v3350 = vsel %vm3333, %v3300, %v3302
      %v3351 = vsel %vm3333, %v3302, %v3304
      %v3352 = vsel %vm3333, %v3304, %v3306
      %v3353 = vsel %vm3333, %v3306, %v3308
      %v3354 = vsel %vm3333, %v3308, %v3310
      %v3355 = vsel %vm3333, %v3310, %v3312
      %v3356 = vsel %vm3333, %v3312, %v3314
      %v3357 = vsel %vm3333, %v3314, %v3316
      %v3358 = vsel %vm3333, %v3316, %v3318
      %v3359 = vsel %vm3333, %v3318, %v3320
      %v3360 = vsel %vm3333, %v3320, %v3322
      %v3361 = vsel %vm3333, %v3322, %v3324
      %v3362 = vsel %vm3333, %v3324, %v3326
      %v3363 = vsel %vm3333, %v3326, %v3328
      %v3364 = vsel %vm3333, %v3328, %v3330
      %v3365 = vsel %vm3333, %v3330, %v3332
      %3399 = vrot.lane.b32.xlu0 %v2230, 112
      %v3400 = vpop.permute.xlu0 %3399
      %3401 = vrot.lane.b32.xlu0 %v2231, 112
      %v3402 = vpop.permute.xlu0 %3401
      %3403 = vrot.lane.b32.xlu0 %v2232, 112
      %v3404 = vpop.permute.xlu0 %3403
      %3405 = vrot.lane.b32.xlu0 %v2233, 112
      %v3406 = vpop.permute.xlu0 %3405
      %3407 = vrot.lane.b32.xlu0 %v2234, 112
      %v3408 = vpop.permute.xlu0 %3407
      %3409 = vrot.lane.b32.xlu0 %v2235, 112
      %v3410 = vpop.permute.xlu0 %3409
      %3411 = vrot.lane.b32.xlu0 %v2236, 112
      %v3412 = vpop.permute.xlu0 %3411
      %3413 = vrot.lane.b32.xlu0 %v2237, 112
      %v3414 = vpop.permute.xlu0 %3413
      %3415 = vrot.lane.b32.xlu0 %v2238, 112
      %v3416 = vpop.permute.xlu0 %3415
      %3417 = vrot.lane.b32.xlu0 %v2239, 112
      %v3418 = vpop.permute.xlu0 %3417
      %3419 = vrot.lane.b32.xlu0 %v2240, 112
      %v3420 = vpop.permute.xlu0 %3419
      %3421 = vrot.lane.b32.xlu0 %v2241, 112
      %v3422 = vpop.permute.xlu0 %3421
      %3423 = vrot.lane.b32.xlu0 %v2242, 112
      %v3424 = vpop.permute.xlu0 %3423
      %3425 = vrot.lane.b32.xlu0 %v2243, 112
      %v3426 = vpop.permute.xlu0 %3425
      %3427 = vrot.lane.b32.xlu0 %v2244, 112
      %v3428 = vpop.permute.xlu0 %3427
      %3429 = vrot.lane.b32.xlu0 %v2245, 112
      %v3430 = vpop.permute.xlu0 %3429
      %3431 = vrot.lane.b32.xlu0 %v2246, 112
      %v3432 = vpop.permute.xlu0 %3431
      %3433 = vrot.lane.b32.xlu0 %v2247, 112
      %v3434 = vpop.permute.xlu0 %3433
      %3435 = vrot.lane.b32.xlu0 %v2248, 112
      %v3436 = vpop.permute.xlu0 %3435
      %3437 = vrot.lane.b32.xlu0 %v2249, 112
      %v3438 = vpop.permute.xlu0 %3437
      %3439 = vrot.lane.b32.xlu0 %v2250, 112
      %v3440 = vpop.permute.xlu0 %3439
      %3441 = vrot.lane.b32.xlu0 %v2251, 112
      %v3442 = vpop.permute.xlu0 %3441
      %3443 = vrot.lane.b32.xlu0 %v2252, 112
      %v3444 = vpop.permute.xlu0 %3443
      %3445 = vrot.lane.b32.xlu0 %v2253, 112
      %v3446 = vpop.permute.xlu0 %3445
      %3447 = vrot.lane.b32.xlu0 %v2254, 112
      %v3448 = vpop.permute.xlu0 %3447
      %3449 = vrot.lane.b32.xlu0 %v2255, 112
      %v3450 = vpop.permute.xlu0 %3449
      %3451 = vrot.lane.b32.xlu0 %v2256, 112
      %v3452 = vpop.permute.xlu0 %3451
      %3453 = vrot.lane.b32.xlu0 %v2257, 112
      %v3454 = vpop.permute.xlu0 %3453
      %3455 = vrot.lane.b32.xlu0 %v2258, 112
      %v3456 = vpop.permute.xlu0 %3455
      %3457 = vrot.lane.b32.xlu0 %v2259, 112
      %v3458 = vpop.permute.xlu0 %3457
      %3459 = vrot.lane.b32.xlu0 %v2260, 112
      %v3460 = vpop.permute.xlu0 %3459
      %3461 = vrot.lane.b32.xlu0 %v2261, 112
      %v3462 = vpop.permute.xlu0 %3461
      %3463 = vrot.lane.b32.xlu0 %v2262, 112
      %v3464 = vpop.permute.xlu0 %3463
      %v3465 = vsel %vm1745, %v3400, %v3402
      %v3466 = vsel %vm1745, %v3402, %v3404
      %v3467 = vsel %vm1745, %v3404, %v3406
      %v3468 = vsel %vm1745, %v3406, %v3408
      %v3469 = vsel %vm1745, %v3408, %v3410
      %v3470 = vsel %vm1745, %v3410, %v3412
      %v3471 = vsel %vm1745, %v3412, %v3414
      %v3472 = vsel %vm1745, %v3414, %v3416
      %v3473 = vsel %vm1745, %v3416, %v3418
      %v3474 = vsel %vm1745, %v3418, %v3420
      %v3475 = vsel %vm1745, %v3420, %v3422
      %v3476 = vsel %vm1745, %v3422, %v3424
      %v3477 = vsel %vm1745, %v3424, %v3426
      %v3478 = vsel %vm1745, %v3426, %v3428
      %v3479 = vsel %vm1745, %v3428, %v3430
      %v3480 = vsel %vm1745, %v3430, %v3432
      %v3481 = vsel %vm1745, %v3432, %v3434
      %v3482 = vsel %vm1745, %v3434, %v3436
      %v3483 = vsel %vm1745, %v3436, %v3438
      %v3484 = vsel %vm1745, %v3438, %v3440
      %v3485 = vsel %vm1745, %v3440, %v3442
      %v3486 = vsel %vm1745, %v3442, %v3444
      %v3487 = vsel %vm1745, %v3444, %v3446
      %v3488 = vsel %vm1745, %v3446, %v3448
      %v3489 = vsel %vm1745, %v3448, %v3450
      %v3490 = vsel %vm1745, %v3450, %v3452
      %v3491 = vsel %vm1745, %v3452, %v3454
      %v3492 = vsel %vm1745, %v3454, %v3456
      %v3493 = vsel %vm1745, %v3456, %v3458
      %v3494 = vsel %vm1745, %v3458, %v3460
      %v3495 = vsel %vm1745, %v3460, %v3462
      %v3496 = vsel %vm1745, %v3462, %v3464
      %3529 = vrot.lane.b32.xlu0 %v173, 111
      %v3530 = vpop.permute.xlu0 %3529
      %3531 = vrot.lane.b32.xlu0 %v174, 111
      %v3532 = vpop.permute.xlu0 %3531
      %3533 = vrot.lane.b32.xlu0 %v175, 111
      %v3534 = vpop.permute.xlu0 %3533
      %3535 = vrot.lane.b32.xlu0 %v176, 111
      %v3536 = vpop.permute.xlu0 %3535
      %3537 = vrot.lane.b32.xlu0 %v177, 111
      %v3538 = vpop.permute.xlu0 %3537
      %3539 = vrot.lane.b32.xlu0 %v178, 111
      %v3540 = vpop.permute.xlu0 %3539
      %3541 = vrot.lane.b32.xlu0 %v179, 111
      %v3542 = vpop.permute.xlu0 %3541
      %3543 = vrot.lane.b32.xlu0 %v180, 111
      %v3544 = vpop.permute.xlu0 %3543
      %3545 = vrot.lane.b32.xlu0 %v181, 111
      %v3546 = vpop.permute.xlu0 %3545
      %3547 = vrot.lane.b32.xlu0 %v182, 111
      %v3548 = vpop.permute.xlu0 %3547
      %3549 = vrot.lane.b32.xlu0 %v183, 111
      %v3550 = vpop.permute.xlu0 %3549
      %3551 = vrot.lane.b32.xlu0 %v184, 111
      %v3552 = vpop.permute.xlu0 %3551
      %3553 = vrot.lane.b32.xlu0 %v185, 111
      %v3554 = vpop.permute.xlu0 %3553
      %3555 = vrot.lane.b32.xlu0 %v186, 111
      %v3556 = vpop.permute.xlu0 %3555
      %3557 = vrot.lane.b32.xlu0 %v187, 111
      %v3558 = vpop.permute.xlu0 %3557
      %3559 = vrot.lane.b32.xlu0 %v188, 111
      %v3560 = vpop.permute.xlu0 %3559
      %3561 = vrot.lane.b32.xlu0 %v189, 111
      %v3562 = vpop.permute.xlu0 %3561
      %3563 = vrot.lane.b32.xlu0 %v190, 111
      %v3564 = vpop.permute.xlu0 %3563
      %3565 = vrot.lane.b32.xlu0 %v191, 111
      %v3566 = vpop.permute.xlu0 %3565
      %3567 = vrot.lane.b32.xlu0 %v192, 111
      %v3568 = vpop.permute.xlu0 %3567
      %3569 = vrot.lane.b32.xlu0 %v193, 111
      %v3570 = vpop.permute.xlu0 %3569
      %3571 = vrot.lane.b32.xlu0 %v194, 111
      %v3572 = vpop.permute.xlu0 %3571
      %3573 = vrot.lane.b32.xlu0 %v195, 111
      %v3574 = vpop.permute.xlu0 %3573
      %3575 = vrot.lane.b32.xlu0 %v196, 111
      %v3576 = vpop.permute.xlu0 %3575
      %3577 = vrot.lane.b32.xlu0 %v197, 111
      %v3578 = vpop.permute.xlu0 %3577
      %3579 = vrot.lane.b32.xlu0 %v198, 111
      %v3580 = vpop.permute.xlu0 %3579
      %3581 = vrot.lane.b32.xlu0 %v199, 111
      %v3582 = vpop.permute.xlu0 %3581
      %3583 = vrot.lane.b32.xlu0 %v200, 111
      %v3584 = vpop.permute.xlu0 %3583
      %3585 = vrot.lane.b32.xlu0 %v201, 111
      %v3586 = vpop.permute.xlu0 %3585
      %3587 = vrot.lane.b32.xlu0 %v202, 111
      %v3588 = vpop.permute.xlu0 %3587
      %3589 = vrot.lane.b32.xlu0 %v203, 111
      %v3590 = vpop.permute.xlu0 %3589
      %3591 = vrot.lane.b32.xlu0 %v204, 111
      %v3592 = vpop.permute.xlu0 %3591
      %v3593 = vsel %vm1551, %v3530, %v3532
      %v3594 = vsel %vm1551, %v3532, %v3534
      %v3595 = vsel %vm1551, %v3534, %v3536
      %v3596 = vsel %vm1551, %v3536, %v3538
      %v3597 = vsel %vm1551, %v3538, %v3540
      %v3598 = vsel %vm1551, %v3540, %v3542
      %v3599 = vsel %vm1551, %v3542, %v3544
      %v3600 = vsel %vm1551, %v3544, %v3546
      %v3601 = vsel %vm1551, %v3546, %v3548
      %v3602 = vsel %vm1551, %v3548, %v3550
      %v3603 = vsel %vm1551, %v3550, %v3552
      %v3604 = vsel %vm1551, %v3552, %v3554
      %v3605 = vsel %vm1551, %v3554, %v3556
      %v3606 = vsel %vm1551, %v3556, %v3558
      %v3607 = vsel %vm1551, %v3558, %v3560
      %v3608 = vsel %vm1551, %v3560, %v3562
      %v3609 = vsel %vm1551, %v3562, %v3564
      %v3610 = vsel %vm1551, %v3564, %v3566
      %v3611 = vsel %vm1551, %v3566, %v3568
      %v3612 = vsel %vm1551, %v3568, %v3570
      %v3613 = vsel %vm1551, %v3570, %v3572
      %v3614 = vsel %vm1551, %v3572, %v3574
      %v3615 = vsel %vm1551, %v3574, %v3576
      %v3616 = vsel %vm1551, %v3576, %v3578
      %v3617 = vsel %vm1551, %v3578, %v3580
      %v3618 = vsel %vm1551, %v3580, %v3582
      %v3619 = vsel %vm1551, %v3582, %v3584
      %v3620 = vsel %vm1551, %v3584, %v3586
      %v3621 = vsel %vm1551, %v3586, %v3588
      %v3622 = vsel %vm1551, %v3588, %v3590
      %v3623 = vsel %vm1551, %v3590, %v3592
      %3657 = vrot.lane.b32.xlu0 %v2424, 110
      %v3658 = vpop.permute.xlu0 %3657
      %3659 = vrot.lane.b32.xlu0 %v2425, 110
      %v3660 = vpop.permute.xlu0 %3659
      %3661 = vrot.lane.b32.xlu0 %v2426, 110
      %v3662 = vpop.permute.xlu0 %3661
      %3663 = vrot.lane.b32.xlu0 %v2427, 110
      %v3664 = vpop.permute.xlu0 %3663
      %3665 = vrot.lane.b32.xlu0 %v2428, 110
      %v3666 = vpop.permute.xlu0 %3665
      %3667 = vrot.lane.b32.xlu0 %v2429, 110
      %v3668 = vpop.permute.xlu0 %3667
      %3669 = vrot.lane.b32.xlu0 %v2430, 110
      %v3670 = vpop.permute.xlu0 %3669
      %3671 = vrot.lane.b32.xlu0 %v2431, 110
      %v3672 = vpop.permute.xlu0 %3671
      %3673 = vrot.lane.b32.xlu0 %v2432, 110
      %v3674 = vpop.permute.xlu0 %3673
      %3675 = vrot.lane.b32.xlu0 %v2433, 110
      %v3676 = vpop.permute.xlu0 %3675
      %3677 = vrot.lane.b32.xlu0 %v2434, 110
      %v3678 = vpop.permute.xlu0 %3677
      %3679 = vrot.lane.b32.xlu0 %v2435, 110
      %v3680 = vpop.permute.xlu0 %3679
      %3681 = vrot.lane.b32.xlu0 %v2436, 110
      %v3682 = vpop.permute.xlu0 %3681
      %3683 = vrot.lane.b32.xlu0 %v2437, 110
      %v3684 = vpop.permute.xlu0 %3683
      %3685 = vrot.lane.b32.xlu0 %v2438, 110
      %v3686 = vpop.permute.xlu0 %3685
      %3687 = vrot.lane.b32.xlu0 %v2439, 110
      %v3688 = vpop.permute.xlu0 %3687
      %3689 = vrot.lane.b32.xlu0 %v2440, 110
      %v3690 = vpop.permute.xlu0 %3689
      %3691 = vrot.lane.b32.xlu0 %v2441, 110
      %v3692 = vpop.permute.xlu0 %3691
      %3693 = vrot.lane.b32.xlu0 %v2442, 110
      %v3694 = vpop.permute.xlu0 %3693
      %3695 = vrot.lane.b32.xlu0 %v2443, 110
      %v3696 = vpop.permute.xlu0 %3695
      %3697 = vrot.lane.b32.xlu0 %v2444, 110
      %v3698 = vpop.permute.xlu0 %3697
      %3699 = vrot.lane.b32.xlu0 %v2445, 110
      %v3700 = vpop.permute.xlu0 %3699
      %3701 = vrot.lane.b32.xlu0 %v2446, 110
      %v3702 = vpop.permute.xlu0 %3701
      %3703 = vrot.lane.b32.xlu0 %v2447, 110
      %v3704 = vpop.permute.xlu0 %3703
      %3705 = vrot.lane.b32.xlu0 %v2448, 110
      %v3706 = vpop.permute.xlu0 %3705
      %3707 = vrot.lane.b32.xlu0 %v2449, 110
      %v3708 = vpop.permute.xlu0 %3707
      %3709 = vrot.lane.b32.xlu0 %v2450, 110
      %v3710 = vpop.permute.xlu0 %3709
      %3711 = vrot.lane.b32.xlu0 %v2451, 110
      %v3712 = vpop.permute.xlu0 %3711
      %3713 = vrot.lane.b32.xlu0 %v2452, 110
      %v3714 = vpop.permute.xlu0 %3713
      %3715 = vrot.lane.b32.xlu0 %v2453, 110
      %v3716 = vpop.permute.xlu0 %3715
      %3717 = vrot.lane.b32.xlu0 %v2454, 110
      %v3718 = vpop.permute.xlu0 %3717
      %3719 = vrot.lane.b32.xlu0 %v2455, 110
      %v3720 = vpop.permute.xlu0 %3719
      %3721 = vrot.lane.b32.xlu0 %v2456, 110
      %v3722 = vpop.permute.xlu0 %3721
      %vm3723 = vcmask 900096
      %v3724 = vsel %vm3723, %v3658, %v3660
      %v3725 = vsel %vm3723, %v3660, %v3662
      %v3726 = vsel %vm3723, %v3662, %v3664
      %v3727 = vsel %vm3723, %v3664, %v3666
      %v3728 = vsel %vm3723, %v3666, %v3668
      %v3729 = vsel %vm3723, %v3668, %v3670
      %v3730 = vsel %vm3723, %v3670, %v3672
      %v3731 = vsel %vm3723, %v3672, %v3674
      %v3732 = vsel %vm3723, %v3674, %v3676
      %v3733 = vsel %vm3723, %v3676, %v3678
      %v3734 = vsel %vm3723, %v3678, %v3680
      %v3735 = vsel %vm3723, %v3680, %v3682
      %v3736 = vsel %vm3723, %v3682, %v3684
      %v3737 = vsel %vm3723, %v3684, %v3686
      %v3738 = vsel %vm3723, %v3686, %v3688
      %v3739 = vsel %vm3723, %v3688, %v3690
      %v3740 = vsel %vm3723, %v3690, %v3692
      %v3741 = vsel %vm3723, %v3692, %v3694
      %v3742 = vsel %vm3723, %v3694, %v3696
      %v3743 = vsel %vm3723, %v3696, %v3698
      %v3744 = vsel %vm3723, %v3698, %v3700
      %v3745 = vsel %vm3723, %v3700, %v3702
      %v3746 = vsel %vm3723, %v3702, %v3704
      %v3747 = vsel %vm3723, %v3704, %v3706
      %v3748 = vsel %vm3723, %v3706, %v3708
      %v3749 = vsel %vm3723, %v3708, %v3710
      %v3750 = vsel %vm3723, %v3710, %v3712
      %v3751 = vsel %vm3723, %v3712, %v3714
      %v3752 = vsel %vm3723, %v3714, %v3716
      %v3753 = vsel %vm3723, %v3716, %v3718
      %v3754 = vsel %vm3723, %v3718, %v3720
      %v3755 = vsel %vm3723, %v3720, %v3722
      %3789 = vrot.lane.b32.xlu0 %v2650, 96
      %v3790 = vpop.permute.xlu0 %3789
      %3791 = vrot.lane.b32.xlu0 %v2651, 96
      %v3792 = vpop.permute.xlu0 %3791
      %3793 = vrot.lane.b32.xlu0 %v2652, 96
      %v3794 = vpop.permute.xlu0 %3793
      %3795 = vrot.lane.b32.xlu0 %v2653, 96
      %v3796 = vpop.permute.xlu0 %3795
      %3797 = vrot.lane.b32.xlu0 %v2654, 96
      %v3798 = vpop.permute.xlu0 %3797
      %3799 = vrot.lane.b32.xlu0 %v2655, 96
      %v3800 = vpop.permute.xlu0 %3799
      %3801 = vrot.lane.b32.xlu0 %v2656, 96
      %v3802 = vpop.permute.xlu0 %3801
      %3803 = vrot.lane.b32.xlu0 %v2657, 96
      %v3804 = vpop.permute.xlu0 %3803
      %3805 = vrot.lane.b32.xlu0 %v2658, 96
      %v3806 = vpop.permute.xlu0 %3805
      %3807 = vrot.lane.b32.xlu0 %v2659, 96
      %v3808 = vpop.permute.xlu0 %3807
      %3809 = vrot.lane.b32.xlu0 %v2660, 96
      %v3810 = vpop.permute.xlu0 %3809
      %3811 = vrot.lane.b32.xlu0 %v2661, 96
      %v3812 = vpop.permute.xlu0 %3811
      %3813 = vrot.lane.b32.xlu0 %v2662, 96
      %v3814 = vpop.permute.xlu0 %3813
      %3815 = vrot.lane.b32.xlu0 %v2663, 96
      %v3816 = vpop.permute.xlu0 %3815
      %3817 = vrot.lane.b32.xlu0 %v2664, 96
      %v3818 = vpop.permute.xlu0 %3817
      %3819 = vrot.lane.b32.xlu0 %v2665, 96
      %v3820 = vpop.permute.xlu0 %3819
      %3821 = vrot.lane.b32.xlu0 %v2666, 96
      %v3822 = vpop.permute.xlu0 %3821
      %3823 = vrot.lane.b32.xlu0 %v2667, 96
      %v3824 = vpop.permute.xlu0 %3823
      %3825 = vrot.lane.b32.xlu0 %v2668, 96
      %v3826 = vpop.permute.xlu0 %3825
      %3827 = vrot.lane.b32.xlu0 %v2669, 96
      %v3828 = vpop.permute.xlu0 %3827
      %3829 = vrot.lane.b32.xlu0 %v2670, 96
      %v3830 = vpop.permute.xlu0 %3829
      %3831 = vrot.lane.b32.xlu0 %v2671, 96
      %v3832 = vpop.permute.xlu0 %3831
      %3833 = vrot.lane.b32.xlu0 %v2672, 96
      %v3834 = vpop.permute.xlu0 %3833
      %3835 = vrot.lane.b32.xlu0 %v2673, 96
      %v3836 = vpop.permute.xlu0 %3835
      %3837 = vrot.lane.b32.xlu0 %v2674, 96
      %v3838 = vpop.permute.xlu0 %3837
      %3839 = vrot.lane.b32.xlu0 %v2675, 96
      %v3840 = vpop.permute.xlu0 %3839
      %3841 = vrot.lane.b32.xlu0 %v2676, 96
      %v3842 = vpop.permute.xlu0 %3841
      %3843 = vrot.lane.b32.xlu0 %v2677, 96
      %v3844 = vpop.permute.xlu0 %3843
      %3845 = vrot.lane.b32.xlu0 %v2678, 96
      %v3846 = vpop.permute.xlu0 %3845
      %3847 = vrot.lane.b32.xlu0 %v2679, 96
      %v3848 = vpop.permute.xlu0 %3847
      %3849 = vrot.lane.b32.xlu0 %v2680, 96
      %v3850 = vpop.permute.xlu0 %3849
      %3851 = vrot.lane.b32.xlu0 %v2681, 96
      %v3852 = vpop.permute.xlu0 %3851
      %3853 = vrot.lane.b32.xlu0 %v2682, 96
      %v3854 = vpop.permute.xlu0 %3853
      %vm3855 = vcmask 785408
      %v3856 = vsel %vm3855, %v3790, %v3792
      %v3857 = vsel %vm3855, %v3792, %v3794
      %v3858 = vsel %vm3855, %v3794, %v3796
      %v3859 = vsel %vm3855, %v3796, %v3798
      %v3860 = vsel %vm3855, %v3798, %v3800
      %v3861 = vsel %vm3855, %v3800, %v3802
      %v3862 = vsel %vm3855, %v3802, %v3804
      %v3863 = vsel %vm3855, %v3804, %v3806
      %v3864 = vsel %vm3855, %v3806, %v3808
      %v3865 = vsel %vm3855, %v3808, %v3810
      %v3866 = vsel %vm3855, %v3810, %v3812
      %v3867 = vsel %vm3855, %v3812, %v3814
      %v3868 = vsel %vm3855, %v3814, %v3816
      %v3869 = vsel %vm3855, %v3816, %v3818
      %v3870 = vsel %vm3855, %v3818, %v3820
      %v3871 = vsel %vm3855, %v3820, %v3822
      %v3872 = vsel %vm3855, %v3822, %v3824
      %v3873 = vsel %vm3855, %v3824, %v3826
      %v3874 = vsel %vm3855, %v3826, %v3828
      %v3875 = vsel %vm3855, %v3828, %v3830
      %v3876 = vsel %vm3855, %v3830, %v3832
      %v3877 = vsel %vm3855, %v3832, %v3834
      %v3878 = vsel %vm3855, %v3834, %v3836
      %v3879 = vsel %vm3855, %v3836, %v3838
      %v3880 = vsel %vm3855, %v3838, %v3840
      %v3881 = vsel %vm3855, %v3840, %v3842
      %v3882 = vsel %vm3855, %v3842, %v3844
      %v3883 = vsel %vm3855, %v3844, %v3846
      %v3884 = vsel %vm3855, %v3846, %v3848
      %v3885 = vsel %vm3855, %v3848, %v3850
      %v3886 = vsel %vm3855, %v3850, %v3852
      %v3887 = vsel %vm3855, %v3852, %v3854
      %3921 = vrot.lane.b32.xlu0 %v2844, 95
      %v3922 = vpop.permute.xlu0 %3921
      %3923 = vrot.lane.b32.xlu0 %v2845, 95
      %v3924 = vpop.permute.xlu0 %3923
      %3925 = vrot.lane.b32.xlu0 %v2846, 95
      %v3926 = vpop.permute.xlu0 %3925
      %3927 = vrot.lane.b32.xlu0 %v2847, 95
      %v3928 = vpop.permute.xlu0 %3927
      %3929 = vrot.lane.b32.xlu0 %v2848, 95
      %v3930 = vpop.permute.xlu0 %3929
      %3931 = vrot.lane.b32.xlu0 %v2849, 95
      %v3932 = vpop.permute.xlu0 %3931
      %3933 = vrot.lane.b32.xlu0 %v2850, 95
      %v3934 = vpop.permute.xlu0 %3933
      %3935 = vrot.lane.b32.xlu0 %v2851, 95
      %v3936 = vpop.permute.xlu0 %3935
      %3937 = vrot.lane.b32.xlu0 %v2852, 95
      %v3938 = vpop.permute.xlu0 %3937
      %3939 = vrot.lane.b32.xlu0 %v2853, 95
      %v3940 = vpop.permute.xlu0 %3939
      %3941 = vrot.lane.b32.xlu0 %v2854, 95
      %v3942 = vpop.permute.xlu0 %3941
      %3943 = vrot.lane.b32.xlu0 %v2855, 95
      %v3944 = vpop.permute.xlu0 %3943
      %3945 = vrot.lane.b32.xlu0 %v2856, 95
      %v3946 = vpop.permute.xlu0 %3945
      %3947 = vrot.lane.b32.xlu0 %v2857, 95
      %v3948 = vpop.permute.xlu0 %3947
      %3949 = vrot.lane.b32.xlu0 %v2858, 95
      %v3950 = vpop.permute.xlu0 %3949
      %3951 = vrot.lane.b32.xlu0 %v2859, 95
      %v3952 = vpop.permute.xlu0 %3951
      %3953 = vrot.lane.b32.xlu0 %v2860, 95
      %v3954 = vpop.permute.xlu0 %3953
      %3955 = vrot.lane.b32.xlu0 %v2861, 95
      %v3956 = vpop.permute.xlu0 %3955
      %3957 = vrot.lane.b32.xlu0 %v2862, 95
      %v3958 = vpop.permute.xlu0 %3957
      %3959 = vrot.lane.b32.xlu0 %v2863, 95
      %v3960 = vpop.permute.xlu0 %3959
      %3961 = vrot.lane.b32.xlu0 %v2864, 95
      %v3962 = vpop.permute.xlu0 %3961
      %3963 = vrot.lane.b32.xlu0 %v2865, 95
      %v3964 = vpop.permute.xlu0 %3963
      %3965 = vrot.lane.b32.xlu0 %v2866, 95
      %v3966 = vpop.permute.xlu0 %3965
      %3967 = vrot.lane.b32.xlu0 %v2867, 95
      %v3968 = vpop.permute.xlu0 %3967
      %3969 = vrot.lane.b32.xlu0 %v2868, 95
      %v3970 = vpop.permute.xlu0 %3969
      %3971 = vrot.lane.b32.xlu0 %v2869, 95
      %v3972 = vpop.permute.xlu0 %3971
      %3973 = vrot.lane.b32.xlu0 %v2870, 95
      %v3974 = vpop.permute.xlu0 %3973
      %3975 = vrot.lane.b32.xlu0 %v2871, 95
      %v3976 = vpop.permute.xlu0 %3975
      %3977 = vrot.lane.b32.xlu0 %v2872, 95
      %v3978 = vpop.permute.xlu0 %3977
      %3979 = vrot.lane.b32.xlu0 %v2873, 95
      %v3980 = vpop.permute.xlu0 %3979
      %3981 = vrot.lane.b32.xlu0 %v2874, 95
      %v3982 = vpop.permute.xlu0 %3981
      %3983 = vrot.lane.b32.xlu0 %v2875, 95
      %v3984 = vpop.permute.xlu0 %3983
      %3985 = vrot.lane.b32.xlu0 %v2876, 95
      %v3986 = vpop.permute.xlu0 %3985
      %vm3987 = vcmask 777216
      %v3988 = vsel %vm3987, %v3922, %v3924
      %v3989 = vsel %vm3987, %v3924, %v3926
      %v3990 = vsel %vm3987, %v3926, %v3928
      %v3991 = vsel %vm3987, %v3928, %v3930
      %v3992 = vsel %vm3987, %v3930, %v3932
      %v3993 = vsel %vm3987, %v3932, %v3934
      %v3994 = vsel %vm3987, %v3934, %v3936
      %v3995 = vsel %vm3987, %v3936, %v3938
      %v3996 = vsel %vm3987, %v3938, %v3940
      %v3997 = vsel %vm3987, %v3940, %v3942
      %v3998 = vsel %vm3987, %v3942, %v3944
      %v3999 = vsel %vm3987, %v3944, %v3946
      %v4000 = vsel %vm3987, %v3946, %v3948
      %v4001 = vsel %vm3987, %v3948, %v3950
      %v4002 = vsel %vm3987, %v3950, %v3952
      %v4003 = vsel %vm3987, %v3952, %v3954
      %v4004 = vsel %vm3987, %v3954, %v3956
      %v4005 = vsel %vm3987, %v3956, %v3958
      %v4006 = vsel %vm3987, %v3958, %v3960
      %v4007 = vsel %vm3987, %v3960, %v3962
      %v4008 = vsel %vm3987, %v3962, %v3964
      %v4009 = vsel %vm3987, %v3964, %v3966
      %v4010 = vsel %vm3987, %v3966, %v3968
      %v4011 = vsel %vm3987, %v3968, %v3970
      %v4012 = vsel %vm3987, %v3970, %v3972
      %v4013 = vsel %vm3987, %v3972, %v3974
      %v4014 = vsel %vm3987, %v3974, %v3976
      %v4015 = vsel %vm3987, %v3976, %v3978
      %v4016 = vsel %vm3987, %v3978, %v3980
      %v4017 = vsel %vm3987, %v3980, %v3982
      %v4018 = vsel %vm3987, %v3982, %v3984
      %v4019 = vsel %vm3987, %v3984, %v3986
      %4053 = vrot.lane.b32.xlu0 %v3070, 94
      %v4054 = vpop.permute.xlu0 %4053
      %4055 = vrot.lane.b32.xlu0 %v3071, 94
      %v4056 = vpop.permute.xlu0 %4055
      %4057 = vrot.lane.b32.xlu0 %v3072, 94
      %v4058 = vpop.permute.xlu0 %4057
      %4059 = vrot.lane.b32.xlu0 %v3073, 94
      %v4060 = vpop.permute.xlu0 %4059
      %4061 = vrot.lane.b32.xlu0 %v3074, 94
      %v4062 = vpop.permute.xlu0 %4061
      %4063 = vrot.lane.b32.xlu0 %v3075, 94
      %v4064 = vpop.permute.xlu0 %4063
      %4065 = vrot.lane.b32.xlu0 %v3076, 94
      %v4066 = vpop.permute.xlu0 %4065
      %4067 = vrot.lane.b32.xlu0 %v3077, 94
      %v4068 = vpop.permute.xlu0 %4067
      %4069 = vrot.lane.b32.xlu0 %v3078, 94
      %v4070 = vpop.permute.xlu0 %4069
      %4071 = vrot.lane.b32.xlu0 %v3079, 94
      %v4072 = vpop.permute.xlu0 %4071
      %4073 = vrot.lane.b32.xlu0 %v3080, 94
      %v4074 = vpop.permute.xlu0 %4073
      %4075 = vrot.lane.b32.xlu0 %v3081, 94
      %v4076 = vpop.permute.xlu0 %4075
      %4077 = vrot.lane.b32.xlu0 %v3082, 94
      %v4078 = vpop.permute.xlu0 %4077
      %4079 = vrot.lane.b32.xlu0 %v3083, 94
      %v4080 = vpop.permute.xlu0 %4079
      %4081 = vrot.lane.b32.xlu0 %v3084, 94
      %v4082 = vpop.permute.xlu0 %4081
      %4083 = vrot.lane.b32.xlu0 %v3085, 94
      %v4084 = vpop.permute.xlu0 %4083
      %4085 = vrot.lane.b32.xlu0 %v3086, 94
      %v4086 = vpop.permute.xlu0 %4085
      %4087 = vrot.lane.b32.xlu0 %v3087, 94
      %v4088 = vpop.permute.xlu0 %4087
      %4089 = vrot.lane.b32.xlu0 %v3088, 94
      %v4090 = vpop.permute.xlu0 %4089
      %4091 = vrot.lane.b32.xlu0 %v3089, 94
      %v4092 = vpop.permute.xlu0 %4091
      %4093 = vrot.lane.b32.xlu0 %v3090, 94
      %v4094 = vpop.permute.xlu0 %4093
      %4095 = vrot.lane.b32.xlu0 %v3091, 94
      %v4096 = vpop.permute.xlu0 %4095
      %4097 = vrot.lane.b32.xlu0 %v3092, 94
      %v4098 = vpop.permute.xlu0 %4097
      %4099 = vrot.lane.b32.xlu0 %v3093, 94
      %v4100 = vpop.permute.xlu0 %4099
      %4101 = vrot.lane.b32.xlu0 %v3094, 94
      %v4102 = vpop.permute.xlu0 %4101
      %4103 = vrot.lane.b32.xlu0 %v3095, 94
      %v4104 = vpop.permute.xlu0 %4103
      %4105 = vrot.lane.b32.xlu0 %v3096, 94
      %v4106 = vpop.permute.xlu0 %4105
      %4107 = vrot.lane.b32.xlu0 %v3097, 94
      %v4108 = vpop.permute.xlu0 %4107
      %4109 = vrot.lane.b32.xlu0 %v3098, 94
      %v4110 = vpop.permute.xlu0 %4109
      %4111 = vrot.lane.b32.xlu0 %v3099, 94
      %v4112 = vpop.permute.xlu0 %4111
      %4113 = vrot.lane.b32.xlu0 %v3100, 94
      %v4114 = vpop.permute.xlu0 %4113
      %4115 = vrot.lane.b32.xlu0 %v3101, 94
      %v4116 = vpop.permute.xlu0 %4115
      %4117 = vrot.lane.b32.xlu0 %v3102, 94
      %v4118 = vpop.permute.xlu0 %4117
      %vm4119 = vcmask 769024
      %v4120 = vsel %vm4119, %v4054, %v4056
      %v4121 = vsel %vm4119, %v4056, %v4058
      %v4122 = vsel %vm4119, %v4058, %v4060
      %v4123 = vsel %vm4119, %v4060, %v4062
      %v4124 = vsel %vm4119, %v4062, %v4064
      %v4125 = vsel %vm4119, %v4064, %v4066
      %v4126 = vsel %vm4119, %v4066, %v4068
      %v4127 = vsel %vm4119, %v4068, %v4070
      %v4128 = vsel %vm4119, %v4070, %v4072
      %v4129 = vsel %vm4119, %v4072, %v4074
      %v4130 = vsel %vm4119, %v4074, %v4076
      %v4131 = vsel %vm4119, %v4076, %v4078
      %v4132 = vsel %vm4119, %v4078, %v4080
      %v4133 = vsel %vm4119, %v4080, %v4082
      %v4134 = vsel %vm4119, %v4082, %v4084
      %v4135 = vsel %vm4119, %v4084, %v4086
      %v4136 = vsel %vm4119, %v4086, %v4088
      %v4137 = vsel %vm4119, %v4088, %v4090
      %v4138 = vsel %vm4119, %v4090, %v4092
      %v4139 = vsel %vm4119, %v4092, %v4094
      %v4140 = vsel %vm4119, %v4094, %v4096
      %v4141 = vsel %vm4119, %v4096, %v4098
      %v4142 = vsel %vm4119, %v4098, %v4100
      %v4143 = vsel %vm4119, %v4100, %v4102
      %v4144 = vsel %vm4119, %v4102, %v4104
      %v4145 = vsel %vm4119, %v4104, %v4106
      %v4146 = vsel %vm4119, %v4106, %v4108
      %v4147 = vsel %vm4119, %v4108, %v4110
      %v4148 = vsel %vm4119, %v4110, %v4112
      %v4149 = vsel %vm4119, %v4112, %v4114
      %v4150 = vsel %vm4119, %v4114, %v4116
      %v4151 = vsel %vm4119, %v4116, %v4118
      %4153 = vset.pattern.permute.xlu0 0
      %4154 = vperm.xlu0 %4153, %v222
      %v4155 = vpop.permute.xlu0 %4154
      %4158 = vset.pattern.permute.xlu0 0
      %4159 = vperm.xlu0 %4158, %v223
      %v4160 = vpop.permute.xlu0 %4159
      %4163 = vset.pattern.permute.xlu0 0
      %4164 = vperm.xlu0 %4163, %v224
      %v4165 = vpop.permute.xlu0 %4164
      %4168 = vset.pattern.permute.xlu0 0
      %4169 = vperm.xlu0 %4168, %v225
      %v4170 = vpop.permute.xlu0 %4169
      %4173 = vset.pattern.permute.xlu0 0
      %4174 = vperm.xlu0 %4173, %v226
      %v4175 = vpop.permute.xlu0 %4174
      %4178 = vset.pattern.permute.xlu0 0
      %4179 = vperm.xlu0 %4178, %v227
      %v4180 = vpop.permute.xlu0 %4179
      %4183 = vset.pattern.permute.xlu0 0
      %4184 = vperm.xlu0 %4183, %v228
      %v4185 = vpop.permute.xlu0 %4184
      %4188 = vset.pattern.permute.xlu0 0
      %4189 = vperm.xlu0 %4188, %v229
      %v4190 = vpop.permute.xlu0 %4189
      %4193 = vset.pattern.permute.xlu0 0
      %4194 = vperm.xlu0 %4193, %v230
      %v4195 = vpop.permute.xlu0 %4194
      %4198 = vset.pattern.permute.xlu0 0
      %4199 = vperm.xlu0 %4198, %v231
      %v4200 = vpop.permute.xlu0 %4199
      %4203 = vset.pattern.permute.xlu0 0
      %4204 = vperm.xlu0 %4203, %v232
      %v4205 = vpop.permute.xlu0 %4204
      %4208 = vset.pattern.permute.xlu0 0
      %4209 = vperm.xlu0 %4208, %v233
      %v4210 = vpop.permute.xlu0 %4209
      %4213 = vset.pattern.permute.xlu0 0
      %4214 = vperm.xlu0 %4213, %v234
      %v4215 = vpop.permute.xlu0 %4214
      %4218 = vset.pattern.permute.xlu0 0
      %4219 = vperm.xlu0 %4218, %v235
      %v4220 = vpop.permute.xlu0 %4219
      %4223 = vset.pattern.permute.xlu0 0
      %4224 = vperm.xlu0 %4223, %v236
      %v4225 = vpop.permute.xlu0 %4224
      %4228 = vset.pattern.permute.xlu0 0
      %4229 = vperm.xlu0 %4228, %v237
      %v4230 = vpop.permute.xlu0 %4229
      %4265 = vrot.lane.b32.xlu0 %v1616, 17
      %v4266 = vpop.permute.xlu0 %4265
      %4267 = vrot.lane.b32.xlu0 %v1617, 17
      %v4268 = vpop.permute.xlu0 %4267
      %4269 = vrot.lane.b32.xlu0 %v1618, 17
      %v4270 = vpop.permute.xlu0 %4269
      %4271 = vrot.lane.b32.xlu0 %v1619, 17
      %v4272 = vpop.permute.xlu0 %4271
      %4273 = vrot.lane.b32.xlu0 %v1620, 17
      %v4274 = vpop.permute.xlu0 %4273
      %4275 = vrot.lane.b32.xlu0 %v1621, 17
      %v4276 = vpop.permute.xlu0 %4275
      %4277 = vrot.lane.b32.xlu0 %v1622, 17
      %v4278 = vpop.permute.xlu0 %4277
      %4279 = vrot.lane.b32.xlu0 %v1623, 17
      %v4280 = vpop.permute.xlu0 %4279
      %4281 = vrot.lane.b32.xlu0 %v1624, 17
      %v4282 = vpop.permute.xlu0 %4281
      %4283 = vrot.lane.b32.xlu0 %v1625, 17
      %v4284 = vpop.permute.xlu0 %4283
      %4285 = vrot.lane.b32.xlu0 %v1626, 17
      %v4286 = vpop.permute.xlu0 %4285
      %4287 = vrot.lane.b32.xlu0 %v1627, 17
      %v4288 = vpop.permute.xlu0 %4287
      %4289 = vrot.lane.b32.xlu0 %v1628, 17
      %v4290 = vpop.permute.xlu0 %4289
      %4291 = vrot.lane.b32.xlu0 %v1629, 17
      %v4292 = vpop.permute.xlu0 %4291
      %4293 = vrot.lane.b32.xlu0 %v1630, 17
      %v4294 = vpop.permute.xlu0 %4293
      %4295 = vrot.lane.b32.xlu0 %v1631, 17
      %v4296 = vpop.permute.xlu0 %4295
      %4297 = vrot.lane.b32.xlu0 %v1632, 17
      %v4298 = vpop.permute.xlu0 %4297
      %4299 = vrot.lane.b32.xlu0 %v1633, 17
      %v4300 = vpop.permute.xlu0 %4299
      %4301 = vrot.lane.b32.xlu0 %v1634, 17
      %v4302 = vpop.permute.xlu0 %4301
      %4303 = vrot.lane.b32.xlu0 %v1635, 17
      %v4304 = vpop.permute.xlu0 %4303
      %4305 = vrot.lane.b32.xlu0 %v1636, 17
      %v4306 = vpop.permute.xlu0 %4305
      %4307 = vrot.lane.b32.xlu0 %v1637, 17
      %v4308 = vpop.permute.xlu0 %4307
      %4309 = vrot.lane.b32.xlu0 %v1638, 17
      %v4310 = vpop.permute.xlu0 %4309
      %4311 = vrot.lane.b32.xlu0 %v1639, 17
      %v4312 = vpop.permute.xlu0 %4311
      %4313 = vrot.lane.b32.xlu0 %v1640, 17
      %v4314 = vpop.permute.xlu0 %4313
      %4315 = vrot.lane.b32.xlu0 %v1641, 17
      %v4316 = vpop.permute.xlu0 %4315
      %4317 = vrot.lane.b32.xlu0 %v1642, 17
      %v4318 = vpop.permute.xlu0 %4317
      %4319 = vrot.lane.b32.xlu0 %v1643, 17
      %v4320 = vpop.permute.xlu0 %4319
      %4321 = vrot.lane.b32.xlu0 %v1644, 17
      %v4322 = vpop.permute.xlu0 %4321
      %4323 = vrot.lane.b32.xlu0 %v1645, 17
      %v4324 = vpop.permute.xlu0 %4323
      %4325 = vrot.lane.b32.xlu0 %v1646, 17
      %v4326 = vpop.permute.xlu0 %4325
      %4327 = vrot.lane.b32.xlu0 %v1647, 17
      %v4328 = vpop.permute.xlu0 %4327
      %4329 = vrot.lane.b32.xlu0 %v1648, 17
      %v4330 = vpop.permute.xlu0 %4329
      %4331 = vrot.lane.b32.xlu0 %v3202, 17
      %v4332 = vpop.permute.xlu0 %4331
      %4333 = vrot.lane.b32.xlu0 %v3203, 17
      %v4334 = vpop.permute.xlu0 %4333
      %4335 = vrot.lane.b32.xlu0 %v3204, 17
      %v4336 = vpop.permute.xlu0 %4335
      %4337 = vrot.lane.b32.xlu0 %v3205, 17
      %v4338 = vpop.permute.xlu0 %4337
      %4339 = vrot.lane.b32.xlu0 %v3206, 17
      %v4340 = vpop.permute.xlu0 %4339
      %4341 = vrot.lane.b32.xlu0 %v3207, 17
      %v4342 = vpop.permute.xlu0 %4341
      %4343 = vrot.lane.b32.xlu0 %v3208, 17
      %v4344 = vpop.permute.xlu0 %4343
      %4345 = vrot.lane.b32.xlu0 %v3209, 17
      %v4346 = vpop.permute.xlu0 %4345
      %4347 = vrot.lane.b32.xlu0 %v3210, 17
      %v4348 = vpop.permute.xlu0 %4347
      %4349 = vrot.lane.b32.xlu0 %v3211, 17
      %v4350 = vpop.permute.xlu0 %4349
      %4351 = vrot.lane.b32.xlu0 %v3212, 17
      %v4352 = vpop.permute.xlu0 %4351
      %4353 = vrot.lane.b32.xlu0 %v3213, 17
      %v4354 = vpop.permute.xlu0 %4353
      %4355 = vrot.lane.b32.xlu0 %v3214, 17
      %v4356 = vpop.permute.xlu0 %4355
      %4357 = vrot.lane.b32.xlu0 %v3215, 17
      %v4358 = vpop.permute.xlu0 %4357
      %4359 = vrot.lane.b32.xlu0 %v3216, 17
      %v4360 = vpop.permute.xlu0 %4359
      %4361 = vrot.lane.b32.xlu0 %v3217, 17
      %v4362 = vpop.permute.xlu0 %4361
      %4363 = vrot.lane.b32.xlu0 %v3218, 17
      %v4364 = vpop.permute.xlu0 %4363
      %4365 = vrot.lane.b32.xlu0 %v3219, 17
      %v4366 = vpop.permute.xlu0 %4365
      %4367 = vrot.lane.b32.xlu0 %v3220, 17
      %v4368 = vpop.permute.xlu0 %4367
      %4369 = vrot.lane.b32.xlu0 %v3221, 17
      %v4370 = vpop.permute.xlu0 %4369
      %4371 = vrot.lane.b32.xlu0 %v3222, 17
      %v4372 = vpop.permute.xlu0 %4371
      %4373 = vrot.lane.b32.xlu0 %v3223, 17
      %v4374 = vpop.permute.xlu0 %4373
      %4375 = vrot.lane.b32.xlu0 %v3224, 17
      %v4376 = vpop.permute.xlu0 %4375
      %4377 = vrot.lane.b32.xlu0 %v3225, 17
      %v4378 = vpop.permute.xlu0 %4377
      %4379 = vrot.lane.b32.xlu0 %v3226, 17
      %v4380 = vpop.permute.xlu0 %4379
      %4381 = vrot.lane.b32.xlu0 %v3227, 17
      %v4382 = vpop.permute.xlu0 %4381
      %4383 = vrot.lane.b32.xlu0 %v3228, 17
      %v4384 = vpop.permute.xlu0 %4383
      %4385 = vrot.lane.b32.xlu0 %v3229, 17
      %v4386 = vpop.permute.xlu0 %4385
      %4387 = vrot.lane.b32.xlu0 %v3230, 17
      %v4388 = vpop.permute.xlu0 %4387
      %4389 = vrot.lane.b32.xlu0 %v3231, 17
      %v4390 = vpop.permute.xlu0 %4389
      %4391 = vrot.lane.b32.xlu0 %v3232, 17
      %v4392 = vpop.permute.xlu0 %4391
      %4393 = vrot.lane.b32.xlu0 %v3233, 17
      %v4394 = vpop.permute.xlu0 %4393
      %4395 = vrot.lane.b32.xlu0 %v3201, 17
      %v4396 = vpop.permute.xlu0 %4395
      %4397 = vrot.lane.b32.xlu0 %v3334, 17
      %v4398 = vpop.permute.xlu0 %4397
      %4399 = vrot.lane.b32.xlu0 %v3335, 17
      %v4400 = vpop.permute.xlu0 %4399
      %4401 = vrot.lane.b32.xlu0 %v3336, 17
      %v4402 = vpop.permute.xlu0 %4401
      %4403 = vrot.lane.b32.xlu0 %v3337, 17
      %v4404 = vpop.permute.xlu0 %4403
      %4405 = vrot.lane.b32.xlu0 %v3338, 17
      %v4406 = vpop.permute.xlu0 %4405
      %4407 = vrot.lane.b32.xlu0 %v3339, 17
      %v4408 = vpop.permute.xlu0 %4407
      %4409 = vrot.lane.b32.xlu0 %v3340, 17
      %v4410 = vpop.permute.xlu0 %4409
      %4411 = vrot.lane.b32.xlu0 %v3341, 17
      %v4412 = vpop.permute.xlu0 %4411
      %4413 = vrot.lane.b32.xlu0 %v3342, 17
      %v4414 = vpop.permute.xlu0 %4413
      %4415 = vrot.lane.b32.xlu0 %v3343, 17
      %v4416 = vpop.permute.xlu0 %4415
      %4417 = vrot.lane.b32.xlu0 %v3344, 17
      %v4418 = vpop.permute.xlu0 %4417
      %4419 = vrot.lane.b32.xlu0 %v3345, 17
      %v4420 = vpop.permute.xlu0 %4419
      %4421 = vrot.lane.b32.xlu0 %v3346, 17
      %v4422 = vpop.permute.xlu0 %4421
      %4423 = vrot.lane.b32.xlu0 %v3347, 17
      %v4424 = vpop.permute.xlu0 %4423
      %4425 = vrot.lane.b32.xlu0 %v3348, 17
      %v4426 = vpop.permute.xlu0 %4425
      %4427 = vrot.lane.b32.xlu0 %v3349, 17
      %v4428 = vpop.permute.xlu0 %4427
      %4429 = vrot.lane.b32.xlu0 %v3350, 17
      %v4430 = vpop.permute.xlu0 %4429
      %4431 = vrot.lane.b32.xlu0 %v3351, 17
      %v4432 = vpop.permute.xlu0 %4431
      %4433 = vrot.lane.b32.xlu0 %v3352, 17
      %v4434 = vpop.permute.xlu0 %4433
      %4435 = vrot.lane.b32.xlu0 %v3353, 17
      %v4436 = vpop.permute.xlu0 %4435
      %4437 = vrot.lane.b32.xlu0 %v3354, 17
      %v4438 = vpop.permute.xlu0 %4437
      %4439 = vrot.lane.b32.xlu0 %v3355, 17
      %v4440 = vpop.permute.xlu0 %4439
      %4441 = vrot.lane.b32.xlu0 %v3356, 17
      %v4442 = vpop.permute.xlu0 %4441
      %4443 = vrot.lane.b32.xlu0 %v3357, 17
      %v4444 = vpop.permute.xlu0 %4443
      %4445 = vrot.lane.b32.xlu0 %v3358, 17
      %v4446 = vpop.permute.xlu0 %4445
      %4447 = vrot.lane.b32.xlu0 %v3359, 17
      %v4448 = vpop.permute.xlu0 %4447
      %4449 = vrot.lane.b32.xlu0 %v3360, 17
      %v4450 = vpop.permute.xlu0 %4449
      %4451 = vrot.lane.b32.xlu0 %v3361, 17
      %v4452 = vpop.permute.xlu0 %4451
      %4453 = vrot.lane.b32.xlu0 %v3362, 17
      %v4454 = vpop.permute.xlu0 %4453
      %4455 = vrot.lane.b32.xlu0 %v3363, 17
      %v4456 = vpop.permute.xlu0 %4455
      %4457 = vrot.lane.b32.xlu0 %v3364, 17
      %v4458 = vpop.permute.xlu0 %4457
      %4459 = vrot.lane.b32.xlu0 %v3365, 17
      %v4460 = vpop.permute.xlu0 %4459
      %4461 = vrot.lane.b32.xlu0 %v3332, 17
      %v4462 = vpop.permute.xlu0 %4461
      %4463 = vrot.lane.b32.xlu0 %v3465, 17
      %v4464 = vpop.permute.xlu0 %4463
      %4465 = vrot.lane.b32.xlu0 %v3466, 17
      %v4466 = vpop.permute.xlu0 %4465
      %4467 = vrot.lane.b32.xlu0 %v3467, 17
      %v4468 = vpop.permute.xlu0 %4467
      %4469 = vrot.lane.b32.xlu0 %v3468, 17
      %v4470 = vpop.permute.xlu0 %4469
      %4471 = vrot.lane.b32.xlu0 %v3469, 17
      %v4472 = vpop.permute.xlu0 %4471
      %4473 = vrot.lane.b32.xlu0 %v3470, 17
      %v4474 = vpop.permute.xlu0 %4473
      %4475 = vrot.lane.b32.xlu0 %v3471, 17
      %v4476 = vpop.permute.xlu0 %4475
      %4477 = vrot.lane.b32.xlu0 %v3472, 17
      %v4478 = vpop.permute.xlu0 %4477
      %4479 = vrot.lane.b32.xlu0 %v3473, 17
      %v4480 = vpop.permute.xlu0 %4479
      %4481 = vrot.lane.b32.xlu0 %v3474, 17
      %v4482 = vpop.permute.xlu0 %4481
      %4483 = vrot.lane.b32.xlu0 %v3475, 17
      %v4484 = vpop.permute.xlu0 %4483
      %4485 = vrot.lane.b32.xlu0 %v3476, 17
      %v4486 = vpop.permute.xlu0 %4485
      %4487 = vrot.lane.b32.xlu0 %v3477, 17
      %v4488 = vpop.permute.xlu0 %4487
      %4489 = vrot.lane.b32.xlu0 %v3478, 17
      %v4490 = vpop.permute.xlu0 %4489
      %4491 = vrot.lane.b32.xlu0 %v3479, 17
      %v4492 = vpop.permute.xlu0 %4491
      %4493 = vrot.lane.b32.xlu0 %v3480, 17
      %v4494 = vpop.permute.xlu0 %4493
      %4495 = vrot.lane.b32.xlu0 %v3481, 17
      %v4496 = vpop.permute.xlu0 %4495
      %4497 = vrot.lane.b32.xlu0 %v3482, 17
      %v4498 = vpop.permute.xlu0 %4497
      %4499 = vrot.lane.b32.xlu0 %v3483, 17
      %v4500 = vpop.permute.xlu0 %4499
      %4501 = vrot.lane.b32.xlu0 %v3484, 17
      %v4502 = vpop.permute.xlu0 %4501
      %4503 = vrot.lane.b32.xlu0 %v3485, 17
      %v4504 = vpop.permute.xlu0 %4503
      %4505 = vrot.lane.b32.xlu0 %v3486, 17
      %v4506 = vpop.permute.xlu0 %4505
      %4507 = vrot.lane.b32.xlu0 %v3487, 17
      %v4508 = vpop.permute.xlu0 %4507
      %4509 = vrot.lane.b32.xlu0 %v3488, 17
      %v4510 = vpop.permute.xlu0 %4509
      %4511 = vrot.lane.b32.xlu0 %v3489, 17
      %v4512 = vpop.permute.xlu0 %4511
      %4513 = vrot.lane.b32.xlu0 %v3490, 17
      %v4514 = vpop.permute.xlu0 %4513
      %4515 = vrot.lane.b32.xlu0 %v3491, 17
      %v4516 = vpop.permute.xlu0 %4515
      %4517 = vrot.lane.b32.xlu0 %v3492, 17
      %v4518 = vpop.permute.xlu0 %4517
      %4519 = vrot.lane.b32.xlu0 %v3493, 17
      %v4520 = vpop.permute.xlu0 %4519
      %4521 = vrot.lane.b32.xlu0 %v3494, 17
      %v4522 = vpop.permute.xlu0 %4521
      %4523 = vrot.lane.b32.xlu0 %v3495, 17
      %v4524 = vpop.permute.xlu0 %4523
      %4525 = vrot.lane.b32.xlu0 %v3496, 17
      %v4526 = vpop.permute.xlu0 %4525
      %4527 = vrot.lane.b32.xlu0 %v3464, 17
      %v4528 = vpop.permute.xlu0 %4527
      %4529 = vrot.lane.b32.xlu0 %v3530, 17
      %v4530 = vpop.permute.xlu0 %4529
      %4531 = vrot.lane.b32.xlu0 %v3593, 17
      %v4532 = vpop.permute.xlu0 %4531
      %4533 = vrot.lane.b32.xlu0 %v3594, 17
      %v4534 = vpop.permute.xlu0 %4533
      %4535 = vrot.lane.b32.xlu0 %v3595, 17
      %v4536 = vpop.permute.xlu0 %4535
      %4537 = vrot.lane.b32.xlu0 %v3596, 17
      %v4538 = vpop.permute.xlu0 %4537
      %4539 = vrot.lane.b32.xlu0 %v3597, 17
      %v4540 = vpop.permute.xlu0 %4539
      %4541 = vrot.lane.b32.xlu0 %v3598, 17
      %v4542 = vpop.permute.xlu0 %4541
      %4543 = vrot.lane.b32.xlu0 %v3599, 17
      %v4544 = vpop.permute.xlu0 %4543
      %4545 = vrot.lane.b32.xlu0 %v3600, 17
      %v4546 = vpop.permute.xlu0 %4545
      %4547 = vrot.lane.b32.xlu0 %v3601, 17
      %v4548 = vpop.permute.xlu0 %4547
      %4549 = vrot.lane.b32.xlu0 %v3602, 17
      %v4550 = vpop.permute.xlu0 %4549
      %4551 = vrot.lane.b32.xlu0 %v3603, 17
      %v4552 = vpop.permute.xlu0 %4551
      %4553 = vrot.lane.b32.xlu0 %v3604, 17
      %v4554 = vpop.permute.xlu0 %4553
      %4555 = vrot.lane.b32.xlu0 %v3605, 17
      %v4556 = vpop.permute.xlu0 %4555
      %4557 = vrot.lane.b32.xlu0 %v3606, 17
      %v4558 = vpop.permute.xlu0 %4557
      %4559 = vrot.lane.b32.xlu0 %v3607, 17
      %v4560 = vpop.permute.xlu0 %4559
      %4561 = vrot.lane.b32.xlu0 %v3608, 17
      %v4562 = vpop.permute.xlu0 %4561
      %4563 = vrot.lane.b32.xlu0 %v3609, 17
      %v4564 = vpop.permute.xlu0 %4563
      %4565 = vrot.lane.b32.xlu0 %v3610, 17
      %v4566 = vpop.permute.xlu0 %4565
      %4567 = vrot.lane.b32.xlu0 %v3611, 17
      %v4568 = vpop.permute.xlu0 %4567
      %4569 = vrot.lane.b32.xlu0 %v3612, 17
      %v4570 = vpop.permute.xlu0 %4569
      %4571 = vrot.lane.b32.xlu0 %v3613, 17
      %v4572 = vpop.permute.xlu0 %4571
      %4573 = vrot.lane.b32.xlu0 %v3614, 17
      %v4574 = vpop.permute.xlu0 %4573
      %4575 = vrot.lane.b32.xlu0 %v3615, 17
      %v4576 = vpop.permute.xlu0 %4575
      %4577 = vrot.lane.b32.xlu0 %v3616, 17
      %v4578 = vpop.permute.xlu0 %4577
      %4579 = vrot.lane.b32.xlu0 %v3617, 17
      %v4580 = vpop.permute.xlu0 %4579
      %4581 = vrot.lane.b32.xlu0 %v3618, 17
      %v4582 = vpop.permute.xlu0 %4581
      %4583 = vrot.lane.b32.xlu0 %v3619, 17
      %v4584 = vpop.permute.xlu0 %4583
      %4585 = vrot.lane.b32.xlu0 %v3620, 17
      %v4586 = vpop.permute.xlu0 %4585
      %4587 = vrot.lane.b32.xlu0 %v3621, 17
      %v4588 = vpop.permute.xlu0 %4587
      %4589 = vrot.lane.b32.xlu0 %v3622, 17
      %v4590 = vpop.permute.xlu0 %4589
      %4591 = vrot.lane.b32.xlu0 %v3623, 17
      %v4592 = vpop.permute.xlu0 %4591
      %4593 = vrot.lane.b32.xlu0 %v3592, 17
      %v4594 = vpop.permute.xlu0 %4593
      %4595 = vrot.lane.b32.xlu0 %v3658, 17
      %v4596 = vpop.permute.xlu0 %4595
      %4597 = vrot.lane.b32.xlu0 %v3724, 17
      %v4598 = vpop.permute.xlu0 %4597
      %4599 = vrot.lane.b32.xlu0 %v3725, 17
      %v4600 = vpop.permute.xlu0 %4599
      %4601 = vrot.lane.b32.xlu0 %v3726, 17
      %v4602 = vpop.permute.xlu0 %4601
      %4603 = vrot.lane.b32.xlu0 %v3727, 17
      %v4604 = vpop.permute.xlu0 %4603
      %4605 = vrot.lane.b32.xlu0 %v3728, 17
      %v4606 = vpop.permute.xlu0 %4605
      %4607 = vrot.lane.b32.xlu0 %v3729, 17
      %v4608 = vpop.permute.xlu0 %4607
      %4609 = vrot.lane.b32.xlu0 %v3730, 17
      %v4610 = vpop.permute.xlu0 %4609
      %4611 = vrot.lane.b32.xlu0 %v3731, 17
      %v4612 = vpop.permute.xlu0 %4611
      %4613 = vrot.lane.b32.xlu0 %v3732, 17
      %v4614 = vpop.permute.xlu0 %4613
      %4615 = vrot.lane.b32.xlu0 %v3733, 17
      %v4616 = vpop.permute.xlu0 %4615
      %4617 = vrot.lane.b32.xlu0 %v3734, 17
      %v4618 = vpop.permute.xlu0 %4617
      %4619 = vrot.lane.b32.xlu0 %v3735, 17
      %v4620 = vpop.permute.xlu0 %4619
      %4621 = vrot.lane.b32.xlu0 %v3736, 17
      %v4622 = vpop.permute.xlu0 %4621
      %4623 = vrot.lane.b32.xlu0 %v3737, 17
      %v4624 = vpop.permute.xlu0 %4623
      %4625 = vrot.lane.b32.xlu0 %v3738, 17
      %v4626 = vpop.permute.xlu0 %4625
      %4627 = vrot.lane.b32.xlu0 %v3739, 17
      %v4628 = vpop.permute.xlu0 %4627
      %4629 = vrot.lane.b32.xlu0 %v3740, 17
      %v4630 = vpop.permute.xlu0 %4629
      %4631 = vrot.lane.b32.xlu0 %v3741, 17
      %v4632 = vpop.permute.xlu0 %4631
      %4633 = vrot.lane.b32.xlu0 %v3742, 17
      %v4634 = vpop.permute.xlu0 %4633
      %4635 = vrot.lane.b32.xlu0 %v3743, 17
      %v4636 = vpop.permute.xlu0 %4635
      %4637 = vrot.lane.b32.xlu0 %v3744, 17
      %v4638 = vpop.permute.xlu0 %4637
      %4639 = vrot.lane.b32.xlu0 %v3745, 17
      %v4640 = vpop.permute.xlu0 %4639
      %4641 = vrot.lane.b32.xlu0 %v3746, 17
      %v4642 = vpop.permute.xlu0 %4641
      %4643 = vrot.lane.b32.xlu0 %v3747, 17
      %v4644 = vpop.permute.xlu0 %4643
      %4645 = vrot.lane.b32.xlu0 %v3748, 17
      %v4646 = vpop.permute.xlu0 %4645
      %4647 = vrot.lane.b32.xlu0 %v3749, 17
      %v4648 = vpop.permute.xlu0 %4647
      %4649 = vrot.lane.b32.xlu0 %v3750, 17
      %v4650 = vpop.permute.xlu0 %4649
      %4651 = vrot.lane.b32.xlu0 %v3751, 17
      %v4652 = vpop.permute.xlu0 %4651
      %4653 = vrot.lane.b32.xlu0 %v3752, 17
      %v4654 = vpop.permute.xlu0 %4653
      %4655 = vrot.lane.b32.xlu0 %v3753, 17
      %v4656 = vpop.permute.xlu0 %4655
      %4657 = vrot.lane.b32.xlu0 %v3754, 17
      %v4658 = vpop.permute.xlu0 %4657
      %4659 = vrot.lane.b32.xlu0 %v3755, 17
      %v4660 = vpop.permute.xlu0 %4659
      %4661 = vrot.lane.b32.xlu0 %v3790, 17
      %v4662 = vpop.permute.xlu0 %4661
      %4663 = vrot.lane.b32.xlu0 %v3856, 17
      %v4664 = vpop.permute.xlu0 %4663
      %4665 = vrot.lane.b32.xlu0 %v3857, 17
      %v4666 = vpop.permute.xlu0 %4665
      %4667 = vrot.lane.b32.xlu0 %v3858, 17
      %v4668 = vpop.permute.xlu0 %4667
      %4669 = vrot.lane.b32.xlu0 %v3859, 17
      %v4670 = vpop.permute.xlu0 %4669
      %4671 = vrot.lane.b32.xlu0 %v3860, 17
      %v4672 = vpop.permute.xlu0 %4671
      %4673 = vrot.lane.b32.xlu0 %v3861, 17
      %v4674 = vpop.permute.xlu0 %4673
      %4675 = vrot.lane.b32.xlu0 %v3862, 17
      %v4676 = vpop.permute.xlu0 %4675
      %4677 = vrot.lane.b32.xlu0 %v3863, 17
      %v4678 = vpop.permute.xlu0 %4677
      %4679 = vrot.lane.b32.xlu0 %v3864, 17
      %v4680 = vpop.permute.xlu0 %4679
      %4681 = vrot.lane.b32.xlu0 %v3865, 17
      %v4682 = vpop.permute.xlu0 %4681
      %4683 = vrot.lane.b32.xlu0 %v3866, 17
      %v4684 = vpop.permute.xlu0 %4683
      %4685 = vrot.lane.b32.xlu0 %v3867, 17
      %v4686 = vpop.permute.xlu0 %4685
      %4687 = vrot.lane.b32.xlu0 %v3868, 17
      %v4688 = vpop.permute.xlu0 %4687
      %4689 = vrot.lane.b32.xlu0 %v3869, 17
      %v4690 = vpop.permute.xlu0 %4689
      %4691 = vrot.lane.b32.xlu0 %v3870, 17
      %v4692 = vpop.permute.xlu0 %4691
      %4693 = vrot.lane.b32.xlu0 %v3871, 17
      %v4694 = vpop.permute.xlu0 %4693
      %4695 = vrot.lane.b32.xlu0 %v3872, 17
      %v4696 = vpop.permute.xlu0 %4695
      %4697 = vrot.lane.b32.xlu0 %v3873, 17
      %v4698 = vpop.permute.xlu0 %4697
      %4699 = vrot.lane.b32.xlu0 %v3874, 17
      %v4700 = vpop.permute.xlu0 %4699
      %4701 = vrot.lane.b32.xlu0 %v3875, 17
      %v4702 = vpop.permute.xlu0 %4701
      %4703 = vrot.lane.b32.xlu0 %v3876, 17
      %v4704 = vpop.permute.xlu0 %4703
      %4705 = vrot.lane.b32.xlu0 %v3877, 17
      %v4706 = vpop.permute.xlu0 %4705
      %4707 = vrot.lane.b32.xlu0 %v3878, 17
      %v4708 = vpop.permute.xlu0 %4707
      %4709 = vrot.lane.b32.xlu0 %v3879, 17
      %v4710 = vpop.permute.xlu0 %4709
      %4711 = vrot.lane.b32.xlu0 %v3880, 17
      %v4712 = vpop.permute.xlu0 %4711
      %4713 = vrot.lane.b32.xlu0 %v3881, 17
      %v4714 = vpop.permute.xlu0 %4713
      %4715 = vrot.lane.b32.xlu0 %v3882, 17
      %v4716 = vpop.permute.xlu0 %4715
      %4717 = vrot.lane.b32.xlu0 %v3883, 17
      %v4718 = vpop.permute.xlu0 %4717
      %4719 = vrot.lane.b32.xlu0 %v3884, 17
      %v4720 = vpop.permute.xlu0 %4719
      %4721 = vrot.lane.b32.xlu0 %v3885, 17
      %v4722 = vpop.permute.xlu0 %4721
      %4723 = vrot.lane.b32.xlu0 %v3886, 17
      %v4724 = vpop.permute.xlu0 %4723
      %4725 = vrot.lane.b32.xlu0 %v3887, 17
      %v4726 = vpop.permute.xlu0 %4725
      %4727 = vrot.lane.b32.xlu0 %v3922, 17
      %v4728 = vpop.permute.xlu0 %4727
      %4729 = vrot.lane.b32.xlu0 %v3988, 17
      %v4730 = vpop.permute.xlu0 %4729
      %4731 = vrot.lane.b32.xlu0 %v3989, 17
      %v4732 = vpop.permute.xlu0 %4731
      %4733 = vrot.lane.b32.xlu0 %v3990, 17
      %v4734 = vpop.permute.xlu0 %4733
      %4735 = vrot.lane.b32.xlu0 %v3991, 17
      %v4736 = vpop.permute.xlu0 %4735
      %4737 = vrot.lane.b32.xlu0 %v3992, 17
      %v4738 = vpop.permute.xlu0 %4737
      %4739 = vrot.lane.b32.xlu0 %v3993, 17
      %v4740 = vpop.permute.xlu0 %4739
      %4741 = vrot.lane.b32.xlu0 %v3994, 17
      %v4742 = vpop.permute.xlu0 %4741
      %4743 = vrot.lane.b32.xlu0 %v3995, 17
      %v4744 = vpop.permute.xlu0 %4743
      %4745 = vrot.lane.b32.xlu0 %v3996, 17
      %v4746 = vpop.permute.xlu0 %4745
      %4747 = vrot.lane.b32.xlu0 %v3997, 17
      %v4748 = vpop.permute.xlu0 %4747
      %4749 = vrot.lane.b32.xlu0 %v3998, 17
      %v4750 = vpop.permute.xlu0 %4749
      %4751 = vrot.lane.b32.xlu0 %v3999, 17
      %v4752 = vpop.permute.xlu0 %4751
      %4753 = vrot.lane.b32.xlu0 %v4000, 17
      %v4754 = vpop.permute.xlu0 %4753
      %4755 = vrot.lane.b32.xlu0 %v4001, 17
      %v4756 = vpop.permute.xlu0 %4755
      %4757 = vrot.lane.b32.xlu0 %v4002, 17
      %v4758 = vpop.permute.xlu0 %4757
      %4759 = vrot.lane.b32.xlu0 %v4003, 17
      %v4760 = vpop.permute.xlu0 %4759
      %4761 = vrot.lane.b32.xlu0 %v4004, 17
      %v4762 = vpop.permute.xlu0 %4761
      %4763 = vrot.lane.b32.xlu0 %v4005, 17
      %v4764 = vpop.permute.xlu0 %4763
      %4765 = vrot.lane.b32.xlu0 %v4006, 17
      %v4766 = vpop.permute.xlu0 %4765
      %4767 = vrot.lane.b32.xlu0 %v4007, 17
      %v4768 = vpop.permute.xlu0 %4767
      %4769 = vrot.lane.b32.xlu0 %v4008, 17
      %v4770 = vpop.permute.xlu0 %4769
      %4771 = vrot.lane.b32.xlu0 %v4009, 17
      %v4772 = vpop.permute.xlu0 %4771
      %4773 = vrot.lane.b32.xlu0 %v4010, 17
      %v4774 = vpop.permute.xlu0 %4773
      %4775 = vrot.lane.b32.xlu0 %v4011, 17
      %v4776 = vpop.permute.xlu0 %4775
      %4777 = vrot.lane.b32.xlu0 %v4012, 17
      %v4778 = vpop.permute.xlu0 %4777
      %4779 = vrot.lane.b32.xlu0 %v4013, 17
      %v4780 = vpop.permute.xlu0 %4779
      %4781 = vrot.lane.b32.xlu0 %v4014, 17
      %v4782 = vpop.permute.xlu0 %4781
      %4783 = vrot.lane.b32.xlu0 %v4015, 17
      %v4784 = vpop.permute.xlu0 %4783
      %4785 = vrot.lane.b32.xlu0 %v4016, 17
      %v4786 = vpop.permute.xlu0 %4785
      %4787 = vrot.lane.b32.xlu0 %v4017, 17
      %v4788 = vpop.permute.xlu0 %4787
      %4789 = vrot.lane.b32.xlu0 %v4018, 17
      %v4790 = vpop.permute.xlu0 %4789
      %4791 = vrot.lane.b32.xlu0 %v4019, 17
      %v4792 = vpop.permute.xlu0 %4791
      %4793 = vrot.lane.b32.xlu0 %v4054, 17
      %v4794 = vpop.permute.xlu0 %4793
      %4795 = vrot.lane.b32.xlu0 %v4120, 17
      %v4796 = vpop.permute.xlu0 %4795
      %4797 = vrot.lane.b32.xlu0 %v4121, 17
      %v4798 = vpop.permute.xlu0 %4797
      %4799 = vrot.lane.b32.xlu0 %v4122, 17
      %v4800 = vpop.permute.xlu0 %4799
      %4801 = vrot.lane.b32.xlu0 %v4123, 17
      %v4802 = vpop.permute.xlu0 %4801
      %4803 = vrot.lane.b32.xlu0 %v4124, 17
      %v4804 = vpop.permute.xlu0 %4803
      %4805 = vrot.lane.b32.xlu0 %v4125, 17
      %v4806 = vpop.permute.xlu0 %4805
      %4807 = vrot.lane.b32.xlu0 %v4126, 17
      %v4808 = vpop.permute.xlu0 %4807
      %4809 = vrot.lane.b32.xlu0 %v4127, 17
      %v4810 = vpop.permute.xlu0 %4809
      %4811 = vrot.lane.b32.xlu0 %v4128, 17
      %v4812 = vpop.permute.xlu0 %4811
      %4813 = vrot.lane.b32.xlu0 %v4129, 17
      %v4814 = vpop.permute.xlu0 %4813
      %4815 = vrot.lane.b32.xlu0 %v4130, 17
      %v4816 = vpop.permute.xlu0 %4815
      %4817 = vrot.lane.b32.xlu0 %v4131, 17
      %v4818 = vpop.permute.xlu0 %4817
      %4819 = vrot.lane.b32.xlu0 %v4132, 17
      %v4820 = vpop.permute.xlu0 %4819
      %4821 = vrot.lane.b32.xlu0 %v4133, 17
      %v4822 = vpop.permute.xlu0 %4821
      %4823 = vrot.lane.b32.xlu0 %v4134, 17
      %v4824 = vpop.permute.xlu0 %4823
      %4825 = vrot.lane.b32.xlu0 %v4135, 17
      %v4826 = vpop.permute.xlu0 %4825
      %4827 = vrot.lane.b32.xlu0 %v4136, 17
      %v4828 = vpop.permute.xlu0 %4827
      %4829 = vrot.lane.b32.xlu0 %v4137, 17
      %v4830 = vpop.permute.xlu0 %4829
      %4831 = vrot.lane.b32.xlu0 %v4138, 17
      %v4832 = vpop.permute.xlu0 %4831
      %4833 = vrot.lane.b32.xlu0 %v4139, 17
      %v4834 = vpop.permute.xlu0 %4833
      %4835 = vrot.lane.b32.xlu0 %v4140, 17
      %v4836 = vpop.permute.xlu0 %4835
      %4837 = vrot.lane.b32.xlu0 %v4141, 17
      %v4838 = vpop.permute.xlu0 %4837
      %4839 = vrot.lane.b32.xlu0 %v4142, 17
      %v4840 = vpop.permute.xlu0 %4839
      %4841 = vrot.lane.b32.xlu0 %v4143, 17
      %v4842 = vpop.permute.xlu0 %4841
      %4843 = vrot.lane.b32.xlu0 %v4144, 17
      %v4844 = vpop.permute.xlu0 %4843
      %4845 = vrot.lane.b32.xlu0 %v4145, 17
      %v4846 = vpop.permute.xlu0 %4845
      %4847 = vrot.lane.b32.xlu0 %v4146, 17
      %v4848 = vpop.permute.xlu0 %4847
      %4849 = vrot.lane.b32.xlu0 %v4147, 17
      %v4850 = vpop.permute.xlu0 %4849
      %4851 = vrot.lane.b32.xlu0 %v4148, 17
      %v4852 = vpop.permute.xlu0 %4851
      %4853 = vrot.lane.b32.xlu0 %v4149, 17
      %v4854 = vpop.permute.xlu0 %4853
      %4855 = vrot.lane.b32.xlu0 %v4150, 17
      %v4856 = vpop.permute.xlu0 %4855
      %4857 = vrot.lane.b32.xlu0 %v4151, 17
      %v4858 = vpop.permute.xlu0 %4857
      %v4859 = vsel %vm3005, %v4266, %v4268
      %v4860 = vsel %vm3005, %v4268, %v4270
      %v4861 = vsel %vm3005, %v4270, %v4272
      %v4862 = vsel %vm3005, %v4272, %v4274
      %v4863 = vsel %vm3005, %v4274, %v4276
      %v4864 = vsel %vm3005, %v4276, %v4278
      %v4865 = vsel %vm3005, %v4278, %v4280
      %v4866 = vsel %vm3005, %v4280, %v4282
      %v4867 = vsel %vm3005, %v4282, %v4284
      %v4868 = vsel %vm3005, %v4284, %v4286
      %v4869 = vsel %vm3005, %v4286, %v4288
      %v4870 = vsel %vm3005, %v4288, %v4290
      %v4871 = vsel %vm3005, %v4290, %v4292
      %v4872 = vsel %vm3005, %v4292, %v4294
      %v4873 = vsel %vm3005, %v4294, %v4296
      %v4874 = vsel %vm3005, %v4296, %v4298
      %v4875 = vsel %vm3005, %v4298, %v4300
      %v4876 = vsel %vm3005, %v4300, %v4302
      %v4877 = vsel %vm3005, %v4302, %v4304
      %v4878 = vsel %vm3005, %v4304, %v4306
      %v4879 = vsel %vm3005, %v4306, %v4308
      %v4880 = vsel %vm3005, %v4308, %v4310
      %v4881 = vsel %vm3005, %v4310, %v4312
      %v4882 = vsel %vm3005, %v4312, %v4314
      %v4883 = vsel %vm3005, %v4314, %v4316
      %v4884 = vsel %vm3005, %v4316, %v4318
      %v4885 = vsel %vm3005, %v4318, %v4320
      %v4886 = vsel %vm3005, %v4320, %v4322
      %v4887 = vsel %vm3005, %v4322, %v4324
      %v4888 = vsel %vm3005, %v4324, %v4326
      %v4889 = vsel %vm3005, %v4326, %v4328
      %v4890 = vsel %vm3005, %v4328, %v4330
      %v4891 = vsel %vm3005, %v4332, %v4334
      %v4892 = vsel %vm3005, %v4334, %v4336
      %v4893 = vsel %vm3005, %v4336, %v4338
      %v4894 = vsel %vm3005, %v4338, %v4340
      %v4895 = vsel %vm3005, %v4340, %v4342
      %v4896 = vsel %vm3005, %v4342, %v4344
      %v4897 = vsel %vm3005, %v4344, %v4346
      %v4898 = vsel %vm3005, %v4346, %v4348
      %v4899 = vsel %vm3005, %v4348, %v4350
      %v4900 = vsel %vm3005, %v4350, %v4352
      %v4901 = vsel %vm3005, %v4352, %v4354
      %v4902 = vsel %vm3005, %v4354, %v4356
      %v4903 = vsel %vm3005, %v4356, %v4358
      %v4904 = vsel %vm3005, %v4358, %v4360
      %v4905 = vsel %vm3005, %v4360, %v4362
      %v4906 = vsel %vm3005, %v4362, %v4364
      %v4907 = vsel %vm3005, %v4364, %v4366
      %v4908 = vsel %vm3005, %v4366, %v4368
      %v4909 = vsel %vm3005, %v4368, %v4370
      %v4910 = vsel %vm3005, %v4370, %v4372
      %v4911 = vsel %vm3005, %v4372, %v4374
      %v4912 = vsel %vm3005, %v4374, %v4376
      %v4913 = vsel %vm3005, %v4376, %v4378
      %v4914 = vsel %vm3005, %v4378, %v4380
      %v4915 = vsel %vm3005, %v4380, %v4382
      %v4916 = vsel %vm3005, %v4382, %v4384
      %v4917 = vsel %vm3005, %v4384, %v4386
      %v4918 = vsel %vm3005, %v4386, %v4388
      %v4919 = vsel %vm3005, %v4388, %v4390
      %v4920 = vsel %vm3005, %v4390, %v4392
      %v4921 = vsel %vm3005, %v4392, %v4394
      %v4922 = vsel %vm3005, %v4394, %v4396
      %v4923 = vsel %vm3005, %v4398, %v4400
      %v4924 = vsel %vm3005, %v4400, %v4402
      %v4925 = vsel %vm3005, %v4402, %v4404
      %v4926 = vsel %vm3005, %v4404, %v4406
      %v4927 = vsel %vm3005, %v4406, %v4408
      %v4928 = vsel %vm3005, %v4408, %v4410
      %v4929 = vsel %vm3005, %v4410, %v4412
      %v4930 = vsel %vm3005, %v4412, %v4414
      %v4931 = vsel %vm3005, %v4414, %v4416
      %v4932 = vsel %vm3005, %v4416, %v4418
      %v4933 = vsel %vm3005, %v4418, %v4420
      %v4934 = vsel %vm3005, %v4420, %v4422
      %v4935 = vsel %vm3005, %v4422, %v4424
      %v4936 = vsel %vm3005, %v4424, %v4426
      %v4937 = vsel %vm3005, %v4426, %v4428
      %v4938 = vsel %vm3005, %v4428, %v4430
      %v4939 = vsel %vm3005, %v4430, %v4432
      %v4940 = vsel %vm3005, %v4432, %v4434
      %v4941 = vsel %vm3005, %v4434, %v4436
      %v4942 = vsel %vm3005, %v4436, %v4438
      %v4943 = vsel %vm3005, %v4438, %v4440
      %v4944 = vsel %vm3005, %v4440, %v4442
      %v4945 = vsel %vm3005, %v4442, %v4444
      %v4946 = vsel %vm3005, %v4444, %v4446
      %v4947 = vsel %vm3005, %v4446, %v4448
      %v4948 = vsel %vm3005, %v4448, %v4450
      %v4949 = vsel %vm3005, %v4450, %v4452
      %v4950 = vsel %vm3005, %v4452, %v4454
      %v4951 = vsel %vm3005, %v4454, %v4456
      %v4952 = vsel %vm3005, %v4456, %v4458
      %v4953 = vsel %vm3005, %v4458, %v4460
      %v4954 = vsel %vm3005, %v4460, %v4462
      %v4955 = vsel %vm3005, %v4464, %v4466
      %v4956 = vsel %vm3005, %v4466, %v4468
      %v4957 = vsel %vm3005, %v4468, %v4470
      %v4958 = vsel %vm3005, %v4470, %v4472
      %v4959 = vsel %vm3005, %v4472, %v4474
      %v4960 = vsel %vm3005, %v4474, %v4476
      %v4961 = vsel %vm3005, %v4476, %v4478
      %v4962 = vsel %vm3005, %v4478, %v4480
      %v4963 = vsel %vm3005, %v4480, %v4482
      %v4964 = vsel %vm3005, %v4482, %v4484
      %v4965 = vsel %vm3005, %v4484, %v4486
      %v4966 = vsel %vm3005, %v4486, %v4488
      %v4967 = vsel %vm3005, %v4488, %v4490
      %v4968 = vsel %vm3005, %v4490, %v4492
      %v4969 = vsel %vm3005, %v4492, %v4494
      %v4970 = vsel %vm3005, %v4494, %v4496
      %v4971 = vsel %vm3005, %v4496, %v4498
      %v4972 = vsel %vm3005, %v4498, %v4500
      %v4973 = vsel %vm3005, %v4500, %v4502
      %v4974 = vsel %vm3005, %v4502, %v4504
      %v4975 = vsel %vm3005, %v4504, %v4506
      %v4976 = vsel %vm3005, %v4506, %v4508
      %v4977 = vsel %vm3005, %v4508, %v4510
      %v4978 = vsel %vm3005, %v4510, %v4512
      %v4979 = vsel %vm3005, %v4512, %v4514
      %v4980 = vsel %vm3005, %v4514, %v4516
      %v4981 = vsel %vm3005, %v4516, %v4518
      %v4982 = vsel %vm3005, %v4518, %v4520
      %v4983 = vsel %vm3005, %v4520, %v4522
      %v4984 = vsel %vm3005, %v4522, %v4524
      %v4985 = vsel %vm3005, %v4524, %v4526
      %v4986 = vsel %vm3005, %v4526, %v4528
      %v4987 = vsel %vm3005, %v4530, %v4532
      %v4988 = vsel %vm3005, %v4532, %v4534
      %v4989 = vsel %vm3005, %v4534, %v4536
      %v4990 = vsel %vm3005, %v4536, %v4538
      %v4991 = vsel %vm3005, %v4538, %v4540
      %v4992 = vsel %vm3005, %v4540, %v4542
      %v4993 = vsel %vm3005, %v4542, %v4544
      %v4994 = vsel %vm3005, %v4544, %v4546
      %v4995 = vsel %vm3005, %v4546, %v4548
      %v4996 = vsel %vm3005, %v4548, %v4550
      %v4997 = vsel %vm3005, %v4550, %v4552
      %v4998 = vsel %vm3005, %v4552, %v4554
      %v4999 = vsel %vm3005, %v4554, %v4556
      %v5000 = vsel %vm3005, %v4556, %v4558
      %v5001 = vsel %vm3005, %v4558, %v4560
      %v5002 = vsel %vm3005, %v4560, %v4562
      %v5003 = vsel %vm3005, %v4562, %v4564
      %v5004 = vsel %vm3005, %v4564, %v4566
      %v5005 = vsel %vm3005, %v4566, %v4568
      %v5006 = vsel %vm3005, %v4568, %v4570
      %v5007 = vsel %vm3005, %v4570, %v4572
      %v5008 = vsel %vm3005, %v4572, %v4574
      %v5009 = vsel %vm3005, %v4574, %v4576
      %v5010 = vsel %vm3005, %v4576, %v4578
      %v5011 = vsel %vm3005, %v4578, %v4580
      %v5012 = vsel %vm3005, %v4580, %v4582
      %v5013 = vsel %vm3005, %v4582, %v4584
      %v5014 = vsel %vm3005, %v4584, %v4586
      %v5015 = vsel %vm3005, %v4586, %v4588
      %v5016 = vsel %vm3005, %v4588, %v4590
      %v5017 = vsel %vm3005, %v4590, %v4592
      %v5018 = vsel %vm3005, %v4592, %v4594
      %v5019 = vsel %vm3005, %v4596, %v4598
      %v5020 = vsel %vm3005, %v4598, %v4600
      %v5021 = vsel %vm3005, %v4600, %v4602
      %v5022 = vsel %vm3005, %v4602, %v4604
      %v5023 = vsel %vm3005, %v4604, %v4606
      %v5024 = vsel %vm3005, %v4606, %v4608
      %v5025 = vsel %vm3005, %v4608, %v4610
      %v5026 = vsel %vm3005, %v4610, %v4612
      %v5027 = vsel %vm3005, %v4612, %v4614
      %v5028 = vsel %vm3005, %v4614, %v4616
      %v5029 = vsel %vm3005, %v4616, %v4618
      %v5030 = vsel %vm3005, %v4618, %v4620
      %v5031 = vsel %vm3005, %v4620, %v4622
      %v5032 = vsel %vm3005, %v4622, %v4624
      %v5033 = vsel %vm3005, %v4624, %v4626
      %v5034 = vsel %vm3005, %v4626, %v4628
      %v5035 = vsel %vm3005, %v4628, %v4630
      %v5036 = vsel %vm3005, %v4630, %v4632
      %v5037 = vsel %vm3005, %v4632, %v4634
      %v5038 = vsel %vm3005, %v4634, %v4636
      %v5039 = vsel %vm3005, %v4636, %v4638
      %v5040 = vsel %vm3005, %v4638, %v4640
      %v5041 = vsel %vm3005, %v4640, %v4642
      %v5042 = vsel %vm3005, %v4642, %v4644
      %v5043 = vsel %vm3005, %v4644, %v4646
      %v5044 = vsel %vm3005, %v4646, %v4648
      %v5045 = vsel %vm3005, %v4648, %v4650
      %v5046 = vsel %vm3005, %v4650, %v4652
      %v5047 = vsel %vm3005, %v4652, %v4654
      %v5048 = vsel %vm3005, %v4654, %v4656
      %v5049 = vsel %vm3005, %v4656, %v4658
      %v5050 = vsel %vm3005, %v4658, %v4660
      %v5051 = vsel %vm3005, %v4662, %v4664
      %v5052 = vsel %vm3005, %v4664, %v4666
      %v5053 = vsel %vm3005, %v4666, %v4668
      %v5054 = vsel %vm3005, %v4668, %v4670
      %v5055 = vsel %vm3005, %v4670, %v4672
      %v5056 = vsel %vm3005, %v4672, %v4674
      %v5057 = vsel %vm3005, %v4674, %v4676
      %v5058 = vsel %vm3005, %v4676, %v4678
      %v5059 = vsel %vm3005, %v4678, %v4680
      %v5060 = vsel %vm3005, %v4680, %v4682
      %v5061 = vsel %vm3005, %v4682, %v4684
      %v5062 = vsel %vm3005, %v4684, %v4686
      %v5063 = vsel %vm3005, %v4686, %v4688
      %v5064 = vsel %vm3005, %v4688, %v4690
      %v5065 = vsel %vm3005, %v4690, %v4692
      %v5066 = vsel %vm3005, %v4692, %v4694
      %v5067 = vsel %vm3005, %v4694, %v4696
      %v5068 = vsel %vm3005, %v4696, %v4698
      %v5069 = vsel %vm3005, %v4698, %v4700
      %v5070 = vsel %vm3005, %v4700, %v4702
      %v5071 = vsel %vm3005, %v4702, %v4704
      %v5072 = vsel %vm3005, %v4704, %v4706
      %v5073 = vsel %vm3005, %v4706, %v4708
      %v5074 = vsel %vm3005, %v4708, %v4710
      %v5075 = vsel %vm3005, %v4710, %v4712
      %v5076 = vsel %vm3005, %v4712, %v4714
      %v5077 = vsel %vm3005, %v4714, %v4716
      %v5078 = vsel %vm3005, %v4716, %v4718
      %v5079 = vsel %vm3005, %v4718, %v4720
      %v5080 = vsel %vm3005, %v4720, %v4722
      %v5081 = vsel %vm3005, %v4722, %v4724
      %v5082 = vsel %vm3005, %v4724, %v4726
      %v5083 = vsel %vm3005, %v4728, %v4730
      %v5084 = vsel %vm3005, %v4730, %v4732
      %v5085 = vsel %vm3005, %v4732, %v4734
      %v5086 = vsel %vm3005, %v4734, %v4736
      %v5087 = vsel %vm3005, %v4736, %v4738
      %v5088 = vsel %vm3005, %v4738, %v4740
      %v5089 = vsel %vm3005, %v4740, %v4742
      %v5090 = vsel %vm3005, %v4742, %v4744
      %v5091 = vsel %vm3005, %v4744, %v4746
      %v5092 = vsel %vm3005, %v4746, %v4748
      %v5093 = vsel %vm3005, %v4748, %v4750
      %v5094 = vsel %vm3005, %v4750, %v4752
      %v5095 = vsel %vm3005, %v4752, %v4754
      %v5096 = vsel %vm3005, %v4754, %v4756
      %v5097 = vsel %vm3005, %v4756, %v4758
      %v5098 = vsel %vm3005, %v4758, %v4760
      %v5099 = vsel %vm3005, %v4760, %v4762
      %v5100 = vsel %vm3005, %v4762, %v4764
      %v5101 = vsel %vm3005, %v4764, %v4766
      %v5102 = vsel %vm3005, %v4766, %v4768
      %v5103 = vsel %vm3005, %v4768, %v4770
      %v5104 = vsel %vm3005, %v4770, %v4772
      %v5105 = vsel %vm3005, %v4772, %v4774
      %v5106 = vsel %vm3005, %v4774, %v4776
      %v5107 = vsel %vm3005, %v4776, %v4778
      %v5108 = vsel %vm3005, %v4778, %v4780
      %v5109 = vsel %vm3005, %v4780, %v4782
      %v5110 = vsel %vm3005, %v4782, %v4784
      %v5111 = vsel %vm3005, %v4784, %v4786
      %v5112 = vsel %vm3005, %v4786, %v4788
      %v5113 = vsel %vm3005, %v4788, %v4790
      %v5114 = vsel %vm3005, %v4790, %v4792
      %v5115 = vsel %vm3005, %v4794, %v4796
      %v5116 = vsel %vm3005, %v4796, %v4798
      %v5117 = vsel %vm3005, %v4798, %v4800
      %v5118 = vsel %vm3005, %v4800, %v4802
      %v5119 = vsel %vm3005, %v4802, %v4804
      %v5120 = vsel %vm3005, %v4804, %v4806
      %v5121 = vsel %vm3005, %v4806, %v4808
      %v5122 = vsel %vm3005, %v4808, %v4810
      %v5123 = vsel %vm3005, %v4810, %v4812
      %v5124 = vsel %vm3005, %v4812, %v4814
      %v5125 = vsel %vm3005, %v4814, %v4816
      %v5126 = vsel %vm3005, %v4816, %v4818
      %v5127 = vsel %vm3005, %v4818, %v4820
      %v5128 = vsel %vm3005, %v4820, %v4822
      %v5129 = vsel %vm3005, %v4822, %v4824
      %v5130 = vsel %vm3005, %v4824, %v4826
      %v5131 = vsel %vm3005, %v4826, %v4828
      %v5132 = vsel %vm3005, %v4828, %v4830
      %v5133 = vsel %vm3005, %v4830, %v4832
      %v5134 = vsel %vm3005, %v4832, %v4834
      %v5135 = vsel %vm3005, %v4834, %v4836
      %v5136 = vsel %vm3005, %v4836, %v4838
      %v5137 = vsel %vm3005, %v4838, %v4840
      %v5138 = vsel %vm3005, %v4840, %v4842
      %v5139 = vsel %vm3005, %v4842, %v4844
      %v5140 = vsel %vm3005, %v4844, %v4846
      %v5141 = vsel %vm3005, %v4846, %v4848
      %v5142 = vsel %vm3005, %v4848, %v4850
      %v5143 = vsel %vm3005, %v4850, %v4852
      %v5144 = vsel %vm3005, %v4852, %v4854
      %v5145 = vsel %vm3005, %v4854, %v4856
      %v5146 = vsel %vm3005, %v4856, %v4858
      %vm5435 = vcmask 588800
      %v5437 = vsel %vm5435, %v206, 0
      %v5440 = vsel %vm5435, %v207, 0
      %v5443 = vsel %vm5435, %v208, 0
      %v5446 = vsel %vm5435, %v209, 0
      %v5449 = vsel %vm5435, %v210, 0
      %v5452 = vsel %vm5435, %v211, 0
      %v5455 = vsel %vm5435, %v212, 0
      %v5458 = vsel %vm5435, %v213, 0
      %v5461 = vsel %vm5435, %v214, 0
      %v5464 = vsel %vm5435, %v215, 0
      %v5467 = vsel %vm5435, %v216, 0
      %v5470 = vsel %vm5435, %v217, 0
      %v5473 = vsel %vm5435, %v218, 0
      %v5476 = vsel %vm5435, %v219, 0
      %v5479 = vsel %vm5435, %v220, 0
      %v5482 = vsel %vm5435, %v221, 0
      %5484 = vmatpush.msra.mxu0 0.0
      %5485 = vmatpush.msra.mxu0 0.0
      %5486 = vmatpush.msra.mxu0 0.0
      %5487 = vmatpush.msra.mxu0 0.0
      %5488 = vmatpush.msra.mxu0 0.0
      %5489 = vmatpush.msra.mxu0 0.0
      %5490 = vmatpush.msra.mxu0 0.0
      %5491 = vmatpush.msra.mxu0 %v5115
      %5492 = vmatpush.msra.mxu0 %v5083
      %5493 = vmatpush.msra.mxu0 %v5051
      %5494 = vmatpush.msra.mxu0 %v5019
      %5495 = vmatpush.msra.mxu0 %v4987
      %5496 = vmatpush.msra.mxu0 %v4955
      %5497 = vmatpush.msra.mxu0 %v4923
      %5498 = vmatpush.msra.mxu0 %v4891
      %5499 = vmatpush.msra.mxu0 %v4859
      %5500 = vmatmul.f32.gmra.mxu0 %v5437
      %v5501 = vpop.f32.mrf.mxu0
      %v5502 = vadd.f32 %v4155, %v5501
      %5503 = vmatmul.f32.gmra.mxu0 %v5440
      %v5504 = vpop.f32.mrf.mxu0
      %v5505 = vadd.f32 %v4160, %v5504
      %5506 = vmatmul.f32.gmra.mxu0 %v5443
      %v5507 = vpop.f32.mrf.mxu0
      %v5508 = vadd.f32 %v4165, %v5507
      %5509 = vmatmul.f32.gmra.mxu0 %v5446
      %v5510 = vpop.f32.mrf.mxu0
      %v5511 = vadd.f32 %v4170, %v5510
      %5512 = vmatmul.f32.gmra.mxu0 %v5449
      %v5513 = vpop.f32.mrf.mxu0
      %v5514 = vadd.f32 %v4175, %v5513
      %5515 = vmatmul.f32.gmra.mxu0 %v5452
      %v5516 = vpop.f32.mrf.mxu0
      %v5517 = vadd.f32 %v4180, %v5516
      %5518 = vmatmul.f32.gmra.mxu0 %v5455
      %v5519 = vpop.f32.mrf.mxu0
      %v5520 = vadd.f32 %v4185, %v5519
      %5521 = vmatmul.f32.gmra.mxu0 %v5458
      %v5522 = vpop.f32.mrf.mxu0
      %v5523 = vadd.f32 %v4190, %v5522
      %5524 = vmatmul.f32.gmra.mxu0 %v5461
      %v5525 = vpop.f32.mrf.mxu0
      %v5526 = vadd.f32 %v4195, %v5525
      %5527 = vmatmul.f32.gmra.mxu0 %v5464
      %v5528 = vpop.f32.mrf.mxu0
      %v5529 = vadd.f32 %v4200, %v5528
      %5530 = vmatmul.f32.gmra.mxu0 %v5467
      %v5531 = vpop.f32.mrf.mxu0
      %v5532 = vadd.f32 %v4205, %v5531
      %5533 = vmatmul.f32.gmra.mxu0 %v5470
      %v5534 = vpop.f32.mrf.mxu0
      %v5535 = vadd.f32 %v4210, %v5534
      %5536 = vmatmul.f32.gmra.mxu0 %v5473
      %v5537 = vpop.f32.mrf.mxu0
      %v5538 = vadd.f32 %v4215, %v5537
      %5539 = vmatmul.f32.gmra.mxu0 %v5476
      %v5540 = vpop.f32.mrf.mxu0
      %v5541 = vadd.f32 %v4220, %v5540
      %5542 = vmatmul.f32.gmra.mxu0 %v5479
      %v5543 = vpop.f32.mrf.mxu0
      %v5544 = vadd.f32 %v4225, %v5543
      %5545 = vmatmul.f32.gmra.mxu0 %v5482
      %v5546 = vpop.f32.mrf.mxu0
      %v5547 = vadd.f32 %v4230, %v5546
      %5548 = vdwg.mxu0
      %5549 = vmatpush.msra.mxu0 0.0
      %5550 = vmatpush.msra.mxu0 0.0
      %5551 = vmatpush.msra.mxu0 0.0
      %5552 = vmatpush.msra.mxu0 0.0
      %5553 = vmatpush.msra.mxu0 0.0
      %5554 = vmatpush.msra.mxu0 0.0
      %5555 = vmatpush.msra.mxu0 0.0
      %5556 = vmatpush.msra.mxu0 %v5116
      %5557 = vmatpush.msra.mxu0 %v5084
      %5558 = vmatpush.msra.mxu0 %v5052
      %5559 = vmatpush.msra.mxu0 %v5020
      %5560 = vmatpush.msra.mxu0 %v4988
      %5561 = vmatpush.msra.mxu0 %v4956
      %5562 = vmatpush.msra.mxu0 %v4924
      %5563 = vmatpush.msra.mxu0 %v4892
      %5564 = vmatpush.msra.mxu0 %v4860
      %5565 = vmatmul.f32.gmra.mxu0 %v5437
      %v5566 = vpop.f32.mrf.mxu0
      %v5567 = vadd.f32 %v4155, %v5566
      %5568 = vmatmul.f32.gmra.mxu0 %v5440
      %v5569 = vpop.f32.mrf.mxu0
      %v5570 = vadd.f32 %v4160, %v5569
      %5571 = vmatmul.f32.gmra.mxu0 %v5443
      %v5572 = vpop.f32.mrf.mxu0
      %v5573 = vadd.f32 %v4165, %v5572
      %5574 = vmatmul.f32.gmra.mxu0 %v5446
      %v5575 = vpop.f32.mrf.mxu0
      %v5576 = vadd.f32 %v4170, %v5575
      %5577 = vmatmul.f32.gmra.mxu0 %v5449
      %v5578 = vpop.f32.mrf.mxu0
      %v5579 = vadd.f32 %v4175, %v5578
      %5580 = vmatmul.f32.gmra.mxu0 %v5452
      %v5581 = vpop.f32.mrf.mxu0
      %v5582 = vadd.f32 %v4180, %v5581
      %5583 = vmatmul.f32.gmra.mxu0 %v5455
      %v5584 = vpop.f32.mrf.mxu0
      %v5585 = vadd.f32 %v4185, %v5584
      %5586 = vmatmul.f32.gmra.mxu0 %v5458
      %v5587 = vpop.f32.mrf.mxu0
      %v5588 = vadd.f32 %v4190, %v5587
      %5589 = vmatmul.f32.gmra.mxu0 %v5461
      %v5590 = vpop.f32.mrf.mxu0
      %v5591 = vadd.f32 %v4195, %v5590
      %5592 = vmatmul.f32.gmra.mxu0 %v5464
      %v5593 = vpop.f32.mrf.mxu0
      %v5594 = vadd.f32 %v4200, %v5593
      %5595 = vmatmul.f32.gmra.mxu0 %v5467
      %v5596 = vpop.f32.mrf.mxu0
      %v5597 = vadd.f32 %v4205, %v5596
      %5598 = vmatmul.f32.gmra.mxu0 %v5470
      %v5599 = vpop.f32.mrf.mxu0
      %v5600 = vadd.f32 %v4210, %v5599
      %5601 = vmatmul.f32.gmra.mxu0 %v5473
      %v5602 = vpop.f32.mrf.mxu0
      %v5603 = vadd.f32 %v4215, %v5602
      %5604 = vmatmul.f32.gmra.mxu0 %v5476
      %v5605 = vpop.f32.mrf.mxu0
      %v5606 = vadd.f32 %v4220, %v5605
      %5607 = vmatmul.f32.gmra.mxu0 %v5479
      %v5608 = vpop.f32.mrf.mxu0
      %v5609 = vadd.f32 %v4225, %v5608
      %5610 = vmatmul.f32.gmra.mxu0 %v5482
      %v5611 = vpop.f32.mrf.mxu0
      %v5612 = vadd.f32 %v4230, %v5611
      %5613 = vdwg.mxu0
      %5614 = vmatpush.msra.mxu0 0.0
      %5615 = vmatpush.msra.mxu0 0.0
      %5616 = vmatpush.msra.mxu0 0.0
      %5617 = vmatpush.msra.mxu0 0.0
      %5618 = vmatpush.msra.mxu0 0.0
      %5619 = vmatpush.msra.mxu0 0.0
      %5620 = vmatpush.msra.mxu0 0.0
      %5621 = vmatpush.msra.mxu0 %v5117
      %5622 = vmatpush.msra.mxu0 %v5085
      %5623 = vmatpush.msra.mxu0 %v5053
      %5624 = vmatpush.msra.mxu0 %v5021
      %5625 = vmatpush.msra.mxu0 %v4989
      %5626 = vmatpush.msra.mxu0 %v4957
      %5627 = vmatpush.msra.mxu0 %v4925
      %5628 = vmatpush.msra.mxu0 %v4893
      %5629 = vmatpush.msra.mxu0 %v4861
      %5630 = vmatmul.f32.gmra.mxu0 %v5437
      %v5631 = vpop.f32.mrf.mxu0
      %v5632 = vadd.f32 %v4155, %v5631
      %5633 = vmatmul.f32.gmra.mxu0 %v5440
      %v5634 = vpop.f32.mrf.mxu0
      %v5635 = vadd.f32 %v4160, %v5634
      %5636 = vmatmul.f32.gmra.mxu0 %v5443
      %v5637 = vpop.f32.mrf.mxu0
      %v5638 = vadd.f32 %v4165, %v5637
      %5639 = vmatmul.f32.gmra.mxu0 %v5446
      %v5640 = vpop.f32.mrf.mxu0
      %v5641 = vadd.f32 %v4170, %v5640
      %5642 = vmatmul.f32.gmra.mxu0 %v5449
      %v5643 = vpop.f32.mrf.mxu0
      %v5644 = vadd.f32 %v4175, %v5643
      %5645 = vmatmul.f32.gmra.mxu0 %v5452
      %v5646 = vpop.f32.mrf.mxu0
      %v5647 = vadd.f32 %v4180, %v5646
      %5648 = vmatmul.f32.gmra.mxu0 %v5455
      %v5649 = vpop.f32.mrf.mxu0
      %v5650 = vadd.f32 %v4185, %v5649
      %5651 = vmatmul.f32.gmra.mxu0 %v5458
      %v5652 = vpop.f32.mrf.mxu0
      %v5653 = vadd.f32 %v4190, %v5652
      %5654 = vmatmul.f32.gmra.mxu0 %v5461
      %v5655 = vpop.f32.mrf.mxu0
      %v5656 = vadd.f32 %v4195, %v5655
      %5657 = vmatmul.f32.gmra.mxu0 %v5464
      %v5658 = vpop.f32.mrf.mxu0
      %v5659 = vadd.f32 %v4200, %v5658
      %5660 = vmatmul.f32.gmra.mxu0 %v5467
      %v5661 = vpop.f32.mrf.mxu0
      %v5662 = vadd.f32 %v4205, %v5661
      %5663 = vmatmul.f32.gmra.mxu0 %v5470
      %v5664 = vpop.f32.mrf.mxu0
      %v5665 = vadd.f32 %v4210, %v5664
      %5666 = vmatmul.f32.gmra.mxu0 %v5473
      %v5667 = vpop.f32.mrf.mxu0
      %v5668 = vadd.f32 %v4215, %v5667
      %5669 = vmatmul.f32.gmra.mxu0 %v5476
      %v5670 = vpop.f32.mrf.mxu0
      %v5671 = vadd.f32 %v4220, %v5670
      %5672 = vmatmul.f32.gmra.mxu0 %v5479
      %v5673 = vpop.f32.mrf.mxu0
      %v5674 = vadd.f32 %v4225, %v5673
      %5675 = vmatmul.f32.gmra.mxu0 %v5482
      %v5676 = vpop.f32.mrf.mxu0
      %v5677 = vadd.f32 %v4230, %v5676
      %5678 = vdwg.mxu0
      %5679 = vmatpush.msra.mxu0 0.0
      %5680 = vmatpush.msra.mxu0 0.0
      %5681 = vmatpush.msra.mxu0 0.0
      %5682 = vmatpush.msra.mxu0 0.0
      %5683 = vmatpush.msra.mxu0 0.0
      %5684 = vmatpush.msra.mxu0 0.0
      %5685 = vmatpush.msra.mxu0 0.0
      %5686 = vmatpush.msra.mxu0 %v5118
      %5687 = vmatpush.msra.mxu0 %v5086
      %5688 = vmatpush.msra.mxu0 %v5054
      %5689 = vmatpush.msra.mxu0 %v5022
      %5690 = vmatpush.msra.mxu0 %v4990
      %5691 = vmatpush.msra.mxu0 %v4958
      %5692 = vmatpush.msra.mxu0 %v4926
      %5693 = vmatpush.msra.mxu0 %v4894
      %5694 = vmatpush.msra.mxu0 %v4862
      %5695 = vmatmul.f32.gmra.mxu0 %v5437
      %v5696 = vpop.f32.mrf.mxu0
      %v5697 = vadd.f32 %v4155, %v5696
      %5698 = vmatmul.f32.gmra.mxu0 %v5440
      %v5699 = vpop.f32.mrf.mxu0
      %v5700 = vadd.f32 %v4160, %v5699
      %5701 = vmatmul.f32.gmra.mxu0 %v5443
      %v5702 = vpop.f32.mrf.mxu0
      %v5703 = vadd.f32 %v4165, %v5702
      %5704 = vmatmul.f32.gmra.mxu0 %v5446
      %v5705 = vpop.f32.mrf.mxu0
      %v5706 = vadd.f32 %v4170, %v5705
      %5707 = vmatmul.f32.gmra.mxu0 %v5449
      %v5708 = vpop.f32.mrf.mxu0
      %v5709 = vadd.f32 %v4175, %v5708
      %5710 = vmatmul.f32.gmra.mxu0 %v5452
      %v5711 = vpop.f32.mrf.mxu0
      %v5712 = vadd.f32 %v4180, %v5711
      %5713 = vmatmul.f32.gmra.mxu0 %v5455
      %v5714 = vpop.f32.mrf.mxu0
      %v5715 = vadd.f32 %v4185, %v5714
      %5716 = vmatmul.f32.gmra.mxu0 %v5458
      %v5717 = vpop.f32.mrf.mxu0
      %v5718 = vadd.f32 %v4190, %v5717
      %5719 = vmatmul.f32.gmra.mxu0 %v5461
      %v5720 = vpop.f32.mrf.mxu0
      %v5721 = vadd.f32 %v4195, %v5720
      %5722 = vmatmul.f32.gmra.mxu0 %v5464
      %v5723 = vpop.f32.mrf.mxu0
      %v5724 = vadd.f32 %v4200, %v5723
      %5725 = vmatmul.f32.gmra.mxu0 %v5467
      %v5726 = vpop.f32.mrf.mxu0
      %v5727 = vadd.f32 %v4205, %v5726
      %5728 = vmatmul.f32.gmra.mxu0 %v5470
      %v5729 = vpop.f32.mrf.mxu0
      %v5730 = vadd.f32 %v4210, %v5729
      %5731 = vmatmul.f32.gmra.mxu0 %v5473
      %v5732 = vpop.f32.mrf.mxu0
      %v5733 = vadd.f32 %v4215, %v5732
      %5734 = vmatmul.f32.gmra.mxu0 %v5476
      %v5735 = vpop.f32.mrf.mxu0
      %v5736 = vadd.f32 %v4220, %v5735
      %5737 = vmatmul.f32.gmra.mxu0 %v5479
      %v5738 = vpop.f32.mrf.mxu0
      %v5739 = vadd.f32 %v4225, %v5738
      %5740 = vmatmul.f32.gmra.mxu0 %v5482
      %v5741 = vpop.f32.mrf.mxu0
      %v5742 = vadd.f32 %v4230, %v5741
      %5743 = vdwg.mxu0
      %5744 = vmatpush.msra.mxu0 0.0
      %5745 = vmatpush.msra.mxu0 0.0
      %5746 = vmatpush.msra.mxu0 0.0
      %5747 = vmatpush.msra.mxu0 0.0
      %5748 = vmatpush.msra.mxu0 0.0
      %5749 = vmatpush.msra.mxu0 0.0
      %5750 = vmatpush.msra.mxu0 0.0
      %5751 = vmatpush.msra.mxu0 %v5119
      %5752 = vmatpush.msra.mxu0 %v5087
      %5753 = vmatpush.msra.mxu0 %v5055
      %5754 = vmatpush.msra.mxu0 %v5023
      %5755 = vmatpush.msra.mxu0 %v4991
      %5756 = vmatpush.msra.mxu0 %v4959
      %5757 = vmatpush.msra.mxu0 %v4927
      %5758 = vmatpush.msra.mxu0 %v4895
      %5759 = vmatpush.msra.mxu0 %v4863
      %5760 = vmatmul.f32.gmra.mxu0 %v5437
      %v5761 = vpop.f32.mrf.mxu0
      %v5762 = vadd.f32 %v4155, %v5761
      %5763 = vmatmul.f32.gmra.mxu0 %v5440
      %v5764 = vpop.f32.mrf.mxu0
      %v5765 = vadd.f32 %v4160, %v5764
      %5766 = vmatmul.f32.gmra.mxu0 %v5443
      %v5767 = vpop.f32.mrf.mxu0
      %v5768 = vadd.f32 %v4165, %v5767
      %5769 = vmatmul.f32.gmra.mxu0 %v5446
      %v5770 = vpop.f32.mrf.mxu0
      %v5771 = vadd.f32 %v4170, %v5770
      %5772 = vmatmul.f32.gmra.mxu0 %v5449
      %v5773 = vpop.f32.mrf.mxu0
      %v5774 = vadd.f32 %v4175, %v5773
      %5775 = vmatmul.f32.gmra.mxu0 %v5452
      %v5776 = vpop.f32.mrf.mxu0
      %v5777 = vadd.f32 %v4180, %v5776
      %5778 = vmatmul.f32.gmra.mxu0 %v5455
      %v5779 = vpop.f32.mrf.mxu0
      %v5780 = vadd.f32 %v4185, %v5779
      %5781 = vmatmul.f32.gmra.mxu0 %v5458
      %v5782 = vpop.f32.mrf.mxu0
      %v5783 = vadd.f32 %v4190, %v5782
      %5784 = vmatmul.f32.gmra.mxu0 %v5461
      %v5785 = vpop.f32.mrf.mxu0
      %v5786 = vadd.f32 %v4195, %v5785
      %5787 = vmatmul.f32.gmra.mxu0 %v5464
      %v5788 = vpop.f32.mrf.mxu0
      %v5789 = vadd.f32 %v4200, %v5788
      %5790 = vmatmul.f32.gmra.mxu0 %v5467
      %v5791 = vpop.f32.mrf.mxu0
      %v5792 = vadd.f32 %v4205, %v5791
      %5793 = vmatmul.f32.gmra.mxu0 %v5470
      %v5794 = vpop.f32.mrf.mxu0
      %v5795 = vadd.f32 %v4210, %v5794
      %5796 = vmatmul.f32.gmra.mxu0 %v5473
      %v5797 = vpop.f32.mrf.mxu0
      %v5798 = vadd.f32 %v4215, %v5797
      %5799 = vmatmul.f32.gmra.mxu0 %v5476
      %v5800 = vpop.f32.mrf.mxu0
      %v5801 = vadd.f32 %v4220, %v5800
      %5802 = vmatmul.f32.gmra.mxu0 %v5479
      %v5803 = vpop.f32.mrf.mxu0
      %v5804 = vadd.f32 %v4225, %v5803
      %5805 = vmatmul.f32.gmra.mxu0 %v5482
      %v5806 = vpop.f32.mrf.mxu0
      %v5807 = vadd.f32 %v4230, %v5806
      %5808 = vdwg.mxu0
      %5809 = vmatpush.msra.mxu0 0.0
      %5810 = vmatpush.msra.mxu0 0.0
      %5811 = vmatpush.msra.mxu0 0.0
      %5812 = vmatpush.msra.mxu0 0.0
      %5813 = vmatpush.msra.mxu0 0.0
      %5814 = vmatpush.msra.mxu0 0.0
      %5815 = vmatpush.msra.mxu0 0.0
      %5816 = vmatpush.msra.mxu0 %v5120
      %5817 = vmatpush.msra.mxu0 %v5088
      %5818 = vmatpush.msra.mxu0 %v5056
      %5819 = vmatpush.msra.mxu0 %v5024
      %5820 = vmatpush.msra.mxu0 %v4992
      %5821 = vmatpush.msra.mxu0 %v4960
      %5822 = vmatpush.msra.mxu0 %v4928
      %5823 = vmatpush.msra.mxu0 %v4896
      %5824 = vmatpush.msra.mxu0 %v4864
      %5825 = vmatmul.f32.gmra.mxu0 %v5437
      %v5826 = vpop.f32.mrf.mxu0
      %v5827 = vadd.f32 %v4155, %v5826
      %5828 = vmatmul.f32.gmra.mxu0 %v5440
      %v5829 = vpop.f32.mrf.mxu0
      %v5830 = vadd.f32 %v4160, %v5829
      %5831 = vmatmul.f32.gmra.mxu0 %v5443
      %v5832 = vpop.f32.mrf.mxu0
      %v5833 = vadd.f32 %v4165, %v5832
      %5834 = vmatmul.f32.gmra.mxu0 %v5446
      %v5835 = vpop.f32.mrf.mxu0
      %v5836 = vadd.f32 %v4170, %v5835
      %5837 = vmatmul.f32.gmra.mxu0 %v5449
      %v5838 = vpop.f32.mrf.mxu0
      %v5839 = vadd.f32 %v4175, %v5838
      %5840 = vmatmul.f32.gmra.mxu0 %v5452
      %v5841 = vpop.f32.mrf.mxu0
      %v5842 = vadd.f32 %v4180, %v5841
      %5843 = vmatmul.f32.gmra.mxu0 %v5455
      %v5844 = vpop.f32.mrf.mxu0
      %v5845 = vadd.f32 %v4185, %v5844
      %5846 = vmatmul.f32.gmra.mxu0 %v5458
      %v5847 = vpop.f32.mrf.mxu0
      %v5848 = vadd.f32 %v4190, %v5847
      %5849 = vmatmul.f32.gmra.mxu0 %v5461
      %v5850 = vpop.f32.mrf.mxu0
      %v5851 = vadd.f32 %v4195, %v5850
      %5852 = vmatmul.f32.gmra.mxu0 %v5464
      %v5853 = vpop.f32.mrf.mxu0
      %v5854 = vadd.f32 %v4200, %v5853
      %5855 = vmatmul.f32.gmra.mxu0 %v5467
      %v5856 = vpop.f32.mrf.mxu0
      %v5857 = vadd.f32 %v4205, %v5856
      %5858 = vmatmul.f32.gmra.mxu0 %v5470
      %v5859 = vpop.f32.mrf.mxu0
      %v5860 = vadd.f32 %v4210, %v5859
      %5861 = vmatmul.f32.gmra.mxu0 %v5473
      %v5862 = vpop.f32.mrf.mxu0
      %v5863 = vadd.f32 %v4215, %v5862
      %5864 = vmatmul.f32.gmra.mxu0 %v5476
      %v5865 = vpop.f32.mrf.mxu0
      %v5866 = vadd.f32 %v4220, %v5865
      %5867 = vmatmul.f32.gmra.mxu0 %v5479
      %v5868 = vpop.f32.mrf.mxu0
      %v5869 = vadd.f32 %v4225, %v5868
      %5870 = vmatmul.f32.gmra.mxu0 %v5482
      %v5871 = vpop.f32.mrf.mxu0
      %v5872 = vadd.f32 %v4230, %v5871
      %5873 = vdwg.mxu0
      %5874 = vmatpush.msra.mxu0 0.0
      %5875 = vmatpush.msra.mxu0 0.0
      %5876 = vmatpush.msra.mxu0 0.0
      %5877 = vmatpush.msra.mxu0 0.0
      %5878 = vmatpush.msra.mxu0 0.0
      %5879 = vmatpush.msra.mxu0 0.0
      %5880 = vmatpush.msra.mxu0 0.0
      %5881 = vmatpush.msra.mxu0 %v5121
      %5882 = vmatpush.msra.mxu0 %v5089
      %5883 = vmatpush.msra.mxu0 %v5057
      %5884 = vmatpush.msra.mxu0 %v5025
      %5885 = vmatpush.msra.mxu0 %v4993
      %5886 = vmatpush.msra.mxu0 %v4961
      %5887 = vmatpush.msra.mxu0 %v4929
      %5888 = vmatpush.msra.mxu0 %v4897
      %5889 = vmatpush.msra.mxu0 %v4865
      %5890 = vmatmul.f32.gmra.mxu0 %v5437
      %v5891 = vpop.f32.mrf.mxu0
      %v5892 = vadd.f32 %v4155, %v5891
      %5893 = vmatmul.f32.gmra.mxu0 %v5440
      %v5894 = vpop.f32.mrf.mxu0
      %v5895 = vadd.f32 %v4160, %v5894
      %5896 = vmatmul.f32.gmra.mxu0 %v5443
      %v5897 = vpop.f32.mrf.mxu0
      %v5898 = vadd.f32 %v4165, %v5897
      %5899 = vmatmul.f32.gmra.mxu0 %v5446
      %v5900 = vpop.f32.mrf.mxu0
      %v5901 = vadd.f32 %v4170, %v5900
      %5902 = vmatmul.f32.gmra.mxu0 %v5449
      %v5903 = vpop.f32.mrf.mxu0
      %v5904 = vadd.f32 %v4175, %v5903
      %5905 = vmatmul.f32.gmra.mxu0 %v5452
      %v5906 = vpop.f32.mrf.mxu0
      %v5907 = vadd.f32 %v4180, %v5906
      %5908 = vmatmul.f32.gmra.mxu0 %v5455
      %v5909 = vpop.f32.mrf.mxu0
      %v5910 = vadd.f32 %v4185, %v5909
      %5911 = vmatmul.f32.gmra.mxu0 %v5458
      %v5912 = vpop.f32.mrf.mxu0
      %v5913 = vadd.f32 %v4190, %v5912
      %5914 = vmatmul.f32.gmra.mxu0 %v5461
      %v5915 = vpop.f32.mrf.mxu0
      %v5916 = vadd.f32 %v4195, %v5915
      %5917 = vmatmul.f32.gmra.mxu0 %v5464
      %v5918 = vpop.f32.mrf.mxu0
      %v5919 = vadd.f32 %v4200, %v5918
      %5920 = vmatmul.f32.gmra.mxu0 %v5467
      %v5921 = vpop.f32.mrf.mxu0
      %v5922 = vadd.f32 %v4205, %v5921
      %5923 = vmatmul.f32.gmra.mxu0 %v5470
      %v5924 = vpop.f32.mrf.mxu0
      %v5925 = vadd.f32 %v4210, %v5924
      %5926 = vmatmul.f32.gmra.mxu0 %v5473
      %v5927 = vpop.f32.mrf.mxu0
      %v5928 = vadd.f32 %v4215, %v5927
      %5929 = vmatmul.f32.gmra.mxu0 %v5476
      %v5930 = vpop.f32.mrf.mxu0
      %v5931 = vadd.f32 %v4220, %v5930
      %5932 = vmatmul.f32.gmra.mxu0 %v5479
      %v5933 = vpop.f32.mrf.mxu0
      %v5934 = vadd.f32 %v4225, %v5933
      %5935 = vmatmul.f32.gmra.mxu0 %v5482
      %v5936 = vpop.f32.mrf.mxu0
      %v5937 = vadd.f32 %v4230, %v5936
      %5938 = vdwg.mxu0
      %5939 = vmatpush.msra.mxu0 0.0
      %5940 = vmatpush.msra.mxu0 0.0
      %5941 = vmatpush.msra.mxu0 0.0
      %5942 = vmatpush.msra.mxu0 0.0
      %5943 = vmatpush.msra.mxu0 0.0
      %5944 = vmatpush.msra.mxu0 0.0
      %5945 = vmatpush.msra.mxu0 0.0
      %5946 = vmatpush.msra.mxu0 %v5122
      %5947 = vmatpush.msra.mxu0 %v5090
      %5948 = vmatpush.msra.mxu0 %v5058
      %5949 = vmatpush.msra.mxu0 %v5026
      %5950 = vmatpush.msra.mxu0 %v4994
      %5951 = vmatpush.msra.mxu0 %v4962
      %5952 = vmatpush.msra.mxu0 %v4930
      %5953 = vmatpush.msra.mxu0 %v4898
      %5954 = vmatpush.msra.mxu0 %v4866
      %5955 = vmatmul.f32.gmra.mxu0 %v5437
      %v5956 = vpop.f32.mrf.mxu0
      %v5957 = vadd.f32 %v4155, %v5956
      %5958 = vmatmul.f32.gmra.mxu0 %v5440
      %v5959 = vpop.f32.mrf.mxu0
      %v5960 = vadd.f32 %v4160, %v5959
      %5961 = vmatmul.f32.gmra.mxu0 %v5443
      %v5962 = vpop.f32.mrf.mxu0
      %v5963 = vadd.f32 %v4165, %v5962
      %5964 = vmatmul.f32.gmra.mxu0 %v5446
      %v5965 = vpop.f32.mrf.mxu0
      %v5966 = vadd.f32 %v4170, %v5965
      %5967 = vmatmul.f32.gmra.mxu0 %v5449
      %v5968 = vpop.f32.mrf.mxu0
      %v5969 = vadd.f32 %v4175, %v5968
      %5970 = vmatmul.f32.gmra.mxu0 %v5452
      %v5971 = vpop.f32.mrf.mxu0
      %v5972 = vadd.f32 %v4180, %v5971
      %5973 = vmatmul.f32.gmra.mxu0 %v5455
      %v5974 = vpop.f32.mrf.mxu0
      %v5975 = vadd.f32 %v4185, %v5974
      %5976 = vmatmul.f32.gmra.mxu0 %v5458
      %v5977 = vpop.f32.mrf.mxu0
      %v5978 = vadd.f32 %v4190, %v5977
      %5979 = vmatmul.f32.gmra.mxu0 %v5461
      %v5980 = vpop.f32.mrf.mxu0
      %v5981 = vadd.f32 %v4195, %v5980
      %5982 = vmatmul.f32.gmra.mxu0 %v5464
      %v5983 = vpop.f32.mrf.mxu0
      %v5984 = vadd.f32 %v4200, %v5983
      %5985 = vmatmul.f32.gmra.mxu0 %v5467
      %v5986 = vpop.f32.mrf.mxu0
      %v5987 = vadd.f32 %v4205, %v5986
      %5988 = vmatmul.f32.gmra.mxu0 %v5470
      %v5989 = vpop.f32.mrf.mxu0
      %v5990 = vadd.f32 %v4210, %v5989
      %5991 = vmatmul.f32.gmra.mxu0 %v5473
      %v5992 = vpop.f32.mrf.mxu0
      %v5993 = vadd.f32 %v4215, %v5992
      %5994 = vmatmul.f32.gmra.mxu0 %v5476
      %v5995 = vpop.f32.mrf.mxu0
      %v5996 = vadd.f32 %v4220, %v5995
      %5997 = vmatmul.f32.gmra.mxu0 %v5479
      %v5998 = vpop.f32.mrf.mxu0
      %v5999 = vadd.f32 %v4225, %v5998
      %6000 = vmatmul.f32.gmra.mxu0 %v5482
      %v6001 = vpop.f32.mrf.mxu0
      %v6002 = vadd.f32 %v4230, %v6001
      %6003 = vdwg.mxu0
      %6004 = vmatpush.msra.mxu0 0.0
      %6005 = vmatpush.msra.mxu0 0.0
      %6006 = vmatpush.msra.mxu0 0.0
      %6007 = vmatpush.msra.mxu0 0.0
      %6008 = vmatpush.msra.mxu0 0.0
      %6009 = vmatpush.msra.mxu0 0.0
      %6010 = vmatpush.msra.mxu0 0.0
      %6011 = vmatpush.msra.mxu0 %v5123
      %6012 = vmatpush.msra.mxu0 %v5091
      %6013 = vmatpush.msra.mxu0 %v5059
      %6014 = vmatpush.msra.mxu0 %v5027
      %6015 = vmatpush.msra.mxu0 %v4995
      %6016 = vmatpush.msra.mxu0 %v4963
      %6017 = vmatpush.msra.mxu0 %v4931
      %6018 = vmatpush.msra.mxu0 %v4899
      %6019 = vmatpush.msra.mxu0 %v4867
      %6020 = vmatmul.f32.gmra.mxu0 %v5437
      %v6021 = vpop.f32.mrf.mxu0
      %v6022 = vadd.f32 %v4155, %v6021
      %6023 = vmatmul.f32.gmra.mxu0 %v5440
      %v6024 = vpop.f32.mrf.mxu0
      %v6025 = vadd.f32 %v4160, %v6024
      %6026 = vmatmul.f32.gmra.mxu0 %v5443
      %v6027 = vpop.f32.mrf.mxu0
      %v6028 = vadd.f32 %v4165, %v6027
      %6029 = vmatmul.f32.gmra.mxu0 %v5446
      %v6030 = vpop.f32.mrf.mxu0
      %v6031 = vadd.f32 %v4170, %v6030
      %6032 = vmatmul.f32.gmra.mxu0 %v5449
      %v6033 = vpop.f32.mrf.mxu0
      %v6034 = vadd.f32 %v4175, %v6033
      %6035 = vmatmul.f32.gmra.mxu0 %v5452
      %v6036 = vpop.f32.mrf.mxu0
      %v6037 = vadd.f32 %v4180, %v6036
      %6038 = vmatmul.f32.gmra.mxu0 %v5455
      %v6039 = vpop.f32.mrf.mxu0
      %v6040 = vadd.f32 %v4185, %v6039
      %6041 = vmatmul.f32.gmra.mxu0 %v5458
      %v6042 = vpop.f32.mrf.mxu0
      %v6043 = vadd.f32 %v4190, %v6042
      %6044 = vmatmul.f32.gmra.mxu0 %v5461
      %v6045 = vpop.f32.mrf.mxu0
      %v6046 = vadd.f32 %v4195, %v6045
      %6047 = vmatmul.f32.gmra.mxu0 %v5464
      %v6048 = vpop.f32.mrf.mxu0
      %v6049 = vadd.f32 %v4200, %v6048
      %6050 = vmatmul.f32.gmra.mxu0 %v5467
      %v6051 = vpop.f32.mrf.mxu0
      %v6052 = vadd.f32 %v4205, %v6051
      %6053 = vmatmul.f32.gmra.mxu0 %v5470
      %v6054 = vpop.f32.mrf.mxu0
      %v6055 = vadd.f32 %v4210, %v6054
      %6056 = vmatmul.f32.gmra.mxu0 %v5473
      %v6057 = vpop.f32.mrf.mxu0
      %v6058 = vadd.f32 %v4215, %v6057
      %6059 = vmatmul.f32.gmra.mxu0 %v5476
      %v6060 = vpop.f32.mrf.mxu0
      %v6061 = vadd.f32 %v4220, %v6060
      %6062 = vmatmul.f32.gmra.mxu0 %v5479
      %v6063 = vpop.f32.mrf.mxu0
      %v6064 = vadd.f32 %v4225, %v6063
      %6065 = vmatmul.f32.gmra.mxu0 %v5482
      %v6066 = vpop.f32.mrf.mxu0
      %v6067 = vadd.f32 %v4230, %v6066
      %6068 = vdwg.mxu0
      %6069 = vmatpush.msra.mxu0 0.0
      %6070 = vmatpush.msra.mxu0 0.0
      %6071 = vmatpush.msra.mxu0 0.0
      %6072 = vmatpush.msra.mxu0 0.0
      %6073 = vmatpush.msra.mxu0 0.0
      %6074 = vmatpush.msra.mxu0 0.0
      %6075 = vmatpush.msra.mxu0 0.0
      %6076 = vmatpush.msra.mxu0 %v5124
      %6077 = vmatpush.msra.mxu0 %v5092
      %6078 = vmatpush.msra.mxu0 %v5060
      %6079 = vmatpush.msra.mxu0 %v5028
      %6080 = vmatpush.msra.mxu0 %v4996
      %6081 = vmatpush.msra.mxu0 %v4964
      %6082 = vmatpush.msra.mxu0 %v4932
      %6083 = vmatpush.msra.mxu0 %v4900
      %6084 = vmatpush.msra.mxu0 %v4868
      %6085 = vmatmul.f32.gmra.mxu0 %v5437
      %v6086 = vpop.f32.mrf.mxu0
      %v6087 = vadd.f32 %v4155, %v6086
      %6088 = vmatmul.f32.gmra.mxu0 %v5440
      %v6089 = vpop.f32.mrf.mxu0
      %v6090 = vadd.f32 %v4160, %v6089
      %6091 = vmatmul.f32.gmra.mxu0 %v5443
      %v6092 = vpop.f32.mrf.mxu0
      %v6093 = vadd.f32 %v4165, %v6092
      %6094 = vmatmul.f32.gmra.mxu0 %v5446
      %v6095 = vpop.f32.mrf.mxu0
      %v6096 = vadd.f32 %v4170, %v6095
      %6097 = vmatmul.f32.gmra.mxu0 %v5449
      %v6098 = vpop.f32.mrf.mxu0
      %v6099 = vadd.f32 %v4175, %v6098
      %6100 = vmatmul.f32.gmra.mxu0 %v5452
      %v6101 = vpop.f32.mrf.mxu0
      %v6102 = vadd.f32 %v4180, %v6101
      %6103 = vmatmul.f32.gmra.mxu0 %v5455
      %v6104 = vpop.f32.mrf.mxu0
      %v6105 = vadd.f32 %v4185, %v6104
      %6106 = vmatmul.f32.gmra.mxu0 %v5458
      %v6107 = vpop.f32.mrf.mxu0
      %v6108 = vadd.f32 %v4190, %v6107
      %6109 = vmatmul.f32.gmra.mxu0 %v5461
      %v6110 = vpop.f32.mrf.mxu0
      %v6111 = vadd.f32 %v4195, %v6110
      %6112 = vmatmul.f32.gmra.mxu0 %v5464
      %v6113 = vpop.f32.mrf.mxu0
      %v6114 = vadd.f32 %v4200, %v6113
      %6115 = vmatmul.f32.gmra.mxu0 %v5467
      %v6116 = vpop.f32.mrf.mxu0
      %v6117 = vadd.f32 %v4205, %v6116
      %6118 = vmatmul.f32.gmra.mxu0 %v5470
      %v6119 = vpop.f32.mrf.mxu0
      %v6120 = vadd.f32 %v4210, %v6119
      %6121 = vmatmul.f32.gmra.mxu0 %v5473
      %v6122 = vpop.f32.mrf.mxu0
      %v6123 = vadd.f32 %v4215, %v6122
      %6124 = vmatmul.f32.gmra.mxu0 %v5476
      %v6125 = vpop.f32.mrf.mxu0
      %v6126 = vadd.f32 %v4220, %v6125
      %6127 = vmatmul.f32.gmra.mxu0 %v5479
      %v6128 = vpop.f32.mrf.mxu0
      %v6129 = vadd.f32 %v4225, %v6128
      %6130 = vmatmul.f32.gmra.mxu0 %v5482
      %v6131 = vpop.f32.mrf.mxu0
      %v6132 = vadd.f32 %v4230, %v6131
      %6133 = vdwg.mxu0
      %6134 = vmatpush.msra.mxu0 0.0
      %6135 = vmatpush.msra.mxu0 0.0
      %6136 = vmatpush.msra.mxu0 0.0
      %6137 = vmatpush.msra.mxu0 0.0
      %6138 = vmatpush.msra.mxu0 0.0
      %6139 = vmatpush.msra.mxu0 0.0
      %6140 = vmatpush.msra.mxu0 0.0
      %6141 = vmatpush.msra.mxu0 %v5125
      %6142 = vmatpush.msra.mxu0 %v5093
      %6143 = vmatpush.msra.mxu0 %v5061
      %6144 = vmatpush.msra.mxu0 %v5029
      %6145 = vmatpush.msra.mxu0 %v4997
      %6146 = vmatpush.msra.mxu0 %v4965
      %6147 = vmatpush.msra.mxu0 %v4933
      %6148 = vmatpush.msra.mxu0 %v4901
      %6149 = vmatpush.msra.mxu0 %v4869
      %6150 = vmatmul.f32.gmra.mxu0 %v5437
      %v6151 = vpop.f32.mrf.mxu0
      %v6152 = vadd.f32 %v4155, %v6151
      %6153 = vmatmul.f32.gmra.mxu0 %v5440
      %v6154 = vpop.f32.mrf.mxu0
      %v6155 = vadd.f32 %v4160, %v6154
      %6156 = vmatmul.f32.gmra.mxu0 %v5443
      %v6157 = vpop.f32.mrf.mxu0
      %v6158 = vadd.f32 %v4165, %v6157
      %6159 = vmatmul.f32.gmra.mxu0 %v5446
      %v6160 = vpop.f32.mrf.mxu0
      %v6161 = vadd.f32 %v4170, %v6160
      %6162 = vmatmul.f32.gmra.mxu0 %v5449
      %v6163 = vpop.f32.mrf.mxu0
      %v6164 = vadd.f32 %v4175, %v6163
      %6165 = vmatmul.f32.gmra.mxu0 %v5452
      %v6166 = vpop.f32.mrf.mxu0
      %v6167 = vadd.f32 %v4180, %v6166
      %6168 = vmatmul.f32.gmra.mxu0 %v5455
      %v6169 = vpop.f32.mrf.mxu0
      %v6170 = vadd.f32 %v4185, %v6169
      %6171 = vmatmul.f32.gmra.mxu0 %v5458
      %v6172 = vpop.f32.mrf.mxu0
      %v6173 = vadd.f32 %v4190, %v6172
      %6174 = vmatmul.f32.gmra.mxu0 %v5461
      %v6175 = vpop.f32.mrf.mxu0
      %v6176 = vadd.f32 %v4195, %v6175
      %6177 = vmatmul.f32.gmra.mxu0 %v5464
      %v6178 = vpop.f32.mrf.mxu0
      %v6179 = vadd.f32 %v4200, %v6178
      %6180 = vmatmul.f32.gmra.mxu0 %v5467
      %v6181 = vpop.f32.mrf.mxu0
      %v6182 = vadd.f32 %v4205, %v6181
      %6183 = vmatmul.f32.gmra.mxu0 %v5470
      %v6184 = vpop.f32.mrf.mxu0
      %v6185 = vadd.f32 %v4210, %v6184
      %6186 = vmatmul.f32.gmra.mxu0 %v5473
      %v6187 = vpop.f32.mrf.mxu0
      %v6188 = vadd.f32 %v4215, %v6187
      %6189 = vmatmul.f32.gmra.mxu0 %v5476
      %v6190 = vpop.f32.mrf.mxu0
      %v6191 = vadd.f32 %v4220, %v6190
      %6192 = vmatmul.f32.gmra.mxu0 %v5479
      %v6193 = vpop.f32.mrf.mxu0
      %v6194 = vadd.f32 %v4225, %v6193
      %6195 = vmatmul.f32.gmra.mxu0 %v5482
      %v6196 = vpop.f32.mrf.mxu0
      %v6197 = vadd.f32 %v4230, %v6196
      %6198 = vdwg.mxu0
      %6199 = vmatpush.msra.mxu0 0.0
      %6200 = vmatpush.msra.mxu0 0.0
      %6201 = vmatpush.msra.mxu0 0.0
      %6202 = vmatpush.msra.mxu0 0.0
      %6203 = vmatpush.msra.mxu0 0.0
      %6204 = vmatpush.msra.mxu0 0.0
      %6205 = vmatpush.msra.mxu0 0.0
      %6206 = vmatpush.msra.mxu0 %v5126
      %6207 = vmatpush.msra.mxu0 %v5094
      %6208 = vmatpush.msra.mxu0 %v5062
      %6209 = vmatpush.msra.mxu0 %v5030
      %6210 = vmatpush.msra.mxu0 %v4998
      %6211 = vmatpush.msra.mxu0 %v4966
      %6212 = vmatpush.msra.mxu0 %v4934
      %6213 = vmatpush.msra.mxu0 %v4902
      %6214 = vmatpush.msra.mxu0 %v4870
      %6215 = vmatmul.f32.gmra.mxu0 %v5437
      %v6216 = vpop.f32.mrf.mxu0
      %v6217 = vadd.f32 %v4155, %v6216
      %6218 = vmatmul.f32.gmra.mxu0 %v5440
      %v6219 = vpop.f32.mrf.mxu0
      %v6220 = vadd.f32 %v4160, %v6219
      %6221 = vmatmul.f32.gmra.mxu0 %v5443
      %v6222 = vpop.f32.mrf.mxu0
      %v6223 = vadd.f32 %v4165, %v6222
      %6224 = vmatmul.f32.gmra.mxu0 %v5446
      %v6225 = vpop.f32.mrf.mxu0
      %v6226 = vadd.f32 %v4170, %v6225
      %6227 = vmatmul.f32.gmra.mxu0 %v5449
      %v6228 = vpop.f32.mrf.mxu0
      %v6229 = vadd.f32 %v4175, %v6228
      %6230 = vmatmul.f32.gmra.mxu0 %v5452
      %v6231 = vpop.f32.mrf.mxu0
      %v6232 = vadd.f32 %v4180, %v6231
      %6233 = vmatmul.f32.gmra.mxu0 %v5455
      %v6234 = vpop.f32.mrf.mxu0
      %v6235 = vadd.f32 %v4185, %v6234
      %6236 = vmatmul.f32.gmra.mxu0 %v5458
      %v6237 = vpop.f32.mrf.mxu0
      %v6238 = vadd.f32 %v4190, %v6237
      %6239 = vmatmul.f32.gmra.mxu0 %v5461
      %v6240 = vpop.f32.mrf.mxu0
      %v6241 = vadd.f32 %v4195, %v6240
      %6242 = vmatmul.f32.gmra.mxu0 %v5464
      %v6243 = vpop.f32.mrf.mxu0
      %v6244 = vadd.f32 %v4200, %v6243
      %6245 = vmatmul.f32.gmra.mxu0 %v5467
      %v6246 = vpop.f32.mrf.mxu0
      %v6247 = vadd.f32 %v4205, %v6246
      %6248 = vmatmul.f32.gmra.mxu0 %v5470
      %v6249 = vpop.f32.mrf.mxu0
      %v6250 = vadd.f32 %v4210, %v6249
      %6251 = vmatmul.f32.gmra.mxu0 %v5473
      %v6252 = vpop.f32.mrf.mxu0
      %v6253 = vadd.f32 %v4215, %v6252
      %6254 = vmatmul.f32.gmra.mxu0 %v5476
      %v6255 = vpop.f32.mrf.mxu0
      %v6256 = vadd.f32 %v4220, %v6255
      %6257 = vmatmul.f32.gmra.mxu0 %v5479
      %v6258 = vpop.f32.mrf.mxu0
      %v6259 = vadd.f32 %v4225, %v6258
      %6260 = vmatmul.f32.gmra.mxu0 %v5482
      %v6261 = vpop.f32.mrf.mxu0
      %v6262 = vadd.f32 %v4230, %v6261
      %6263 = vdwg.mxu0
      %6264 = vmatpush.msra.mxu0 0.0
      %6265 = vmatpush.msra.mxu0 0.0
      %6266 = vmatpush.msra.mxu0 0.0
      %6267 = vmatpush.msra.mxu0 0.0
      %6268 = vmatpush.msra.mxu0 0.0
      %6269 = vmatpush.msra.mxu0 0.0
      %6270 = vmatpush.msra.mxu0 0.0
      %6271 = vmatpush.msra.mxu0 %v5127
      %6272 = vmatpush.msra.mxu0 %v5095
      %6273 = vmatpush.msra.mxu0 %v5063
      %6274 = vmatpush.msra.mxu0 %v5031
      %6275 = vmatpush.msra.mxu0 %v4999
      %6276 = vmatpush.msra.mxu0 %v4967
      %6277 = vmatpush.msra.mxu0 %v4935
      %6278 = vmatpush.msra.mxu0 %v4903
      %6279 = vmatpush.msra.mxu0 %v4871
      %6280 = vmatmul.f32.gmra.mxu0 %v5437
      %v6281 = vpop.f32.mrf.mxu0
      %v6282 = vadd.f32 %v4155, %v6281
      %6283 = vmatmul.f32.gmra.mxu0 %v5440
      %v6284 = vpop.f32.mrf.mxu0
      %v6285 = vadd.f32 %v4160, %v6284
      %6286 = vmatmul.f32.gmra.mxu0 %v5443
      %v6287 = vpop.f32.mrf.mxu0
      %v6288 = vadd.f32 %v4165, %v6287
      %6289 = vmatmul.f32.gmra.mxu0 %v5446
      %v6290 = vpop.f32.mrf.mxu0
      %v6291 = vadd.f32 %v4170, %v6290
      %6292 = vmatmul.f32.gmra.mxu0 %v5449
      %v6293 = vpop.f32.mrf.mxu0
      %v6294 = vadd.f32 %v4175, %v6293
      %6295 = vmatmul.f32.gmra.mxu0 %v5452
      %v6296 = vpop.f32.mrf.mxu0
      %v6297 = vadd.f32 %v4180, %v6296
      %6298 = vmatmul.f32.gmra.mxu0 %v5455
      %v6299 = vpop.f32.mrf.mxu0
      %v6300 = vadd.f32 %v4185, %v6299
      %6301 = vmatmul.f32.gmra.mxu0 %v5458
      %v6302 = vpop.f32.mrf.mxu0
      %v6303 = vadd.f32 %v4190, %v6302
      %6304 = vmatmul.f32.gmra.mxu0 %v5461
      %v6305 = vpop.f32.mrf.mxu0
      %v6306 = vadd.f32 %v4195, %v6305
      %6307 = vmatmul.f32.gmra.mxu0 %v5464
      %v6308 = vpop.f32.mrf.mxu0
      %v6309 = vadd.f32 %v4200, %v6308
      %6310 = vmatmul.f32.gmra.mxu0 %v5467
      %v6311 = vpop.f32.mrf.mxu0
      %v6312 = vadd.f32 %v4205, %v6311
      %6313 = vmatmul.f32.gmra.mxu0 %v5470
      %v6314 = vpop.f32.mrf.mxu0
      %v6315 = vadd.f32 %v4210, %v6314
      %6316 = vmatmul.f32.gmra.mxu0 %v5473
      %v6317 = vpop.f32.mrf.mxu0
      %v6318 = vadd.f32 %v4215, %v6317
      %6319 = vmatmul.f32.gmra.mxu0 %v5476
      %v6320 = vpop.f32.mrf.mxu0
      %v6321 = vadd.f32 %v4220, %v6320
      %6322 = vmatmul.f32.gmra.mxu0 %v5479
      %v6323 = vpop.f32.mrf.mxu0
      %v6324 = vadd.f32 %v4225, %v6323
      %6325 = vmatmul.f32.gmra.mxu0 %v5482
      %v6326 = vpop.f32.mrf.mxu0
      %v6327 = vadd.f32 %v4230, %v6326
      %6328 = vdwg.mxu0
      %6329 = vmatpush.msra.mxu0 0.0
      %6330 = vmatpush.msra.mxu0 0.0
      %6331 = vmatpush.msra.mxu0 0.0
      %6332 = vmatpush.msra.mxu0 0.0
      %6333 = vmatpush.msra.mxu0 0.0
      %6334 = vmatpush.msra.mxu0 0.0
      %6335 = vmatpush.msra.mxu0 0.0
      %6336 = vmatpush.msra.mxu0 %v5128
      %6337 = vmatpush.msra.mxu0 %v5096
      %6338 = vmatpush.msra.mxu0 %v5064
      %6339 = vmatpush.msra.mxu0 %v5032
      %6340 = vmatpush.msra.mxu0 %v5000
      %6341 = vmatpush.msra.mxu0 %v4968
      %6342 = vmatpush.msra.mxu0 %v4936
      %6343 = vmatpush.msra.mxu0 %v4904
      %6344 = vmatpush.msra.mxu0 %v4872
      %6345 = vmatmul.f32.gmra.mxu0 %v5437
      %v6346 = vpop.f32.mrf.mxu0
      %v6347 = vadd.f32 %v4155, %v6346
      %6348 = vmatmul.f32.gmra.mxu0 %v5440
      %v6349 = vpop.f32.mrf.mxu0
      %v6350 = vadd.f32 %v4160, %v6349
      %6351 = vmatmul.f32.gmra.mxu0 %v5443
      %v6352 = vpop.f32.mrf.mxu0
      %v6353 = vadd.f32 %v4165, %v6352
      %6354 = vmatmul.f32.gmra.mxu0 %v5446
      %v6355 = vpop.f32.mrf.mxu0
      %v6356 = vadd.f32 %v4170, %v6355
      %6357 = vmatmul.f32.gmra.mxu0 %v5449
      %v6358 = vpop.f32.mrf.mxu0
      %v6359 = vadd.f32 %v4175, %v6358
      %6360 = vmatmul.f32.gmra.mxu0 %v5452
      %v6361 = vpop.f32.mrf.mxu0
      %v6362 = vadd.f32 %v4180, %v6361
      %6363 = vmatmul.f32.gmra.mxu0 %v5455
      %v6364 = vpop.f32.mrf.mxu0
      %v6365 = vadd.f32 %v4185, %v6364
      %6366 = vmatmul.f32.gmra.mxu0 %v5458
      %v6367 = vpop.f32.mrf.mxu0
      %v6368 = vadd.f32 %v4190, %v6367
      %6369 = vmatmul.f32.gmra.mxu0 %v5461
      %v6370 = vpop.f32.mrf.mxu0
      %v6371 = vadd.f32 %v4195, %v6370
      %6372 = vmatmul.f32.gmra.mxu0 %v5464
      %v6373 = vpop.f32.mrf.mxu0
      %v6374 = vadd.f32 %v4200, %v6373
      %6375 = vmatmul.f32.gmra.mxu0 %v5467
      %v6376 = vpop.f32.mrf.mxu0
      %v6377 = vadd.f32 %v4205, %v6376
      %6378 = vmatmul.f32.gmra.mxu0 %v5470
      %v6379 = vpop.f32.mrf.mxu0
      %v6380 = vadd.f32 %v4210, %v6379
      %6381 = vmatmul.f32.gmra.mxu0 %v5473
      %v6382 = vpop.f32.mrf.mxu0
      %v6383 = vadd.f32 %v4215, %v6382
      %6384 = vmatmul.f32.gmra.mxu0 %v5476
      %v6385 = vpop.f32.mrf.mxu0
      %v6386 = vadd.f32 %v4220, %v6385
      %6387 = vmatmul.f32.gmra.mxu0 %v5479
      %v6388 = vpop.f32.mrf.mxu0
      %v6389 = vadd.f32 %v4225, %v6388
      %6390 = vmatmul.f32.gmra.mxu0 %v5482
      %v6391 = vpop.f32.mrf.mxu0
      %v6392 = vadd.f32 %v4230, %v6391
      %6393 = vdwg.mxu0
      %6394 = vmatpush.msra.mxu0 0.0
      %6395 = vmatpush.msra.mxu0 0.0
      %6396 = vmatpush.msra.mxu0 0.0
      %6397 = vmatpush.msra.mxu0 0.0
      %6398 = vmatpush.msra.mxu0 0.0
      %6399 = vmatpush.msra.mxu0 0.0
      %6400 = vmatpush.msra.mxu0 0.0
      %6401 = vmatpush.msra.mxu0 %v5129
      %6402 = vmatpush.msra.mxu0 %v5097
      %6403 = vmatpush.msra.mxu0 %v5065
      %6404 = vmatpush.msra.mxu0 %v5033
      %6405 = vmatpush.msra.mxu0 %v5001
      %6406 = vmatpush.msra.mxu0 %v4969
      %6407 = vmatpush.msra.mxu0 %v4937
      %6408 = vmatpush.msra.mxu0 %v4905
      %6409 = vmatpush.msra.mxu0 %v4873
      %6410 = vmatmul.f32.gmra.mxu0 %v5437
      %v6411 = vpop.f32.mrf.mxu0
      %v6412 = vadd.f32 %v4155, %v6411
      %6413 = vmatmul.f32.gmra.mxu0 %v5440
      %v6414 = vpop.f32.mrf.mxu0
      %v6415 = vadd.f32 %v4160, %v6414
      %6416 = vmatmul.f32.gmra.mxu0 %v5443
      %v6417 = vpop.f32.mrf.mxu0
      %v6418 = vadd.f32 %v4165, %v6417
      %6419 = vmatmul.f32.gmra.mxu0 %v5446
      %v6420 = vpop.f32.mrf.mxu0
      %v6421 = vadd.f32 %v4170, %v6420
      %6422 = vmatmul.f32.gmra.mxu0 %v5449
      %v6423 = vpop.f32.mrf.mxu0
      %v6424 = vadd.f32 %v4175, %v6423
      %6425 = vmatmul.f32.gmra.mxu0 %v5452
      %v6426 = vpop.f32.mrf.mxu0
      %v6427 = vadd.f32 %v4180, %v6426
      %6428 = vmatmul.f32.gmra.mxu0 %v5455
      %v6429 = vpop.f32.mrf.mxu0
      %v6430 = vadd.f32 %v4185, %v6429
      %6431 = vmatmul.f32.gmra.mxu0 %v5458
      %v6432 = vpop.f32.mrf.mxu0
      %v6433 = vadd.f32 %v4190, %v6432
      %6434 = vmatmul.f32.gmra.mxu0 %v5461
      %v6435 = vpop.f32.mrf.mxu0
      %v6436 = vadd.f32 %v4195, %v6435
      %6437 = vmatmul.f32.gmra.mxu0 %v5464
      %v6438 = vpop.f32.mrf.mxu0
      %v6439 = vadd.f32 %v4200, %v6438
      %6440 = vmatmul.f32.gmra.mxu0 %v5467
      %v6441 = vpop.f32.mrf.mxu0
      %v6442 = vadd.f32 %v4205, %v6441
      %6443 = vmatmul.f32.gmra.mxu0 %v5470
      %v6444 = vpop.f32.mrf.mxu0
      %v6445 = vadd.f32 %v4210, %v6444
      %6446 = vmatmul.f32.gmra.mxu0 %v5473
      %v6447 = vpop.f32.mrf.mxu0
      %v6448 = vadd.f32 %v4215, %v6447
      %6449 = vmatmul.f32.gmra.mxu0 %v5476
      %v6450 = vpop.f32.mrf.mxu0
      %v6451 = vadd.f32 %v4220, %v6450
      %6452 = vmatmul.f32.gmra.mxu0 %v5479
      %v6453 = vpop.f32.mrf.mxu0
      %v6454 = vadd.f32 %v4225, %v6453
      %6455 = vmatmul.f32.gmra.mxu0 %v5482
      %v6456 = vpop.f32.mrf.mxu0
      %v6457 = vadd.f32 %v4230, %v6456
      %6458 = vdwg.mxu0
      %6459 = vmatpush.msra.mxu0 0.0
      %6460 = vmatpush.msra.mxu0 0.0
      %6461 = vmatpush.msra.mxu0 0.0
      %6462 = vmatpush.msra.mxu0 0.0
      %6463 = vmatpush.msra.mxu0 0.0
      %6464 = vmatpush.msra.mxu0 0.0
      %6465 = vmatpush.msra.mxu0 0.0
      %6466 = vmatpush.msra.mxu0 %v5130
      %6467 = vmatpush.msra.mxu0 %v5098
      %6468 = vmatpush.msra.mxu0 %v5066
      %6469 = vmatpush.msra.mxu0 %v5034
      %6470 = vmatpush.msra.mxu0 %v5002
      %6471 = vmatpush.msra.mxu0 %v4970
      %6472 = vmatpush.msra.mxu0 %v4938
      %6473 = vmatpush.msra.mxu0 %v4906
      %6474 = vmatpush.msra.mxu0 %v4874
      %6475 = vmatmul.f32.gmra.mxu0 %v5437
      %v6476 = vpop.f32.mrf.mxu0
      %v6477 = vadd.f32 %v4155, %v6476
      %6478 = vmatmul.f32.gmra.mxu0 %v5440
      %v6479 = vpop.f32.mrf.mxu0
      %v6480 = vadd.f32 %v4160, %v6479
      %6481 = vmatmul.f32.gmra.mxu0 %v5443
      %v6482 = vpop.f32.mrf.mxu0
      %v6483 = vadd.f32 %v4165, %v6482
      %6484 = vmatmul.f32.gmra.mxu0 %v5446
      %v6485 = vpop.f32.mrf.mxu0
      %v6486 = vadd.f32 %v4170, %v6485
      %6487 = vmatmul.f32.gmra.mxu0 %v5449
      %v6488 = vpop.f32.mrf.mxu0
      %v6489 = vadd.f32 %v4175, %v6488
      %6490 = vmatmul.f32.gmra.mxu0 %v5452
      %v6491 = vpop.f32.mrf.mxu0
      %v6492 = vadd.f32 %v4180, %v6491
      %6493 = vmatmul.f32.gmra.mxu0 %v5455
      %v6494 = vpop.f32.mrf.mxu0
      %v6495 = vadd.f32 %v4185, %v6494
      %6496 = vmatmul.f32.gmra.mxu0 %v5458
      %v6497 = vpop.f32.mrf.mxu0
      %v6498 = vadd.f32 %v4190, %v6497
      %6499 = vmatmul.f32.gmra.mxu0 %v5461
      %v6500 = vpop.f32.mrf.mxu0
      %v6501 = vadd.f32 %v4195, %v6500
      %6502 = vmatmul.f32.gmra.mxu0 %v5464
      %v6503 = vpop.f32.mrf.mxu0
      %v6504 = vadd.f32 %v4200, %v6503
      %6505 = vmatmul.f32.gmra.mxu0 %v5467
      %v6506 = vpop.f32.mrf.mxu0
      %v6507 = vadd.f32 %v4205, %v6506
      %6508 = vmatmul.f32.gmra.mxu0 %v5470
      %v6509 = vpop.f32.mrf.mxu0
      %v6510 = vadd.f32 %v4210, %v6509
      %6511 = vmatmul.f32.gmra.mxu0 %v5473
      %v6512 = vpop.f32.mrf.mxu0
      %v6513 = vadd.f32 %v4215, %v6512
      %6514 = vmatmul.f32.gmra.mxu0 %v5476
      %v6515 = vpop.f32.mrf.mxu0
      %v6516 = vadd.f32 %v4220, %v6515
      %6517 = vmatmul.f32.gmra.mxu0 %v5479
      %v6518 = vpop.f32.mrf.mxu0
      %v6519 = vadd.f32 %v4225, %v6518
      %6520 = vmatmul.f32.gmra.mxu0 %v5482
      %v6521 = vpop.f32.mrf.mxu0
      %v6522 = vadd.f32 %v4230, %v6521
      %6523 = vdwg.mxu0
      %6524 = vmatpush.msra.mxu0 0.0
      %6525 = vmatpush.msra.mxu0 0.0
      %6526 = vmatpush.msra.mxu0 0.0
      %6527 = vmatpush.msra.mxu0 0.0
      %6528 = vmatpush.msra.mxu0 0.0
      %6529 = vmatpush.msra.mxu0 0.0
      %6530 = vmatpush.msra.mxu0 0.0
      %6531 = vmatpush.msra.mxu0 %v5131
      %6532 = vmatpush.msra.mxu0 %v5099
      %6533 = vmatpush.msra.mxu0 %v5067
      %6534 = vmatpush.msra.mxu0 %v5035
      %6535 = vmatpush.msra.mxu0 %v5003
      %6536 = vmatpush.msra.mxu0 %v4971
      %6537 = vmatpush.msra.mxu0 %v4939
      %6538 = vmatpush.msra.mxu0 %v4907
      %6539 = vmatpush.msra.mxu0 %v4875
      %6540 = vmatmul.f32.gmra.mxu0 %v5437
      %v6541 = vpop.f32.mrf.mxu0
      %v6542 = vadd.f32 %v4155, %v6541
      %6543 = vmatmul.f32.gmra.mxu0 %v5440
      %v6544 = vpop.f32.mrf.mxu0
      %v6545 = vadd.f32 %v4160, %v6544
      %6546 = vmatmul.f32.gmra.mxu0 %v5443
      %v6547 = vpop.f32.mrf.mxu0
      %v6548 = vadd.f32 %v4165, %v6547
      %6549 = vmatmul.f32.gmra.mxu0 %v5446
      %v6550 = vpop.f32.mrf.mxu0
      %v6551 = vadd.f32 %v4170, %v6550
      %6552 = vmatmul.f32.gmra.mxu0 %v5449
      %v6553 = vpop.f32.mrf.mxu0
      %v6554 = vadd.f32 %v4175, %v6553
      %6555 = vmatmul.f32.gmra.mxu0 %v5452
      %v6556 = vpop.f32.mrf.mxu0
      %v6557 = vadd.f32 %v4180, %v6556
      %6558 = vmatmul.f32.gmra.mxu0 %v5455
      %v6559 = vpop.f32.mrf.mxu0
      %v6560 = vadd.f32 %v4185, %v6559
      %6561 = vmatmul.f32.gmra.mxu0 %v5458
      %v6562 = vpop.f32.mrf.mxu0
      %v6563 = vadd.f32 %v4190, %v6562
      %6564 = vmatmul.f32.gmra.mxu0 %v5461
      %v6565 = vpop.f32.mrf.mxu0
      %v6566 = vadd.f32 %v4195, %v6565
      %6567 = vmatmul.f32.gmra.mxu0 %v5464
      %v6568 = vpop.f32.mrf.mxu0
      %v6569 = vadd.f32 %v4200, %v6568
      %6570 = vmatmul.f32.gmra.mxu0 %v5467
      %v6571 = vpop.f32.mrf.mxu0
      %v6572 = vadd.f32 %v4205, %v6571
      %6573 = vmatmul.f32.gmra.mxu0 %v5470
      %v6574 = vpop.f32.mrf.mxu0
      %v6575 = vadd.f32 %v4210, %v6574
      %6576 = vmatmul.f32.gmra.mxu0 %v5473
      %v6577 = vpop.f32.mrf.mxu0
      %v6578 = vadd.f32 %v4215, %v6577
      %6579 = vmatmul.f32.gmra.mxu0 %v5476
      %v6580 = vpop.f32.mrf.mxu0
      %v6581 = vadd.f32 %v4220, %v6580
      %6582 = vmatmul.f32.gmra.mxu0 %v5479
      %v6583 = vpop.f32.mrf.mxu0
      %v6584 = vadd.f32 %v4225, %v6583
      %6585 = vmatmul.f32.gmra.mxu0 %v5482
      %v6586 = vpop.f32.mrf.mxu0
      %v6587 = vadd.f32 %v4230, %v6586
      %6588 = vdwg.mxu0
      %6589 = vmatpush.msra.mxu0 0.0
      %6590 = vmatpush.msra.mxu0 0.0
      %6591 = vmatpush.msra.mxu0 0.0
      %6592 = vmatpush.msra.mxu0 0.0
      %6593 = vmatpush.msra.mxu0 0.0
      %6594 = vmatpush.msra.mxu0 0.0
      %6595 = vmatpush.msra.mxu0 0.0
      %6596 = vmatpush.msra.mxu0 %v5132
      %6597 = vmatpush.msra.mxu0 %v5100
      %6598 = vmatpush.msra.mxu0 %v5068
      %6599 = vmatpush.msra.mxu0 %v5036
      %6600 = vmatpush.msra.mxu0 %v5004
      %6601 = vmatpush.msra.mxu0 %v4972
      %6602 = vmatpush.msra.mxu0 %v4940
      %6603 = vmatpush.msra.mxu0 %v4908
      %6604 = vmatpush.msra.mxu0 %v4876
      %6605 = vmatmul.f32.gmra.mxu0 %v5437
      %v6606 = vpop.f32.mrf.mxu0
      %v6607 = vadd.f32 %v4155, %v6606
      %6608 = vmatmul.f32.gmra.mxu0 %v5440
      %v6609 = vpop.f32.mrf.mxu0
      %v6610 = vadd.f32 %v4160, %v6609
      %6611 = vmatmul.f32.gmra.mxu0 %v5443
      %v6612 = vpop.f32.mrf.mxu0
      %v6613 = vadd.f32 %v4165, %v6612
      %6614 = vmatmul.f32.gmra.mxu0 %v5446
      %v6615 = vpop.f32.mrf.mxu0
      %v6616 = vadd.f32 %v4170, %v6615
      %6617 = vmatmul.f32.gmra.mxu0 %v5449
      %v6618 = vpop.f32.mrf.mxu0
      %v6619 = vadd.f32 %v4175, %v6618
      %6620 = vmatmul.f32.gmra.mxu0 %v5452
      %v6621 = vpop.f32.mrf.mxu0
      %v6622 = vadd.f32 %v4180, %v6621
      %6623 = vmatmul.f32.gmra.mxu0 %v5455
      %v6624 = vpop.f32.mrf.mxu0
      %v6625 = vadd.f32 %v4185, %v6624
      %6626 = vmatmul.f32.gmra.mxu0 %v5458
      %v6627 = vpop.f32.mrf.mxu0
      %v6628 = vadd.f32 %v4190, %v6627
      %6629 = vmatmul.f32.gmra.mxu0 %v5461
      %v6630 = vpop.f32.mrf.mxu0
      %v6631 = vadd.f32 %v4195, %v6630
      %6632 = vmatmul.f32.gmra.mxu0 %v5464
      %v6633 = vpop.f32.mrf.mxu0
      %v6634 = vadd.f32 %v4200, %v6633
      %6635 = vmatmul.f32.gmra.mxu0 %v5467
      %v6636 = vpop.f32.mrf.mxu0
      %v6637 = vadd.f32 %v4205, %v6636
      %6638 = vmatmul.f32.gmra.mxu0 %v5470
      %v6639 = vpop.f32.mrf.mxu0
      %v6640 = vadd.f32 %v4210, %v6639
      %6641 = vmatmul.f32.gmra.mxu0 %v5473
      %v6642 = vpop.f32.mrf.mxu0
      %v6643 = vadd.f32 %v4215, %v6642
      %6644 = vmatmul.f32.gmra.mxu0 %v5476
      %v6645 = vpop.f32.mrf.mxu0
      %v6646 = vadd.f32 %v4220, %v6645
      %6647 = vmatmul.f32.gmra.mxu0 %v5479
      %v6648 = vpop.f32.mrf.mxu0
      %v6649 = vadd.f32 %v4225, %v6648
      %6650 = vmatmul.f32.gmra.mxu0 %v5482
      %v6651 = vpop.f32.mrf.mxu0
      %v6652 = vadd.f32 %v4230, %v6651
      %6653 = vdwg.mxu0
      %6654 = vmatpush.msra.mxu0 0.0
      %6655 = vmatpush.msra.mxu0 0.0
      %6656 = vmatpush.msra.mxu0 0.0
      %6657 = vmatpush.msra.mxu0 0.0
      %6658 = vmatpush.msra.mxu0 0.0
      %6659 = vmatpush.msra.mxu0 0.0
      %6660 = vmatpush.msra.mxu0 0.0
      %6661 = vmatpush.msra.mxu0 %v5133
      %6662 = vmatpush.msra.mxu0 %v5101
      %6663 = vmatpush.msra.mxu0 %v5069
      %6664 = vmatpush.msra.mxu0 %v5037
      %6665 = vmatpush.msra.mxu0 %v5005
      %6666 = vmatpush.msra.mxu0 %v4973
      %6667 = vmatpush.msra.mxu0 %v4941
      %6668 = vmatpush.msra.mxu0 %v4909
      %6669 = vmatpush.msra.mxu0 %v4877
      %6670 = vmatmul.f32.gmra.mxu0 %v5437
      %v6671 = vpop.f32.mrf.mxu0
      %v6672 = vadd.f32 %v4155, %v6671
      %6673 = vmatmul.f32.gmra.mxu0 %v5440
      %v6674 = vpop.f32.mrf.mxu0
      %v6675 = vadd.f32 %v4160, %v6674
      %6676 = vmatmul.f32.gmra.mxu0 %v5443
      %v6677 = vpop.f32.mrf.mxu0
      %v6678 = vadd.f32 %v4165, %v6677
      %6679 = vmatmul.f32.gmra.mxu0 %v5446
      %v6680 = vpop.f32.mrf.mxu0
      %v6681 = vadd.f32 %v4170, %v6680
      %6682 = vmatmul.f32.gmra.mxu0 %v5449
      %v6683 = vpop.f32.mrf.mxu0
      %v6684 = vadd.f32 %v4175, %v6683
      %6685 = vmatmul.f32.gmra.mxu0 %v5452
      %v6686 = vpop.f32.mrf.mxu0
      %v6687 = vadd.f32 %v4180, %v6686
      %6688 = vmatmul.f32.gmra.mxu0 %v5455
      %v6689 = vpop.f32.mrf.mxu0
      %v6690 = vadd.f32 %v4185, %v6689
      %6691 = vmatmul.f32.gmra.mxu0 %v5458
      %v6692 = vpop.f32.mrf.mxu0
      %v6693 = vadd.f32 %v4190, %v6692
      %6694 = vmatmul.f32.gmra.mxu0 %v5461
      %v6695 = vpop.f32.mrf.mxu0
      %v6696 = vadd.f32 %v4195, %v6695
      %6697 = vmatmul.f32.gmra.mxu0 %v5464
      %v6698 = vpop.f32.mrf.mxu0
      %v6699 = vadd.f32 %v4200, %v6698
      %6700 = vmatmul.f32.gmra.mxu0 %v5467
      %v6701 = vpop.f32.mrf.mxu0
      %v6702 = vadd.f32 %v4205, %v6701
      %6703 = vmatmul.f32.gmra.mxu0 %v5470
      %v6704 = vpop.f32.mrf.mxu0
      %v6705 = vadd.f32 %v4210, %v6704
      %6706 = vmatmul.f32.gmra.mxu0 %v5473
      %v6707 = vpop.f32.mrf.mxu0
      %v6708 = vadd.f32 %v4215, %v6707
      %6709 = vmatmul.f32.gmra.mxu0 %v5476
      %v6710 = vpop.f32.mrf.mxu0
      %v6711 = vadd.f32 %v4220, %v6710
      %6712 = vmatmul.f32.gmra.mxu0 %v5479
      %v6713 = vpop.f32.mrf.mxu0
      %v6714 = vadd.f32 %v4225, %v6713
      %6715 = vmatmul.f32.gmra.mxu0 %v5482
      %v6716 = vpop.f32.mrf.mxu0
      %v6717 = vadd.f32 %v4230, %v6716
      %6718 = vdwg.mxu0
      %6719 = vmatpush.msra.mxu0 0.0
      %6720 = vmatpush.msra.mxu0 0.0
      %6721 = vmatpush.msra.mxu0 0.0
      %6722 = vmatpush.msra.mxu0 0.0
      %6723 = vmatpush.msra.mxu0 0.0
      %6724 = vmatpush.msra.mxu0 0.0
      %6725 = vmatpush.msra.mxu0 0.0
      %6726 = vmatpush.msra.mxu0 %v5134
      %6727 = vmatpush.msra.mxu0 %v5102
      %6728 = vmatpush.msra.mxu0 %v5070
      %6729 = vmatpush.msra.mxu0 %v5038
      %6730 = vmatpush.msra.mxu0 %v5006
      %6731 = vmatpush.msra.mxu0 %v4974
      %6732 = vmatpush.msra.mxu0 %v4942
      %6733 = vmatpush.msra.mxu0 %v4910
      %6734 = vmatpush.msra.mxu0 %v4878
      %6735 = vmatmul.f32.gmra.mxu0 %v5437
      %v6736 = vpop.f32.mrf.mxu0
      %v6737 = vadd.f32 %v4155, %v6736
      %6738 = vmatmul.f32.gmra.mxu0 %v5440
      %v6739 = vpop.f32.mrf.mxu0
      %v6740 = vadd.f32 %v4160, %v6739
      %6741 = vmatmul.f32.gmra.mxu0 %v5443
      %v6742 = vpop.f32.mrf.mxu0
      %v6743 = vadd.f32 %v4165, %v6742
      %6744 = vmatmul.f32.gmra.mxu0 %v5446
      %v6745 = vpop.f32.mrf.mxu0
      %v6746 = vadd.f32 %v4170, %v6745
      %6747 = vmatmul.f32.gmra.mxu0 %v5449
      %v6748 = vpop.f32.mrf.mxu0
      %v6749 = vadd.f32 %v4175, %v6748
      %6750 = vmatmul.f32.gmra.mxu0 %v5452
      %v6751 = vpop.f32.mrf.mxu0
      %v6752 = vadd.f32 %v4180, %v6751
      %6753 = vmatmul.f32.gmra.mxu0 %v5455
      %v6754 = vpop.f32.mrf.mxu0
      %v6755 = vadd.f32 %v4185, %v6754
      %6756 = vmatmul.f32.gmra.mxu0 %v5458
      %v6757 = vpop.f32.mrf.mxu0
      %v6758 = vadd.f32 %v4190, %v6757
      %6759 = vmatmul.f32.gmra.mxu0 %v5461
      %v6760 = vpop.f32.mrf.mxu0
      %v6761 = vadd.f32 %v4195, %v6760
      %6762 = vmatmul.f32.gmra.mxu0 %v5464
      %v6763 = vpop.f32.mrf.mxu0
      %v6764 = vadd.f32 %v4200, %v6763
      %6765 = vmatmul.f32.gmra.mxu0 %v5467
      %v6766 = vpop.f32.mrf.mxu0
      %v6767 = vadd.f32 %v4205, %v6766
      %6768 = vmatmul.f32.gmra.mxu0 %v5470
      %v6769 = vpop.f32.mrf.mxu0
      %v6770 = vadd.f32 %v4210, %v6769
      %6771 = vmatmul.f32.gmra.mxu0 %v5473
      %v6772 = vpop.f32.mrf.mxu0
      %v6773 = vadd.f32 %v4215, %v6772
      %6774 = vmatmul.f32.gmra.mxu0 %v5476
      %v6775 = vpop.f32.mrf.mxu0
      %v6776 = vadd.f32 %v4220, %v6775
      %6777 = vmatmul.f32.gmra.mxu0 %v5479
      %v6778 = vpop.f32.mrf.mxu0
      %v6779 = vadd.f32 %v4225, %v6778
      %6780 = vmatmul.f32.gmra.mxu0 %v5482
      %v6781 = vpop.f32.mrf.mxu0
      %v6782 = vadd.f32 %v4230, %v6781
      %6783 = vdwg.mxu0
      %6784 = vmatpush.msra.mxu0 0.0
      %6785 = vmatpush.msra.mxu0 0.0
      %6786 = vmatpush.msra.mxu0 0.0
      %6787 = vmatpush.msra.mxu0 0.0
      %6788 = vmatpush.msra.mxu0 0.0
      %6789 = vmatpush.msra.mxu0 0.0
      %6790 = vmatpush.msra.mxu0 0.0
      %6791 = vmatpush.msra.mxu0 %v5135
      %6792 = vmatpush.msra.mxu0 %v5103
      %6793 = vmatpush.msra.mxu0 %v5071
      %6794 = vmatpush.msra.mxu0 %v5039
      %6795 = vmatpush.msra.mxu0 %v5007
      %6796 = vmatpush.msra.mxu0 %v4975
      %6797 = vmatpush.msra.mxu0 %v4943
      %6798 = vmatpush.msra.mxu0 %v4911
      %6799 = vmatpush.msra.mxu0 %v4879
      %6800 = vmatmul.f32.gmra.mxu0 %v5437
      %v6801 = vpop.f32.mrf.mxu0
      %v6802 = vadd.f32 %v4155, %v6801
      %6803 = vmatmul.f32.gmra.mxu0 %v5440
      %v6804 = vpop.f32.mrf.mxu0
      %v6805 = vadd.f32 %v4160, %v6804
      %6806 = vmatmul.f32.gmra.mxu0 %v5443
      %v6807 = vpop.f32.mrf.mxu0
      %v6808 = vadd.f32 %v4165, %v6807
      %6809 = vmatmul.f32.gmra.mxu0 %v5446
      %v6810 = vpop.f32.mrf.mxu0
      %v6811 = vadd.f32 %v4170, %v6810
      %6812 = vmatmul.f32.gmra.mxu0 %v5449
      %v6813 = vpop.f32.mrf.mxu0
      %v6814 = vadd.f32 %v4175, %v6813
      %6815 = vmatmul.f32.gmra.mxu0 %v5452
      %v6816 = vpop.f32.mrf.mxu0
      %v6817 = vadd.f32 %v4180, %v6816
      %6818 = vmatmul.f32.gmra.mxu0 %v5455
      %v6819 = vpop.f32.mrf.mxu0
      %v6820 = vadd.f32 %v4185, %v6819
      %6821 = vmatmul.f32.gmra.mxu0 %v5458
      %v6822 = vpop.f32.mrf.mxu0
      %v6823 = vadd.f32 %v4190, %v6822
      %6824 = vmatmul.f32.gmra.mxu0 %v5461
      %v6825 = vpop.f32.mrf.mxu0
      %v6826 = vadd.f32 %v4195, %v6825
      %6827 = vmatmul.f32.gmra.mxu0 %v5464
      %v6828 = vpop.f32.mrf.mxu0
      %v6829 = vadd.f32 %v4200, %v6828
      %6830 = vmatmul.f32.gmra.mxu0 %v5467
      %v6831 = vpop.f32.mrf.mxu0
      %v6832 = vadd.f32 %v4205, %v6831
      %6833 = vmatmul.f32.gmra.mxu0 %v5470
      %v6834 = vpop.f32.mrf.mxu0
      %v6835 = vadd.f32 %v4210, %v6834
      %6836 = vmatmul.f32.gmra.mxu0 %v5473
      %v6837 = vpop.f32.mrf.mxu0
      %v6838 = vadd.f32 %v4215, %v6837
      %6839 = vmatmul.f32.gmra.mxu0 %v5476
      %v6840 = vpop.f32.mrf.mxu0
      %v6841 = vadd.f32 %v4220, %v6840
      %6842 = vmatmul.f32.gmra.mxu0 %v5479
      %v6843 = vpop.f32.mrf.mxu0
      %v6844 = vadd.f32 %v4225, %v6843
      %6845 = vmatmul.f32.gmra.mxu0 %v5482
      %v6846 = vpop.f32.mrf.mxu0
      %v6847 = vadd.f32 %v4230, %v6846
      %6848 = vdwg.mxu0
      %6849 = vmatpush.msra.mxu0 0.0
      %6850 = vmatpush.msra.mxu0 0.0
      %6851 = vmatpush.msra.mxu0 0.0
      %6852 = vmatpush.msra.mxu0 0.0
      %6853 = vmatpush.msra.mxu0 0.0
      %6854 = vmatpush.msra.mxu0 0.0
      %6855 = vmatpush.msra.mxu0 0.0
      %6856 = vmatpush.msra.mxu0 %v5136
      %6857 = vmatpush.msra.mxu0 %v5104
      %6858 = vmatpush.msra.mxu0 %v5072
      %6859 = vmatpush.msra.mxu0 %v5040
      %6860 = vmatpush.msra.mxu0 %v5008
      %6861 = vmatpush.msra.mxu0 %v4976
      %6862 = vmatpush.msra.mxu0 %v4944
      %6863 = vmatpush.msra.mxu0 %v4912
      %6864 = vmatpush.msra.mxu0 %v4880
      %6865 = vmatmul.f32.gmra.mxu0 %v5437
      %v6866 = vpop.f32.mrf.mxu0
      %v6867 = vadd.f32 %v4155, %v6866
      %6868 = vmatmul.f32.gmra.mxu0 %v5440
      %v6869 = vpop.f32.mrf.mxu0
      %v6870 = vadd.f32 %v4160, %v6869
      %6871 = vmatmul.f32.gmra.mxu0 %v5443
      %v6872 = vpop.f32.mrf.mxu0
      %v6873 = vadd.f32 %v4165, %v6872
      %6874 = vmatmul.f32.gmra.mxu0 %v5446
      %v6875 = vpop.f32.mrf.mxu0
      %v6876 = vadd.f32 %v4170, %v6875
      %6877 = vmatmul.f32.gmra.mxu0 %v5449
      %v6878 = vpop.f32.mrf.mxu0
      %v6879 = vadd.f32 %v4175, %v6878
      %6880 = vmatmul.f32.gmra.mxu0 %v5452
      %v6881 = vpop.f32.mrf.mxu0
      %v6882 = vadd.f32 %v4180, %v6881
      %6883 = vmatmul.f32.gmra.mxu0 %v5455
      %v6884 = vpop.f32.mrf.mxu0
      %v6885 = vadd.f32 %v4185, %v6884
      %6886 = vmatmul.f32.gmra.mxu0 %v5458
      %v6887 = vpop.f32.mrf.mxu0
      %v6888 = vadd.f32 %v4190, %v6887
      %6889 = vmatmul.f32.gmra.mxu0 %v5461
      %v6890 = vpop.f32.mrf.mxu0
      %v6891 = vadd.f32 %v4195, %v6890
      %6892 = vmatmul.f32.gmra.mxu0 %v5464
      %v6893 = vpop.f32.mrf.mxu0
      %v6894 = vadd.f32 %v4200, %v6893
      %6895 = vmatmul.f32.gmra.mxu0 %v5467
      %v6896 = vpop.f32.mrf.mxu0
      %v6897 = vadd.f32 %v4205, %v6896
      %6898 = vmatmul.f32.gmra.mxu0 %v5470
      %v6899 = vpop.f32.mrf.mxu0
      %v6900 = vadd.f32 %v4210, %v6899
      %6901 = vmatmul.f32.gmra.mxu0 %v5473
      %v6902 = vpop.f32.mrf.mxu0
      %v6903 = vadd.f32 %v4215, %v6902
      %6904 = vmatmul.f32.gmra.mxu0 %v5476
      %v6905 = vpop.f32.mrf.mxu0
      %v6906 = vadd.f32 %v4220, %v6905
      %6907 = vmatmul.f32.gmra.mxu0 %v5479
      %v6908 = vpop.f32.mrf.mxu0
      %v6909 = vadd.f32 %v4225, %v6908
      %6910 = vmatmul.f32.gmra.mxu0 %v5482
      %v6911 = vpop.f32.mrf.mxu0
      %v6912 = vadd.f32 %v4230, %v6911
      %6913 = vdwg.mxu0
      %6914 = vmatpush.msra.mxu0 0.0
      %6915 = vmatpush.msra.mxu0 0.0
      %6916 = vmatpush.msra.mxu0 0.0
      %6917 = vmatpush.msra.mxu0 0.0
      %6918 = vmatpush.msra.mxu0 0.0
      %6919 = vmatpush.msra.mxu0 0.0
      %6920 = vmatpush.msra.mxu0 0.0
      %6921 = vmatpush.msra.mxu0 %v5137
      %6922 = vmatpush.msra.mxu0 %v5105
      %6923 = vmatpush.msra.mxu0 %v5073
      %6924 = vmatpush.msra.mxu0 %v5041
      %6925 = vmatpush.msra.mxu0 %v5009
      %6926 = vmatpush.msra.mxu0 %v4977
      %6927 = vmatpush.msra.mxu0 %v4945
      %6928 = vmatpush.msra.mxu0 %v4913
      %6929 = vmatpush.msra.mxu0 %v4881
      %6930 = vmatmul.f32.gmra.mxu0 %v5437
      %v6931 = vpop.f32.mrf.mxu0
      %v6932 = vadd.f32 %v4155, %v6931
      %6933 = vmatmul.f32.gmra.mxu0 %v5440
      %v6934 = vpop.f32.mrf.mxu0
      %v6935 = vadd.f32 %v4160, %v6934
      %6936 = vmatmul.f32.gmra.mxu0 %v5443
      %v6937 = vpop.f32.mrf.mxu0
      %v6938 = vadd.f32 %v4165, %v6937
      %6939 = vmatmul.f32.gmra.mxu0 %v5446
      %v6940 = vpop.f32.mrf.mxu0
      %v6941 = vadd.f32 %v4170, %v6940
      %6942 = vmatmul.f32.gmra.mxu0 %v5449
      %v6943 = vpop.f32.mrf.mxu0
      %v6944 = vadd.f32 %v4175, %v6943
      %6945 = vmatmul.f32.gmra.mxu0 %v5452
      %v6946 = vpop.f32.mrf.mxu0
      %v6947 = vadd.f32 %v4180, %v6946
      %6948 = vmatmul.f32.gmra.mxu0 %v5455
      %v6949 = vpop.f32.mrf.mxu0
      %v6950 = vadd.f32 %v4185, %v6949
      %6951 = vmatmul.f32.gmra.mxu0 %v5458
      %v6952 = vpop.f32.mrf.mxu0
      %v6953 = vadd.f32 %v4190, %v6952
      %6954 = vmatmul.f32.gmra.mxu0 %v5461
      %v6955 = vpop.f32.mrf.mxu0
      %v6956 = vadd.f32 %v4195, %v6955
      %6957 = vmatmul.f32.gmra.mxu0 %v5464
      %v6958 = vpop.f32.mrf.mxu0
      %v6959 = vadd.f32 %v4200, %v6958
      %6960 = vmatmul.f32.gmra.mxu0 %v5467
      %v6961 = vpop.f32.mrf.mxu0
      %v6962 = vadd.f32 %v4205, %v6961
      %6963 = vmatmul.f32.gmra.mxu0 %v5470
      %v6964 = vpop.f32.mrf.mxu0
      %v6965 = vadd.f32 %v4210, %v6964
      %6966 = vmatmul.f32.gmra.mxu0 %v5473
      %v6967 = vpop.f32.mrf.mxu0
      %v6968 = vadd.f32 %v4215, %v6967
      %6969 = vmatmul.f32.gmra.mxu0 %v5476
      %v6970 = vpop.f32.mrf.mxu0
      %v6971 = vadd.f32 %v4220, %v6970
      %6972 = vmatmul.f32.gmra.mxu0 %v5479
      %v6973 = vpop.f32.mrf.mxu0
      %v6974 = vadd.f32 %v4225, %v6973
      %6975 = vmatmul.f32.gmra.mxu0 %v5482
      %v6976 = vpop.f32.mrf.mxu0
      %v6977 = vadd.f32 %v4230, %v6976
      %6978 = vdwg.mxu0
      %6979 = vmatpush.msra.mxu0 0.0
      %6980 = vmatpush.msra.mxu0 0.0
      %6981 = vmatpush.msra.mxu0 0.0
      %6982 = vmatpush.msra.mxu0 0.0
      %6983 = vmatpush.msra.mxu0 0.0
      %6984 = vmatpush.msra.mxu0 0.0
      %6985 = vmatpush.msra.mxu0 0.0
      %6986 = vmatpush.msra.mxu0 %v5138
      %6987 = vmatpush.msra.mxu0 %v5106
      %6988 = vmatpush.msra.mxu0 %v5074
      %6989 = vmatpush.msra.mxu0 %v5042
      %6990 = vmatpush.msra.mxu0 %v5010
      %6991 = vmatpush.msra.mxu0 %v4978
      %6992 = vmatpush.msra.mxu0 %v4946
      %6993 = vmatpush.msra.mxu0 %v4914
      %6994 = vmatpush.msra.mxu0 %v4882
      %6995 = vmatmul.f32.gmra.mxu0 %v5437
      %v6996 = vpop.f32.mrf.mxu0
      %v6997 = vadd.f32 %v4155, %v6996
      %6998 = vmatmul.f32.gmra.mxu0 %v5440
      %v6999 = vpop.f32.mrf.mxu0
      %v7000 = vadd.f32 %v4160, %v6999
      %7001 = vmatmul.f32.gmra.mxu0 %v5443
      %v7002 = vpop.f32.mrf.mxu0
      %v7003 = vadd.f32 %v4165, %v7002
      %7004 = vmatmul.f32.gmra.mxu0 %v5446
      %v7005 = vpop.f32.mrf.mxu0
      %v7006 = vadd.f32 %v4170, %v7005
      %7007 = vmatmul.f32.gmra.mxu0 %v5449
      %v7008 = vpop.f32.mrf.mxu0
      %v7009 = vadd.f32 %v4175, %v7008
      %7010 = vmatmul.f32.gmra.mxu0 %v5452
      %v7011 = vpop.f32.mrf.mxu0
      %v7012 = vadd.f32 %v4180, %v7011
      %7013 = vmatmul.f32.gmra.mxu0 %v5455
      %v7014 = vpop.f32.mrf.mxu0
      %v7015 = vadd.f32 %v4185, %v7014
      %7016 = vmatmul.f32.gmra.mxu0 %v5458
      %v7017 = vpop.f32.mrf.mxu0
      %v7018 = vadd.f32 %v4190, %v7017
      %7019 = vmatmul.f32.gmra.mxu0 %v5461
      %v7020 = vpop.f32.mrf.mxu0
      %v7021 = vadd.f32 %v4195, %v7020
      %7022 = vmatmul.f32.gmra.mxu0 %v5464
      %v7023 = vpop.f32.mrf.mxu0
      %v7024 = vadd.f32 %v4200, %v7023
      %7025 = vmatmul.f32.gmra.mxu0 %v5467
      %v7026 = vpop.f32.mrf.mxu0
      %v7027 = vadd.f32 %v4205, %v7026
      %7028 = vmatmul.f32.gmra.mxu0 %v5470
      %v7029 = vpop.f32.mrf.mxu0
      %v7030 = vadd.f32 %v4210, %v7029
      %7031 = vmatmul.f32.gmra.mxu0 %v5473
      %v7032 = vpop.f32.mrf.mxu0
      %v7033 = vadd.f32 %v4215, %v7032
      %7034 = vmatmul.f32.gmra.mxu0 %v5476
      %v7035 = vpop.f32.mrf.mxu0
      %v7036 = vadd.f32 %v4220, %v7035
      %7037 = vmatmul.f32.gmra.mxu0 %v5479
      %v7038 = vpop.f32.mrf.mxu0
      %v7039 = vadd.f32 %v4225, %v7038
      %7040 = vmatmul.f32.gmra.mxu0 %v5482
      %v7041 = vpop.f32.mrf.mxu0
      %v7042 = vadd.f32 %v4230, %v7041
      %7043 = vdwg.mxu0
      %7044 = vmatpush.msra.mxu0 0.0
      %7045 = vmatpush.msra.mxu0 0.0
      %7046 = vmatpush.msra.mxu0 0.0
      %7047 = vmatpush.msra.mxu0 0.0
      %7048 = vmatpush.msra.mxu0 0.0
      %7049 = vmatpush.msra.mxu0 0.0
      %7050 = vmatpush.msra.mxu0 0.0
      %7051 = vmatpush.msra.mxu0 %v5139
      %7052 = vmatpush.msra.mxu0 %v5107
      %7053 = vmatpush.msra.mxu0 %v5075
      %7054 = vmatpush.msra.mxu0 %v5043
      %7055 = vmatpush.msra.mxu0 %v5011
      %7056 = vmatpush.msra.mxu0 %v4979
      %7057 = vmatpush.msra.mxu0 %v4947
      %7058 = vmatpush.msra.mxu0 %v4915
      %7059 = vmatpush.msra.mxu0 %v4883
      %7060 = vmatmul.f32.gmra.mxu0 %v5437
      %v7061 = vpop.f32.mrf.mxu0
      %v7062 = vadd.f32 %v4155, %v7061
      %7063 = vmatmul.f32.gmra.mxu0 %v5440
      %v7064 = vpop.f32.mrf.mxu0
      %v7065 = vadd.f32 %v4160, %v7064
      %7066 = vmatmul.f32.gmra.mxu0 %v5443
      %v7067 = vpop.f32.mrf.mxu0
      %v7068 = vadd.f32 %v4165, %v7067
      %7069 = vmatmul.f32.gmra.mxu0 %v5446
      %v7070 = vpop.f32.mrf.mxu0
      %v7071 = vadd.f32 %v4170, %v7070
      %7072 = vmatmul.f32.gmra.mxu0 %v5449
      %v7073 = vpop.f32.mrf.mxu0
      %v7074 = vadd.f32 %v4175, %v7073
      %7075 = vmatmul.f32.gmra.mxu0 %v5452
      %v7076 = vpop.f32.mrf.mxu0
      %v7077 = vadd.f32 %v4180, %v7076
      %7078 = vmatmul.f32.gmra.mxu0 %v5455
      %v7079 = vpop.f32.mrf.mxu0
      %v7080 = vadd.f32 %v4185, %v7079
      %7081 = vmatmul.f32.gmra.mxu0 %v5458
      %v7082 = vpop.f32.mrf.mxu0
      %v7083 = vadd.f32 %v4190, %v7082
      %7084 = vmatmul.f32.gmra.mxu0 %v5461
      %v7085 = vpop.f32.mrf.mxu0
      %v7086 = vadd.f32 %v4195, %v7085
      %7087 = vmatmul.f32.gmra.mxu0 %v5464
      %v7088 = vpop.f32.mrf.mxu0
      %v7089 = vadd.f32 %v4200, %v7088
      %7090 = vmatmul.f32.gmra.mxu0 %v5467
      %v7091 = vpop.f32.mrf.mxu0
      %v7092 = vadd.f32 %v4205, %v7091
      %7093 = vmatmul.f32.gmra.mxu0 %v5470
      %v7094 = vpop.f32.mrf.mxu0
      %v7095 = vadd.f32 %v4210, %v7094
      %7096 = vmatmul.f32.gmra.mxu0 %v5473
      %v7097 = vpop.f32.mrf.mxu0
      %v7098 = vadd.f32 %v4215, %v7097
      %7099 = vmatmul.f32.gmra.mxu0 %v5476
      %v7100 = vpop.f32.mrf.mxu0
      %v7101 = vadd.f32 %v4220, %v7100
      %7102 = vmatmul.f32.gmra.mxu0 %v5479
      %v7103 = vpop.f32.mrf.mxu0
      %v7104 = vadd.f32 %v4225, %v7103
      %7105 = vmatmul.f32.gmra.mxu0 %v5482
      %v7106 = vpop.f32.mrf.mxu0
      %v7107 = vadd.f32 %v4230, %v7106
      %7108 = vdwg.mxu0
      %7109 = vmatpush.msra.mxu0 0.0
      %7110 = vmatpush.msra.mxu0 0.0
      %7111 = vmatpush.msra.mxu0 0.0
      %7112 = vmatpush.msra.mxu0 0.0
      %7113 = vmatpush.msra.mxu0 0.0
      %7114 = vmatpush.msra.mxu0 0.0
      %7115 = vmatpush.msra.mxu0 0.0
      %7116 = vmatpush.msra.mxu0 %v5140
      %7117 = vmatpush.msra.mxu0 %v5108
      %7118 = vmatpush.msra.mxu0 %v5076
      %7119 = vmatpush.msra.mxu0 %v5044
      %7120 = vmatpush.msra.mxu0 %v5012
      %7121 = vmatpush.msra.mxu0 %v4980
      %7122 = vmatpush.msra.mxu0 %v4948
      %7123 = vmatpush.msra.mxu0 %v4916
      %7124 = vmatpush.msra.mxu0 %v4884
      %7125 = vmatmul.f32.gmra.mxu0 %v5437
      %v7126 = vpop.f32.mrf.mxu0
      %v7127 = vadd.f32 %v4155, %v7126
      %7128 = vmatmul.f32.gmra.mxu0 %v5440
      %v7129 = vpop.f32.mrf.mxu0
      %v7130 = vadd.f32 %v4160, %v7129
      %7131 = vmatmul.f32.gmra.mxu0 %v5443
      %v7132 = vpop.f32.mrf.mxu0
      %v7133 = vadd.f32 %v4165, %v7132
      %7134 = vmatmul.f32.gmra.mxu0 %v5446
      %v7135 = vpop.f32.mrf.mxu0
      %v7136 = vadd.f32 %v4170, %v7135
      %7137 = vmatmul.f32.gmra.mxu0 %v5449
      %v7138 = vpop.f32.mrf.mxu0
      %v7139 = vadd.f32 %v4175, %v7138
      %7140 = vmatmul.f32.gmra.mxu0 %v5452
      %v7141 = vpop.f32.mrf.mxu0
      %v7142 = vadd.f32 %v4180, %v7141
      %7143 = vmatmul.f32.gmra.mxu0 %v5455
      %v7144 = vpop.f32.mrf.mxu0
      %v7145 = vadd.f32 %v4185, %v7144
      %7146 = vmatmul.f32.gmra.mxu0 %v5458
      %v7147 = vpop.f32.mrf.mxu0
      %v7148 = vadd.f32 %v4190, %v7147
      %7149 = vmatmul.f32.gmra.mxu0 %v5461
      %v7150 = vpop.f32.mrf.mxu0
      %v7151 = vadd.f32 %v4195, %v7150
      %7152 = vmatmul.f32.gmra.mxu0 %v5464
      %v7153 = vpop.f32.mrf.mxu0
      %v7154 = vadd.f32 %v4200, %v7153
      %7155 = vmatmul.f32.gmra.mxu0 %v5467
      %v7156 = vpop.f32.mrf.mxu0
      %v7157 = vadd.f32 %v4205, %v7156
      %7158 = vmatmul.f32.gmra.mxu0 %v5470
      %v7159 = vpop.f32.mrf.mxu0
      %v7160 = vadd.f32 %v4210, %v7159
      %7161 = vmatmul.f32.gmra.mxu0 %v5473
      %v7162 = vpop.f32.mrf.mxu0
      %v7163 = vadd.f32 %v4215, %v7162
      %7164 = vmatmul.f32.gmra.mxu0 %v5476
      %v7165 = vpop.f32.mrf.mxu0
      %v7166 = vadd.f32 %v4220, %v7165
      %7167 = vmatmul.f32.gmra.mxu0 %v5479
      %v7168 = vpop.f32.mrf.mxu0
      %v7169 = vadd.f32 %v4225, %v7168
      %7170 = vmatmul.f32.gmra.mxu0 %v5482
      %v7171 = vpop.f32.mrf.mxu0
      %v7172 = vadd.f32 %v4230, %v7171
      %7173 = vdwg.mxu0
      %7174 = vmatpush.msra.mxu0 0.0
      %7175 = vmatpush.msra.mxu0 0.0
      %7176 = vmatpush.msra.mxu0 0.0
      %7177 = vmatpush.msra.mxu0 0.0
      %7178 = vmatpush.msra.mxu0 0.0
      %7179 = vmatpush.msra.mxu0 0.0
      %7180 = vmatpush.msra.mxu0 0.0
      %7181 = vmatpush.msra.mxu0 %v5141
      %7182 = vmatpush.msra.mxu0 %v5109
      %7183 = vmatpush.msra.mxu0 %v5077
      %7184 = vmatpush.msra.mxu0 %v5045
      %7185 = vmatpush.msra.mxu0 %v5013
      %7186 = vmatpush.msra.mxu0 %v4981
      %7187 = vmatpush.msra.mxu0 %v4949
      %7188 = vmatpush.msra.mxu0 %v4917
      %7189 = vmatpush.msra.mxu0 %v4885
      %7190 = vmatmul.f32.gmra.mxu0 %v5437
      %v7191 = vpop.f32.mrf.mxu0
      %v7192 = vadd.f32 %v4155, %v7191
      %7193 = vmatmul.f32.gmra.mxu0 %v5440
      %v7194 = vpop.f32.mrf.mxu0
      %v7195 = vadd.f32 %v4160, %v7194
      %7196 = vmatmul.f32.gmra.mxu0 %v5443
      %v7197 = vpop.f32.mrf.mxu0
      %v7198 = vadd.f32 %v4165, %v7197
      %7199 = vmatmul.f32.gmra.mxu0 %v5446
      %v7200 = vpop.f32.mrf.mxu0
      %v7201 = vadd.f32 %v4170, %v7200
      %7202 = vmatmul.f32.gmra.mxu0 %v5449
      %v7203 = vpop.f32.mrf.mxu0
      %v7204 = vadd.f32 %v4175, %v7203
      %7205 = vmatmul.f32.gmra.mxu0 %v5452
      %v7206 = vpop.f32.mrf.mxu0
      %v7207 = vadd.f32 %v4180, %v7206
      %7208 = vmatmul.f32.gmra.mxu0 %v5455
      %v7209 = vpop.f32.mrf.mxu0
      %v7210 = vadd.f32 %v4185, %v7209
      %7211 = vmatmul.f32.gmra.mxu0 %v5458
      %v7212 = vpop.f32.mrf.mxu0
      %v7213 = vadd.f32 %v4190, %v7212
      %7214 = vmatmul.f32.gmra.mxu0 %v5461
      %v7215 = vpop.f32.mrf.mxu0
      %v7216 = vadd.f32 %v4195, %v7215
      %7217 = vmatmul.f32.gmra.mxu0 %v5464
      %v7218 = vpop.f32.mrf.mxu0
      %v7219 = vadd.f32 %v4200, %v7218
      %7220 = vmatmul.f32.gmra.mxu0 %v5467
      %v7221 = vpop.f32.mrf.mxu0
      %v7222 = vadd.f32 %v4205, %v7221
      %7223 = vmatmul.f32.gmra.mxu0 %v5470
      %v7224 = vpop.f32.mrf.mxu0
      %v7225 = vadd.f32 %v4210, %v7224
      %7226 = vmatmul.f32.gmra.mxu0 %v5473
      %v7227 = vpop.f32.mrf.mxu0
      %v7228 = vadd.f32 %v4215, %v7227
      %7229 = vmatmul.f32.gmra.mxu0 %v5476
      %v7230 = vpop.f32.mrf.mxu0
      %v7231 = vadd.f32 %v4220, %v7230
      %7232 = vmatmul.f32.gmra.mxu0 %v5479
      %v7233 = vpop.f32.mrf.mxu0
      %v7234 = vadd.f32 %v4225, %v7233
      %7235 = vmatmul.f32.gmra.mxu0 %v5482
      %v7236 = vpop.f32.mrf.mxu0
      %v7237 = vadd.f32 %v4230, %v7236
      %7238 = vdwg.mxu0
      %7239 = vmatpush.msra.mxu0 0.0
      %7240 = vmatpush.msra.mxu0 0.0
      %7241 = vmatpush.msra.mxu0 0.0
      %7242 = vmatpush.msra.mxu0 0.0
      %7243 = vmatpush.msra.mxu0 0.0
      %7244 = vmatpush.msra.mxu0 0.0
      %7245 = vmatpush.msra.mxu0 0.0
      %7246 = vmatpush.msra.mxu0 %v5142
      %7247 = vmatpush.msra.mxu0 %v5110
      %7248 = vmatpush.msra.mxu0 %v5078
      %7249 = vmatpush.msra.mxu0 %v5046
      %7250 = vmatpush.msra.mxu0 %v5014
      %7251 = vmatpush.msra.mxu0 %v4982
      %7252 = vmatpush.msra.mxu0 %v4950
      %7253 = vmatpush.msra.mxu0 %v4918
      %7254 = vmatpush.msra.mxu0 %v4886
      %7255 = vmatmul.f32.gmra.mxu0 %v5437
      %v7256 = vpop.f32.mrf.mxu0
      %v7257 = vadd.f32 %v4155, %v7256
      %7258 = vmatmul.f32.gmra.mxu0 %v5440
      %v7259 = vpop.f32.mrf.mxu0
      %v7260 = vadd.f32 %v4160, %v7259
      %7261 = vmatmul.f32.gmra.mxu0 %v5443
      %v7262 = vpop.f32.mrf.mxu0
      %v7263 = vadd.f32 %v4165, %v7262
      %7264 = vmatmul.f32.gmra.mxu0 %v5446
      %v7265 = vpop.f32.mrf.mxu0
      %v7266 = vadd.f32 %v4170, %v7265
      %7267 = vmatmul.f32.gmra.mxu0 %v5449
      %v7268 = vpop.f32.mrf.mxu0
      %v7269 = vadd.f32 %v4175, %v7268
      %7270 = vmatmul.f32.gmra.mxu0 %v5452
      %v7271 = vpop.f32.mrf.mxu0
      %v7272 = vadd.f32 %v4180, %v7271
      %7273 = vmatmul.f32.gmra.mxu0 %v5455
      %v7274 = vpop.f32.mrf.mxu0
      %v7275 = vadd.f32 %v4185, %v7274
      %7276 = vmatmul.f32.gmra.mxu0 %v5458
      %v7277 = vpop.f32.mrf.mxu0
      %v7278 = vadd.f32 %v4190, %v7277
      %7279 = vmatmul.f32.gmra.mxu0 %v5461
      %v7280 = vpop.f32.mrf.mxu0
      %v7281 = vadd.f32 %v4195, %v7280
      %7282 = vmatmul.f32.gmra.mxu0 %v5464
      %v7283 = vpop.f32.mrf.mxu0
      %v7284 = vadd.f32 %v4200, %v7283
      %7285 = vmatmul.f32.gmra.mxu0 %v5467
      %v7286 = vpop.f32.mrf.mxu0
      %v7287 = vadd.f32 %v4205, %v7286
      %7288 = vmatmul.f32.gmra.mxu0 %v5470
      %v7289 = vpop.f32.mrf.mxu0
      %v7290 = vadd.f32 %v4210, %v7289
      %7291 = vmatmul.f32.gmra.mxu0 %v5473
      %v7292 = vpop.f32.mrf.mxu0
      %v7293 = vadd.f32 %v4215, %v7292
      %7294 = vmatmul.f32.gmra.mxu0 %v5476
      %v7295 = vpop.f32.mrf.mxu0
      %v7296 = vadd.f32 %v4220, %v7295
      %7297 = vmatmul.f32.gmra.mxu0 %v5479
      %v7298 = vpop.f32.mrf.mxu0
      %v7299 = vadd.f32 %v4225, %v7298
      %7300 = vmatmul.f32.gmra.mxu0 %v5482
      %v7301 = vpop.f32.mrf.mxu0
      %v7302 = vadd.f32 %v4230, %v7301
      %7303 = vdwg.mxu0
      %7304 = vmatpush.msra.mxu0 0.0
      %7305 = vmatpush.msra.mxu0 0.0
      %7306 = vmatpush.msra.mxu0 0.0
      %7307 = vmatpush.msra.mxu0 0.0
      %7308 = vmatpush.msra.mxu0 0.0
      %7309 = vmatpush.msra.mxu0 0.0
      %7310 = vmatpush.msra.mxu0 0.0
      %7311 = vmatpush.msra.mxu0 %v5143
      %7312 = vmatpush.msra.mxu0 %v5111
      %7313 = vmatpush.msra.mxu0 %v5079
      %7314 = vmatpush.msra.mxu0 %v5047
      %7315 = vmatpush.msra.mxu0 %v5015
      %7316 = vmatpush.msra.mxu0 %v4983
      %7317 = vmatpush.msra.mxu0 %v4951
      %7318 = vmatpush.msra.mxu0 %v4919
      %7319 = vmatpush.msra.mxu0 %v4887
      %7320 = vmatmul.f32.gmra.mxu0 %v5437
      %v7321 = vpop.f32.mrf.mxu0
      %v7322 = vadd.f32 %v4155, %v7321
      %7323 = vmatmul.f32.gmra.mxu0 %v5440
      %v7324 = vpop.f32.mrf.mxu0
      %v7325 = vadd.f32 %v4160, %v7324
      %7326 = vmatmul.f32.gmra.mxu0 %v5443
      %v7327 = vpop.f32.mrf.mxu0
      %v7328 = vadd.f32 %v4165, %v7327
      %7329 = vmatmul.f32.gmra.mxu0 %v5446
      %v7330 = vpop.f32.mrf.mxu0
      %v7331 = vadd.f32 %v4170, %v7330
      %7332 = vmatmul.f32.gmra.mxu0 %v5449
      %v7333 = vpop.f32.mrf.mxu0
      %v7334 = vadd.f32 %v4175, %v7333
      %7335 = vmatmul.f32.gmra.mxu0 %v5452
      %v7336 = vpop.f32.mrf.mxu0
      %v7337 = vadd.f32 %v4180, %v7336
      %7338 = vmatmul.f32.gmra.mxu0 %v5455
      %v7339 = vpop.f32.mrf.mxu0
      %v7340 = vadd.f32 %v4185, %v7339
      %7341 = vmatmul.f32.gmra.mxu0 %v5458
      %v7342 = vpop.f32.mrf.mxu0
      %v7343 = vadd.f32 %v4190, %v7342
      %7344 = vmatmul.f32.gmra.mxu0 %v5461
      %v7345 = vpop.f32.mrf.mxu0
      %v7346 = vadd.f32 %v4195, %v7345
      %7347 = vmatmul.f32.gmra.mxu0 %v5464
      %v7348 = vpop.f32.mrf.mxu0
      %v7349 = vadd.f32 %v4200, %v7348
      %7350 = vmatmul.f32.gmra.mxu0 %v5467
      %v7351 = vpop.f32.mrf.mxu0
      %v7352 = vadd.f32 %v4205, %v7351
      %7353 = vmatmul.f32.gmra.mxu0 %v5470
      %v7354 = vpop.f32.mrf.mxu0
      %v7355 = vadd.f32 %v4210, %v7354
      %7356 = vmatmul.f32.gmra.mxu0 %v5473
      %v7357 = vpop.f32.mrf.mxu0
      %v7358 = vadd.f32 %v4215, %v7357
      %7359 = vmatmul.f32.gmra.mxu0 %v5476
      %v7360 = vpop.f32.mrf.mxu0
      %v7361 = vadd.f32 %v4220, %v7360
      %7362 = vmatmul.f32.gmra.mxu0 %v5479
      %v7363 = vpop.f32.mrf.mxu0
      %v7364 = vadd.f32 %v4225, %v7363
      %7365 = vmatmul.f32.gmra.mxu0 %v5482
      %v7366 = vpop.f32.mrf.mxu0
      %v7367 = vadd.f32 %v4230, %v7366
      %7368 = vdwg.mxu0
      %7369 = vmatpush.msra.mxu0 0.0
      %7370 = vmatpush.msra.mxu0 0.0
      %7371 = vmatpush.msra.mxu0 0.0
      %7372 = vmatpush.msra.mxu0 0.0
      %7373 = vmatpush.msra.mxu0 0.0
      %7374 = vmatpush.msra.mxu0 0.0
      %7375 = vmatpush.msra.mxu0 0.0
      %7376 = vmatpush.msra.mxu0 %v5144
      %7377 = vmatpush.msra.mxu0 %v5112
      %7378 = vmatpush.msra.mxu0 %v5080
      %7379 = vmatpush.msra.mxu0 %v5048
      %7380 = vmatpush.msra.mxu0 %v5016
      %7381 = vmatpush.msra.mxu0 %v4984
      %7382 = vmatpush.msra.mxu0 %v4952
      %7383 = vmatpush.msra.mxu0 %v4920
      %7384 = vmatpush.msra.mxu0 %v4888
      %7385 = vmatmul.f32.gmra.mxu0 %v5437
      %v7386 = vpop.f32.mrf.mxu0
      %v7387 = vadd.f32 %v4155, %v7386
      %7388 = vmatmul.f32.gmra.mxu0 %v5440
      %v7389 = vpop.f32.mrf.mxu0
      %v7390 = vadd.f32 %v4160, %v7389
      %7391 = vmatmul.f32.gmra.mxu0 %v5443
      %v7392 = vpop.f32.mrf.mxu0
      %v7393 = vadd.f32 %v4165, %v7392
      %7394 = vmatmul.f32.gmra.mxu0 %v5446
      %v7395 = vpop.f32.mrf.mxu0
      %v7396 = vadd.f32 %v4170, %v7395
      %7397 = vmatmul.f32.gmra.mxu0 %v5449
      %v7398 = vpop.f32.mrf.mxu0
      %v7399 = vadd.f32 %v4175, %v7398
      %7400 = vmatmul.f32.gmra.mxu0 %v5452
      %v7401 = vpop.f32.mrf.mxu0
      %v7402 = vadd.f32 %v4180, %v7401
      %7403 = vmatmul.f32.gmra.mxu0 %v5455
      %v7404 = vpop.f32.mrf.mxu0
      %v7405 = vadd.f32 %v4185, %v7404
      %7406 = vmatmul.f32.gmra.mxu0 %v5458
      %v7407 = vpop.f32.mrf.mxu0
      %v7408 = vadd.f32 %v4190, %v7407
      %7409 = vmatmul.f32.gmra.mxu0 %v5461
      %v7410 = vpop.f32.mrf.mxu0
      %v7411 = vadd.f32 %v4195, %v7410
      %7412 = vmatmul.f32.gmra.mxu0 %v5464
      %v7413 = vpop.f32.mrf.mxu0
      %v7414 = vadd.f32 %v4200, %v7413
      %7415 = vmatmul.f32.gmra.mxu0 %v5467
      %v7416 = vpop.f32.mrf.mxu0
      %v7417 = vadd.f32 %v4205, %v7416
      %7418 = vmatmul.f32.gmra.mxu0 %v5470
      %v7419 = vpop.f32.mrf.mxu0
      %v7420 = vadd.f32 %v4210, %v7419
      %7421 = vmatmul.f32.gmra.mxu0 %v5473
      %v7422 = vpop.f32.mrf.mxu0
      %v7423 = vadd.f32 %v4215, %v7422
      %7424 = vmatmul.f32.gmra.mxu0 %v5476
      %v7425 = vpop.f32.mrf.mxu0
      %v7426 = vadd.f32 %v4220, %v7425
      %7427 = vmatmul.f32.gmra.mxu0 %v5479
      %v7428 = vpop.f32.mrf.mxu0
      %v7429 = vadd.f32 %v4225, %v7428
      %7430 = vmatmul.f32.gmra.mxu0 %v5482
      %v7431 = vpop.f32.mrf.mxu0
      %v7432 = vadd.f32 %v4230, %v7431
      %7433 = vdwg.mxu0
      %7434 = vmatpush.msra.mxu0 0.0
      %7435 = vmatpush.msra.mxu0 0.0
      %7436 = vmatpush.msra.mxu0 0.0
      %7437 = vmatpush.msra.mxu0 0.0
      %7438 = vmatpush.msra.mxu0 0.0
      %7439 = vmatpush.msra.mxu0 0.0
      %7440 = vmatpush.msra.mxu0 0.0
      %7441 = vmatpush.msra.mxu0 %v5145
      %7442 = vmatpush.msra.mxu0 %v5113
      %7443 = vmatpush.msra.mxu0 %v5081
      %7444 = vmatpush.msra.mxu0 %v5049
      %7445 = vmatpush.msra.mxu0 %v5017
      %7446 = vmatpush.msra.mxu0 %v4985
      %7447 = vmatpush.msra.mxu0 %v4953
      %7448 = vmatpush.msra.mxu0 %v4921
      %7449 = vmatpush.msra.mxu0 %v4889
      %7450 = vmatmul.f32.gmra.mxu0 %v5437
      %v7451 = vpop.f32.mrf.mxu0
      %v7452 = vadd.f32 %v4155, %v7451
      %7453 = vmatmul.f32.gmra.mxu0 %v5440
      %v7454 = vpop.f32.mrf.mxu0
      %v7455 = vadd.f32 %v4160, %v7454
      %7456 = vmatmul.f32.gmra.mxu0 %v5443
      %v7457 = vpop.f32.mrf.mxu0
      %v7458 = vadd.f32 %v4165, %v7457
      %7459 = vmatmul.f32.gmra.mxu0 %v5446
      %v7460 = vpop.f32.mrf.mxu0
      %v7461 = vadd.f32 %v4170, %v7460
      %7462 = vmatmul.f32.gmra.mxu0 %v5449
      %v7463 = vpop.f32.mrf.mxu0
      %v7464 = vadd.f32 %v4175, %v7463
      %7465 = vmatmul.f32.gmra.mxu0 %v5452
      %v7466 = vpop.f32.mrf.mxu0
      %v7467 = vadd.f32 %v4180, %v7466
      %7468 = vmatmul.f32.gmra.mxu0 %v5455
      %v7469 = vpop.f32.mrf.mxu0
      %v7470 = vadd.f32 %v4185, %v7469
      %7471 = vmatmul.f32.gmra.mxu0 %v5458
      %v7472 = vpop.f32.mrf.mxu0
      %v7473 = vadd.f32 %v4190, %v7472
      %7474 = vmatmul.f32.gmra.mxu0 %v5461
      %v7475 = vpop.f32.mrf.mxu0
      %v7476 = vadd.f32 %v4195, %v7475
      %7477 = vmatmul.f32.gmra.mxu0 %v5464
      %v7478 = vpop.f32.mrf.mxu0
      %v7479 = vadd.f32 %v4200, %v7478
      %7480 = vmatmul.f32.gmra.mxu0 %v5467
      %v7481 = vpop.f32.mrf.mxu0
      %v7482 = vadd.f32 %v4205, %v7481
      %7483 = vmatmul.f32.gmra.mxu0 %v5470
      %v7484 = vpop.f32.mrf.mxu0
      %v7485 = vadd.f32 %v4210, %v7484
      %7486 = vmatmul.f32.gmra.mxu0 %v5473
      %v7487 = vpop.f32.mrf.mxu0
      %v7488 = vadd.f32 %v4215, %v7487
      %7489 = vmatmul.f32.gmra.mxu0 %v5476
      %v7490 = vpop.f32.mrf.mxu0
      %v7491 = vadd.f32 %v4220, %v7490
      %7492 = vmatmul.f32.gmra.mxu0 %v5479
      %v7493 = vpop.f32.mrf.mxu0
      %v7494 = vadd.f32 %v4225, %v7493
      %7495 = vmatmul.f32.gmra.mxu0 %v5482
      %v7496 = vpop.f32.mrf.mxu0
      %v7497 = vadd.f32 %v4230, %v7496
      %7498 = vdwg.mxu0
      %7499 = vmatpush.msra.mxu0 0.0
      %7500 = vmatpush.msra.mxu0 0.0
      %7501 = vmatpush.msra.mxu0 0.0
      %7502 = vmatpush.msra.mxu0 0.0
      %7503 = vmatpush.msra.mxu0 0.0
      %7504 = vmatpush.msra.mxu0 0.0
      %7505 = vmatpush.msra.mxu0 0.0
      %7506 = vmatpush.msra.mxu0 %v5146
      %7507 = vmatpush.msra.mxu0 %v5114
      %7508 = vmatpush.msra.mxu0 %v5082
      %7509 = vmatpush.msra.mxu0 %v5050
      %7510 = vmatpush.msra.mxu0 %v5018
      %7511 = vmatpush.msra.mxu0 %v4986
      %7512 = vmatpush.msra.mxu0 %v4954
      %7513 = vmatpush.msra.mxu0 %v4922
      %7514 = vmatpush.msra.mxu0 %v4890
      %7515 = vmatmul.f32.gmra.mxu0 %v5437
      %v7516 = vpop.f32.mrf.mxu0
      %v7517 = vadd.f32 %v4155, %v7516
      %7518 = vmatmul.f32.gmra.mxu0 %v5440
      %v7519 = vpop.f32.mrf.mxu0
      %v7520 = vadd.f32 %v4160, %v7519
      %7521 = vmatmul.f32.gmra.mxu0 %v5443
      %v7522 = vpop.f32.mrf.mxu0
      %v7523 = vadd.f32 %v4165, %v7522
      %7524 = vmatmul.f32.gmra.mxu0 %v5446
      %v7525 = vpop.f32.mrf.mxu0
      %v7526 = vadd.f32 %v4170, %v7525
      %7527 = vmatmul.f32.gmra.mxu0 %v5449
      %v7528 = vpop.f32.mrf.mxu0
      %v7529 = vadd.f32 %v4175, %v7528
      %7530 = vmatmul.f32.gmra.mxu0 %v5452
      %v7531 = vpop.f32.mrf.mxu0
      %v7532 = vadd.f32 %v4180, %v7531
      %7533 = vmatmul.f32.gmra.mxu0 %v5455
      %v7534 = vpop.f32.mrf.mxu0
      %v7535 = vadd.f32 %v4185, %v7534
      %7536 = vmatmul.f32.gmra.mxu0 %v5458
      %v7537 = vpop.f32.mrf.mxu0
      %v7538 = vadd.f32 %v4190, %v7537
      %7539 = vmatmul.f32.gmra.mxu0 %v5461
      %v7540 = vpop.f32.mrf.mxu0
      %v7541 = vadd.f32 %v4195, %v7540
      %7542 = vmatmul.f32.gmra.mxu0 %v5464
      %v7543 = vpop.f32.mrf.mxu0
      %v7544 = vadd.f32 %v4200, %v7543
      %7545 = vmatmul.f32.gmra.mxu0 %v5467
      %v7546 = vpop.f32.mrf.mxu0
      %v7547 = vadd.f32 %v4205, %v7546
      %7548 = vmatmul.f32.gmra.mxu0 %v5470
      %v7549 = vpop.f32.mrf.mxu0
      %v7550 = vadd.f32 %v4210, %v7549
      %7551 = vmatmul.f32.gmra.mxu0 %v5473
      %v7552 = vpop.f32.mrf.mxu0
      %v7553 = vadd.f32 %v4215, %v7552
      %7554 = vmatmul.f32.gmra.mxu0 %v5476
      %v7555 = vpop.f32.mrf.mxu0
      %v7556 = vadd.f32 %v4220, %v7555
      %7557 = vmatmul.f32.gmra.mxu0 %v5479
      %v7558 = vpop.f32.mrf.mxu0
      %v7559 = vadd.f32 %v4225, %v7558
      %7560 = vmatmul.f32.gmra.mxu0 %v5482
      %v7561 = vpop.f32.mrf.mxu0
      %v7562 = vadd.f32 %v4230, %v7561
      %7563 = vdwg.mxu0
      %v7564 = vmax.f32 %v5502, 0.0
      %v7565 = vmax.f32 %v5567, 0.0
      %v7566 = vmax.f32 %v5632, 0.0
      %v7567 = vmax.f32 %v5697, 0.0
      %v7568 = vmax.f32 %v5762, 0.0
      %v7569 = vmax.f32 %v5827, 0.0
      %v7570 = vmax.f32 %v5892, 0.0
      %v7571 = vmax.f32 %v5957, 0.0
      %v7572 = vmax.f32 %v6022, 0.0
      %v7573 = vmax.f32 %v6087, 0.0
      %v7574 = vmax.f32 %v6152, 0.0
      %v7575 = vmax.f32 %v6217, 0.0
      %v7576 = vmax.f32 %v6282, 0.0
      %v7577 = vmax.f32 %v6347, 0.0
      %v7578 = vmax.f32 %v6412, 0.0
      %v7579 = vmax.f32 %v6477, 0.0
      %v7580 = vmax.f32 %v6542, 0.0
      %v7581 = vmax.f32 %v6607, 0.0
      %v7582 = vmax.f32 %v6672, 0.0
      %v7583 = vmax.f32 %v6737, 0.0
      %v7584 = vmax.f32 %v6802, 0.0
      %v7585 = vmax.f32 %v6867, 0.0
      %v7586 = vmax.f32 %v6932, 0.0
      %v7587 = vmax.f32 %v6997, 0.0
      %v7588 = vmax.f32 %v7062, 0.0
      %v7589 = vmax.f32 %v7127, 0.0
      %v7590 = vmax.f32 %v7192, 0.0
      %v7591 = vmax.f32 %v7257, 0.0
      %v7592 = vmax.f32 %v7322, 0.0
      %v7593 = vmax.f32 %v7387, 0.0
      %v7594 = vmax.f32 %v7452, 0.0
      %v7595 = vmax.f32 %v7517, 0.0
      %v7596 = vmax.f32 %v5505, 0.0
      %v7597 = vmax.f32 %v5570, 0.0
      %v7598 = vmax.f32 %v5635, 0.0
      %v7599 = vmax.f32 %v5700, 0.0
      %v7600 = vmax.f32 %v5765, 0.0
      %v7601 = vmax.f32 %v5830, 0.0
      %v7602 = vmax.f32 %v5895, 0.0
      %v7603 = vmax.f32 %v5960, 0.0
      %v7604 = vmax.f32 %v6025, 0.0
      %v7605 = vmax.f32 %v6090, 0.0
      %v7606 = vmax.f32 %v6155, 0.0
      %v7607 = vmax.f32 %v6220, 0.0
      %v7608 = vmax.f32 %v6285, 0.0
      %v7609 = vmax.f32 %v6350, 0.0
      %v7610 = vmax.f32 %v6415, 0.0
      %v7611 = vmax.f32 %v6480, 0.0
      %v7612 = vmax.f32 %v6545, 0.0
      %v7613 = vmax.f32 %v6610, 0.0
      %v7614 = vmax.f32 %v6675, 0.0
      %v7615 = vmax.f32 %v6740, 0.0
      %v7616 = vmax.f32 %v6805, 0.0
      %v7617 = vmax.f32 %v6870, 0.0
      %v7618 = vmax.f32 %v6935, 0.0
      %v7619 = vmax.f32 %v7000, 0.0
      %v7620 = vmax.f32 %v7065, 0.0
      %v7621 = vmax.f32 %v7130, 0.0
      %v7622 = vmax.f32 %v7195, 0.0
      %v7623 = vmax.f32 %v7260, 0.0
      %v7624 = vmax.f32 %v7325, 0.0
      %v7625 = vmax.f32 %v7390, 0.0
      %v7626 = vmax.f32 %v7455, 0.0
      %v7627 = vmax.f32 %v7520, 0.0
      %v7628 = vmax.f32 %v5508, 0.0
      %v7629 = vmax.f32 %v5573, 0.0
      %v7630 = vmax.f32 %v5638, 0.0
      %v7631 = vmax.f32 %v5703, 0.0
      %v7632 = vmax.f32 %v5768, 0.0
      %v7633 = vmax.f32 %v5833, 0.0
      %v7634 = vmax.f32 %v5898, 0.0
      %v7635 = vmax.f32 %v5963, 0.0
      %v7636 = vmax.f32 %v6028, 0.0
      %v7637 = vmax.f32 %v6093, 0.0
      %v7638 = vmax.f32 %v6158, 0.0
      %v7639 = vmax.f32 %v6223, 0.0
      %v7640 = vmax.f32 %v6288, 0.0
      %v7641 = vmax.f32 %v6353, 0.0
      %v7642 = vmax.f32 %v6418, 0.0
      %v7643 = vmax.f32 %v6483, 0.0
      %v7644 = vmax.f32 %v6548, 0.0
      %v7645 = vmax.f32 %v6613, 0.0
      %v7646 = vmax.f32 %v6678, 0.0
      %v7647 = vmax.f32 %v6743, 0.0
      %v7648 = vmax.f32 %v6808, 0.0
      %v7649 = vmax.f32 %v6873, 0.0
      %v7650 = vmax.f32 %v6938, 0.0
      %v7651 = vmax.f32 %v7003, 0.0
      %v7652 = vmax.f32 %v7068, 0.0
      %v7653 = vmax.f32 %v7133, 0.0
      %v7654 = vmax.f32 %v7198, 0.0
      %v7655 = vmax.f32 %v7263, 0.0
      %v7656 = vmax.f32 %v7328, 0.0
      %v7657 = vmax.f32 %v7393, 0.0
      %v7658 = vmax.f32 %v7458, 0.0
      %v7659 = vmax.f32 %v7523, 0.0
      %v7660 = vmax.f32 %v5511, 0.0
      %v7661 = vmax.f32 %v5576, 0.0
      %v7662 = vmax.f32 %v5641, 0.0
      %v7663 = vmax.f32 %v5706, 0.0
      %v7664 = vmax.f32 %v5771, 0.0
      %v7665 = vmax.f32 %v5836, 0.0
      %v7666 = vmax.f32 %v5901, 0.0
      %v7667 = vmax.f32 %v5966, 0.0
      %v7668 = vmax.f32 %v6031, 0.0
      %v7669 = vmax.f32 %v6096, 0.0
      %v7670 = vmax.f32 %v6161, 0.0
      %v7671 = vmax.f32 %v6226, 0.0
      %v7672 = vmax.f32 %v6291, 0.0
      %v7673 = vmax.f32 %v6356, 0.0
      %v7674 = vmax.f32 %v6421, 0.0
      %v7675 = vmax.f32 %v6486, 0.0
      %v7676 = vmax.f32 %v6551, 0.0
      %v7677 = vmax.f32 %v6616, 0.0
      %v7678 = vmax.f32 %v6681, 0.0
      %v7679 = vmax.f32 %v6746, 0.0
      %v7680 = vmax.f32 %v6811, 0.0
      %v7681 = vmax.f32 %v6876, 0.0
      %v7682 = vmax.f32 %v6941, 0.0
      %v7683 = vmax.f32 %v7006, 0.0
      %v7684 = vmax.f32 %v7071, 0.0
      %v7685 = vmax.f32 %v7136, 0.0
      %v7686 = vmax.f32 %v7201, 0.0
      %v7687 = vmax.f32 %v7266, 0.0
      %v7688 = vmax.f32 %v7331, 0.0
      %v7689 = vmax.f32 %v7396, 0.0
      %v7690 = vmax.f32 %v7461, 0.0
      %v7691 = vmax.f32 %v7526, 0.0
      %v7692 = vmax.f32 %v5514, 0.0
      %v7693 = vmax.f32 %v5579, 0.0
      %v7694 = vmax.f32 %v5644, 0.0
      %v7695 = vmax.f32 %v5709, 0.0
      %v7696 = vmax.f32 %v5774, 0.0
      %v7697 = vmax.f32 %v5839, 0.0
      %v7698 = vmax.f32 %v5904, 0.0
      %v7699 = vmax.f32 %v5969, 0.0
      %v7700 = vmax.f32 %v6034, 0.0
      %v7701 = vmax.f32 %v6099, 0.0
      %v7702 = vmax.f32 %v6164, 0.0
      %v7703 = vmax.f32 %v6229, 0.0
      %v7704 = vmax.f32 %v6294, 0.0
      %v7705 = vmax.f32 %v6359, 0.0
      %v7706 = vmax.f32 %v6424, 0.0
      %v7707 = vmax.f32 %v6489, 0.0
      %v7708 = vmax.f32 %v6554, 0.0
      %v7709 = vmax.f32 %v6619, 0.0
      %v7710 = vmax.f32 %v6684, 0.0
      %v7711 = vmax.f32 %v6749, 0.0
      %v7712 = vmax.f32 %v6814, 0.0
      %v7713 = vmax.f32 %v6879, 0.0
      %v7714 = vmax.f32 %v6944, 0.0
      %v7715 = vmax.f32 %v7009, 0.0
      %v7716 = vmax.f32 %v7074, 0.0
      %v7717 = vmax.f32 %v7139, 0.0
      %v7718 = vmax.f32 %v7204, 0.0
      %v7719 = vmax.f32 %v7269, 0.0
      %v7720 = vmax.f32 %v7334, 0.0
      %v7721 = vmax.f32 %v7399, 0.0
      %v7722 = vmax.f32 %v7464, 0.0
      %v7723 = vmax.f32 %v7529, 0.0
      %v7724 = vmax.f32 %v5517, 0.0
      %v7725 = vmax.f32 %v5582, 0.0
      %v7726 = vmax.f32 %v5647, 0.0
      %v7727 = vmax.f32 %v5712, 0.0
      %v7728 = vmax.f32 %v5777, 0.0
      %v7729 = vmax.f32 %v5842, 0.0
      %v7730 = vmax.f32 %v5907, 0.0
      %v7731 = vmax.f32 %v5972, 0.0
      %v7732 = vmax.f32 %v6037, 0.0
      %v7733 = vmax.f32 %v6102, 0.0
      %v7734 = vmax.f32 %v6167, 0.0
      %v7735 = vmax.f32 %v6232, 0.0
      %v7736 = vmax.f32 %v6297, 0.0
      %v7737 = vmax.f32 %v6362, 0.0
      %v7738 = vmax.f32 %v6427, 0.0
      %v7739 = vmax.f32 %v6492, 0.0
      %v7740 = vmax.f32 %v6557, 0.0
      %v7741 = vmax.f32 %v6622, 0.0
      %v7742 = vmax.f32 %v6687, 0.0
      %v7743 = vmax.f32 %v6752, 0.0
      %v7744 = vmax.f32 %v6817, 0.0
      %v7745 = vmax.f32 %v6882, 0.0
      %v7746 = vmax.f32 %v6947, 0.0
      %v7747 = vmax.f32 %v7012, 0.0
      %v7748 = vmax.f32 %v7077, 0.0
      %v7749 = vmax.f32 %v7142, 0.0
      %v7750 = vmax.f32 %v7207, 0.0
      %v7751 = vmax.f32 %v7272, 0.0
      %v7752 = vmax.f32 %v7337, 0.0
      %v7753 = vmax.f32 %v7402, 0.0
      %v7754 = vmax.f32 %v7467, 0.0
      %v7755 = vmax.f32 %v7532, 0.0
      %v7756 = vmax.f32 %v5520, 0.0
      %v7757 = vmax.f32 %v5585, 0.0
      %v7758 = vmax.f32 %v5650, 0.0
      %v7759 = vmax.f32 %v5715, 0.0
      %v7760 = vmax.f32 %v5780, 0.0
      %v7761 = vmax.f32 %v5845, 0.0
      %v7762 = vmax.f32 %v5910, 0.0
      %v7763 = vmax.f32 %v5975, 0.0
      %v7764 = vmax.f32 %v6040, 0.0
      %v7765 = vmax.f32 %v6105, 0.0
      %v7766 = vmax.f32 %v6170, 0.0
      %v7767 = vmax.f32 %v6235, 0.0
      %v7768 = vmax.f32 %v6300, 0.0
      %v7769 = vmax.f32 %v6365, 0.0
      %v7770 = vmax.f32 %v6430, 0.0
      %v7771 = vmax.f32 %v6495, 0.0
      %v7772 = vmax.f32 %v6560, 0.0
      %v7773 = vmax.f32 %v6625, 0.0
      %v7774 = vmax.f32 %v6690, 0.0
      %v7775 = vmax.f32 %v6755, 0.0
      %v7776 = vmax.f32 %v6820, 0.0
      %v7777 = vmax.f32 %v6885, 0.0
      %v7778 = vmax.f32 %v6950, 0.0
      %v7779 = vmax.f32 %v7015, 0.0
      %v7780 = vmax.f32 %v7080, 0.0
      %v7781 = vmax.f32 %v7145, 0.0
      %v7782 = vmax.f32 %v7210, 0.0
      %v7783 = vmax.f32 %v7275, 0.0
      %v7784 = vmax.f32 %v7340, 0.0
      %v7785 = vmax.f32 %v7405, 0.0
      %v7786 = vmax.f32 %v7470, 0.0
      %v7787 = vmax.f32 %v7535, 0.0
      %v7788 = vmax.f32 %v5523, 0.0
      %v7789 = vmax.f32 %v5588, 0.0
      %v7790 = vmax.f32 %v5653, 0.0
      %v7791 = vmax.f32 %v5718, 0.0
      %v7792 = vmax.f32 %v5783, 0.0
      %v7793 = vmax.f32 %v5848, 0.0
      %v7794 = vmax.f32 %v5913, 0.0
      %v7795 = vmax.f32 %v5978, 0.0
      %v7796 = vmax.f32 %v6043, 0.0
      %v7797 = vmax.f32 %v6108, 0.0
      %v7798 = vmax.f32 %v6173, 0.0
      %v7799 = vmax.f32 %v6238, 0.0
      %v7800 = vmax.f32 %v6303, 0.0
      %v7801 = vmax.f32 %v6368, 0.0
      %v7802 = vmax.f32 %v6433, 0.0
      %v7803 = vmax.f32 %v6498, 0.0
      %v7804 = vmax.f32 %v6563, 0.0
      %v7805 = vmax.f32 %v6628, 0.0
      %v7806 = vmax.f32 %v6693, 0.0
      %v7807 = vmax.f32 %v6758, 0.0
      %v7808 = vmax.f32 %v6823, 0.0
      %v7809 = vmax.f32 %v6888, 0.0
      %v7810 = vmax.f32 %v6953, 0.0
      %v7811 = vmax.f32 %v7018, 0.0
      %v7812 = vmax.f32 %v7083, 0.0
      %v7813 = vmax.f32 %v7148, 0.0
      %v7814 = vmax.f32 %v7213, 0.0
      %v7815 = vmax.f32 %v7278, 0.0
      %v7816 = vmax.f32 %v7343, 0.0
      %v7817 = vmax.f32 %v7408, 0.0
      %v7818 = vmax.f32 %v7473, 0.0
      %v7819 = vmax.f32 %v7538, 0.0
      %v7820 = vmax.f32 %v5526, 0.0
      %v7821 = vmax.f32 %v5591, 0.0
      %v7822 = vmax.f32 %v5656, 0.0
      %v7823 = vmax.f32 %v5721, 0.0
      %v7824 = vmax.f32 %v5786, 0.0
      %v7825 = vmax.f32 %v5851, 0.0
      %v7826 = vmax.f32 %v5916, 0.0
      %v7827 = vmax.f32 %v5981, 0.0
      %v7828 = vmax.f32 %v6046, 0.0
      %v7829 = vmax.f32 %v6111, 0.0
      %v7830 = vmax.f32 %v6176, 0.0
      %v7831 = vmax.f32 %v6241, 0.0
      %v7832 = vmax.f32 %v6306, 0.0
      %v7833 = vmax.f32 %v6371, 0.0
      %v7834 = vmax.f32 %v6436, 0.0
      %v7835 = vmax.f32 %v6501, 0.0
      %v7836 = vmax.f32 %v6566, 0.0
      %v7837 = vmax.f32 %v6631, 0.0
      %v7838 = vmax.f32 %v6696, 0.0
      %v7839 = vmax.f32 %v6761, 0.0
      %v7840 = vmax.f32 %v6826, 0.0
      %v7841 = vmax.f32 %v6891, 0.0
      %v7842 = vmax.f32 %v6956, 0.0
      %v7843 = vmax.f32 %v7021, 0.0
      %v7844 = vmax.f32 %v7086, 0.0
      %v7845 = vmax.f32 %v7151, 0.0
      %v7846 = vmax.f32 %v7216, 0.0
      %v7847 = vmax.f32 %v7281, 0.0
      %v7848 = vmax.f32 %v7346, 0.0
      %v7849 = vmax.f32 %v7411, 0.0
      %v7850 = vmax.f32 %v7476, 0.0
      %v7851 = vmax.f32 %v7541, 0.0
      %v7852 = vmax.f32 %v5529, 0.0
      %v7853 = vmax.f32 %v5594, 0.0
      %v7854 = vmax.f32 %v5659, 0.0
      %v7855 = vmax.f32 %v5724, 0.0
      %v7856 = vmax.f32 %v5789, 0.0
      %v7857 = vmax.f32 %v5854, 0.0
      %v7858 = vmax.f32 %v5919, 0.0
      %v7859 = vmax.f32 %v5984, 0.0
      %v7860 = vmax.f32 %v6049, 0.0
      %v7861 = vmax.f32 %v6114, 0.0
      %v7862 = vmax.f32 %v6179, 0.0
      %v7863 = vmax.f32 %v6244, 0.0
      %v7864 = vmax.f32 %v6309, 0.0
      %v7865 = vmax.f32 %v6374, 0.0
      %v7866 = vmax.f32 %v6439, 0.0
      %v7867 = vmax.f32 %v6504, 0.0
      %v7868 = vmax.f32 %v6569, 0.0
      %v7869 = vmax.f32 %v6634, 0.0
      %v7870 = vmax.f32 %v6699, 0.0
      %v7871 = vmax.f32 %v6764, 0.0
      %v7872 = vmax.f32 %v6829, 0.0
      %v7873 = vmax.f32 %v6894, 0.0
      %v7874 = vmax.f32 %v6959, 0.0
      %v7875 = vmax.f32 %v7024, 0.0
      %v7876 = vmax.f32 %v7089, 0.0
      %v7877 = vmax.f32 %v7154, 0.0
      %v7878 = vmax.f32 %v7219, 0.0
      %v7879 = vmax.f32 %v7284, 0.0
      %v7880 = vmax.f32 %v7349, 0.0
      %v7881 = vmax.f32 %v7414, 0.0
      %v7882 = vmax.f32 %v7479, 0.0
      %v7883 = vmax.f32 %v7544, 0.0
      %v7884 = vmax.f32 %v5532, 0.0
      %v7885 = vmax.f32 %v5597, 0.0
      %v7886 = vmax.f32 %v5662, 0.0
      %v7887 = vmax.f32 %v5727, 0.0
      %v7888 = vmax.f32 %v5792, 0.0
      %v7889 = vmax.f32 %v5857, 0.0
      %v7890 = vmax.f32 %v5922, 0.0
      %v7891 = vmax.f32 %v5987, 0.0
      %v7892 = vmax.f32 %v6052, 0.0
      %v7893 = vmax.f32 %v6117, 0.0
      %v7894 = vmax.f32 %v6182, 0.0
      %v7895 = vmax.f32 %v6247, 0.0
      %v7896 = vmax.f32 %v6312, 0.0
      %v7897 = vmax.f32 %v6377, 0.0
      %v7898 = vmax.f32 %v6442, 0.0
      %v7899 = vmax.f32 %v6507, 0.0
      %v7900 = vmax.f32 %v6572, 0.0
      %v7901 = vmax.f32 %v6637, 0.0
      %v7902 = vmax.f32 %v6702, 0.0
      %v7903 = vmax.f32 %v6767, 0.0
      %v7904 = vmax.f32 %v6832, 0.0
      %v7905 = vmax.f32 %v6897, 0.0
      %v7906 = vmax.f32 %v6962, 0.0
      %v7907 = vmax.f32 %v7027, 0.0
      %v7908 = vmax.f32 %v7092, 0.0
      %v7909 = vmax.f32 %v7157, 0.0
      %v7910 = vmax.f32 %v7222, 0.0
      %v7911 = vmax.f32 %v7287, 0.0
      %v7912 = vmax.f32 %v7352, 0.0
      %v7913 = vmax.f32 %v7417, 0.0
      %v7914 = vmax.f32 %v7482, 0.0
      %v7915 = vmax.f32 %v7547, 0.0
      %v7916 = vmax.f32 %v5535, 0.0
      %v7917 = vmax.f32 %v5600, 0.0
      %v7918 = vmax.f32 %v5665, 0.0
      %v7919 = vmax.f32 %v5730, 0.0
      %v7920 = vmax.f32 %v5795, 0.0
      %v7921 = vmax.f32 %v5860, 0.0
      %v7922 = vmax.f32 %v5925, 0.0
      %v7923 = vmax.f32 %v5990, 0.0
      %v7924 = vmax.f32 %v6055, 0.0
      %v7925 = vmax.f32 %v6120, 0.0
      %v7926 = vmax.f32 %v6185, 0.0
      %v7927 = vmax.f32 %v6250, 0.0
      %v7928 = vmax.f32 %v6315, 0.0
      %v7929 = vmax.f32 %v6380, 0.0
      %v7930 = vmax.f32 %v6445, 0.0
      %v7931 = vmax.f32 %v6510, 0.0
      %v7932 = vmax.f32 %v6575, 0.0
      %v7933 = vmax.f32 %v6640, 0.0
      %v7934 = vmax.f32 %v6705, 0.0
      %v7935 = vmax.f32 %v6770, 0.0
      %v7936 = vmax.f32 %v6835, 0.0
      %v7937 = vmax.f32 %v6900, 0.0
      %v7938 = vmax.f32 %v6965, 0.0
      %v7939 = vmax.f32 %v7030, 0.0
      %v7940 = vmax.f32 %v7095, 0.0
      %v7941 = vmax.f32 %v7160, 0.0
      %v7942 = vmax.f32 %v7225, 0.0
      %v7943 = vmax.f32 %v7290, 0.0
      %v7944 = vmax.f32 %v7355, 0.0
      %v7945 = vmax.f32 %v7420, 0.0
      %v7946 = vmax.f32 %v7485, 0.0
      %v7947 = vmax.f32 %v7550, 0.0
      %v7948 = vmax.f32 %v5538, 0.0
      %v7949 = vmax.f32 %v5603, 0.0
      %v7950 = vmax.f32 %v5668, 0.0
      %v7951 = vmax.f32 %v5733, 0.0
      %v7952 = vmax.f32 %v5798, 0.0
      %v7953 = vmax.f32 %v5863, 0.0
      %v7954 = vmax.f32 %v5928, 0.0
      %v7955 = vmax.f32 %v5993, 0.0
      %v7956 = vmax.f32 %v6058, 0.0
      %v7957 = vmax.f32 %v6123, 0.0
      %v7958 = vmax.f32 %v6188, 0.0
      %v7959 = vmax.f32 %v6253, 0.0
      %v7960 = vmax.f32 %v6318, 0.0
      %v7961 = vmax.f32 %v6383, 0.0
      %v7962 = vmax.f32 %v6448, 0.0
      %v7963 = vmax.f32 %v6513, 0.0
      %v7964 = vmax.f32 %v6578, 0.0
      %v7965 = vmax.f32 %v6643, 0.0
      %v7966 = vmax.f32 %v6708, 0.0
      %v7967 = vmax.f32 %v6773, 0.0
      %v7968 = vmax.f32 %v6838, 0.0
      %v7969 = vmax.f32 %v6903, 0.0
      %v7970 = vmax.f32 %v6968, 0.0
      %v7971 = vmax.f32 %v7033, 0.0
      %v7972 = vmax.f32 %v7098, 0.0
      %v7973 = vmax.f32 %v7163, 0.0
      %v7974 = vmax.f32 %v7228, 0.0
      %v7975 = vmax.f32 %v7293, 0.0
      %v7976 = vmax.f32 %v7358, 0.0
      %v7977 = vmax.f32 %v7423, 0.0
      %v7978 = vmax.f32 %v7488, 0.0
      %v7979 = vmax.f32 %v7553, 0.0
      %v7980 = vmax.f32 %v5541, 0.0
      %v7981 = vmax.f32 %v5606, 0.0
      %v7982 = vmax.f32 %v5671, 0.0
      %v7983 = vmax.f32 %v5736, 0.0
      %v7984 = vmax.f32 %v5801, 0.0
      %v7985 = vmax.f32 %v5866, 0.0
      %v7986 = vmax.f32 %v5931, 0.0
      %v7987 = vmax.f32 %v5996, 0.0
      %v7988 = vmax.f32 %v6061, 0.0
      %v7989 = vmax.f32 %v6126, 0.0
      %v7990 = vmax.f32 %v6191, 0.0
      %v7991 = vmax.f32 %v6256, 0.0
      %v7992 = vmax.f32 %v6321, 0.0
      %v7993 = vmax.f32 %v6386, 0.0
      %v7994 = vmax.f32 %v6451, 0.0
      %v7995 = vmax.f32 %v6516, 0.0
      %v7996 = vmax.f32 %v6581, 0.0
      %v7997 = vmax.f32 %v6646, 0.0
      %v7998 = vmax.f32 %v6711, 0.0
      %v7999 = vmax.f32 %v6776, 0.0
      %v8000 = vmax.f32 %v6841, 0.0
      %v8001 = vmax.f32 %v6906, 0.0
      %v8002 = vmax.f32 %v6971, 0.0
      %v8003 = vmax.f32 %v7036, 0.0
      %v8004 = vmax.f32 %v7101, 0.0
      %v8005 = vmax.f32 %v7166, 0.0
      %v8006 = vmax.f32 %v7231, 0.0
      %v8007 = vmax.f32 %v7296, 0.0
      %v8008 = vmax.f32 %v7361, 0.0
      %v8009 = vmax.f32 %v7426, 0.0
      %v8010 = vmax.f32 %v7491, 0.0
      %v8011 = vmax.f32 %v7556, 0.0
      %v8012 = vmax.f32 %v5544, 0.0
      %v8013 = vmax.f32 %v5609, 0.0
      %v8014 = vmax.f32 %v5674, 0.0
      %v8015 = vmax.f32 %v5739, 0.0
      %v8016 = vmax.f32 %v5804, 0.0
      %v8017 = vmax.f32 %v5869, 0.0
      %v8018 = vmax.f32 %v5934, 0.0
      %v8019 = vmax.f32 %v5999, 0.0
      %v8020 = vmax.f32 %v6064, 0.0
      %v8021 = vmax.f32 %v6129, 0.0
      %v8022 = vmax.f32 %v6194, 0.0
      %v8023 = vmax.f32 %v6259, 0.0
      %v8024 = vmax.f32 %v6324, 0.0
      %v8025 = vmax.f32 %v6389, 0.0
      %v8026 = vmax.f32 %v6454, 0.0
      %v8027 = vmax.f32 %v6519, 0.0
      %v8028 = vmax.f32 %v6584, 0.0
      %v8029 = vmax.f32 %v6649, 0.0
      %v8030 = vmax.f32 %v6714, 0.0
      %v8031 = vmax.f32 %v6779, 0.0
      %v8032 = vmax.f32 %v6844, 0.0
      %v8033 = vmax.f32 %v6909, 0.0
      %v8034 = vmax.f32 %v6974, 0.0
      %v8035 = vmax.f32 %v7039, 0.0
      %v8036 = vmax.f32 %v7104, 0.0
      %v8037 = vmax.f32 %v7169, 0.0
      %v8038 = vmax.f32 %v7234, 0.0
      %v8039 = vmax.f32 %v7299, 0.0
      %v8040 = vmax.f32 %v7364, 0.0
      %v8041 = vmax.f32 %v7429, 0.0
      %v8042 = vmax.f32 %v7494, 0.0
      %v8043 = vmax.f32 %v7559, 0.0
      %v8044 = vmax.f32 %v5547, 0.0
      %v8045 = vmax.f32 %v5612, 0.0
      %v8046 = vmax.f32 %v5677, 0.0
      %v8047 = vmax.f32 %v5742, 0.0
      %v8048 = vmax.f32 %v5807, 0.0
      %v8049 = vmax.f32 %v5872, 0.0
      %v8050 = vmax.f32 %v5937, 0.0
      %v8051 = vmax.f32 %v6002, 0.0
      %v8052 = vmax.f32 %v6067, 0.0
      %v8053 = vmax.f32 %v6132, 0.0
      %v8054 = vmax.f32 %v6197, 0.0
      %v8055 = vmax.f32 %v6262, 0.0
      %v8056 = vmax.f32 %v6327, 0.0
      %v8057 = vmax.f32 %v6392, 0.0
      %v8058 = vmax.f32 %v6457, 0.0
      %v8059 = vmax.f32 %v6522, 0.0
      %v8060 = vmax.f32 %v6587, 0.0
      %v8061 = vmax.f32 %v6652, 0.0
      %v8062 = vmax.f32 %v6717, 0.0
      %v8063 = vmax.f32 %v6782, 0.0
      %v8064 = vmax.f32 %v6847, 0.0
      %v8065 = vmax.f32 %v6912, 0.0
      %v8066 = vmax.f32 %v6977, 0.0
      %v8067 = vmax.f32 %v7042, 0.0
      %v8068 = vmax.f32 %v7107, 0.0
      %v8069 = vmax.f32 %v7172, 0.0
      %v8070 = vmax.f32 %v7237, 0.0
      %v8071 = vmax.f32 %v7302, 0.0
      %v8072 = vmax.f32 %v7367, 0.0
      %v8073 = vmax.f32 %v7432, 0.0
      %v8074 = vmax.f32 %v7497, 0.0
      %v8075 = vmax.f32 %v7562, 0.0
      %v8076 = vadd.f32 %v7564, %v7565
      %v8077 = vadd.f32 %v7596, %v7597
      %v8078 = vadd.f32 %v7628, %v7629
      %v8079 = vadd.f32 %v7660, %v7661
      %v8080 = vadd.f32 %v7692, %v7693
      %v8081 = vadd.f32 %v7724, %v7725
      %v8082 = vadd.f32 %v7756, %v7757
      %v8083 = vadd.f32 %v7788, %v7789
      %v8084 = vadd.f32 %v7820, %v7821
      %v8085 = vadd.f32 %v7852, %v7853
      %v8086 = vadd.f32 %v7884, %v7885
      %v8087 = vadd.f32 %v7916, %v7917
      %v8088 = vadd.f32 %v7948, %v7949
      %v8089 = vadd.f32 %v7980, %v7981
      %v8090 = vadd.f32 %v8012, %v8013
      %v8091 = vadd.f32 %v8044, %v8045
      %8092 = vadd.xlane.f32.xlu0 %v8076
      %v8093 = vpop.xlane.xlu0 %8092
      %8094 = vadd.xlane.f32.xlu0 %v8077
      %v8095 = vpop.xlane.xlu0 %8094
      %8096 = vadd.xlane.f32.xlu0 %v8078
      %v8097 = vpop.xlane.xlu0 %8096
      %8098 = vadd.xlane.f32.xlu0 %v8079
      %v8099 = vpop.xlane.xlu0 %8098
      %8100 = vadd.xlane.f32.xlu0 %v8080
      %v8101 = vpop.xlane.xlu0 %8100
      %8102 = vadd.xlane.f32.xlu0 %v8081
      %v8103 = vpop.xlane.xlu0 %8102
      %8104 = vadd.xlane.f32.xlu0 %v8082
      %v8105 = vpop.xlane.xlu0 %8104
      %8106 = vadd.xlane.f32.xlu0 %v8083
      %v8107 = vpop.xlane.xlu0 %8106
      %8108 = vadd.xlane.f32.xlu0 %v8084
      %v8109 = vpop.xlane.xlu0 %8108
      %8110 = vadd.xlane.f32.xlu0 %v8085
      %v8111 = vpop.xlane.xlu0 %8110
      %8112 = vadd.xlane.f32.xlu0 %v8086
      %v8113 = vpop.xlane.xlu0 %8112
      %8114 = vadd.xlane.f32.xlu0 %v8087
      %v8115 = vpop.xlane.xlu0 %8114
      %8116 = vadd.xlane.f32.xlu0 %v8088
      %v8117 = vpop.xlane.xlu0 %8116
      %8118 = vadd.xlane.f32.xlu0 %v8089
      %v8119 = vpop.xlane.xlu0 %8118
      %8120 = vadd.xlane.f32.xlu0 %v8090
      %v8121 = vpop.xlane.xlu0 %8120
      %8122 = vadd.xlane.f32.xlu0 %v8091
      %v8123 = vpop.xlane.xlu0 %8122
      %v8124 = vadd.f32 %v7566, %v7567
      %v8125 = vadd.f32 %v7598, %v7599
      %v8126 = vadd.f32 %v7630, %v7631
      %v8127 = vadd.f32 %v7662, %v7663
      %v8128 = vadd.f32 %v7694, %v7695
      %v8129 = vadd.f32 %v7726, %v7727
      %v8130 = vadd.f32 %v7758, %v7759
      %v8131 = vadd.f32 %v7790, %v7791
      %v8132 = vadd.f32 %v7822, %v7823
      %v8133 = vadd.f32 %v7854, %v7855
      %v8134 = vadd.f32 %v7886, %v7887
      %v8135 = vadd.f32 %v7918, %v7919
      %v8136 = vadd.f32 %v7950, %v7951
      %v8137 = vadd.f32 %v7982, %v7983
      %v8138 = vadd.f32 %v8014, %v8015
      %v8139 = vadd.f32 %v8046, %v8047
      %8140 = vadd.xlane.f32.xlu0 %v8124
      %v8141 = vpop.xlane.xlu0 %8140
      %8142 = vadd.xlane.f32.xlu0 %v8125
      %v8143 = vpop.xlane.xlu0 %8142
      %8144 = vadd.xlane.f32.xlu0 %v8126
      %v8145 = vpop.xlane.xlu0 %8144
      %8146 = vadd.xlane.f32.xlu0 %v8127
      %v8147 = vpop.xlane.xlu0 %8146
      %8148 = vadd.xlane.f32.xlu0 %v8128
      %v8149 = vpop.xlane.xlu0 %8148
      %8150 = vadd.xlane.f32.xlu0 %v8129
      %v8151 = vpop.xlane.xlu0 %8150
      %8152 = vadd.xlane.f32.xlu0 %v8130
      %v8153 = vpop.xlane.xlu0 %8152
      %8154 = vadd.xlane.f32.xlu0 %v8131
      %v8155 = vpop.xlane.xlu0 %8154
      %8156 = vadd.xlane.f32.xlu0 %v8132
      %v8157 = vpop.xlane.xlu0 %8156
      %8158 = vadd.xlane.f32.xlu0 %v8133
      %v8159 = vpop.xlane.xlu0 %8158
      %8160 = vadd.xlane.f32.xlu0 %v8134
      %v8161 = vpop.xlane.xlu0 %8160
      %8162 = vadd.xlane.f32.xlu0 %v8135
      %v8163 = vpop.xlane.xlu0 %8162
      %8164 = vadd.xlane.f32.xlu0 %v8136
      %v8165 = vpop.xlane.xlu0 %8164
      %8166 = vadd.xlane.f32.xlu0 %v8137
      %v8167 = vpop.xlane.xlu0 %8166
      %8168 = vadd.xlane.f32.xlu0 %v8138
      %v8169 = vpop.xlane.xlu0 %8168
      %8170 = vadd.xlane.f32.xlu0 %v8139
      %v8171 = vpop.xlane.xlu0 %8170
      %v8172 = vadd.f32 %v7568, %v7569
      %v8173 = vadd.f32 %v7600, %v7601
      %v8174 = vadd.f32 %v7632, %v7633
      %v8175 = vadd.f32 %v7664, %v7665
      %v8176 = vadd.f32 %v7696, %v7697
      %v8177 = vadd.f32 %v7728, %v7729
      %v8178 = vadd.f32 %v7760, %v7761
      %v8179 = vadd.f32 %v7792, %v7793
      %v8180 = vadd.f32 %v7824, %v7825
      %v8181 = vadd.f32 %v7856, %v7857
      %v8182 = vadd.f32 %v7888, %v7889
      %v8183 = vadd.f32 %v7920, %v7921
      %v8184 = vadd.f32 %v7952, %v7953
      %v8185 = vadd.f32 %v7984, %v7985
      %v8186 = vadd.f32 %v8016, %v8017
      %v8187 = vadd.f32 %v8048, %v8049
      %8188 = vadd.xlane.f32.xlu0 %v8172
      %v8189 = vpop.xlane.xlu0 %8188
      %8190 = vadd.xlane.f32.xlu0 %v8173
      %v8191 = vpop.xlane.xlu0 %8190
      %8192 = vadd.xlane.f32.xlu0 %v8174
      %v8193 = vpop.xlane.xlu0 %8192
      %8194 = vadd.xlane.f32.xlu0 %v8175
      %v8195 = vpop.xlane.xlu0 %8194
      %8196 = vadd.xlane.f32.xlu0 %v8176
      %v8197 = vpop.xlane.xlu0 %8196
      %8198 = vadd.xlane.f32.xlu0 %v8177
      %v8199 = vpop.xlane.xlu0 %8198
      %8200 = vadd.xlane.f32.xlu0 %v8178
      %v8201 = vpop.xlane.xlu0 %8200
      %8202 = vadd.xlane.f32.xlu0 %v8179
      %v8203 = vpop.xlane.xlu0 %8202
      %8204 = vadd.xlane.f32.xlu0 %v8180
      %v8205 = vpop.xlane.xlu0 %8204
      %8206 = vadd.xlane.f32.xlu0 %v8181
      %v8207 = vpop.xlane.xlu0 %8206
      %8208 = vadd.xlane.f32.xlu0 %v8182
      %v8209 = vpop.xlane.xlu0 %8208
      %8210 = vadd.xlane.f32.xlu0 %v8183
      %v8211 = vpop.xlane.xlu0 %8210
      %8212 = vadd.xlane.f32.xlu0 %v8184
      %v8213 = vpop.xlane.xlu0 %8212
      %8214 = vadd.xlane.f32.xlu0 %v8185
      %v8215 = vpop.xlane.xlu0 %8214
      %8216 = vadd.xlane.f32.xlu0 %v8186
      %v8217 = vpop.xlane.xlu0 %8216
      %8218 = vadd.xlane.f32.xlu0 %v8187
      %v8219 = vpop.xlane.xlu0 %8218
      %v8220 = vadd.f32 %v7570, %v7571
      %v8221 = vadd.f32 %v7602, %v7603
      %v8222 = vadd.f32 %v7634, %v7635
      %v8223 = vadd.f32 %v7666, %v7667
      %v8224 = vadd.f32 %v7698, %v7699
      %v8225 = vadd.f32 %v7730, %v7731
      %v8226 = vadd.f32 %v7762, %v7763
      %v8227 = vadd.f32 %v7794, %v7795
      %v8228 = vadd.f32 %v7826, %v7827
      %v8229 = vadd.f32 %v7858, %v7859
      %v8230 = vadd.f32 %v7890, %v7891
      %v8231 = vadd.f32 %v7922, %v7923
      %v8232 = vadd.f32 %v7954, %v7955
      %v8233 = vadd.f32 %v7986, %v7987
      %v8234 = vadd.f32 %v8018, %v8019
      %v8235 = vadd.f32 %v8050, %v8051
      %8236 = vadd.xlane.f32.xlu0 %v8220
      %v8237 = vpop.xlane.xlu0 %8236
      %8238 = vadd.xlane.f32.xlu0 %v8221
      %v8239 = vpop.xlane.xlu0 %8238
      %8240 = vadd.xlane.f32.xlu0 %v8222
      %v8241 = vpop.xlane.xlu0 %8240
      %8242 = vadd.xlane.f32.xlu0 %v8223
      %v8243 = vpop.xlane.xlu0 %8242
      %8244 = vadd.xlane.f32.xlu0 %v8224
      %v8245 = vpop.xlane.xlu0 %8244
      %8246 = vadd.xlane.f32.xlu0 %v8225
      %v8247 = vpop.xlane.xlu0 %8246
      %8248 = vadd.xlane.f32.xlu0 %v8226
      %v8249 = vpop.xlane.xlu0 %8248
      %8250 = vadd.xlane.f32.xlu0 %v8227
      %v8251 = vpop.xlane.xlu0 %8250
      %8252 = vadd.xlane.f32.xlu0 %v8228
      %v8253 = vpop.xlane.xlu0 %8252
      %8254 = vadd.xlane.f32.xlu0 %v8229
      %v8255 = vpop.xlane.xlu0 %8254
      %8256 = vadd.xlane.f32.xlu0 %v8230
      %v8257 = vpop.xlane.xlu0 %8256
      %8258 = vadd.xlane.f32.xlu0 %v8231
      %v8259 = vpop.xlane.xlu0 %8258
      %8260 = vadd.xlane.f32.xlu0 %v8232
      %v8261 = vpop.xlane.xlu0 %8260
      %8262 = vadd.xlane.f32.xlu0 %v8233
      %v8263 = vpop.xlane.xlu0 %8262
      %8264 = vadd.xlane.f32.xlu0 %v8234
      %v8265 = vpop.xlane.xlu0 %8264
      %8266 = vadd.xlane.f32.xlu0 %v8235
      %v8267 = vpop.xlane.xlu0 %8266
      %v8268 = vadd.f32 %v7572, %v7573
      %v8269 = vadd.f32 %v7604, %v7605
      %v8270 = vadd.f32 %v7636, %v7637
      %v8271 = vadd.f32 %v7668, %v7669
      %v8272 = vadd.f32 %v7700, %v7701
      %v8273 = vadd.f32 %v7732, %v7733
      %v8274 = vadd.f32 %v7764, %v7765
      %v8275 = vadd.f32 %v7796, %v7797
      %v8276 = vadd.f32 %v7828, %v7829
      %v8277 = vadd.f32 %v7860, %v7861
      %v8278 = vadd.f32 %v7892, %v7893
      %v8279 = vadd.f32 %v7924, %v7925
      %v8280 = vadd.f32 %v7956, %v7957
      %v8281 = vadd.f32 %v7988, %v7989
      %v8282 = vadd.f32 %v8020, %v8021
      %v8283 = vadd.f32 %v8052, %v8053
      %8284 = vadd.xlane.f32.xlu0 %v8268
      %v8285 = vpop.xlane.xlu0 %8284
      %8286 = vadd.xlane.f32.xlu0 %v8269
      %v8287 = vpop.xlane.xlu0 %8286
      %8288 = vadd.xlane.f32.xlu0 %v8270
      %v8289 = vpop.xlane.xlu0 %8288
      %8290 = vadd.xlane.f32.xlu0 %v8271
      %v8291 = vpop.xlane.xlu0 %8290
      %8292 = vadd.xlane.f32.xlu0 %v8272
      %v8293 = vpop.xlane.xlu0 %8292
      %8294 = vadd.xlane.f32.xlu0 %v8273
      %v8295 = vpop.xlane.xlu0 %8294
      %8296 = vadd.xlane.f32.xlu0 %v8274
      %v8297 = vpop.xlane.xlu0 %8296
      %8298 = vadd.xlane.f32.xlu0 %v8275
      %v8299 = vpop.xlane.xlu0 %8298
      %8300 = vadd.xlane.f32.xlu0 %v8276
      %v8301 = vpop.xlane.xlu0 %8300
      %8302 = vadd.xlane.f32.xlu0 %v8277
      %v8303 = vpop.xlane.xlu0 %8302
      %8304 = vadd.xlane.f32.xlu0 %v8278
      %v8305 = vpop.xlane.xlu0 %8304
      %8306 = vadd.xlane.f32.xlu0 %v8279
      %v8307 = vpop.xlane.xlu0 %8306
      %8308 = vadd.xlane.f32.xlu0 %v8280
      %v8309 = vpop.xlane.xlu0 %8308
      %8310 = vadd.xlane.f32.xlu0 %v8281
      %v8311 = vpop.xlane.xlu0 %8310
      %8312 = vadd.xlane.f32.xlu0 %v8282
      %v8313 = vpop.xlane.xlu0 %8312
      %8314 = vadd.xlane.f32.xlu0 %v8283
      %v8315 = vpop.xlane.xlu0 %8314
      %v8316 = vadd.f32 %v7574, %v7575
      %v8317 = vadd.f32 %v7606, %v7607
      %v8318 = vadd.f32 %v7638, %v7639
      %v8319 = vadd.f32 %v7670, %v7671
      %v8320 = vadd.f32 %v7702, %v7703
      %v8321 = vadd.f32 %v7734, %v7735
      %v8322 = vadd.f32 %v7766, %v7767
      %v8323 = vadd.f32 %v7798, %v7799
      %v8324 = vadd.f32 %v7830, %v7831
      %v8325 = vadd.f32 %v7862, %v7863
      %v8326 = vadd.f32 %v7894, %v7895
      %v8327 = vadd.f32 %v7926, %v7927
      %v8328 = vadd.f32 %v7958, %v7959
      %v8329 = vadd.f32 %v7990, %v7991
      %v8330 = vadd.f32 %v8022, %v8023
      %v8331 = vadd.f32 %v8054, %v8055
      %8332 = vadd.xlane.f32.xlu0 %v8316
      %v8333 = vpop.xlane.xlu0 %8332
      %8334 = vadd.xlane.f32.xlu0 %v8317
      %v8335 = vpop.xlane.xlu0 %8334
      %8336 = vadd.xlane.f32.xlu0 %v8318
      %v8337 = vpop.xlane.xlu0 %8336
      %8338 = vadd.xlane.f32.xlu0 %v8319
      %v8339 = vpop.xlane.xlu0 %8338
      %8340 = vadd.xlane.f32.xlu0 %v8320
      %v8341 = vpop.xlane.xlu0 %8340
      %8342 = vadd.xlane.f32.xlu0 %v8321
      %v8343 = vpop.xlane.xlu0 %8342
      %8344 = vadd.xlane.f32.xlu0 %v8322
      %v8345 = vpop.xlane.xlu0 %8344
      %8346 = vadd.xlane.f32.xlu0 %v8323
      %v8347 = vpop.xlane.xlu0 %8346
      %8348 = vadd.xlane.f32.xlu0 %v8324
      %v8349 = vpop.xlane.xlu0 %8348
      %8350 = vadd.xlane.f32.xlu0 %v8325
      %v8351 = vpop.xlane.xlu0 %8350
      %8352 = vadd.xlane.f32.xlu0 %v8326
      %v8353 = vpop.xlane.xlu0 %8352
      %8354 = vadd.xlane.f32.xlu0 %v8327
      %v8355 = vpop.xlane.xlu0 %8354
      %8356 = vadd.xlane.f32.xlu0 %v8328
      %v8357 = vpop.xlane.xlu0 %8356
      %8358 = vadd.xlane.f32.xlu0 %v8329
      %v8359 = vpop.xlane.xlu0 %8358
      %8360 = vadd.xlane.f32.xlu0 %v8330
      %v8361 = vpop.xlane.xlu0 %8360
      %8362 = vadd.xlane.f32.xlu0 %v8331
      %v8363 = vpop.xlane.xlu0 %8362
      %v8364 = vadd.f32 %v7576, %v7577
      %v8365 = vadd.f32 %v7608, %v7609
      %v8366 = vadd.f32 %v7640, %v7641
      %v8367 = vadd.f32 %v7672, %v7673
      %v8368 = vadd.f32 %v7704, %v7705
      %v8369 = vadd.f32 %v7736, %v7737
      %v8370 = vadd.f32 %v7768, %v7769
      %v8371 = vadd.f32 %v7800, %v7801
      %v8372 = vadd.f32 %v7832, %v7833
      %v8373 = vadd.f32 %v7864, %v7865
      %v8374 = vadd.f32 %v7896, %v7897
      %v8375 = vadd.f32 %v7928, %v7929
      %v8376 = vadd.f32 %v7960, %v7961
      %v8377 = vadd.f32 %v7992, %v7993
      %v8378 = vadd.f32 %v8024, %v8025
      %v8379 = vadd.f32 %v8056, %v8057
      %8380 = vadd.xlane.f32.xlu0 %v8364
      %v8381 = vpop.xlane.xlu0 %8380
      %8382 = vadd.xlane.f32.xlu0 %v8365
      %v8383 = vpop.xlane.xlu0 %8382
      %8384 = vadd.xlane.f32.xlu0 %v8366
      %v8385 = vpop.xlane.xlu0 %8384
      %8386 = vadd.xlane.f32.xlu0 %v8367
      %v8387 = vpop.xlane.xlu0 %8386
      %8388 = vadd.xlane.f32.xlu0 %v8368
      %v8389 = vpop.xlane.xlu0 %8388
      %8390 = vadd.xlane.f32.xlu0 %v8369
      %v8391 = vpop.xlane.xlu0 %8390
      %8392 = vadd.xlane.f32.xlu0 %v8370
      %v8393 = vpop.xlane.xlu0 %8392
      %8394 = vadd.xlane.f32.xlu0 %v8371
      %v8395 = vpop.xlane.xlu0 %8394
      %8396 = vadd.xlane.f32.xlu0 %v8372
      %v8397 = vpop.xlane.xlu0 %8396
      %8398 = vadd.xlane.f32.xlu0 %v8373
      %v8399 = vpop.xlane.xlu0 %8398
      %8400 = vadd.xlane.f32.xlu0 %v8374
      %v8401 = vpop.xlane.xlu0 %8400
      %8402 = vadd.xlane.f32.xlu0 %v8375
      %v8403 = vpop.xlane.xlu0 %8402
      %8404 = vadd.xlane.f32.xlu0 %v8376
      %v8405 = vpop.xlane.xlu0 %8404
      %8406 = vadd.xlane.f32.xlu0 %v8377
      %v8407 = vpop.xlane.xlu0 %8406
      %8408 = vadd.xlane.f32.xlu0 %v8378
      %v8409 = vpop.xlane.xlu0 %8408
      %8410 = vadd.xlane.f32.xlu0 %v8379
      %v8411 = vpop.xlane.xlu0 %8410
      %v8412 = vadd.f32 %v7578, %v7579
      %v8413 = vadd.f32 %v7610, %v7611
      %v8414 = vadd.f32 %v7642, %v7643
      %v8415 = vadd.f32 %v7674, %v7675
      %v8416 = vadd.f32 %v7706, %v7707
      %v8417 = vadd.f32 %v7738, %v7739
      %v8418 = vadd.f32 %v7770, %v7771
      %v8419 = vadd.f32 %v7802, %v7803
      %v8420 = vadd.f32 %v7834, %v7835
      %v8421 = vadd.f32 %v7866, %v7867
      %v8422 = vadd.f32 %v7898, %v7899
      %v8423 = vadd.f32 %v7930, %v7931
      %v8424 = vadd.f32 %v7962, %v7963
      %v8425 = vadd.f32 %v7994, %v7995
      %v8426 = vadd.f32 %v8026, %v8027
      %v8427 = vadd.f32 %v8058, %v8059
      %8428 = vadd.xlane.f32.xlu0 %v8412
      %v8429 = vpop.xlane.xlu0 %8428
      %8430 = vadd.xlane.f32.xlu0 %v8413
      %v8431 = vpop.xlane.xlu0 %8430
      %8432 = vadd.xlane.f32.xlu0 %v8414
      %v8433 = vpop.xlane.xlu0 %8432
      %8434 = vadd.xlane.f32.xlu0 %v8415
      %v8435 = vpop.xlane.xlu0 %8434
      %8436 = vadd.xlane.f32.xlu0 %v8416
      %v8437 = vpop.xlane.xlu0 %8436
      %8438 = vadd.xlane.f32.xlu0 %v8417
      %v8439 = vpop.xlane.xlu0 %8438
      %8440 = vadd.xlane.f32.xlu0 %v8418
      %v8441 = vpop.xlane.xlu0 %8440
      %8442 = vadd.xlane.f32.xlu0 %v8419
      %v8443 = vpop.xlane.xlu0 %8442
      %8444 = vadd.xlane.f32.xlu0 %v8420
      %v8445 = vpop.xlane.xlu0 %8444
      %8446 = vadd.xlane.f32.xlu0 %v8421
      %v8447 = vpop.xlane.xlu0 %8446
      %8448 = vadd.xlane.f32.xlu0 %v8422
      %v8449 = vpop.xlane.xlu0 %8448
      %8450 = vadd.xlane.f32.xlu0 %v8423
      %v8451 = vpop.xlane.xlu0 %8450
      %8452 = vadd.xlane.f32.xlu0 %v8424
      %v8453 = vpop.xlane.xlu0 %8452
      %8454 = vadd.xlane.f32.xlu0 %v8425
      %v8455 = vpop.xlane.xlu0 %8454
      %8456 = vadd.xlane.f32.xlu0 %v8426
      %v8457 = vpop.xlane.xlu0 %8456
      %8458 = vadd.xlane.f32.xlu0 %v8427
      %v8459 = vpop.xlane.xlu0 %8458
      %v8460 = vadd.f32 %v7580, %v7581
      %v8461 = vadd.f32 %v7612, %v7613
      %v8462 = vadd.f32 %v7644, %v7645
      %v8463 = vadd.f32 %v7676, %v7677
      %v8464 = vadd.f32 %v7708, %v7709
      %v8465 = vadd.f32 %v7740, %v7741
      %v8466 = vadd.f32 %v7772, %v7773
      %v8467 = vadd.f32 %v7804, %v7805
      %v8468 = vadd.f32 %v7836, %v7837
      %v8469 = vadd.f32 %v7868, %v7869
      %v8470 = vadd.f32 %v7900, %v7901
      %v8471 = vadd.f32 %v7932, %v7933
      %v8472 = vadd.f32 %v7964, %v7965
      %v8473 = vadd.f32 %v7996, %v7997
      %v8474 = vadd.f32 %v8028, %v8029
      %v8475 = vadd.f32 %v8060, %v8061
      %8476 = vadd.xlane.f32.xlu0 %v8460
      %v8477 = vpop.xlane.xlu0 %8476
      %8478 = vadd.xlane.f32.xlu0 %v8461
      %v8479 = vpop.xlane.xlu0 %8478
      %8480 = vadd.xlane.f32.xlu0 %v8462
      %v8481 = vpop.xlane.xlu0 %8480
      %8482 = vadd.xlane.f32.xlu0 %v8463
      %v8483 = vpop.xlane.xlu0 %8482
      %8484 = vadd.xlane.f32.xlu0 %v8464
      %v8485 = vpop.xlane.xlu0 %8484
      %8486 = vadd.xlane.f32.xlu0 %v8465
      %v8487 = vpop.xlane.xlu0 %8486
      %8488 = vadd.xlane.f32.xlu0 %v8466
      %v8489 = vpop.xlane.xlu0 %8488
      %8490 = vadd.xlane.f32.xlu0 %v8467
      %v8491 = vpop.xlane.xlu0 %8490
      %8492 = vadd.xlane.f32.xlu0 %v8468
      %v8493 = vpop.xlane.xlu0 %8492
      %8494 = vadd.xlane.f32.xlu0 %v8469
      %v8495 = vpop.xlane.xlu0 %8494
      %8496 = vadd.xlane.f32.xlu0 %v8470
      %v8497 = vpop.xlane.xlu0 %8496
      %8498 = vadd.xlane.f32.xlu0 %v8471
      %v8499 = vpop.xlane.xlu0 %8498
      %8500 = vadd.xlane.f32.xlu0 %v8472
      %v8501 = vpop.xlane.xlu0 %8500
      %8502 = vadd.xlane.f32.xlu0 %v8473
      %v8503 = vpop.xlane.xlu0 %8502
      %8504 = vadd.xlane.f32.xlu0 %v8474
      %v8505 = vpop.xlane.xlu0 %8504
      %8506 = vadd.xlane.f32.xlu0 %v8475
      %v8507 = vpop.xlane.xlu0 %8506
      %v8508 = vadd.f32 %v7582, %v7583
      %v8509 = vadd.f32 %v7614, %v7615
      %v8510 = vadd.f32 %v7646, %v7647
      %v8511 = vadd.f32 %v7678, %v7679
      %v8512 = vadd.f32 %v7710, %v7711
      %v8513 = vadd.f32 %v7742, %v7743
      %v8514 = vadd.f32 %v7774, %v7775
      %v8515 = vadd.f32 %v7806, %v7807
      %v8516 = vadd.f32 %v7838, %v7839
      %v8517 = vadd.f32 %v7870, %v7871
      %v8518 = vadd.f32 %v7902, %v7903
      %v8519 = vadd.f32 %v7934, %v7935
      %v8520 = vadd.f32 %v7966, %v7967
      %v8521 = vadd.f32 %v7998, %v7999
      %v8522 = vadd.f32 %v8030, %v8031
      %v8523 = vadd.f32 %v8062, %v8063
      %8524 = vadd.xlane.f32.xlu0 %v8508
      %v8525 = vpop.xlane.xlu0 %8524
      %8526 = vadd.xlane.f32.xlu0 %v8509
      %v8527 = vpop.xlane.xlu0 %8526
      %8528 = vadd.xlane.f32.xlu0 %v8510
      %v8529 = vpop.xlane.xlu0 %8528
      %8530 = vadd.xlane.f32.xlu0 %v8511
      %v8531 = vpop.xlane.xlu0 %8530
      %8532 = vadd.xlane.f32.xlu0 %v8512
      %v8533 = vpop.xlane.xlu0 %8532
      %8534 = vadd.xlane.f32.xlu0 %v8513
      %v8535 = vpop.xlane.xlu0 %8534
      %8536 = vadd.xlane.f32.xlu0 %v8514
      %v8537 = vpop.xlane.xlu0 %8536
      %8538 = vadd.xlane.f32.xlu0 %v8515
      %v8539 = vpop.xlane.xlu0 %8538
      %8540 = vadd.xlane.f32.xlu0 %v8516
      %v8541 = vpop.xlane.xlu0 %8540
      %8542 = vadd.xlane.f32.xlu0 %v8517
      %v8543 = vpop.xlane.xlu0 %8542
      %8544 = vadd.xlane.f32.xlu0 %v8518
      %v8545 = vpop.xlane.xlu0 %8544
      %8546 = vadd.xlane.f32.xlu0 %v8519
      %v8547 = vpop.xlane.xlu0 %8546
      %8548 = vadd.xlane.f32.xlu0 %v8520
      %v8549 = vpop.xlane.xlu0 %8548
      %8550 = vadd.xlane.f32.xlu0 %v8521
      %v8551 = vpop.xlane.xlu0 %8550
      %8552 = vadd.xlane.f32.xlu0 %v8522
      %v8553 = vpop.xlane.xlu0 %8552
      %8554 = vadd.xlane.f32.xlu0 %v8523
      %v8555 = vpop.xlane.xlu0 %8554
      %v8556 = vadd.f32 %v7584, %v7585
      %v8557 = vadd.f32 %v7616, %v7617
      %v8558 = vadd.f32 %v7648, %v7649
      %v8559 = vadd.f32 %v7680, %v7681
      %v8560 = vadd.f32 %v7712, %v7713
      %v8561 = vadd.f32 %v7744, %v7745
      %v8562 = vadd.f32 %v7776, %v7777
      %v8563 = vadd.f32 %v7808, %v7809
      %v8564 = vadd.f32 %v7840, %v7841
      %v8565 = vadd.f32 %v7872, %v7873
      %v8566 = vadd.f32 %v7904, %v7905
      %v8567 = vadd.f32 %v7936, %v7937
      %v8568 = vadd.f32 %v7968, %v7969
      %v8569 = vadd.f32 %v8000, %v8001
      %v8570 = vadd.f32 %v8032, %v8033
      %v8571 = vadd.f32 %v8064, %v8065
      %8572 = vadd.xlane.f32.xlu0 %v8556
      %v8573 = vpop.xlane.xlu0 %8572
      %8574 = vadd.xlane.f32.xlu0 %v8557
      %v8575 = vpop.xlane.xlu0 %8574
      %8576 = vadd.xlane.f32.xlu0 %v8558
      %v8577 = vpop.xlane.xlu0 %8576
      %8578 = vadd.xlane.f32.xlu0 %v8559
      %v8579 = vpop.xlane.xlu0 %8578
      %8580 = vadd.xlane.f32.xlu0 %v8560
      %v8581 = vpop.xlane.xlu0 %8580
      %8582 = vadd.xlane.f32.xlu0 %v8561
      %v8583 = vpop.xlane.xlu0 %8582
      %8584 = vadd.xlane.f32.xlu0 %v8562
      %v8585 = vpop.xlane.xlu0 %8584
      %8586 = vadd.xlane.f32.xlu0 %v8563
      %v8587 = vpop.xlane.xlu0 %8586
      %8588 = vadd.xlane.f32.xlu0 %v8564
      %v8589 = vpop.xlane.xlu0 %8588
      %8590 = vadd.xlane.f32.xlu0 %v8565
      %v8591 = vpop.xlane.xlu0 %8590
      %8592 = vadd.xlane.f32.xlu0 %v8566
      %v8593 = vpop.xlane.xlu0 %8592
      %8594 = vadd.xlane.f32.xlu0 %v8567
      %v8595 = vpop.xlane.xlu0 %8594
      %8596 = vadd.xlane.f32.xlu0 %v8568
      %v8597 = vpop.xlane.xlu0 %8596
      %8598 = vadd.xlane.f32.xlu0 %v8569
      %v8599 = vpop.xlane.xlu0 %8598
      %8600 = vadd.xlane.f32.xlu0 %v8570
      %v8601 = vpop.xlane.xlu0 %8600
      %8602 = vadd.xlane.f32.xlu0 %v8571
      %v8603 = vpop.xlane.xlu0 %8602
      %v8604 = vadd.f32 %v7586, %v7587
      %v8605 = vadd.f32 %v7618, %v7619
      %v8606 = vadd.f32 %v7650, %v7651
      %v8607 = vadd.f32 %v7682, %v7683
      %v8608 = vadd.f32 %v7714, %v7715
      %v8609 = vadd.f32 %v7746, %v7747
      %v8610 = vadd.f32 %v7778, %v7779
      %v8611 = vadd.f32 %v7810, %v7811
      %v8612 = vadd.f32 %v7842, %v7843
      %v8613 = vadd.f32 %v7874, %v7875
      %v8614 = vadd.f32 %v7906, %v7907
      %v8615 = vadd.f32 %v7938, %v7939
      %v8616 = vadd.f32 %v7970, %v7971
      %v8617 = vadd.f32 %v8002, %v8003
      %v8618 = vadd.f32 %v8034, %v8035
      %v8619 = vadd.f32 %v8066, %v8067
      %8620 = vadd.xlane.f32.xlu0 %v8604
      %v8621 = vpop.xlane.xlu0 %8620
      %8622 = vadd.xlane.f32.xlu0 %v8605
      %v8623 = vpop.xlane.xlu0 %8622
      %8624 = vadd.xlane.f32.xlu0 %v8606
      %v8625 = vpop.xlane.xlu0 %8624
      %8626 = vadd.xlane.f32.xlu0 %v8607
      %v8627 = vpop.xlane.xlu0 %8626
      %8628 = vadd.xlane.f32.xlu0 %v8608
      %v8629 = vpop.xlane.xlu0 %8628
      %8630 = vadd.xlane.f32.xlu0 %v8609
      %v8631 = vpop.xlane.xlu0 %8630
      %8632 = vadd.xlane.f32.xlu0 %v8610
      %v8633 = vpop.xlane.xlu0 %8632
      %8634 = vadd.xlane.f32.xlu0 %v8611
      %v8635 = vpop.xlane.xlu0 %8634
      %8636 = vadd.xlane.f32.xlu0 %v8612
      %v8637 = vpop.xlane.xlu0 %8636
      %8638 = vadd.xlane.f32.xlu0 %v8613
      %v8639 = vpop.xlane.xlu0 %8638
      %8640 = vadd.xlane.f32.xlu0 %v8614
      %v8641 = vpop.xlane.xlu0 %8640
      %8642 = vadd.xlane.f32.xlu0 %v8615
      %v8643 = vpop.xlane.xlu0 %8642
      %8644 = vadd.xlane.f32.xlu0 %v8616
      %v8645 = vpop.xlane.xlu0 %8644
      %8646 = vadd.xlane.f32.xlu0 %v8617
      %v8647 = vpop.xlane.xlu0 %8646
      %8648 = vadd.xlane.f32.xlu0 %v8618
      %v8649 = vpop.xlane.xlu0 %8648
      %8650 = vadd.xlane.f32.xlu0 %v8619
      %v8651 = vpop.xlane.xlu0 %8650
      %v8652 = vadd.f32 %v7588, %v7589
      %v8653 = vadd.f32 %v7620, %v7621
      %v8654 = vadd.f32 %v7652, %v7653
      %v8655 = vadd.f32 %v7684, %v7685
      %v8656 = vadd.f32 %v7716, %v7717
      %v8657 = vadd.f32 %v7748, %v7749
      %v8658 = vadd.f32 %v7780, %v7781
      %v8659 = vadd.f32 %v7812, %v7813
      %v8660 = vadd.f32 %v7844, %v7845
      %v8661 = vadd.f32 %v7876, %v7877
      %v8662 = vadd.f32 %v7908, %v7909
      %v8663 = vadd.f32 %v7940, %v7941
      %v8664 = vadd.f32 %v7972, %v7973
      %v8665 = vadd.f32 %v8004, %v8005
      %v8666 = vadd.f32 %v8036, %v8037
      %v8667 = vadd.f32 %v8068, %v8069
      %8668 = vadd.xlane.f32.xlu0 %v8652
      %v8669 = vpop.xlane.xlu0 %8668
      %8670 = vadd.xlane.f32.xlu0 %v8653
      %v8671 = vpop.xlane.xlu0 %8670
      %8672 = vadd.xlane.f32.xlu0 %v8654
      %v8673 = vpop.xlane.xlu0 %8672
      %8674 = vadd.xlane.f32.xlu0 %v8655
      %v8675 = vpop.xlane.xlu0 %8674
      %8676 = vadd.xlane.f32.xlu0 %v8656
      %v8677 = vpop.xlane.xlu0 %8676
      %8678 = vadd.xlane.f32.xlu0 %v8657
      %v8679 = vpop.xlane.xlu0 %8678
      %8680 = vadd.xlane.f32.xlu0 %v8658
      %v8681 = vpop.xlane.xlu0 %8680
      %8682 = vadd.xlane.f32.xlu0 %v8659
      %v8683 = vpop.xlane.xlu0 %8682
      %8684 = vadd.xlane.f32.xlu0 %v8660
      %v8685 = vpop.xlane.xlu0 %8684
      %8686 = vadd.xlane.f32.xlu0 %v8661
      %v8687 = vpop.xlane.xlu0 %8686
      %8688 = vadd.xlane.f32.xlu0 %v8662
      %v8689 = vpop.xlane.xlu0 %8688
      %8690 = vadd.xlane.f32.xlu0 %v8663
      %v8691 = vpop.xlane.xlu0 %8690
      %8692 = vadd.xlane.f32.xlu0 %v8664
      %v8693 = vpop.xlane.xlu0 %8692
      %8694 = vadd.xlane.f32.xlu0 %v8665
      %v8695 = vpop.xlane.xlu0 %8694
      %8696 = vadd.xlane.f32.xlu0 %v8666
      %v8697 = vpop.xlane.xlu0 %8696
      %8698 = vadd.xlane.f32.xlu0 %v8667
      %v8699 = vpop.xlane.xlu0 %8698
      %v8700 = vadd.f32 %v7590, %v7591
      %v8701 = vadd.f32 %v7622, %v7623
      %v8702 = vadd.f32 %v7654, %v7655
      %v8703 = vadd.f32 %v7686, %v7687
      %v8704 = vadd.f32 %v7718, %v7719
      %v8705 = vadd.f32 %v7750, %v7751
      %v8706 = vadd.f32 %v7782, %v7783
      %v8707 = vadd.f32 %v7814, %v7815
      %v8708 = vadd.f32 %v7846, %v7847
      %v8709 = vadd.f32 %v7878, %v7879
      %v8710 = vadd.f32 %v7910, %v7911
      %v8711 = vadd.f32 %v7942, %v7943
      %v8712 = vadd.f32 %v7974, %v7975
      %v8713 = vadd.f32 %v8006, %v8007
      %v8714 = vadd.f32 %v8038, %v8039
      %v8715 = vadd.f32 %v8070, %v8071
      %8716 = vadd.xlane.f32.xlu0 %v8700
      %v8717 = vpop.xlane.xlu0 %8716
      %8718 = vadd.xlane.f32.xlu0 %v8701
      %v8719 = vpop.xlane.xlu0 %8718
      %8720 = vadd.xlane.f32.xlu0 %v8702
      %v8721 = vpop.xlane.xlu0 %8720
      %8722 = vadd.xlane.f32.xlu0 %v8703
      %v8723 = vpop.xlane.xlu0 %8722
      %8724 = vadd.xlane.f32.xlu0 %v8704
      %v8725 = vpop.xlane.xlu0 %8724
      %8726 = vadd.xlane.f32.xlu0 %v8705
      %v8727 = vpop.xlane.xlu0 %8726
      %8728 = vadd.xlane.f32.xlu0 %v8706
      %v8729 = vpop.xlane.xlu0 %8728
      %8730 = vadd.xlane.f32.xlu0 %v8707
      %v8731 = vpop.xlane.xlu0 %8730
      %8732 = vadd.xlane.f32.xlu0 %v8708
      %v8733 = vpop.xlane.xlu0 %8732
      %8734 = vadd.xlane.f32.xlu0 %v8709
      %v8735 = vpop.xlane.xlu0 %8734
      %8736 = vadd.xlane.f32.xlu0 %v8710
      %v8737 = vpop.xlane.xlu0 %8736
      %8738 = vadd.xlane.f32.xlu0 %v8711
      %v8739 = vpop.xlane.xlu0 %8738
      %8740 = vadd.xlane.f32.xlu0 %v8712
      %v8741 = vpop.xlane.xlu0 %8740
      %8742 = vadd.xlane.f32.xlu0 %v8713
      %v8743 = vpop.xlane.xlu0 %8742
      %8744 = vadd.xlane.f32.xlu0 %v8714
      %v8745 = vpop.xlane.xlu0 %8744
      %8746 = vadd.xlane.f32.xlu0 %v8715
      %v8747 = vpop.xlane.xlu0 %8746
      %v8748 = vadd.f32 %v7592, %v7593
      %v8749 = vadd.f32 %v7624, %v7625
      %v8750 = vadd.f32 %v7656, %v7657
      %v8751 = vadd.f32 %v7688, %v7689
      %v8752 = vadd.f32 %v7720, %v7721
      %v8753 = vadd.f32 %v7752, %v7753
      %v8754 = vadd.f32 %v7784, %v7785
      %v8755 = vadd.f32 %v7816, %v7817
      %v8756 = vadd.f32 %v7848, %v7849
      %v8757 = vadd.f32 %v7880, %v7881
      %v8758 = vadd.f32 %v7912, %v7913
      %v8759 = vadd.f32 %v7944, %v7945
      %v8760 = vadd.f32 %v7976, %v7977
      %v8761 = vadd.f32 %v8008, %v8009
      %v8762 = vadd.f32 %v8040, %v8041
      %v8763 = vadd.f32 %v8072, %v8073
      %8764 = vadd.xlane.f32.xlu0 %v8748
      %v8765 = vpop.xlane.xlu0 %8764
      %8766 = vadd.xlane.f32.xlu0 %v8749
      %v8767 = vpop.xlane.xlu0 %8766
      %8768 = vadd.xlane.f32.xlu0 %v8750
      %v8769 = vpop.xlane.xlu0 %8768
      %8770 = vadd.xlane.f32.xlu0 %v8751
      %v8771 = vpop.xlane.xlu0 %8770
      %8772 = vadd.xlane.f32.xlu0 %v8752
      %v8773 = vpop.xlane.xlu0 %8772
      %8774 = vadd.xlane.f32.xlu0 %v8753
      %v8775 = vpop.xlane.xlu0 %8774
      %8776 = vadd.xlane.f32.xlu0 %v8754
      %v8777 = vpop.xlane.xlu0 %8776
      %8778 = vadd.xlane.f32.xlu0 %v8755
      %v8779 = vpop.xlane.xlu0 %8778
      %8780 = vadd.xlane.f32.xlu0 %v8756
      %v8781 = vpop.xlane.xlu0 %8780
      %8782 = vadd.xlane.f32.xlu0 %v8757
      %v8783 = vpop.xlane.xlu0 %8782
      %8784 = vadd.xlane.f32.xlu0 %v8758
      %v8785 = vpop.xlane.xlu0 %8784
      %8786 = vadd.xlane.f32.xlu0 %v8759
      %v8787 = vpop.xlane.xlu0 %8786
      %8788 = vadd.xlane.f32.xlu0 %v8760
      %v8789 = vpop.xlane.xlu0 %8788
      %8790 = vadd.xlane.f32.xlu0 %v8761
      %v8791 = vpop.xlane.xlu0 %8790
      %8792 = vadd.xlane.f32.xlu0 %v8762
      %v8793 = vpop.xlane.xlu0 %8792
      %8794 = vadd.xlane.f32.xlu0 %v8763
      %v8795 = vpop.xlane.xlu0 %8794
      %v8796 = vadd.f32 %v7594, %v7595
      %v8797 = vadd.f32 %v7626, %v7627
      %v8798 = vadd.f32 %v7658, %v7659
      %v8799 = vadd.f32 %v7690, %v7691
      %v8800 = vadd.f32 %v7722, %v7723
      %v8801 = vadd.f32 %v7754, %v7755
      %v8802 = vadd.f32 %v7786, %v7787
      %v8803 = vadd.f32 %v7818, %v7819
      %v8804 = vadd.f32 %v7850, %v7851
      %v8805 = vadd.f32 %v7882, %v7883
      %v8806 = vadd.f32 %v7914, %v7915
      %v8807 = vadd.f32 %v7946, %v7947
      %v8808 = vadd.f32 %v7978, %v7979
      %v8809 = vadd.f32 %v8010, %v8011
      %v8810 = vadd.f32 %v8042, %v8043
      %v8811 = vadd.f32 %v8074, %v8075
      %8812 = vadd.xlane.f32.xlu0 %v8796
      %v8813 = vpop.xlane.xlu0 %8812
      %8814 = vadd.xlane.f32.xlu0 %v8797
      %v8815 = vpop.xlane.xlu0 %8814
      %8816 = vadd.xlane.f32.xlu0 %v8798
      %v8817 = vpop.xlane.xlu0 %8816
      %8818 = vadd.xlane.f32.xlu0 %v8799
      %v8819 = vpop.xlane.xlu0 %8818
      %8820 = vadd.xlane.f32.xlu0 %v8800
      %v8821 = vpop.xlane.xlu0 %8820
      %8822 = vadd.xlane.f32.xlu0 %v8801
      %v8823 = vpop.xlane.xlu0 %8822
      %8824 = vadd.xlane.f32.xlu0 %v8802
      %v8825 = vpop.xlane.xlu0 %8824
      %8826 = vadd.xlane.f32.xlu0 %v8803
      %v8827 = vpop.xlane.xlu0 %8826
      %8828 = vadd.xlane.f32.xlu0 %v8804
      %v8829 = vpop.xlane.xlu0 %8828
      %8830 = vadd.xlane.f32.xlu0 %v8805
      %v8831 = vpop.xlane.xlu0 %8830
      %8832 = vadd.xlane.f32.xlu0 %v8806
      %v8833 = vpop.xlane.xlu0 %8832
      %8834 = vadd.xlane.f32.xlu0 %v8807
      %v8835 = vpop.xlane.xlu0 %8834
      %8836 = vadd.xlane.f32.xlu0 %v8808
      %v8837 = vpop.xlane.xlu0 %8836
      %8838 = vadd.xlane.f32.xlu0 %v8809
      %v8839 = vpop.xlane.xlu0 %8838
      %8840 = vadd.xlane.f32.xlu0 %v8810
      %v8841 = vpop.xlane.xlu0 %8840
      %8842 = vadd.xlane.f32.xlu0 %v8811
      %v8843 = vpop.xlane.xlu0 %8842
      %v8860 = vperm.slane %v8093, %v239
      %v8861 = vadd.s32 %v239, 4294967288
      %v8862 = vperm.slane %v8095, %v8861
      %vm8863 = vcmask 130112
      %v8864 = vsel %vm8863, %v8862, %v8860
      %v8865 = vadd.s32 %v239, 4294967280
      %v8866 = vperm.slane %v8097, %v8865
      %vm8867 = vcmask 195712
      %v8868 = vsel %vm8867, %v8866, %v8864
      %v8869 = vadd.s32 %v239, 4294967272
      %v8870 = vperm.slane %v8099, %v8869
      %vm8871 = vcmask 261312
      %v8872 = vsel %vm8871, %v8870, %v8868
      %v8873 = vadd.s32 %v239, 4294967264
      %v8874 = vperm.slane %v8101, %v8873
      %vm8875 = vcmask 326912
      %v8876 = vsel %vm8875, %v8874, %v8872
      %v8877 = vadd.s32 %v239, 4294967256
      %v8878 = vperm.slane %v8103, %v8877
      %vm8879 = vcmask 392512
      %v8880 = vsel %vm8879, %v8878, %v8876
      %v8881 = vadd.s32 %v239, 4294967248
      %v8882 = vperm.slane %v8105, %v8881
      %vm8883 = vcmask 458112
      %v8884 = vsel %vm8883, %v8882, %v8880
      %v8885 = vadd.s32 %v239, 4294967240
      %v8886 = vperm.slane %v8107, %v8885
      %vm8887 = vcmask 523712
      %v8888 = vsel %vm8887, %v8886, %v8884
      %v8889 = vadd.s32 %v239, 4294967232
      %v8890 = vperm.slane %v8109, %v8889
      %vm8891 = vcmask 589312
      %v8892 = vsel %vm8891, %v8890, %v8888
      %v8893 = vadd.s32 %v239, 4294967224
      %v8894 = vperm.slane %v8111, %v8893
      %vm8895 = vcmask 654912
      %v8896 = vsel %vm8895, %v8894, %v8892
      %v8897 = vadd.s32 %v239, 4294967216
      %v8898 = vperm.slane %v8113, %v8897
      %vm8899 = vcmask 720512
      %v8900 = vsel %vm8899, %v8898, %v8896
      %v8901 = vadd.s32 %v239, 4294967208
      %v8902 = vperm.slane %v8115, %v8901
      %vm8903 = vcmask 786112
      %v8904 = vsel %vm8903, %v8902, %v8900
      %v8905 = vadd.s32 %v239, 4294967200
      %v8906 = vperm.slane %v8117, %v8905
      %vm8907 = vcmask 851712
      %v8908 = vsel %vm8907, %v8906, %v8904
      %v8909 = vadd.s32 %v239, 4294967192
      %v8910 = vperm.slane %v8119, %v8909
      %vm8911 = vcmask 917312
      %v8912 = vsel %vm8911, %v8910, %v8908
      %v8913 = vadd.s32 %v239, 4294967184
      %v8914 = vperm.slane %v8121, %v8913
      %vm8915 = vcmask 982912
      %v8916 = vsel %vm8915, %v8914, %v8912
      %v8917 = vadd.s32 %v239, 4294967176
      %v8918 = vperm.slane %v8123, %v8917
      %vm8919 = vcmask 1048512
      %v8920 = vsel %vm8919, %v8918, %v8916
      %v8938 = vperm.slane %v8141, %v239
      %v8939 = vperm.slane %v8143, %v8861
      %v8940 = vsel %vm8863, %v8939, %v8938
      %v8941 = vperm.slane %v8145, %v8865
      %v8942 = vsel %vm8867, %v8941, %v8940
      %v8943 = vperm.slane %v8147, %v8869
      %v8944 = vsel %vm8871, %v8943, %v8942
      %v8945 = vperm.slane %v8149, %v8873
      %v8946 = vsel %vm8875, %v8945, %v8944
      %v8947 = vperm.slane %v8151, %v8877
      %v8948 = vsel %vm8879, %v8947, %v8946
      %v8949 = vperm.slane %v8153, %v8881
      %v8950 = vsel %vm8883, %v8949, %v8948
      %v8951 = vperm.slane %v8155, %v8885
      %v8952 = vsel %vm8887, %v8951, %v8950
      %v8953 = vperm.slane %v8157, %v8889
      %v8954 = vsel %vm8891, %v8953, %v8952
      %v8955 = vperm.slane %v8159, %v8893
      %v8956 = vsel %vm8895, %v8955, %v8954
      %v8957 = vperm.slane %v8161, %v8897
      %v8958 = vsel %vm8899, %v8957, %v8956
      %v8959 = vperm.slane %v8163, %v8901
      %v8960 = vsel %vm8903, %v8959, %v8958
      %v8961 = vperm.slane %v8165, %v8905
      %v8962 = vsel %vm8907, %v8961, %v8960
      %v8963 = vperm.slane %v8167, %v8909
      %v8964 = vsel %vm8911, %v8963, %v8962
      %v8965 = vperm.slane %v8169, %v8913
      %v8966 = vsel %vm8915, %v8965, %v8964
      %v8967 = vperm.slane %v8171, %v8917
      %v8968 = vsel %vm8919, %v8967, %v8966
      %v8986 = vperm.slane %v8189, %v239
      %v8987 = vperm.slane %v8191, %v8861
      %v8988 = vsel %vm8863, %v8987, %v8986
      %v8989 = vperm.slane %v8193, %v8865
      %v8990 = vsel %vm8867, %v8989, %v8988
      %v8991 = vperm.slane %v8195, %v8869
      %v8992 = vsel %vm8871, %v8991, %v8990
      %v8993 = vperm.slane %v8197, %v8873
      %v8994 = vsel %vm8875, %v8993, %v8992
      %v8995 = vperm.slane %v8199, %v8877
      %v8996 = vsel %vm8879, %v8995, %v8994
      %v8997 = vperm.slane %v8201, %v8881
      %v8998 = vsel %vm8883, %v8997, %v8996
      %v8999 = vperm.slane %v8203, %v8885
      %v9000 = vsel %vm8887, %v8999, %v8998
      %v9001 = vperm.slane %v8205, %v8889
      %v9002 = vsel %vm8891, %v9001, %v9000
      %v9003 = vperm.slane %v8207, %v8893
      %v9004 = vsel %vm8895, %v9003, %v9002
      %v9005 = vperm.slane %v8209, %v8897
      %v9006 = vsel %vm8899, %v9005, %v9004
      %v9007 = vperm.slane %v8211, %v8901
      %v9008 = vsel %vm8903, %v9007, %v9006
      %v9009 = vperm.slane %v8213, %v8905
      %v9010 = vsel %vm8907, %v9009, %v9008
      %v9011 = vperm.slane %v8215, %v8909
      %v9012 = vsel %vm8911, %v9011, %v9010
      %v9013 = vperm.slane %v8217, %v8913
      %v9014 = vsel %vm8915, %v9013, %v9012
      %v9015 = vperm.slane %v8219, %v8917
      %v9016 = vsel %vm8919, %v9015, %v9014
      %v9034 = vperm.slane %v8237, %v239
      %v9035 = vperm.slane %v8239, %v8861
      %v9036 = vsel %vm8863, %v9035, %v9034
      %v9037 = vperm.slane %v8241, %v8865
      %v9038 = vsel %vm8867, %v9037, %v9036
      %v9039 = vperm.slane %v8243, %v8869
      %v9040 = vsel %vm8871, %v9039, %v9038
      %v9041 = vperm.slane %v8245, %v8873
      %v9042 = vsel %vm8875, %v9041, %v9040
      %v9043 = vperm.slane %v8247, %v8877
      %v9044 = vsel %vm8879, %v9043, %v9042
      %v9045 = vperm.slane %v8249, %v8881
      %v9046 = vsel %vm8883, %v9045, %v9044
      %v9047 = vperm.slane %v8251, %v8885
      %v9048 = vsel %vm8887, %v9047, %v9046
      %v9049 = vperm.slane %v8253, %v8889
      %v9050 = vsel %vm8891, %v9049, %v9048
      %v9051 = vperm.slane %v8255, %v8893
      %v9052 = vsel %vm8895, %v9051, %v9050
      %v9053 = vperm.slane %v8257, %v8897
      %v9054 = vsel %vm8899, %v9053, %v9052
      %v9055 = vperm.slane %v8259, %v8901
      %v9056 = vsel %vm8903, %v9055, %v9054
      %v9057 = vperm.slane %v8261, %v8905
      %v9058 = vsel %vm8907, %v9057, %v9056
      %v9059 = vperm.slane %v8263, %v8909
      %v9060 = vsel %vm8911, %v9059, %v9058
      %v9061 = vperm.slane %v8265, %v8913
      %v9062 = vsel %vm8915, %v9061, %v9060
      %v9063 = vperm.slane %v8267, %v8917
      %v9064 = vsel %vm8919, %v9063, %v9062
      %v9082 = vperm.slane %v8285, %v239
      %v9083 = vperm.slane %v8287, %v8861
      %v9084 = vsel %vm8863, %v9083, %v9082
      %v9085 = vperm.slane %v8289, %v8865
      %v9086 = vsel %vm8867, %v9085, %v9084
      %v9087 = vperm.slane %v8291, %v8869
      %v9088 = vsel %vm8871, %v9087, %v9086
      %v9089 = vperm.slane %v8293, %v8873
      %v9090 = vsel %vm8875, %v9089, %v9088
      %v9091 = vperm.slane %v8295, %v8877
      %v9092 = vsel %vm8879, %v9091, %v9090
      %v9093 = vperm.slane %v8297, %v8881
      %v9094 = vsel %vm8883, %v9093, %v9092
      %v9095 = vperm.slane %v8299, %v8885
      %v9096 = vsel %vm8887, %v9095, %v9094
      %v9097 = vperm.slane %v8301, %v8889
      %v9098 = vsel %vm8891, %v9097, %v9096
      %v9099 = vperm.slane %v8303, %v8893
      %v9100 = vsel %vm8895, %v9099, %v9098
      %v9101 = vperm.slane %v8305, %v8897
      %v9102 = vsel %vm8899, %v9101, %v9100
      %v9103 = vperm.slane %v8307, %v8901
      %v9104 = vsel %vm8903, %v9103, %v9102
      %v9105 = vperm.slane %v8309, %v8905
      %v9106 = vsel %vm8907, %v9105, %v9104
      %v9107 = vperm.slane %v8311, %v8909
      %v9108 = vsel %vm8911, %v9107, %v9106
      %v9109 = vperm.slane %v8313, %v8913
      %v9110 = vsel %vm8915, %v9109, %v9108
      %v9111 = vperm.slane %v8315, %v8917
      %v9112 = vsel %vm8919, %v9111, %v9110
      %v9130 = vperm.slane %v8333, %v239
      %v9131 = vperm.slane %v8335, %v8861
      %v9132 = vsel %vm8863, %v9131, %v9130
      %v9133 = vperm.slane %v8337, %v8865
      %v9134 = vsel %vm8867, %v9133, %v9132
      %v9135 = vperm.slane %v8339, %v8869
      %v9136 = vsel %vm8871, %v9135, %v9134
      %v9137 = vperm.slane %v8341, %v8873
      %v9138 = vsel %vm8875, %v9137, %v9136
      %v9139 = vperm.slane %v8343, %v8877
      %v9140 = vsel %vm8879, %v9139, %v9138
      %v9141 = vperm.slane %v8345, %v8881
      %v9142 = vsel %vm8883, %v9141, %v9140
      %v9143 = vperm.slane %v8347, %v8885
      %v9144 = vsel %vm8887, %v9143, %v9142
      %v9145 = vperm.slane %v8349, %v8889
      %v9146 = vsel %vm8891, %v9145, %v9144
      %v9147 = vperm.slane %v8351, %v8893
      %v9148 = vsel %vm8895, %v9147, %v9146
      %v9149 = vperm.slane %v8353, %v8897
      %v9150 = vsel %vm8899, %v9149, %v9148
      %v9151 = vperm.slane %v8355, %v8901
      %v9152 = vsel %vm8903, %v9151, %v9150
      %v9153 = vperm.slane %v8357, %v8905
      %v9154 = vsel %vm8907, %v9153, %v9152
      %v9155 = vperm.slane %v8359, %v8909
      %v9156 = vsel %vm8911, %v9155, %v9154
      %v9157 = vperm.slane %v8361, %v8913
      %v9158 = vsel %vm8915, %v9157, %v9156
      %v9159 = vperm.slane %v8363, %v8917
      %v9160 = vsel %vm8919, %v9159, %v9158
      %v9178 = vperm.slane %v8381, %v239
      %v9179 = vperm.slane %v8383, %v8861
      %v9180 = vsel %vm8863, %v9179, %v9178
      %v9181 = vperm.slane %v8385, %v8865
      %v9182 = vsel %vm8867, %v9181, %v9180
      %v9183 = vperm.slane %v8387, %v8869
      %v9184 = vsel %vm8871, %v9183, %v9182
      %v9185 = vperm.slane %v8389, %v8873
      %v9186 = vsel %vm8875, %v9185, %v9184
      %v9187 = vperm.slane %v8391, %v8877
      %v9188 = vsel %vm8879, %v9187, %v9186
      %v9189 = vperm.slane %v8393, %v8881
      %v9190 = vsel %vm8883, %v9189, %v9188
      %v9191 = vperm.slane %v8395, %v8885
      %v9192 = vsel %vm8887, %v9191, %v9190
      %v9193 = vperm.slane %v8397, %v8889
      %v9194 = vsel %vm8891, %v9193, %v9192
      %v9195 = vperm.slane %v8399, %v8893
      %v9196 = vsel %vm8895, %v9195, %v9194
      %v9197 = vperm.slane %v8401, %v8897
      %v9198 = vsel %vm8899, %v9197, %v9196
      %v9199 = vperm.slane %v8403, %v8901
      %v9200 = vsel %vm8903, %v9199, %v9198
      %v9201 = vperm.slane %v8405, %v8905
      %v9202 = vsel %vm8907, %v9201, %v9200
      %v9203 = vperm.slane %v8407, %v8909
      %v9204 = vsel %vm8911, %v9203, %v9202
      %v9205 = vperm.slane %v8409, %v8913
      %v9206 = vsel %vm8915, %v9205, %v9204
      %v9207 = vperm.slane %v8411, %v8917
      %v9208 = vsel %vm8919, %v9207, %v9206
      %v9226 = vperm.slane %v8429, %v239
      %v9227 = vperm.slane %v8431, %v8861
      %v9228 = vsel %vm8863, %v9227, %v9226
      %v9229 = vperm.slane %v8433, %v8865
      %v9230 = vsel %vm8867, %v9229, %v9228
      %v9231 = vperm.slane %v8435, %v8869
      %v9232 = vsel %vm8871, %v9231, %v9230
      %v9233 = vperm.slane %v8437, %v8873
      %v9234 = vsel %vm8875, %v9233, %v9232
      %v9235 = vperm.slane %v8439, %v8877
      %v9236 = vsel %vm8879, %v9235, %v9234
      %v9237 = vperm.slane %v8441, %v8881
      %v9238 = vsel %vm8883, %v9237, %v9236
      %v9239 = vperm.slane %v8443, %v8885
      %v9240 = vsel %vm8887, %v9239, %v9238
      %v9241 = vperm.slane %v8445, %v8889
      %v9242 = vsel %vm8891, %v9241, %v9240
      %v9243 = vperm.slane %v8447, %v8893
      %v9244 = vsel %vm8895, %v9243, %v9242
      %v9245 = vperm.slane %v8449, %v8897
      %v9246 = vsel %vm8899, %v9245, %v9244
      %v9247 = vperm.slane %v8451, %v8901
      %v9248 = vsel %vm8903, %v9247, %v9246
      %v9249 = vperm.slane %v8453, %v8905
      %v9250 = vsel %vm8907, %v9249, %v9248
      %v9251 = vperm.slane %v8455, %v8909
      %v9252 = vsel %vm8911, %v9251, %v9250
      %v9253 = vperm.slane %v8457, %v8913
      %v9254 = vsel %vm8915, %v9253, %v9252
      %v9255 = vperm.slane %v8459, %v8917
      %v9256 = vsel %vm8919, %v9255, %v9254
      %v9274 = vperm.slane %v8477, %v239
      %v9275 = vperm.slane %v8479, %v8861
      %v9276 = vsel %vm8863, %v9275, %v9274
      %v9277 = vperm.slane %v8481, %v8865
      %v9278 = vsel %vm8867, %v9277, %v9276
      %v9279 = vperm.slane %v8483, %v8869
      %v9280 = vsel %vm8871, %v9279, %v9278
      %v9281 = vperm.slane %v8485, %v8873
      %v9282 = vsel %vm8875, %v9281, %v9280
      %v9283 = vperm.slane %v8487, %v8877
      %v9284 = vsel %vm8879, %v9283, %v9282
      %v9285 = vperm.slane %v8489, %v8881
      %v9286 = vsel %vm8883, %v9285, %v9284
      %v9287 = vperm.slane %v8491, %v8885
      %v9288 = vsel %vm8887, %v9287, %v9286
      %v9289 = vperm.slane %v8493, %v8889
      %v9290 = vsel %vm8891, %v9289, %v9288
      %v9291 = vperm.slane %v8495, %v8893
      %v9292 = vsel %vm8895, %v9291, %v9290
      %v9293 = vperm.slane %v8497, %v8897
      %v9294 = vsel %vm8899, %v9293, %v9292
      %v9295 = vperm.slane %v8499, %v8901
      %v9296 = vsel %vm8903, %v9295, %v9294
      %v9297 = vperm.slane %v8501, %v8905
      %v9298 = vsel %vm8907, %v9297, %v9296
      %v9299 = vperm.slane %v8503, %v8909
      %v9300 = vsel %vm8911, %v9299, %v9298
      %v9301 = vperm.slane %v8505, %v8913
      %v9302 = vsel %vm8915, %v9301, %v9300
      %v9303 = vperm.slane %v8507, %v8917
      %v9304 = vsel %vm8919, %v9303, %v9302
      %v9322 = vperm.slane %v8525, %v239
      %v9323 = vperm.slane %v8527, %v8861
      %v9324 = vsel %vm8863, %v9323, %v9322
      %v9325 = vperm.slane %v8529, %v8865
      %v9326 = vsel %vm8867, %v9325, %v9324
      %v9327 = vperm.slane %v8531, %v8869
      %v9328 = vsel %vm8871, %v9327, %v9326
      %v9329 = vperm.slane %v8533, %v8873
      %v9330 = vsel %vm8875, %v9329, %v9328
      %v9331 = vperm.slane %v8535, %v8877
      %v9332 = vsel %vm8879, %v9331, %v9330
      %v9333 = vperm.slane %v8537, %v8881
      %v9334 = vsel %vm8883, %v9333, %v9332
      %v9335 = vperm.slane %v8539, %v8885
      %v9336 = vsel %vm8887, %v9335, %v9334
      %v9337 = vperm.slane %v8541, %v8889
      %v9338 = vsel %vm8891, %v9337, %v9336
      %v9339 = vperm.slane %v8543, %v8893
      %v9340 = vsel %vm8895, %v9339, %v9338
      %v9341 = vperm.slane %v8545, %v8897
      %v9342 = vsel %vm8899, %v9341, %v9340
      %v9343 = vperm.slane %v8547, %v8901
      %v9344 = vsel %vm8903, %v9343, %v9342
      %v9345 = vperm.slane %v8549, %v8905
      %v9346 = vsel %vm8907, %v9345, %v9344
      %v9347 = vperm.slane %v8551, %v8909
      %v9348 = vsel %vm8911, %v9347, %v9346
      %v9349 = vperm.slane %v8553, %v8913
      %v9350 = vsel %vm8915, %v9349, %v9348
      %v9351 = vperm.slane %v8555, %v8917
      %v9352 = vsel %vm8919, %v9351, %v9350
      %v9370 = vperm.slane %v8573, %v239
      %v9371 = vperm.slane %v8575, %v8861
      %v9372 = vsel %vm8863, %v9371, %v9370
      %v9373 = vperm.slane %v8577, %v8865
      %v9374 = vsel %vm8867, %v9373, %v9372
      %v9375 = vperm.slane %v8579, %v8869
      %v9376 = vsel %vm8871, %v9375, %v9374
      %v9377 = vperm.slane %v8581, %v8873
      %v9378 = vsel %vm8875, %v9377, %v9376
      %v9379 = vperm.slane %v8583, %v8877
      %v9380 = vsel %vm8879, %v9379, %v9378
      %v9381 = vperm.slane %v8585, %v8881
      %v9382 = vsel %vm8883, %v9381, %v9380
      %v9383 = vperm.slane %v8587, %v8885
      %v9384 = vsel %vm8887, %v9383, %v9382
      %v9385 = vperm.slane %v8589, %v8889
      %v9386 = vsel %vm8891, %v9385, %v9384
      %v9387 = vperm.slane %v8591, %v8893
      %v9388 = vsel %vm8895, %v9387, %v9386
      %v9389 = vperm.slane %v8593, %v8897
      %v9390 = vsel %vm8899, %v9389, %v9388
      %v9391 = vperm.slane %v8595, %v8901
      %v9392 = vsel %vm8903, %v9391, %v9390
      %v9393 = vperm.slane %v8597, %v8905
      %v9394 = vsel %vm8907, %v9393, %v9392
      %v9395 = vperm.slane %v8599, %v8909
      %v9396 = vsel %vm8911, %v9395, %v9394
      %v9397 = vperm.slane %v8601, %v8913
      %v9398 = vsel %vm8915, %v9397, %v9396
      %v9399 = vperm.slane %v8603, %v8917
      %v9400 = vsel %vm8919, %v9399, %v9398
      %v9418 = vperm.slane %v8621, %v239
      %v9419 = vperm.slane %v8623, %v8861
      %v9420 = vsel %vm8863, %v9419, %v9418
      %v9421 = vperm.slane %v8625, %v8865
      %v9422 = vsel %vm8867, %v9421, %v9420
      %v9423 = vperm.slane %v8627, %v8869
      %v9424 = vsel %vm8871, %v9423, %v9422
      %v9425 = vperm.slane %v8629, %v8873
      %v9426 = vsel %vm8875, %v9425, %v9424
      %v9427 = vperm.slane %v8631, %v8877
      %v9428 = vsel %vm8879, %v9427, %v9426
      %v9429 = vperm.slane %v8633, %v8881
      %v9430 = vsel %vm8883, %v9429, %v9428
      %v9431 = vperm.slane %v8635, %v8885
      %v9432 = vsel %vm8887, %v9431, %v9430
      %v9433 = vperm.slane %v8637, %v8889
      %v9434 = vsel %vm8891, %v9433, %v9432
      %v9435 = vperm.slane %v8639, %v8893
      %v9436 = vsel %vm8895, %v9435, %v9434
      %v9437 = vperm.slane %v8641, %v8897
      %v9438 = vsel %vm8899, %v9437, %v9436
      %v9439 = vperm.slane %v8643, %v8901
      %v9440 = vsel %vm8903, %v9439, %v9438
      %v9441 = vperm.slane %v8645, %v8905
      %v9442 = vsel %vm8907, %v9441, %v9440
      %v9443 = vperm.slane %v8647, %v8909
      %v9444 = vsel %vm8911, %v9443, %v9442
      %v9445 = vperm.slane %v8649, %v8913
      %v9446 = vsel %vm8915, %v9445, %v9444
      %v9447 = vperm.slane %v8651, %v8917
      %v9448 = vsel %vm8919, %v9447, %v9446
      %v9466 = vperm.slane %v8669, %v239
      %v9467 = vperm.slane %v8671, %v8861
      %v9468 = vsel %vm8863, %v9467, %v9466
      %v9469 = vperm.slane %v8673, %v8865
      %v9470 = vsel %vm8867, %v9469, %v9468
      %v9471 = vperm.slane %v8675, %v8869
      %v9472 = vsel %vm8871, %v9471, %v9470
      %v9473 = vperm.slane %v8677, %v8873
      %v9474 = vsel %vm8875, %v9473, %v9472
      %v9475 = vperm.slane %v8679, %v8877
      %v9476 = vsel %vm8879, %v9475, %v9474
      %v9477 = vperm.slane %v8681, %v8881
      %v9478 = vsel %vm8883, %v9477, %v9476
      %v9479 = vperm.slane %v8683, %v8885
      %v9480 = vsel %vm8887, %v9479, %v9478
      %v9481 = vperm.slane %v8685, %v8889
      %v9482 = vsel %vm8891, %v9481, %v9480
      %v9483 = vperm.slane %v8687, %v8893
      %v9484 = vsel %vm8895, %v9483, %v9482
      %v9485 = vperm.slane %v8689, %v8897
      %v9486 = vsel %vm8899, %v9485, %v9484
      %v9487 = vperm.slane %v8691, %v8901
      %v9488 = vsel %vm8903, %v9487, %v9486
      %v9489 = vperm.slane %v8693, %v8905
      %v9490 = vsel %vm8907, %v9489, %v9488
      %v9491 = vperm.slane %v8695, %v8909
      %v9492 = vsel %vm8911, %v9491, %v9490
      %v9493 = vperm.slane %v8697, %v8913
      %v9494 = vsel %vm8915, %v9493, %v9492
      %v9495 = vperm.slane %v8699, %v8917
      %v9496 = vsel %vm8919, %v9495, %v9494
      %v9514 = vperm.slane %v8717, %v239
      %v9515 = vperm.slane %v8719, %v8861
      %v9516 = vsel %vm8863, %v9515, %v9514
      %v9517 = vperm.slane %v8721, %v8865
      %v9518 = vsel %vm8867, %v9517, %v9516
      %v9519 = vperm.slane %v8723, %v8869
      %v9520 = vsel %vm8871, %v9519, %v9518
      %v9521 = vperm.slane %v8725, %v8873
      %v9522 = vsel %vm8875, %v9521, %v9520
      %v9523 = vperm.slane %v8727, %v8877
      %v9524 = vsel %vm8879, %v9523, %v9522
      %v9525 = vperm.slane %v8729, %v8881
      %v9526 = vsel %vm8883, %v9525, %v9524
      %v9527 = vperm.slane %v8731, %v8885
      %v9528 = vsel %vm8887, %v9527, %v9526
      %v9529 = vperm.slane %v8733, %v8889
      %v9530 = vsel %vm8891, %v9529, %v9528
      %v9531 = vperm.slane %v8735, %v8893
      %v9532 = vsel %vm8895, %v9531, %v9530
      %v9533 = vperm.slane %v8737, %v8897
      %v9534 = vsel %vm8899, %v9533, %v9532
      %v9535 = vperm.slane %v8739, %v8901
      %v9536 = vsel %vm8903, %v9535, %v9534
      %v9537 = vperm.slane %v8741, %v8905
      %v9538 = vsel %vm8907, %v9537, %v9536
      %v9539 = vperm.slane %v8743, %v8909
      %v9540 = vsel %vm8911, %v9539, %v9538
      %v9541 = vperm.slane %v8745, %v8913
      %v9542 = vsel %vm8915, %v9541, %v9540
      %v9543 = vperm.slane %v8747, %v8917
      %v9544 = vsel %vm8919, %v9543, %v9542
      %v9562 = vperm.slane %v8765, %v239
      %v9563 = vperm.slane %v8767, %v8861
      %v9564 = vsel %vm8863, %v9563, %v9562
      %v9565 = vperm.slane %v8769, %v8865
      %v9566 = vsel %vm8867, %v9565, %v9564
      %v9567 = vperm.slane %v8771, %v8869
      %v9568 = vsel %vm8871, %v9567, %v9566
      %v9569 = vperm.slane %v8773, %v8873
      %v9570 = vsel %vm8875, %v9569, %v9568
      %v9571 = vperm.slane %v8775, %v8877
      %v9572 = vsel %vm8879, %v9571, %v9570
      %v9573 = vperm.slane %v8777, %v8881
      %v9574 = vsel %vm8883, %v9573, %v9572
      %v9575 = vperm.slane %v8779, %v8885
      %v9576 = vsel %vm8887, %v9575, %v9574
      %v9577 = vperm.slane %v8781, %v8889
      %v9578 = vsel %vm8891, %v9577, %v9576
      %v9579 = vperm.slane %v8783, %v8893
      %v9580 = vsel %vm8895, %v9579, %v9578
      %v9581 = vperm.slane %v8785, %v8897
      %v9582 = vsel %vm8899, %v9581, %v9580
      %v9583 = vperm.slane %v8787, %v8901
      %v9584 = vsel %vm8903, %v9583, %v9582
      %v9585 = vperm.slane %v8789, %v8905
      %v9586 = vsel %vm8907, %v9585, %v9584
      %v9587 = vperm.slane %v8791, %v8909
      %v9588 = vsel %vm8911, %v9587, %v9586
      %v9589 = vperm.slane %v8793, %v8913
      %v9590 = vsel %vm8915, %v9589, %v9588
      %v9591 = vperm.slane %v8795, %v8917
      %v9592 = vsel %vm8919, %v9591, %v9590
      %v9610 = vperm.slane %v8813, %v239
      %v9611 = vperm.slane %v8815, %v8861
      %v9612 = vsel %vm8863, %v9611, %v9610
      %v9613 = vperm.slane %v8817, %v8865
      %v9614 = vsel %vm8867, %v9613, %v9612
      %v9615 = vperm.slane %v8819, %v8869
      %v9616 = vsel %vm8871, %v9615, %v9614
      %v9617 = vperm.slane %v8821, %v8873
      %v9618 = vsel %vm8875, %v9617, %v9616
      %v9619 = vperm.slane %v8823, %v8877
      %v9620 = vsel %vm8879, %v9619, %v9618
      %v9621 = vperm.slane %v8825, %v8881
      %v9622 = vsel %vm8883, %v9621, %v9620
      %v9623 = vperm.slane %v8827, %v8885
      %v9624 = vsel %vm8887, %v9623, %v9622
      %v9625 = vperm.slane %v8829, %v8889
      %v9626 = vsel %vm8891, %v9625, %v9624
      %v9627 = vperm.slane %v8831, %v8893
      %v9628 = vsel %vm8895, %v9627, %v9626
      %v9629 = vperm.slane %v8833, %v8897
      %v9630 = vsel %vm8899, %v9629, %v9628
      %v9631 = vperm.slane %v8835, %v8901
      %v9632 = vsel %vm8903, %v9631, %v9630
      %v9633 = vperm.slane %v8837, %v8905
      %v9634 = vsel %vm8907, %v9633, %v9632
      %v9635 = vperm.slane %v8839, %v8909
      %v9636 = vsel %vm8911, %v9635, %v9634
      %v9637 = vperm.slane %v8841, %v8913
      %v9638 = vsel %vm8915, %v9637, %v9636
      %v9639 = vperm.slane %v8843, %v8917
      %v9640 = vsel %vm8919, %v9639, %v9638
      %vm9642 = vcmask 1040384
      %v9643 = vsel %vm9642, %v8920, %v8968
      %vm9644 = vcmask 1041408
      %v9645 = vsel %vm9644, %v9643, %v9016
      %vm9646 = vcmask 1042432
      %v9647 = vsel %vm9646, %v9645, %v9064
      %vm9648 = vcmask 1043456
      %v9649 = vsel %vm9648, %v9647, %v9112
      %vm9650 = vcmask 1044480
      %v9651 = vsel %vm9650, %v9649, %v9160
      %vm9652 = vcmask 1045504
      %v9653 = vsel %vm9652, %v9651, %v9208
      %vm9654 = vcmask 1046528
      %v9655 = vsel %vm9654, %v9653, %v9256
      %v9656 = vsel %vm9642, %v9304, %v9352
      %v9657 = vsel %vm9644, %v9656, %v9400
      %v9658 = vsel %vm9646, %v9657, %v9448
      %v9659 = vsel %vm9648, %v9658, %v9496
      %v9660 = vsel %vm9650, %v9659, %v9544
      %v9661 = vsel %vm9652, %v9660, %v9592
      %v9662 = vsel %vm9654, %v9661, %v9640
      %v9663 = vmul.f32 %v9655, 0.00390625
      %v9664 = vmul.f32 %v9662, 0.00390625
      %9665 = vst [vmem:[%s170] sm:$0xff] %v9663
      %9666 = vst [vmem:[%s170 + $0x8] sm:$0xff] %v9664
      %s9667 = smul.u32 2, %s14
      %p9668 = scmp.lt.s32.totalorder %s9667, 3
      %s9669 = scalar_select %p9668, %s9667, 3
      %s9670 = smul.addr %s9669, 8
      %s9671 = scalar_lea.vmem %s3, %s9670
      // Predicated region
      $region33: #{meta_baseline_forward.2} parent=31 // pred_check
        %p9672 = pneg %p100
      $region34: #{meta_baseline_forward.2} parent=31 // pred_check_branch
        %9674 = sbr.rel (%p9672) target = $region36
      $region35: #{meta_baseline_forward.2} parent=31 // pred_region
        %s9675 = smul.u32 2, %s14
      $region36: #{meta_baseline_forward.2} parent=31 // pred_fallthru
        _
    $region32: #{meta_baseline_forward.2} parent=5 // pred_fallthru
      _
    %p9676 = scmp.le.s32.totalorder 2, %s9
    // Predicated region
    $region37: #{meta_baseline_forward.2} parent=5 // pred_check
      %p9677 = pneg %p9676
    $region38: #{meta_baseline_forward.2} parent=5 // pred_check_branch
      %9679 = sbr.rel (%p9677) target = $region40
    $region39: #{meta_baseline_forward.2} parent=5 // pred_region
      %s9680 = ssub.s32 %s9, 2
      // Predicated region
      $region41: #{meta_baseline_forward.2} parent=39 // pred_check
        %p9681 = pneg %p106
      $region42: #{meta_baseline_forward.2} parent=39 // pred_check_branch
        %9683 = sbr.rel (%p9681) target = $region44
      $region43: #{meta_baseline_forward.2} parent=39 // pred_region
        %s9684 = smul.u32 2, %s15
        %p9685 = scmp.lt.s32.totalorder %s9684, 3
        %s9686 = scalar_select %p9685, %s9684, 3
        %s9687 = smul.addr %s9686, 8
        %s9688 = scalar_lea.vmem %s3, %s9687
      $region44: #{meta_baseline_forward.2} parent=39 // pred_fallthru
        _
    $region40: #{meta_baseline_forward.2} parent=5 // pred_fallthru
      _
  $region6: #{meta_baseline_forward.2} parent=0 // loop_footer
    %s13 = sadd.s32 1, %s9
  $region7: #{meta_baseline_forward.2} parent=0 // loop_footer_branch
    %8 = sbr.rel target = $region3
  $region8: #{meta_baseline_forward.2} parent=0 // loop_exit
    _

</llo_original>
